<compile_context>
chip_gen: v7x
topology: tpu7x:2x2x1
jax: 0.10.0
libtpu: 0.0.40
codegen_flags: <defaults>
</compile_context>

<pallas_src>
import functools

import numpy as np
import jax
import jax.numpy as jnp
from jax import lax
from jax.experimental import pallas as pl
from jax.experimental.pallas import tpu as pltpu

# ---------------- problem configuration ----------------
X_SIZE = 16
Y_SIZE = 16
STACK = 4            # input channels
C1 = 16
C2 = 32
ACTIONS = 4
HID = 100            # torch hidden width
HIDP = 128           # padded (lane-dense) hidden width
OUTP = 8             # padded second-layer output: [adv(4), value(1), pad(3)]
KS = 3

H1 = X_SIZE - (KS - 1)          # 14
W1 = Y_SIZE - (KS - 1)          # 14
H2 = H1 - (KS - 1)              # 12
W2 = W1 - (KS - 1)              # 12
IMG_SIZE = C2 * H2 * W2         # 4608
SLICE = IMG_SIZE // 2           # 2304

# flat (width-major, row stride W) bookkeeping for the shift/im2col trick
W = Y_SIZE                      # 16
NZ = H2 * W                     # 192 conv2 flat rows computed (valid cols j < W2)
NY = 232                        # conv1 flat rows computed per element
NXP = 272                       # padded input flat rows per element
OFFS = tuple(dy * W + dx for dy in range(KS) for dx in range(KS))
EPS = 1e-5

# Invariants that make the garbage (wrap-around) columns harmless: every conv1
# value consumed by a *valid* conv2 output is itself valid, and all shifted
# windows stay inside each element's NY-row band.
assert NZ >= (H2 - 1) * W + W2
assert NY >= NZ + (KS - 1) * W + (KS - 1) and NY % 8 == 0
assert NXP >= NY + (KS - 1) * W + (KS - 1) and NXP % 8 == 0


# ---------------- Pallas kernels ----------------
def _conv_kernel(blk, m2, xc_ref, w1_ref, b1_ref, w2_ref, b2_ref, z_ref,
                 y_scr, col_scr):
    # xc_ref : (blk*NY, 36)   bf16  conv1 im2col rows (batch stacked, stride NY)
    # w1_ref : (36, C1) bf16  b1_ref: (1, C1) f32   (BN folded)
    # w2_ref : (144, C2) bf16 b2_ref: (1, C2) f32
    # z_ref  : (blk, NZ, C2)  bf16  conv2 output, width-major flat rows
    # y_scr  : (blk*NY, C1)   f32   conv1 output scratch
    # col_scr: (m2, 144)      f32   conv2 im2col scratch
    a1 = jnp.dot(xc_ref[...], w1_ref[...], preferred_element_type=jnp.float32)
    y_scr[...] = jnp.maximum(a1 + b1_ref[...], 0.0)

    # conv2 im2col: place the 9 shifted row-windows of y side by side (K=144).
    for idx in range(KS * KS):
        off = (idx // KS) * W + (idx % KS)
        col_scr[:, idx * C1:(idx + 1) * C1] = y_scr[off:off + m2, :]

    a2 = jnp.dot(col_scr[...].astype(jnp.bfloat16), w2_ref[...],
                 preferred_element_type=jnp.float32)
    z = jnp.maximum(a2 + b2_ref[...], 0.0)
    for e in range(blk):                       # per-element valid row bands
        z_ref[e] = z[e * NY:e * NY + NZ, :].astype(z_ref.dtype)


def _head_kernel(f_ref, w1_ref, b1_ref, w2_ref, b2_ref, q_ref):
    # f_ref : (blk, NZ*C2) bf16  -- free reshape of the conv kernel output
    # w1_ref: (NZ*C2, 2*HIDP) bf16  rows permuted to width-major order; zero
    #         rows absorb the W2->W garbage columns and the x1/x2 channel split
    # w2_ref: (2*HIDP, OUTP) f32 -- cols [0:4)=advantage, col 4 = state value
    h = jnp.dot(f_ref[...], w1_ref[...], preferred_element_type=jnp.float32)
    h = jnp.maximum(h + b1_ref[...], 0.0)
    o = jnp.dot(h, w2_ref[...], preferred_element_type=jnp.float32) + b2_ref[...]
    adv = o[:, 0:ACTIONS]
    sv = o[:, ACTIONS:ACTIONS + 1]
    q_ref[...] = sv + (adv - jnp.mean(adv, axis=1, keepdims=True))


# ---------------- pallas_call wrappers ----------------
def conv_stage(cols, p, Bp, blk):
    m2 = blk * NY - (NY - NZ)
    kernel = functools.partial(_conv_kernel, blk, m2)
    return pl.pallas_call(
        kernel,
        out_shape=jax.ShapeDtypeStruct((Bp, NZ, C2), jnp.bfloat16),
        grid_spec=pltpu.PrefetchScalarGridSpec(
            num_scalar_prefetch=0,
            grid=(Bp // blk,),
            in_specs=[
                pl.BlockSpec((blk * NY, KS * KS * STACK), lambda i: (i, 0)),
                pl.BlockSpec((KS * KS * STACK, C1), lambda i: (0, 0)),
                pl.BlockSpec((1, C1), lambda i: (0, 0)),
                pl.BlockSpec((KS * KS * C1, C2), lambda i: (0, 0)),
                pl.BlockSpec((1, C2), lambda i: (0, 0)),
            ],
            out_specs=pl.BlockSpec((blk, NZ, C2), lambda i: (i, 0, 0)),
            scratch_shapes=[pltpu.VMEM((blk * NY, C1), jnp.float32),
                            pltpu.VMEM((m2, KS * KS * C1), jnp.float32)],
        ),
        compiler_params=pltpu.CompilerParams(
            dimension_semantics=("parallel",)),
    )(cols, p["w1"], p["b1"], p["w2"], p["b2"])


def duel_head(feat, p, Bp, blk):
    return pl.pallas_call(
        _head_kernel,
        out_shape=jax.ShapeDtypeStruct((Bp, ACTIONS), jnp.float32),
        grid_spec=pltpu.PrefetchScalarGridSpec(
            num_scalar_prefetch=0,
            grid=(Bp // blk,),
            in_specs=[
                pl.BlockSpec((blk, NZ * C2), lambda i: (i, 0)),
                pl.BlockSpec((NZ * C2, 2 * HIDP), lambda i: (0, 0)),
                pl.BlockSpec((1, 2 * HIDP), lambda i: (0, 0)),
                pl.BlockSpec((2 * HIDP, OUTP), lambda i: (0, 0)),
                pl.BlockSpec((1, OUTP), lambda i: (0, 0)),
            ],
            out_specs=pl.BlockSpec((blk, ACTIONS), lambda i: (i, 0)),
        ),
        compiler_params=pltpu.CompilerParams(
            dimension_semantics=("parallel",)),
    )(feat, p["w1h"], p["b1h"], p["w2h"], p["b2h"])


def forward(x_nchw, p):
    """Pallas implementation of DuelNetworkConfigurable_2.forward (x is NCHW)."""
    B = x_nchw.shape[0]
    blk = min(8, B)
    Bp = ((B + blk - 1) // blk) * blk
    x = x_nchw.astype(jnp.float32)
    if Bp != B:
        x = jnp.pad(x, ((0, Bp - B), (0, 0), (0, 0), (0, 0)))

    # NCHW -> NHWC -> width-major flat rows; pad rows and build conv1 im2col
    # (tiny, fuses with the unavoidable layout conversion in XLA).
    xf = jnp.transpose(x, (0, 2, 3, 1)).reshape(Bp, X_SIZE * Y_SIZE, STACK)
    xf = jnp.pad(xf, ((0, 0), (0, NXP - X_SIZE * Y_SIZE), (0, 0)))
    cols = jnp.concatenate([xf[:, off:off + NY, :] for off in OFFS], axis=-1)
    cols = cols.reshape(Bp * NY, KS * KS * STACK).astype(jnp.bfloat16)

    z = conv_stage(cols, p, Bp, blk)          # (Bp, NZ, C2) bf16
    feat = z.reshape(Bp, NZ * C2)             # contiguous -> free reshape
    q = duel_head(feat, p, Bp, blk)           # (Bp, ACTIONS) f32
    return q[:B]


# ---------------- deterministic parameters ----------------
def init_params(key):
    """Logical (reference-layout) f32 parameters, BN folded in eval mode."""
    ks = jax.random.split(key, 10)
    w1 = jax.random.normal(ks[0], (KS, KS, STACK, C1), jnp.float32) * 0.1
    w2 = jax.random.normal(ks[1], (KS, KS, C1, C2), jnp.float32) * 0.1

    def bn(c, i):
        g = 1.0 + 0.05 * jnp.arange(c, dtype=jnp.float32)
        b = 0.01 * jnp.arange(c, dtype=jnp.float32) - 0.02 * i
        mu = 0.02 * jnp.arange(c, dtype=jnp.float32)
        var = 1.0 + 0.03 * jnp.arange(c, dtype=jnp.float32)
        s = g / jnp.sqrt(var + EPS)
        return s, b - mu * s

    s1, b1 = bn(C1, 1)
    s2, b2 = bn(C2, 2)
    return dict(
        w1f33=w1 * s1, b1=b1, w2f33=w2 * s2, b2=b2,
        wv1=jax.random.normal(ks[2], (SLICE, HID), jnp.float32) * 0.02,
        bv1=jax.random.normal(ks[3], (HID,), jnp.float32) * 0.02,
        wv2=jax.random.normal(ks[4], (HID, 1), jnp.float32) * 0.05,
        bv2=jax.random.normal(ks[5], (1,), jnp.float32) * 0.05,
        wa1=jax.random.normal(ks[6], (SLICE, HID), jnp.float32) * 0.02,
        ba1=jax.random.normal(ks[7], (HID,), jnp.float32) * 0.02,
        wa2=jax.random.normal(ks[8], (HID, ACTIONS), jnp.float32) * 0.05,
        ba2=jax.random.normal(ks[9], (ACTIONS,), jnp.float32) * 0.05,
    )


def pack_params(lp):
    """One-time repack: bf16 weights, permuted/zero-padded dueling head."""
    f32 = lambda a: np.asarray(a, dtype=np.float32)
    w1 = f32(lp["w1f33"]).reshape(KS * KS * STACK, C1)
    w2 = f32(lp["w2f33"]).reshape(KS * KS * C1, C2)
    b1 = f32(lp["b1"]).reshape(1, C1)
    b2 = f32(lp["b2"]).reshape(1, C2)

    # Head layer 1: map torch feature index c*(H2*W2)+i*W2+j to the conv
    # kernel's width-major feature index (i*W+j)*C2+c; garbage columns (j>=W2)
    # and the opposite channel half get zero rows.  Hidden padded to HIDP.
    i_idx, j_idx = np.meshgrid(np.arange(H2), np.arange(W2), indexing="ij")
    spat_t = (i_idx * W2 + j_idx).reshape(-1)      # torch spatial index
    r_flat = (i_idx * W + j_idx).reshape(-1)       # kernel flat-row index
    wv1, wa1 = f32(lp["wv1"]), f32(lp["wa1"])
    w1h = np.zeros((NZ * C2, 2 * HIDP), np.float32)
    b1h = np.zeros((1, 2 * HIDP), np.float32)
    for c in range(C2 // 2):                       # value head: channels [0,16)
        w1h[r_flat * C2 + c, :HID] = wv1[c * (H2 * W2) + spat_t, :]
    for c in range(C2 // 2, C2):                   # advantage: channels [16,32)
        w1h[r_flat * C2 + c, HIDP:HIDP + HID] = \
            wa1[(c - C2 // 2) * (H2 * W2) + spat_t, :]
    b1h[0, :HID] = f32(lp["bv1"])
    b1h[0, HIDP:HIDP + HID] = f32(lp["ba1"])

    # Head layer 2 (advantage in cols 0..3, state value in col 4).
    w2h = np.zeros((2 * HIDP, OUTP), np.float32)
    b2h = np.zeros((1, OUTP), np.float32)
    w2h[HIDP:HIDP + HID, 0:ACTIONS] = f32(lp["wa2"])
    w2h[:HID, ACTIONS] = f32(lp["wv2"])[:, 0]
    b2h[0, 0:ACTIONS] = f32(lp["ba2"])
    b2h[0, ACTIONS] = f32(lp["bv2"])[0]

    bf = jnp.bfloat16
    return dict(
        w1=jnp.asarray(w1, bf), b1=jnp.asarray(b1),
        w2=jnp.asarray(w2, bf), b2=jnp.asarray(b2),
        w1h=jnp.asarray(w1h, bf), b1h=jnp.asarray(b1h),
        w2h=jnp.asarray(w2h, jnp.float32), b2h=jnp.asarray(b2h, jnp.float32),
    )


# ---------------- pure-JAX f32 reference ----------------
def reference(x_nchw, lp):
    x = jnp.transpose(x_nchw, (0, 2, 3, 1)).astype(jnp.float32)
    y = lax.conv_general_dilated(x, lp["w1f33"], (1, 1), "VALID",
                                 dimension_numbers=("NHWC", "HWIO", "NHWC"))
    y = jnp.maximum(y + lp["b1"], 0.0)
    z = lax.conv_general_dilated(y, lp["w2f33"], (1, 1), "VALID",
                                 dimension_numbers=("NHWC", "HWIO", "NHWC"))
    z = jnp.maximum(z + lp["b2"], 0.0)
    feat = jnp.transpose(z, (0, 3, 1, 2)).reshape(-1, IMG_SIZE)  # torch .view
    x1, x2 = feat[:, :SLICE], feat[:, SLICE:]
    hv = jnp.maximum(x1 @ lp["wv1"] + lp["bv1"], 0.0)
    sv = hv @ lp["wv2"] + lp["bv2"]
    ha = jnp.maximum(x2 @ lp["wa1"] + lp["ba1"], 0.0)
    adv = ha @ lp["wa2"] + lp["ba2"]
    return sv + (adv - jnp.mean(adv, axis=1, keepdims=True))


if __name__ == "__main__":
    key = jax.random.PRNGKey(0)
    k_x, k_p = jax.random.split(key)
    B = 2
    x = jax.random.normal(k_x, (B, STACK, X_SIZE, Y_SIZE), jnp.float32)  # NCHW
    logical = init_params(k_p)
    params = pack_params(logical)

    q = jax.jit(forward)(x, params)
    q = jax.block_until_ready(q)
    assert q.shape == (B, ACTIONS), q.shape

    q_ref = reference(x, logical)
    np.testing.assert_allclose(np.asarray(q), np.asarray(q_ref),
                               rtol=5e-2, atol=5e-2)  # bf16 weights/activations

    print("KERNEL_OK")
</pallas_src>

<mosaic_0001>
module attributes {stable_mosaic.version = 11 : i64} {
  func.func @_conv_kernel(%arg0: i32, %arg1: memref<464x36xbf16, #tpu.memory_space<vmem>>, %arg2: memref<36x16xbf16, #tpu.memory_space<vmem>>, %arg3: memref<1x16xf32, #tpu.memory_space<vmem>>, %arg4: memref<144x32xbf16, #tpu.memory_space<vmem>>, %arg5: memref<1x32xf32, #tpu.memory_space<vmem>>, %arg6: memref<2x192x32xbf16, #tpu.memory_space<vmem>>, %arg7: memref<464x16xf32, #tpu.memory_space<vmem>>, %arg8: memref<424x144xf32, #tpu.memory_space<vmem>>) attributes {dimension_semantics = [#tpu.dimension_semantics<parallel>], iteration_bounds = array<i64: 1>, scalar_prefetch = 0 : i64, scratch_operands = 2 : i64, tpu.core_type = #tpu.core_type<tc>, window_params = [{transform_indices = @transform_0, window_bounds = array<i64: 464, 36>}, {pipeline_mode = #tpu.pipeline_mode<synchronous>, transform_indices = @transform_1, window_bounds = array<i64: 36, 16>}, {pipeline_mode = #tpu.pipeline_mode<synchronous>, transform_indices = @transform_2, window_bounds = array<i64: 1, 16>}, {pipeline_mode = #tpu.pipeline_mode<synchronous>, transform_indices = @transform_3, window_bounds = array<i64: 144, 32>}, {pipeline_mode = #tpu.pipeline_mode<synchronous>, transform_indices = @transform_4, window_bounds = array<i64: 1, 32>}, {transform_indices = @transform_5, window_bounds = array<i64: 2, 192, 32>}]} {
    %c0 = arith.constant 0 : index
    %c0_0 = arith.constant 0 : index
    %0 = vector.load %arg1[%c0, %c0_0] : memref<464x36xbf16, #tpu.memory_space<vmem>>, vector<464x36xbf16>
    %c0_1 = arith.constant 0 : index
    %c0_2 = arith.constant 0 : index
    %1 = vector.load %arg2[%c0_1, %c0_2] : memref<36x16xbf16, #tpu.memory_space<vmem>>, vector<36x16xbf16>
    %cst = arith.constant dense<0.000000e+00> : vector<464x16xf32>
    %2 = tpu.matmul %0, %1, %cst {dimension_numbers = #tpu.dot_dimension_numbers<[1], [0], [0], [1], [0, 0, 1, 1], [], []>} : vector<464x36xbf16>, vector<36x16xbf16>, vector<464x16xf32> -> vector<464x16xf32>
    %c0_3 = arith.constant 0 : index
    %c0_4 = arith.constant 0 : index
    %3 = vector.load %arg3[%c0_3, %c0_4] : memref<1x16xf32, #tpu.memory_space<vmem>>, vector<1x16xf32>
    %4 = vector.broadcast %3 : vector<1x16xf32> to vector<464x16xf32>
    %5 = arith.addf %2, %4 : vector<464x16xf32>
    %cst_5 = arith.constant 0.000000e+00 : f32
    %6 = vector.broadcast %cst_5 : f32 to vector<464x16xf32>
    %7 = arith.maximumf %5, %6 : vector<464x16xf32>
    %c0_6 = arith.constant 0 : index
    %c0_7 = arith.constant 0 : index
    %8 = vector.load %arg7[%c0_6, %c0_7] : memref<464x16xf32, #tpu.memory_space<vmem>>, vector<464x16xf32>
    tpu.vector_store %arg7[%c0_6, %c0_7], %7 {strides = array<i32>} : memref<464x16xf32, #tpu.memory_space<vmem>>, vector<464x16xf32>,
    %c0_8 = arith.constant 0 : index
    %c0_9 = arith.constant 0 : index
    %9 = vector.load %arg7[%c0_8, %c0_9] : memref<464x16xf32, #tpu.memory_space<vmem>>, vector<424x16xf32>
    %c0_10 = arith.constant 0 : index
    %c0_11 = arith.constant 0 : index
    %10 = vector.load %arg8[%c0_10, %c0_11] : memref<424x144xf32, #tpu.memory_space<vmem>>, vector<424x16xf32>
    tpu.vector_store %arg8[%c0_10, %c0_11], %9 {strides = array<i32>} : memref<424x144xf32, #tpu.memory_space<vmem>>, vector<424x16xf32>,
    %c1 = arith.constant 1 : index
    %c0_12 = arith.constant 0 : index
    %11 = vector.load %arg7[%c1, %c0_12] : memref<464x16xf32, #tpu.memory_space<vmem>>, vector<424x16xf32>
    %c0_13 = arith.constant 0 : index
    %c16 = arith.constant 16 : index
    %12 = vector.load %arg8[%c0_13, %c16] : memref<424x144xf32, #tpu.memory_space<vmem>>, vector<424x16xf32>
    tpu.vector_store %arg8[%c0_13, %c16], %11 {strides = array<i32>} : memref<424x144xf32, #tpu.memory_space<vmem>>, vector<424x16xf32>,
    %c2 = arith.constant 2 : index
    %c0_14 = arith.constant 0 : index
    %13 = vector.load %arg7[%c2, %c0_14] : memref<464x16xf32, #tpu.memory_space<vmem>>, vector<424x16xf32>
    %c0_15 = arith.constant 0 : index
    %c32 = arith.constant 32 : index
    %14 = vector.load %arg8[%c0_15, %c32] : memref<424x144xf32, #tpu.memory_space<vmem>>, vector<424x16xf32>
    tpu.vector_store %arg8[%c0_15, %c32], %13 {strides = array<i32>} : memref<424x144xf32, #tpu.memory_space<vmem>>, vector<424x16xf32>,
    %c16_16 = arith.constant 16 : index
    %c0_17 = arith.constant 0 : index
    %15 = vector.load %arg7[%c16_16, %c0_17] : memref<464x16xf32, #tpu.memory_space<vmem>>, vector<424x16xf32>
    %c0_18 = arith.constant 0 : index
    %c48 = arith.constant 48 : index
    %16 = vector.load %arg8[%c0_18, %c48] : memref<424x144xf32, #tpu.memory_space<vmem>>, vector<424x16xf32>
    tpu.vector_store %arg8[%c0_18, %c48], %15 {strides = array<i32>} : memref<424x144xf32, #tpu.memory_space<vmem>>, vector<424x16xf32>,
    %c17 = arith.constant 17 : index
    %c0_19 = arith.constant 0 : index
    %17 = vector.load %arg7[%c17, %c0_19] : memref<464x16xf32, #tpu.memory_space<vmem>>, vector<424x16xf32>
    %c0_20 = arith.constant 0 : index
    %c64 = arith.constant 64 : index
    %18 = vector.load %arg8[%c0_20, %c64] : memref<424x144xf32, #tpu.memory_space<vmem>>, vector<424x16xf32>
    tpu.vector_store %arg8[%c0_20, %c64], %17 {strides = array<i32>} : memref<424x144xf32, #tpu.memory_space<vmem>>, vector<424x16xf32>,
    %c18 = arith.constant 18 : index
    %c0_21 = arith.constant 0 : index
    %19 = vector.load %arg7[%c18, %c0_21] : memref<464x16xf32, #tpu.memory_space<vmem>>, vector<424x16xf32>
    %c0_22 = arith.constant 0 : index
    %c80 = arith.constant 80 : index
    %20 = vector.load %arg8[%c0_22, %c80] : memref<424x144xf32, #tpu.memory_space<vmem>>, vector<424x16xf32>
    tpu.vector_store %arg8[%c0_22, %c80], %19 {strides = array<i32>} : memref<424x144xf32, #tpu.memory_space<vmem>>, vector<424x16xf32>,
    %c32_23 = arith.constant 32 : index
    %c0_24 = arith.constant 0 : index
    %21 = vector.load %arg7[%c32_23, %c0_24] : memref<464x16xf32, #tpu.memory_space<vmem>>, vector<424x16xf32>
    %c0_25 = arith.constant 0 : index
    %c96 = arith.constant 96 : index
    %22 = vector.load %arg8[%c0_25, %c96] : memref<424x144xf32, #tpu.memory_space<vmem>>, vector<424x16xf32>
    tpu.vector_store %arg8[%c0_25, %c96], %21 {strides = array<i32>} : memref<424x144xf32, #tpu.memory_space<vmem>>, vector<424x16xf32>,
    %c33 = arith.constant 33 : index
    %c0_26 = arith.constant 0 : index
    %23 = vector.load %arg7[%c33, %c0_26] : memref<464x16xf32, #tpu.memory_space<vmem>>, vector<424x16xf32>
    %c0_27 = arith.constant 0 : index
    %c112 = arith.constant 112 : index
    %24 = vector.load %arg8[%c0_27, %c112] : memref<424x144xf32, #tpu.memory_space<vmem>>, vector<424x16xf32>
    tpu.vector_store %arg8[%c0_27, %c112], %23 {strides = array<i32>} : memref<424x144xf32, #tpu.memory_space<vmem>>, vector<424x16xf32>,
    %c34 = arith.constant 34 : index
    %c0_28 = arith.constant 0 : index
    %25 = vector.load %arg7[%c34, %c0_28] : memref<464x16xf32, #tpu.memory_space<vmem>>, vector<424x16xf32>
    %c0_29 = arith.constant 0 : index
    %c128 = arith.constant 128 : index
    %26 = vector.load %arg8[%c0_29, %c128] : memref<424x144xf32, #tpu.memory_space<vmem>>, vector<424x16xf32>
    tpu.vector_store %arg8[%c0_29, %c128], %25 {strides = array<i32>} : memref<424x144xf32, #tpu.memory_space<vmem>>, vector<424x16xf32>,
    %c0_30 = arith.constant 0 : index
    %c0_31 = arith.constant 0 : index
    %27 = vector.load %arg8[%c0_30, %c0_31] : memref<424x144xf32, #tpu.memory_space<vmem>>, vector<424x144xf32>
    %28 = arith.truncf %27 : vector<424x144xf32> to vector<424x144xbf16>
    %c0_32 = arith.constant 0 : index
    %c0_33 = arith.constant 0 : index
    %29 = vector.load %arg4[%c0_32, %c0_33] : memref<144x32xbf16, #tpu.memory_space<vmem>>, vector<144x32xbf16>
    %cst_34 = arith.constant dense<0.000000e+00> : vector<424x32xf32>
    %30 = tpu.matmul %28, %29, %cst_34 {dimension_numbers = #tpu.dot_dimension_numbers<[1], [0], [0], [1], [0, 0, 1, 1], [], []>} : vector<424x144xbf16>, vector<144x32xbf16>, vector<424x32xf32> -> vector<424x32xf32>
    %c0_35 = arith.constant 0 : index
    %c0_36 = arith.constant 0 : index
    %31 = vector.load %arg5[%c0_35, %c0_36] : memref<1x32xf32, #tpu.memory_space<vmem>>, vector<1x32xf32>
    %32 = vector.broadcast %31 : vector<1x32xf32> to vector<424x32xf32>
    %33 = arith.addf %30, %32 : vector<424x32xf32>
    %cst_37 = arith.constant 0.000000e+00 : f32
    %34 = vector.broadcast %cst_37 : f32 to vector<424x32xf32>
    %35 = arith.maximumf %33, %34 : vector<424x32xf32>
    %36 = vector.extract_strided_slice %35 {offsets = [0, 0], sizes = [192, 32], strides = [1, 1]} : vector<424x32xf32> to vector<192x32xf32>
    %37 = arith.truncf %36 : vector<192x32xf32> to vector<192x32xbf16>
    %c0_38 = arith.constant 0 : index
    %c0_39 = arith.constant 0 : index
    %c0_40 = arith.constant 0 : index
    %38 = vector.load %arg6[%c0_38, %c0_39, %c0_40] : memref<2x192x32xbf16, #tpu.memory_space<vmem>>, vector<1x192x32xbf16>
    %39 = vector.shape_cast %38 : vector<1x192x32xbf16> to vector<192x32xbf16>
    %40 = vector.shape_cast %37 : vector<192x32xbf16> to vector<1x192x32xbf16>
    tpu.vector_store %arg6[%c0_38, %c0_39, %c0_40], %40 {strides = array<i32>} : memref<2x192x32xbf16, #tpu.memory_space<vmem>>, vector<1x192x32xbf16>,
    %41 = vector.extract_strided_slice %35 {offsets = [232, 0], sizes = [192, 32], strides = [1, 1]} : vector<424x32xf32> to vector<192x32xf32>
    %42 = arith.truncf %41 : vector<192x32xf32> to vector<192x32xbf16>
    %c1_41 = arith.constant 1 : index
    %c0_42 = arith.constant 0 : index
    %c0_43 = arith.constant 0 : index
    %43 = vector.load %arg6[%c1_41, %c0_42, %c0_43] : memref<2x192x32xbf16, #tpu.memory_space<vmem>>, vector<1x192x32xbf16>
    %44 = vector.shape_cast %43 : vector<1x192x32xbf16> to vector<192x32xbf16>
    %45 = vector.shape_cast %42 : vector<192x32xbf16> to vector<1x192x32xbf16>
    tpu.vector_store %arg6[%c1_41, %c0_42, %c0_43], %45 {strides = array<i32>} : memref<2x192x32xbf16, #tpu.memory_space<vmem>>, vector<1x192x32xbf16>,
    return
  }
  func.func @transform_0(%arg0: i32) -> (i32, i32) {
    %c0_i32 = arith.constant 0 : i32
    %c0_i32_0 = arith.constant 0 : i32
    return %arg0, %c0_i32 : i32, i32
  }
  func.func @transform_1(%arg0: i32) -> (i32, i32) {
    %c0_i32 = arith.constant 0 : i32
    %c0_i32_0 = arith.constant 0 : i32
    %c0_i32_1 = arith.constant 0 : i32
    return %c0_i32, %c0_i32_0 : i32, i32
  }
  func.func @transform_2(%arg0: i32) -> (i32, i32) {
    %c0_i32 = arith.constant 0 : i32
    %c0_i32_0 = arith.constant 0 : i32
    %c0_i32_1 = arith.constant 0 : i32
    return %c0_i32, %c0_i32_0 : i32, i32
  }
  func.func @transform_3(%arg0: i32) -> (i32, i32) {
    %c0_i32 = arith.constant 0 : i32
    %c0_i32_0 = arith.constant 0 : i32
    %c0_i32_1 = arith.constant 0 : i32
    return %c0_i32, %c0_i32_0 : i32, i32
  }
  func.func @transform_4(%arg0: i32) -> (i32, i32) {
    %c0_i32 = arith.constant 0 : i32
    %c0_i32_0 = arith.constant 0 : i32
    %c0_i32_1 = arith.constant 0 : i32
    return %c0_i32, %c0_i32_0 : i32, i32
  }
  func.func @transform_5(%arg0: i32) -> (i32, i32, i32) {
    %c0_i32 = arith.constant 0 : i32
    %c0_i32_0 = arith.constant 0 : i32
    %c0_i32_1 = arith.constant 0 : i32
    return %arg0, %c0_i32, %c0_i32_0 : i32, i32, i32
  }
}

module attributes {stable_mosaic.version = 11 : i64} {
  func.func @_head_kernel(%arg0: i32, %arg1: memref<2x6144xbf16, #tpu.memory_space<vmem>>, %arg2: memref<6144x256xbf16, #tpu.memory_space<vmem>>, %arg3: memref<1x256xf32, #tpu.memory_space<vmem>>, %arg4: memref<256x8xf32, #tpu.memory_space<vmem>>, %arg5: memref<1x8xf32, #tpu.memory_space<vmem>>, %arg6: memref<2x4xf32, #tpu.memory_space<vmem>>) attributes {dimension_semantics = [#tpu.dimension_semantics<parallel>], iteration_bounds = array<i64: 1>, scalar_prefetch = 0 : i64, scratch_operands = 0 : i64, tpu.core_type = #tpu.core_type<tc>, window_params = [{transform_indices = @transform_0, window_bounds = array<i64: 2, 6144>}, {pipeline_mode = #tpu.pipeline_mode<synchronous>, transform_indices = @transform_1, window_bounds = array<i64: 6144, 256>}, {pipeline_mode = #tpu.pipeline_mode<synchronous>, transform_indices = @transform_2, window_bounds = array<i64: 1, 256>}, {pipeline_mode = #tpu.pipeline_mode<synchronous>, transform_indices = @transform_3, window_bounds = array<i64: 256, 8>}, {pipeline_mode = #tpu.pipeline_mode<synchronous>, transform_indices = @transform_4, window_bounds = array<i64: 1, 8>}, {transform_indices = @transform_5, window_bounds = array<i64: 2, 4>}]} {
    %c0 = arith.constant 0 : index
    %c0_0 = arith.constant 0 : index
    %0 = vector.load %arg1[%c0, %c0_0] : memref<2x6144xbf16, #tpu.memory_space<vmem>>, vector<2x6144xbf16>
    %c0_1 = arith.constant 0 : index
    %c0_2 = arith.constant 0 : index
    %1 = vector.load %arg2[%c0_1, %c0_2] : memref<6144x256xbf16, #tpu.memory_space<vmem>>, vector<6144x256xbf16>
    %cst = arith.constant dense<0.000000e+00> : vector<2x256xf32>
    %2 = tpu.matmul %0, %1, %cst {dimension_numbers = #tpu.dot_dimension_numbers<[1], [0], [0], [1], [0, 0, 1, 1], [], []>} : vector<2x6144xbf16>, vector<6144x256xbf16>, vector<2x256xf32> -> vector<2x256xf32>
    %c0_3 = arith.constant 0 : index
    %c0_4 = arith.constant 0 : index
    %3 = vector.load %arg3[%c0_3, %c0_4] : memref<1x256xf32, #tpu.memory_space<vmem>>, vector<1x256xf32>
    %4 = vector.broadcast %3 : vector<1x256xf32> to vector<2x256xf32>
    %5 = arith.addf %2, %4 : vector<2x256xf32>
    %cst_5 = arith.constant 0.000000e+00 : f32
    %6 = vector.broadcast %cst_5 : f32 to vector<2x256xf32>
    %7 = arith.maximumf %5, %6 : vector<2x256xf32>
    %c0_6 = arith.constant 0 : index
    %c0_7 = arith.constant 0 : index
    %8 = vector.load %arg4[%c0_6, %c0_7] : memref<256x8xf32, #tpu.memory_space<vmem>>, vector<256x8xf32>
    %cst_8 = arith.constant dense<0.000000e+00> : vector<2x8xf32>
    %9 = tpu.matmul %7, %8, %cst_8 {dimension_numbers = #tpu.dot_dimension_numbers<[1], [0], [0], [1], [0, 0, 1, 1], [], []>} : vector<2x256xf32>, vector<256x8xf32>, vector<2x8xf32> -> vector<2x8xf32>
    %c0_9 = arith.constant 0 : index
    %c0_10 = arith.constant 0 : index
    %10 = vector.load %arg5[%c0_9, %c0_10] : memref<1x8xf32, #tpu.memory_space<vmem>>, vector<1x8xf32>
    %11 = vector.broadcast %10 : vector<1x8xf32> to vector<2x8xf32>
    %12 = arith.addf %9, %11 : vector<2x8xf32>
    %13 = vector.extract_strided_slice %12 {offsets = [0, 0], sizes = [2, 4], strides = [1, 1]} : vector<2x8xf32> to vector<2x4xf32>
    %14 = vector.extract_strided_slice %12 {offsets = [0, 4], sizes = [2, 1], strides = [1, 1]} : vector<2x8xf32> to vector<2x1xf32>
    %cst_11 = arith.constant dense<0.000000e+00> : vector<2xf32>
    %15 = vector.multi_reduction <add>, %13, %cst_11 [1] : vector<2x4xf32> to vector<2xf32>
    %16 = vector.shape_cast %15 : vector<2xf32> to vector<2x1xf32>
    %cst_12 = arith.constant 4.000000e+00 : f32
    %17 = vector.broadcast %cst_12 : f32 to vector<2x1xf32>
    %18 = arith.divf %16, %17 : vector<2x1xf32>
    %19 = vector.broadcast %18 : vector<2x1xf32> to vector<2x4xf32>
    %20 = arith.subf %13, %19 : vector<2x4xf32>
    %21 = vector.broadcast %14 : vector<2x1xf32> to vector<2x4xf32>
    %22 = arith.addf %21, %20 : vector<2x4xf32>
    %c0_13 = arith.constant 0 : index
    %c0_14 = arith.constant 0 : index
    %23 = vector.load %arg6[%c0_13, %c0_14] : memref<2x4xf32, #tpu.memory_space<vmem>>, vector<2x4xf32>
    tpu.vector_store %arg6[%c0_13, %c0_14], %22 {strides = array<i32>} : memref<2x4xf32, #tpu.memory_space<vmem>>, vector<2x4xf32>,
    return
  }
  func.func @transform_0(%arg0: i32) -> (i32, i32) {
    %c0_i32 = arith.constant 0 : i32
    %c0_i32_0 = arith.constant 0 : i32
    return %arg0, %c0_i32 : i32, i32
  }
  func.func @transform_1(%arg0: i32) -> (i32, i32) {
    %c0_i32 = arith.constant 0 : i32
    %c0_i32_0 = arith.constant 0 : i32
    %c0_i32_1 = arith.constant 0 : i32
    return %c0_i32, %c0_i32_0 : i32, i32
  }
  func.func @transform_2(%arg0: i32) -> (i32, i32) {
    %c0_i32 = arith.constant 0 : i32
    %c0_i32_0 = arith.constant 0 : i32
    %c0_i32_1 = arith.constant 0 : i32
    return %c0_i32, %c0_i32_0 : i32, i32
  }
  func.func @transform_3(%arg0: i32) -> (i32, i32) {
    %c0_i32 = arith.constant 0 : i32
    %c0_i32_0 = arith.constant 0 : i32
    %c0_i32_1 = arith.constant 0 : i32
    return %c0_i32, %c0_i32_0 : i32, i32
  }
  func.func @transform_4(%arg0: i32) -> (i32, i32) {
    %c0_i32 = arith.constant 0 : i32
    %c0_i32_0 = arith.constant 0 : i32
    %c0_i32_1 = arith.constant 0 : i32
    return %c0_i32, %c0_i32_0 : i32, i32
  }
  func.func @transform_5(%arg0: i32) -> (i32, i32) {
    %c0_i32 = arith.constant 0 : i32
    %c0_i32_0 = arith.constant 0 : i32
    return %arg0, %c0_i32 : i32, i32
  }
}

</mosaic_0001>

<llo_original>
// kernel: forward.2
$region0: #{forward.2}
  #allocation0 [shape = 'u32[]', space=smem, size = 0x4, offset = 0x4, fixed_abs, tag = 'smem constant byte address 0x4 - core index']
  #allocation1 [shape = 'u32[144,128]{1,0:T(1,128)}', space=vmem, size = 0x12000, scoped, tag = 'internal scratch']
  #allocation2 [shape = 'f32[464,16]{1,0:T(8,128)}', space=vmem, size = 0x3a000, scoped, tag = 'scratch operand']
  #allocation3 [shape = 'f32[424,144]{1,0:T(8,128)}', space=vmem, size = 0x6a000, scoped, tag = 'scratch operand']
  %s0 = inlined_call_operand.vmem [shape: bf16[464,36], index: 0, kind: input, shape index: {}]
  %s1 = inlined_call_operand.vmem [shape: bf16[36,16], index: 1, kind: input, shape index: {}]
  %s2 = inlined_call_operand.hbm [shape: f32[1,16], index: 2, kind: input, shape index: {}]
  %s3 = inlined_call_operand.vmem [shape: bf16[144,32], index: 3, kind: input, shape index: {}]
  %s4 = inlined_call_operand.hbm [shape: f32[1,32], index: 4, kind: input, shape index: {}]
  %s5 = inlined_call_operand.vmem [shape: bf16[2,192,32], index: 5, kind: output, shape index: {}]
  %s6 = sld [smem:[#allocation0]]
  $region38: #{forward.2} parent=0
    _
  %s8 = ssub.s32 1, %s6
  %s9 = scalar_select 0, %s8, %s6
  $region1: #{forward.2} parent=0
    #allocation4 [shape = 'u8[512]{0}', space=vmem, size = 0x400, scoped, tag = 'input window, operand 2, single buffered']
    #allocation5 [shape = 's32[1]{0}', space=sflag, size = 0x4, scoped, tag = 'scoped memory for forward.2']
    #allocation6 [shape = 'u8[512]{0}', space=vmem, size = 0x400, scoped, tag = 'input window, operand 4, single buffered']
    #allocation7 [shape = 's32[1]{0}', space=sflag, size = 0x4, scoped, tag = 'scoped memory for forward.2']
    %10 = vsyncpa [#allocation5], 0
    %11 = vsyncpa [#allocation7], 0
    // Predicated region
    $region2: #{forward.2} parent=1 // pred_check
      _
    $region3: #{forward.2} parent=1 // pred_check_branch
      %13 = sbr.rel (0) target = $region5
    $region4: #{forward.2} parent=1 // pred_region
      _
    $region5: #{forward.2} parent=1 // pred_fallthru
      _
    // Predicated region
    $region6: #{forward.2} parent=1 // pred_check
      _
    $region7: #{forward.2} parent=1 // pred_check_branch
      %15 = sbr.rel (0) target = $region9
    $region8: #{forward.2} parent=1 // pred_region
      _
    $region9: #{forward.2} parent=1 // pred_fallthru
      _
    // Predicated region
    $region10: #{forward.2} parent=1 // pred_check
      _
    $region11: #{forward.2} parent=1 // pred_check_branch
      %17 = sbr.rel (0) target = $region13
    $region12: #{forward.2} parent=1 // pred_region
      %s19 = ssub.s32 16, 16
      %20 = vsyncadd [#allocation5], %s19
      %s22 = sshll.u32 [#allocation4], 4
      %s23 = int_to_ptr.vmem [resolvable:$true] %s22
      %25 = dma.hbm_to_vmem [thread:$0]  %s2, 16, %s23, [#allocation5]
    $region13: #{forward.2} parent=1 // pred_fallthru
      _
    // Predicated region
    $region14: #{forward.2} parent=1 // pred_check
      _
    $region15: #{forward.2} parent=1 // pred_check_branch
      %27 = sbr.rel (0) target = $region17
    $region16: #{forward.2} parent=1 // pred_region
      _
    $region17: #{forward.2} parent=1 // pred_fallthru
      _
    // Predicated region
    $region18: #{forward.2} parent=1 // pred_check
      _
    $region19: #{forward.2} parent=1 // pred_check_branch
      %29 = sbr.rel (0) target = $region21
    $region20: #{forward.2} parent=1 // pred_region
      %s31 = ssub.s32 16, 16
      %32 = vsyncadd [#allocation7], %s31
      %s34 = sshll.u32 [#allocation6], 4
      %s35 = int_to_ptr.vmem [resolvable:$true] %s34
      %37 = dma.hbm_to_vmem [thread:$0]  %s4, 16, %s35, [#allocation7]
    $region21: #{forward.2} parent=1 // pred_fallthru
      _
    // Predicated region
    $region22: #{forward.2} parent=1 // pred_check
      _
    $region23: #{forward.2} parent=1 // pred_check_branch
      %39 = sbr.rel (0) target = $region25
    $region24: #{forward.2} parent=1 // pred_region
      %40 = dma.done [#allocation5], 16
    $region25: #{forward.2} parent=1 // pred_fallthru
      _
    // Predicated region
    $region26: #{forward.2} parent=1 // pred_check
      _
    $region27: #{forward.2} parent=1 // pred_check_branch
      %42 = sbr.rel (0) target = $region29
    $region28: #{forward.2} parent=1 // pred_region
      %43 = dma.done [#allocation7], 16
    $region29: #{forward.2} parent=1 // pred_fallthru
      _
    %v45 = vld [vmem:[%s0] sm:$0xf]
    %v46 = vld [vmem:[%s0 + $0x4] sm:$0xf]
    %v47 = vld [vmem:[%s0 + $0x8] sm:$0xf]
    %v48 = vld [vmem:[%s0 + $0xc] sm:$0xf]
    %v49 = vld [vmem:[%s0 + $0x10] sm:$0xf]
    %v50 = vld [vmem:[%s0 + $0x14] sm:$0xf]
    %v51 = vld [vmem:[%s0 + $0x18] sm:$0xf]
    %v52 = vld [vmem:[%s0 + $0x1c] sm:$0xf]
    %v53 = vld [vmem:[%s0 + $0x20] sm:$0xf]
    %v54 = vld [vmem:[%s0 + $0x24] sm:$0xf]
    %v55 = vld [vmem:[%s0 + $0x28] sm:$0xf]
    %v56 = vld [vmem:[%s0 + $0x2c] sm:$0xf]
    %v57 = vld [vmem:[%s0 + $0x30] sm:$0xf]
    %v58 = vld [vmem:[%s0 + $0x34] sm:$0xf]
    %v59 = vld [vmem:[%s0 + $0x38] sm:$0xf]
    %v60 = vld [vmem:[%s0 + $0x3c] sm:$0xf]
    %v61 = vld [vmem:[%s0 + $0x40] sm:$0xf]
    %v62 = vld [vmem:[%s0 + $0x44] sm:$0xf]
    %v63 = vld [vmem:[%s0 + $0x48] sm:$0xf]
    %v64 = vld [vmem:[%s0 + $0x4c] sm:$0xf]
    %v65 = vld [vmem:[%s0 + $0x50] sm:$0xf]
    %v66 = vld [vmem:[%s0 + $0x54] sm:$0xf]
    %v67 = vld [vmem:[%s0 + $0x58] sm:$0xf]
    %v68 = vld [vmem:[%s0 + $0x5c] sm:$0xf]
    %v69 = vld [vmem:[%s0 + $0x60] sm:$0xf]
    %v70 = vld [vmem:[%s0 + $0x64] sm:$0xf]
    %v71 = vld [vmem:[%s0 + $0x68] sm:$0xf]
    %v72 = vld [vmem:[%s0 + $0x6c] sm:$0xf]
    %v73 = vld [vmem:[%s0 + $0x70] sm:$0xf]
    %v74 = vld [vmem:[%s0 + $0x74] sm:$0xf]
    %v75 = vld [vmem:[%s0 + $0x78] sm:$0xf]
    %v76 = vld [vmem:[%s0 + $0x7c] sm:$0xf]
    %v77 = vld [vmem:[%s0 + $0x80] sm:$0xf]
    %v78 = vld [vmem:[%s0 + $0x84] sm:$0xf]
    %v79 = vld [vmem:[%s0 + $0x88] sm:$0xf]
    %v80 = vld [vmem:[%s0 + $0x8c] sm:$0xf]
    %v81 = vld [vmem:[%s0 + $0x90] sm:$0xf]
    %v82 = vld [vmem:[%s0 + $0x94] sm:$0xf]
    %v83 = vld [vmem:[%s0 + $0x98] sm:$0xf]
    %v84 = vld [vmem:[%s0 + $0x9c] sm:$0xf]
    %v85 = vld [vmem:[%s0 + $0xa0] sm:$0xf]
    %v86 = vld [vmem:[%s0 + $0xa4] sm:$0xf]
    %v87 = vld [vmem:[%s0 + $0xa8] sm:$0xf]
    %v88 = vld [vmem:[%s0 + $0xac] sm:$0xf]
    %v89 = vld [vmem:[%s0 + $0xb0] sm:$0xf]
    %v90 = vld [vmem:[%s0 + $0xb4] sm:$0xf]
    %v91 = vld [vmem:[%s0 + $0xb8] sm:$0xf]
    %v92 = vld [vmem:[%s0 + $0xbc] sm:$0xf]
    %v93 = vld [vmem:[%s0 + $0xc0] sm:$0xf]
    %v94 = vld [vmem:[%s0 + $0xc4] sm:$0xf]
    %v95 = vld [vmem:[%s0 + $0xc8] sm:$0xf]
    %v96 = vld [vmem:[%s0 + $0xcc] sm:$0xf]
    %v97 = vld [vmem:[%s0 + $0xd0] sm:$0xf]
    %v98 = vld [vmem:[%s0 + $0xd4] sm:$0xf]
    %v99 = vld [vmem:[%s0 + $0xd8] sm:$0xf]
    %v100 = vld [vmem:[%s0 + $0xdc] sm:$0xf]
    %v101 = vld [vmem:[%s0 + $0xe0] sm:$0xf]
    %v102 = vld [vmem:[%s0 + $0xe4] sm:$0xf]
    %v103 = vld [vmem:[%s1] sm:$0xf]
    %v104 = vld [vmem:[%s1 + $0x4] sm:$0xf]
    %v105 = vld [vmem:[%s1 + $0x8] sm:$0xf]
    %v106 = vld [vmem:[%s1 + $0xc] sm:$0xf]
    %v107 = vld [vmem:[%s1 + $0x10] sm:$0x3]
    %v108 = vld [vmem:[#allocation4] sm:$0x1]
    %v110 = vlaneseq
    %v111 = vshrl.u32 %v110, 7
    %v112 = vsub.s32 0, %v111
    %v113 = vrot.slane %v108, %v112
    %v173 = vunpack.c.l.b16 %v45
    %v174 = vunpack.c.l.b16 %v46
    %v175 = vunpack.c.l.b16 %v47
    %v176 = vunpack.c.l.b16 %v48
    %v177 = vunpack.c.l.b16 %v49
    %v178 = vunpack.c.l.b16 %v50
    %v179 = vunpack.c.l.b16 %v51
    %v180 = vunpack.c.l.b16 %v52
    %v181 = vunpack.c.l.b16 %v53
    %v182 = vunpack.c.l.b16 %v54
    %v183 = vunpack.c.l.b16 %v55
    %v184 = vunpack.c.l.b16 %v56
    %v185 = vunpack.c.l.b16 %v57
    %v186 = vunpack.c.l.b16 %v58
    %v187 = vunpack.c.l.b16 %v59
    %v188 = vunpack.c.l.b16 %v60
    %v189 = vunpack.c.l.b16 %v61
    %v190 = vunpack.c.l.b16 %v62
    %v191 = vunpack.c.l.b16 %v63
    %v192 = vunpack.c.l.b16 %v64
    %v193 = vunpack.c.l.b16 %v65
    %v194 = vunpack.c.l.b16 %v66
    %v195 = vunpack.c.l.b16 %v67
    %v196 = vunpack.c.l.b16 %v68
    %v197 = vunpack.c.l.b16 %v69
    %v198 = vunpack.c.l.b16 %v70
    %v199 = vunpack.c.l.b16 %v71
    %v200 = vunpack.c.l.b16 %v72
    %v201 = vunpack.c.l.b16 %v73
    %v202 = vunpack.c.l.b16 %v74
    %v203 = vunpack.c.l.b16 %v75
    %v204 = vunpack.c.l.b16 %v76
    %v205 = vunpack.c.l.b16 %v77
    %v206 = vunpack.c.l.b16 %v78
    %v207 = vunpack.c.l.b16 %v79
    %v208 = vunpack.c.l.b16 %v80
    %v209 = vunpack.c.l.b16 %v81
    %v210 = vunpack.c.l.b16 %v82
    %v211 = vunpack.c.l.b16 %v83
    %v212 = vunpack.c.l.b16 %v84
    %v213 = vunpack.c.l.b16 %v85
    %v214 = vunpack.c.l.b16 %v86
    %v215 = vunpack.c.l.b16 %v87
    %v216 = vunpack.c.l.b16 %v88
    %v217 = vunpack.c.l.b16 %v89
    %v218 = vunpack.c.l.b16 %v90
    %v219 = vunpack.c.l.b16 %v91
    %v220 = vunpack.c.l.b16 %v92
    %v221 = vunpack.c.l.b16 %v93
    %v222 = vunpack.c.l.b16 %v94
    %v223 = vunpack.c.l.b16 %v95
    %v224 = vunpack.c.l.b16 %v96
    %v225 = vunpack.c.l.b16 %v97
    %v226 = vunpack.c.l.b16 %v98
    %v227 = vunpack.c.l.b16 %v99
    %v228 = vunpack.c.l.b16 %v100
    %v229 = vunpack.c.l.b16 %v101
    %v230 = vunpack.c.l.b16 %v102
    %v231 = vpack.c.b16 %v174, %v173
    %v232 = vpack.c.b16 %v176, %v175
    %v233 = vpack.c.b16 %v178, %v177
    %v234 = vpack.c.b16 %v180, %v179
    %v235 = vpack.c.b16 %v182, %v181
    %v236 = vpack.c.b16 %v184, %v183
    %v237 = vpack.c.b16 %v186, %v185
    %v238 = vpack.c.b16 %v188, %v187
    %v239 = vpack.c.b16 %v190, %v189
    %v240 = vpack.c.b16 %v192, %v191
    %v241 = vpack.c.b16 %v194, %v193
    %v242 = vpack.c.b16 %v196, %v195
    %v243 = vpack.c.b16 %v198, %v197
    %v244 = vpack.c.b16 %v200, %v199
    %v245 = vpack.c.b16 %v202, %v201
    %v246 = vpack.c.b16 %v204, %v203
    %v247 = vpack.c.b16 %v206, %v205
    %v248 = vpack.c.b16 %v208, %v207
    %v249 = vpack.c.b16 %v210, %v209
    %v250 = vpack.c.b16 %v212, %v211
    %v251 = vpack.c.b16 %v214, %v213
    %v252 = vpack.c.b16 %v216, %v215
    %v253 = vpack.c.b16 %v218, %v217
    %v254 = vpack.c.b16 %v220, %v219
    %v255 = vpack.c.b16 %v222, %v221
    %v256 = vpack.c.b16 %v224, %v223
    %v257 = vpack.c.b16 %v226, %v225
    %v258 = vpack.c.b16 %v228, %v227
    %v259 = vpack.c.b16 %v230, %v229
    %v265 = vunpack.c.l.b16 %v103
    %v266 = vunpack.c.l.b16 %v104
    %v267 = vunpack.c.l.b16 %v105
    %v268 = vunpack.c.l.b16 %v106
    %v269 = vunpack.c.l.b16 %v107
    %v270 = vpack.c.b16 %v266, %v265
    %v271 = vpack.c.b16 %v268, %v267
    %v272 = vpack.c.b16 %v269, %v269
    %vm275 = vcmask 293888
    %v277 = vsel %vm275, %v231, 0
    %v280 = vsel %vm275, %v232, 0
    %v283 = vsel %vm275, %v233, 0
    %v286 = vsel %vm275, %v234, 0
    %v289 = vsel %vm275, %v235, 0
    %v292 = vsel %vm275, %v236, 0
    %v295 = vsel %vm275, %v237, 0
    %v298 = vsel %vm275, %v238, 0
    %v301 = vsel %vm275, %v239, 0
    %v304 = vsel %vm275, %v240, 0
    %v307 = vsel %vm275, %v241, 0
    %v310 = vsel %vm275, %v242, 0
    %v313 = vsel %vm275, %v243, 0
    %v316 = vsel %vm275, %v244, 0
    %v319 = vsel %vm275, %v245, 0
    %v322 = vsel %vm275, %v246, 0
    %v325 = vsel %vm275, %v247, 0
    %v328 = vsel %vm275, %v248, 0
    %v331 = vsel %vm275, %v249, 0
    %v334 = vsel %vm275, %v250, 0
    %v337 = vsel %vm275, %v251, 0
    %v340 = vsel %vm275, %v252, 0
    %v343 = vsel %vm275, %v253, 0
    %v346 = vsel %vm275, %v254, 0
    %v349 = vsel %vm275, %v255, 0
    %v352 = vsel %vm275, %v256, 0
    %v355 = vsel %vm275, %v257, 0
    %v358 = vsel %vm275, %v258, 0
    %v361 = vsel %vm275, %v259, 0
    %vm363 = vcmask 1041408
    %v365 = vsel %vm363, %v272, 0
    %367 = vmatprep.subr.bf16.mxu0 0
    %368 = vmatpush1.bf16.msra.mxu0 %v270
    %369 = vmatprep.subr.bf16.mxu0 0
    %370 = vmatpush1.bf16.msra.mxu0 %v271
    %371 = vmatprep.subr.bf16.mxu0 0
    %372 = vmatpush1.bf16.msra.mxu0 %v365
    %373 = vmatprep.subr.bf16.mxu0 0
    %374 = vmatpush1.bf16.msra.mxu0 0
    %375 = vmatprep.subr.bf16.mxu0 0
    %376 = vmatpush1.bf16.msra.mxu0 0
    %377 = vmatprep.subr.bf16.mxu0 0
    %378 = vmatpush1.bf16.msra.mxu0 0
    %379 = vmatprep.subr.bf16.mxu0 0
    %380 = vmatpush1.bf16.msra.mxu0 0
    %381 = vmatprep.subr.bf16.mxu0 0
    %382 = vmatpush1.bf16.msra.mxu0 0
    %383 = vmatprep.subr.bf16.mxu0 0
    %384 = vmatpush1.bf16.msra.mxu0 0
    %385 = vmatprep.subr.bf16.mxu0 0
    %386 = vmatpush1.bf16.msra.mxu0 0
    %387 = vmatprep.subr.bf16.mxu0 0
    %388 = vmatpush1.bf16.msra.mxu0 0
    %389 = vmatprep.subr.bf16.mxu0 0
    %390 = vmatpush1.bf16.msra.mxu0 0
    %391 = vmatprep.subr.bf16.mxu0 0
    %392 = vmatpush1.bf16.msra.mxu0 0
    %393 = vmatprep.subr.bf16.mxu0 0
    %394 = vmatpush1.bf16.msra.mxu0 0
    %395 = vmatprep.subr.bf16.mxu0 0
    %396 = vmatpush1.bf16.msra.mxu0 0
    %397 = vmatprep.subr.bf16.mxu0 0
    %398 = vmatpush1.bf16.msra.mxu0 0
    %399 = vmatprep.mubr.bf16.mxu0 0
    %400 = vmatmul.mubr.bf16.gmra.mrb[0].mxu0 %v277
    %v401 = vpop.f32.mrb[0].mxu0
    %v402 = vadd.f32 %v113, %v401
    %v403 = vpop.f32.mrb[0].mxu0
    %v404 = vpop.f32.mrb[0].mxu0
    %v405 = vadd.f32 %v113, %v404
    %v406 = vpop.f32.mrb[0].mxu0
    %407 = vmatprep.mubr.bf16.mxu0 0
    %408 = vmatmul.mubr.bf16.gmra.mrb[0].mxu0 %v280
    %v409 = vpop.f32.mrb[0].mxu0
    %v410 = vadd.f32 %v113, %v409
    %v411 = vpop.f32.mrb[0].mxu0
    %v412 = vpop.f32.mrb[0].mxu0
    %v413 = vadd.f32 %v113, %v412
    %v414 = vpop.f32.mrb[0].mxu0
    %415 = vmatprep.mubr.bf16.mxu0 0
    %416 = vmatmul.mubr.bf16.gmra.mrb[0].mxu0 %v283
    %v417 = vpop.f32.mrb[0].mxu0
    %v418 = vadd.f32 %v113, %v417
    %v419 = vpop.f32.mrb[0].mxu0
    %v420 = vpop.f32.mrb[0].mxu0
    %v421 = vadd.f32 %v113, %v420
    %v422 = vpop.f32.mrb[0].mxu0
    %423 = vmatprep.mubr.bf16.mxu0 0
    %424 = vmatmul.mubr.bf16.gmra.mrb[0].mxu0 %v286
    %v425 = vpop.f32.mrb[0].mxu0
    %v426 = vadd.f32 %v113, %v425
    %v427 = vpop.f32.mrb[0].mxu0
    %v428 = vpop.f32.mrb[0].mxu0
    %v429 = vadd.f32 %v113, %v428
    %v430 = vpop.f32.mrb[0].mxu0
    %431 = vmatprep.mubr.bf16.mxu0 0
    %432 = vmatmul.mubr.bf16.gmra.mrb[0].mxu0 %v289
    %v433 = vpop.f32.mrb[0].mxu0
    %v434 = vadd.f32 %v113, %v433
    %v435 = vpop.f32.mrb[0].mxu0
    %v436 = vpop.f32.mrb[0].mxu0
    %v437 = vadd.f32 %v113, %v436
    %v438 = vpop.f32.mrb[0].mxu0
    %439 = vmatprep.mubr.bf16.mxu0 0
    %440 = vmatmul.mubr.bf16.gmra.mrb[0].mxu0 %v292
    %v441 = vpop.f32.mrb[0].mxu0
    %v442 = vadd.f32 %v113, %v441
    %v443 = vpop.f32.mrb[0].mxu0
    %v444 = vpop.f32.mrb[0].mxu0
    %v445 = vadd.f32 %v113, %v444
    %v446 = vpop.f32.mrb[0].mxu0
    %447 = vmatprep.mubr.bf16.mxu0 0
    %448 = vmatmul.mubr.bf16.gmra.mrb[0].mxu0 %v295
    %v449 = vpop.f32.mrb[0].mxu0
    %v450 = vadd.f32 %v113, %v449
    %v451 = vpop.f32.mrb[0].mxu0
    %v452 = vpop.f32.mrb[0].mxu0
    %v453 = vadd.f32 %v113, %v452
    %v454 = vpop.f32.mrb[0].mxu0
    %455 = vmatprep.mubr.bf16.mxu0 0
    %456 = vmatmul.mubr.bf16.gmra.mrb[0].mxu0 %v298
    %v457 = vpop.f32.mrb[0].mxu0
    %v458 = vadd.f32 %v113, %v457
    %v459 = vpop.f32.mrb[0].mxu0
    %v460 = vpop.f32.mrb[0].mxu0
    %v461 = vadd.f32 %v113, %v460
    %v462 = vpop.f32.mrb[0].mxu0
    %463 = vmatprep.mubr.bf16.mxu0 0
    %464 = vmatmul.mubr.bf16.gmra.mrb[0].mxu0 %v301
    %v465 = vpop.f32.mrb[0].mxu0
    %v466 = vadd.f32 %v113, %v465
    %v467 = vpop.f32.mrb[0].mxu0
    %v468 = vpop.f32.mrb[0].mxu0
    %v469 = vadd.f32 %v113, %v468
    %v470 = vpop.f32.mrb[0].mxu0
    %471 = vmatprep.mubr.bf16.mxu0 0
    %472 = vmatmul.mubr.bf16.gmra.mrb[0].mxu0 %v304
    %v473 = vpop.f32.mrb[0].mxu0
    %v474 = vadd.f32 %v113, %v473
    %v475 = vpop.f32.mrb[0].mxu0
    %v476 = vpop.f32.mrb[0].mxu0
    %v477 = vadd.f32 %v113, %v476
    %v478 = vpop.f32.mrb[0].mxu0
    %479 = vmatprep.mubr.bf16.mxu0 0
    %480 = vmatmul.mubr.bf16.gmra.mrb[0].mxu0 %v307
    %v481 = vpop.f32.mrb[0].mxu0
    %v482 = vadd.f32 %v113, %v481
    %v483 = vpop.f32.mrb[0].mxu0
    %v484 = vpop.f32.mrb[0].mxu0
    %v485 = vadd.f32 %v113, %v484
    %v486 = vpop.f32.mrb[0].mxu0
    %487 = vmatprep.mubr.bf16.mxu0 0
    %488 = vmatmul.mubr.bf16.gmra.mrb[0].mxu0 %v310
    %v489 = vpop.f32.mrb[0].mxu0
    %v490 = vadd.f32 %v113, %v489
    %v491 = vpop.f32.mrb[0].mxu0
    %v492 = vpop.f32.mrb[0].mxu0
    %v493 = vadd.f32 %v113, %v492
    %v494 = vpop.f32.mrb[0].mxu0
    %495 = vmatprep.mubr.bf16.mxu0 0
    %496 = vmatmul.mubr.bf16.gmra.mrb[0].mxu0 %v313
    %v497 = vpop.f32.mrb[0].mxu0
    %v498 = vadd.f32 %v113, %v497
    %v499 = vpop.f32.mrb[0].mxu0
    %v500 = vpop.f32.mrb[0].mxu0
    %v501 = vadd.f32 %v113, %v500
    %v502 = vpop.f32.mrb[0].mxu0
    %503 = vmatprep.mubr.bf16.mxu0 0
    %504 = vmatmul.mubr.bf16.gmra.mrb[0].mxu0 %v316
    %v505 = vpop.f32.mrb[0].mxu0
    %v506 = vadd.f32 %v113, %v505
    %v507 = vpop.f32.mrb[0].mxu0
    %v508 = vpop.f32.mrb[0].mxu0
    %v509 = vadd.f32 %v113, %v508
    %v510 = vpop.f32.mrb[0].mxu0
    %511 = vmatprep.mubr.bf16.mxu0 0
    %512 = vmatmul.mubr.bf16.gmra.mrb[0].mxu0 %v319
    %v513 = vpop.f32.mrb[0].mxu0
    %v514 = vadd.f32 %v113, %v513
    %v515 = vpop.f32.mrb[0].mxu0
    %v516 = vpop.f32.mrb[0].mxu0
    %v517 = vadd.f32 %v113, %v516
    %v518 = vpop.f32.mrb[0].mxu0
    %519 = vmatprep.mubr.bf16.mxu0 0
    %520 = vmatmul.mubr.bf16.gmra.mrb[0].mxu0 %v322
    %v521 = vpop.f32.mrb[0].mxu0
    %v522 = vadd.f32 %v113, %v521
    %v523 = vpop.f32.mrb[0].mxu0
    %v524 = vpop.f32.mrb[0].mxu0
    %v525 = vadd.f32 %v113, %v524
    %v526 = vpop.f32.mrb[0].mxu0
    %527 = vmatprep.mubr.bf16.mxu0 0
    %528 = vmatmul.mubr.bf16.gmra.mrb[0].mxu0 %v325
    %v529 = vpop.f32.mrb[0].mxu0
    %v530 = vadd.f32 %v113, %v529
    %v531 = vpop.f32.mrb[0].mxu0
    %v532 = vpop.f32.mrb[0].mxu0
    %v533 = vadd.f32 %v113, %v532
    %v534 = vpop.f32.mrb[0].mxu0
    %535 = vmatprep.mubr.bf16.mxu0 0
    %536 = vmatmul.mubr.bf16.gmra.mrb[0].mxu0 %v328
    %v537 = vpop.f32.mrb[0].mxu0
    %v538 = vadd.f32 %v113, %v537
    %v539 = vpop.f32.mrb[0].mxu0
    %v540 = vpop.f32.mrb[0].mxu0
    %v541 = vadd.f32 %v113, %v540
    %v542 = vpop.f32.mrb[0].mxu0
    %543 = vmatprep.mubr.bf16.mxu0 0
    %544 = vmatmul.mubr.bf16.gmra.mrb[0].mxu0 %v331
    %v545 = vpop.f32.mrb[0].mxu0
    %v546 = vadd.f32 %v113, %v545
    %v547 = vpop.f32.mrb[0].mxu0
    %v548 = vpop.f32.mrb[0].mxu0
    %v549 = vadd.f32 %v113, %v548
    %v550 = vpop.f32.mrb[0].mxu0
    %551 = vmatprep.mubr.bf16.mxu0 0
    %552 = vmatmul.mubr.bf16.gmra.mrb[0].mxu0 %v334
    %v553 = vpop.f32.mrb[0].mxu0
    %v554 = vadd.f32 %v113, %v553
    %v555 = vpop.f32.mrb[0].mxu0
    %v556 = vpop.f32.mrb[0].mxu0
    %v557 = vadd.f32 %v113, %v556
    %v558 = vpop.f32.mrb[0].mxu0
    %559 = vmatprep.mubr.bf16.mxu0 0
    %560 = vmatmul.mubr.bf16.gmra.mrb[0].mxu0 %v337
    %v561 = vpop.f32.mrb[0].mxu0
    %v562 = vadd.f32 %v113, %v561
    %v563 = vpop.f32.mrb[0].mxu0
    %v564 = vpop.f32.mrb[0].mxu0
    %v565 = vadd.f32 %v113, %v564
    %v566 = vpop.f32.mrb[0].mxu0
    %567 = vmatprep.mubr.bf16.mxu0 0
    %568 = vmatmul.mubr.bf16.gmra.mrb[0].mxu0 %v340
    %v569 = vpop.f32.mrb[0].mxu0
    %v570 = vadd.f32 %v113, %v569
    %v571 = vpop.f32.mrb[0].mxu0
    %v572 = vpop.f32.mrb[0].mxu0
    %v573 = vadd.f32 %v113, %v572
    %v574 = vpop.f32.mrb[0].mxu0
    %575 = vmatprep.mubr.bf16.mxu0 0
    %576 = vmatmul.mubr.bf16.gmra.mrb[0].mxu0 %v343
    %v577 = vpop.f32.mrb[0].mxu0
    %v578 = vadd.f32 %v113, %v577
    %v579 = vpop.f32.mrb[0].mxu0
    %v580 = vpop.f32.mrb[0].mxu0
    %v581 = vadd.f32 %v113, %v580
    %v582 = vpop.f32.mrb[0].mxu0
    %583 = vmatprep.mubr.bf16.mxu0 0
    %584 = vmatmul.mubr.bf16.gmra.mrb[0].mxu0 %v346
    %v585 = vpop.f32.mrb[0].mxu0
    %v586 = vadd.f32 %v113, %v585
    %v587 = vpop.f32.mrb[0].mxu0
    %v588 = vpop.f32.mrb[0].mxu0
    %v589 = vadd.f32 %v113, %v588
    %v590 = vpop.f32.mrb[0].mxu0
    %591 = vmatprep.mubr.bf16.mxu0 0
    %592 = vmatmul.mubr.bf16.gmra.mrb[0].mxu0 %v349
    %v593 = vpop.f32.mrb[0].mxu0
    %v594 = vadd.f32 %v113, %v593
    %v595 = vpop.f32.mrb[0].mxu0
    %v596 = vpop.f32.mrb[0].mxu0
    %v597 = vadd.f32 %v113, %v596
    %v598 = vpop.f32.mrb[0].mxu0
    %599 = vmatprep.mubr.bf16.mxu0 0
    %600 = vmatmul.mubr.bf16.gmra.mrb[0].mxu0 %v352
    %v601 = vpop.f32.mrb[0].mxu0
    %v602 = vadd.f32 %v113, %v601
    %v603 = vpop.f32.mrb[0].mxu0
    %v604 = vpop.f32.mrb[0].mxu0
    %v605 = vadd.f32 %v113, %v604
    %v606 = vpop.f32.mrb[0].mxu0
    %607 = vmatprep.mubr.bf16.mxu0 0
    %608 = vmatmul.mubr.bf16.gmra.mrb[0].mxu0 %v355
    %v609 = vpop.f32.mrb[0].mxu0
    %v610 = vadd.f32 %v113, %v609
    %v611 = vpop.f32.mrb[0].mxu0
    %v612 = vpop.f32.mrb[0].mxu0
    %v613 = vadd.f32 %v113, %v612
    %v614 = vpop.f32.mrb[0].mxu0
    %615 = vmatprep.mubr.bf16.mxu0 0
    %616 = vmatmul.mubr.bf16.gmra.mrb[0].mxu0 %v358
    %v617 = vpop.f32.mrb[0].mxu0
    %v618 = vadd.f32 %v113, %v617
    %v619 = vpop.f32.mrb[0].mxu0
    %v620 = vpop.f32.mrb[0].mxu0
    %v621 = vadd.f32 %v113, %v620
    %v622 = vpop.f32.mrb[0].mxu0
    %623 = vmatprep.mubr.bf16.mxu0 0
    %624 = vmatmul.mubr.bf16.gmra.mrb[0].mxu0 %v361
    %v625 = vpop.f32.mrb[0].mxu0
    %v626 = vadd.f32 %v113, %v625
    %v627 = vpop.f32.mrb[0].mxu0
    %v628 = vpop.f32.mrb[0].mxu0
    %v629 = vadd.f32 %v113, %v628
    %v630 = vpop.f32.mrb[0].mxu0
    %631 = vdwg.mxu0
    %v632 = vmax.f32 %v402, 0.0
    %v633 = vmax.f32 %v405, 0.0
    %v634 = vmax.f32 %v410, 0.0
    %v635 = vmax.f32 %v413, 0.0
    %v636 = vmax.f32 %v418, 0.0
    %v637 = vmax.f32 %v421, 0.0
    %v638 = vmax.f32 %v426, 0.0
    %v639 = vmax.f32 %v429, 0.0
    %v640 = vmax.f32 %v434, 0.0
    %v641 = vmax.f32 %v437, 0.0
    %v642 = vmax.f32 %v442, 0.0
    %v643 = vmax.f32 %v445, 0.0
    %v644 = vmax.f32 %v450, 0.0
    %v645 = vmax.f32 %v453, 0.0
    %v646 = vmax.f32 %v458, 0.0
    %v647 = vmax.f32 %v461, 0.0
    %v648 = vmax.f32 %v466, 0.0
    %v649 = vmax.f32 %v469, 0.0
    %v650 = vmax.f32 %v474, 0.0
    %v651 = vmax.f32 %v477, 0.0
    %v652 = vmax.f32 %v482, 0.0
    %v653 = vmax.f32 %v485, 0.0
    %v654 = vmax.f32 %v490, 0.0
    %v655 = vmax.f32 %v493, 0.0
    %v656 = vmax.f32 %v498, 0.0
    %v657 = vmax.f32 %v501, 0.0
    %v658 = vmax.f32 %v506, 0.0
    %v659 = vmax.f32 %v509, 0.0
    %v660 = vmax.f32 %v514, 0.0
    %v661 = vmax.f32 %v517, 0.0
    %v662 = vmax.f32 %v522, 0.0
    %v663 = vmax.f32 %v525, 0.0
    %v664 = vmax.f32 %v530, 0.0
    %v665 = vmax.f32 %v533, 0.0
    %v666 = vmax.f32 %v538, 0.0
    %v667 = vmax.f32 %v541, 0.0
    %v668 = vmax.f32 %v546, 0.0
    %v669 = vmax.f32 %v549, 0.0
    %v670 = vmax.f32 %v554, 0.0
    %v671 = vmax.f32 %v557, 0.0
    %v672 = vmax.f32 %v562, 0.0
    %v673 = vmax.f32 %v565, 0.0
    %v674 = vmax.f32 %v570, 0.0
    %v675 = vmax.f32 %v573, 0.0
    %v676 = vmax.f32 %v578, 0.0
    %v677 = vmax.f32 %v581, 0.0
    %v678 = vmax.f32 %v586, 0.0
    %v679 = vmax.f32 %v589, 0.0
    %v680 = vmax.f32 %v594, 0.0
    %v681 = vmax.f32 %v597, 0.0
    %v682 = vmax.f32 %v602, 0.0
    %v683 = vmax.f32 %v605, 0.0
    %v684 = vmax.f32 %v610, 0.0
    %v685 = vmax.f32 %v613, 0.0
    %v686 = vmax.f32 %v618, 0.0
    %v687 = vmax.f32 %v621, 0.0
    %v688 = vmax.f32 %v626, 0.0
    %v689 = vmax.f32 %v629, 0.0
    %vm690 = vcmask 130048
    %691 = vst.msk [vmem:[#allocation2] sm:$0xff] %vm690, %v632
    %692 = vst.msk [vmem:[#allocation2 + $0x8] sm:$0xff] %vm690, %v633
    %693 = vst.msk [vmem:[#allocation2 + $0x10] sm:$0xff] %vm690, %v634
    %694 = vst.msk [vmem:[#allocation2 + $0x18] sm:$0xff] %vm690, %v635
    %695 = vst.msk [vmem:[#allocation2 + $0x20] sm:$0xff] %vm690, %v636
    %696 = vst.msk [vmem:[#allocation2 + $0x28] sm:$0xff] %vm690, %v637
    %697 = vst.msk [vmem:[#allocation2 + $0x30] sm:$0xff] %vm690, %v638
    %698 = vst.msk [vmem:[#allocation2 + $0x38] sm:$0xff] %vm690, %v639
    %699 = vst.msk [vmem:[#allocation2 + $0x40] sm:$0xff] %vm690, %v640
    %700 = vst.msk [vmem:[#allocation2 + $0x48] sm:$0xff] %vm690, %v641
    %701 = vst.msk [vmem:[#allocation2 + $0x50] sm:$0xff] %vm690, %v642
    %702 = vst.msk [vmem:[#allocation2 + $0x58] sm:$0xff] %vm690, %v643
    %703 = vst.msk [vmem:[#allocation2 + $0x60] sm:$0xff] %vm690, %v644
    %704 = vst.msk [vmem:[#allocation2 + $0x68] sm:$0xff] %vm690, %v645
    %705 = vst.msk [vmem:[#allocation2 + $0x70] sm:$0xff] %vm690, %v646
    %706 = vst.msk [vmem:[#allocation2 + $0x78] sm:$0xff] %vm690, %v647
    %707 = vst.msk [vmem:[#allocation2 + $0x80] sm:$0xff] %vm690, %v648
    %708 = vst.msk [vmem:[#allocation2 + $0x88] sm:$0xff] %vm690, %v649
    %709 = vst.msk [vmem:[#allocation2 + $0x90] sm:$0xff] %vm690, %v650
    %710 = vst.msk [vmem:[#allocation2 + $0x98] sm:$0xff] %vm690, %v651
    %711 = vst.msk [vmem:[#allocation2 + $0xa0] sm:$0xff] %vm690, %v652
    %712 = vst.msk [vmem:[#allocation2 + $0xa8] sm:$0xff] %vm690, %v653
    %713 = vst.msk [vmem:[#allocation2 + $0xb0] sm:$0xff] %vm690, %v654
    %714 = vst.msk [vmem:[#allocation2 + $0xb8] sm:$0xff] %vm690, %v655
    %715 = vst.msk [vmem:[#allocation2 + $0xc0] sm:$0xff] %vm690, %v656
    %716 = vst.msk [vmem:[#allocation2 + $0xc8] sm:$0xff] %vm690, %v657
    %717 = vst.msk [vmem:[#allocation2 + $0xd0] sm:$0xff] %vm690, %v658
    %718 = vst.msk [vmem:[#allocation2 + $0xd8] sm:$0xff] %vm690, %v659
    %719 = vst.msk [vmem:[#allocation2 + $0xe0] sm:$0xff] %vm690, %v660
    %720 = vst.msk [vmem:[#allocation2 + $0xe8] sm:$0xff] %vm690, %v661
    %721 = vst.msk [vmem:[#allocation2 + $0xf0] sm:$0xff] %vm690, %v662
    %722 = vst.msk [vmem:[#allocation2 + $0xf8] sm:$0xff] %vm690, %v663
    %723 = vst.msk [vmem:[#allocation2 + $0x100] sm:$0xff] %vm690, %v664
    %724 = vst.msk [vmem:[#allocation2 + $0x108] sm:$0xff] %vm690, %v665
    %725 = vst.msk [vmem:[#allocation2 + $0x110] sm:$0xff] %vm690, %v666
    %726 = vst.msk [vmem:[#allocation2 + $0x118] sm:$0xff] %vm690, %v667
    %727 = vst.msk [vmem:[#allocation2 + $0x120] sm:$0xff] %vm690, %v668
    %728 = vst.msk [vmem:[#allocation2 + $0x128] sm:$0xff] %vm690, %v669
    %729 = vst.msk [vmem:[#allocation2 + $0x130] sm:$0xff] %vm690, %v670
    %730 = vst.msk [vmem:[#allocation2 + $0x138] sm:$0xff] %vm690, %v671
    %731 = vst.msk [vmem:[#allocation2 + $0x140] sm:$0xff] %vm690, %v672
    %732 = vst.msk [vmem:[#allocation2 + $0x148] sm:$0xff] %vm690, %v673
    %733 = vst.msk [vmem:[#allocation2 + $0x150] sm:$0xff] %vm690, %v674
    %734 = vst.msk [vmem:[#allocation2 + $0x158] sm:$0xff] %vm690, %v675
    %735 = vst.msk [vmem:[#allocation2 + $0x160] sm:$0xff] %vm690, %v676
    %736 = vst.msk [vmem:[#allocation2 + $0x168] sm:$0xff] %vm690, %v677
    %737 = vst.msk [vmem:[#allocation2 + $0x170] sm:$0xff] %vm690, %v678
    %738 = vst.msk [vmem:[#allocation2 + $0x178] sm:$0xff] %vm690, %v679
    %739 = vst.msk [vmem:[#allocation2 + $0x180] sm:$0xff] %vm690, %v680
    %740 = vst.msk [vmem:[#allocation2 + $0x188] sm:$0xff] %vm690, %v681
    %741 = vst.msk [vmem:[#allocation2 + $0x190] sm:$0xff] %vm690, %v682
    %742 = vst.msk [vmem:[#allocation2 + $0x198] sm:$0xff] %vm690, %v683
    %743 = vst.msk [vmem:[#allocation2 + $0x1a0] sm:$0xff] %vm690, %v684
    %744 = vst.msk [vmem:[#allocation2 + $0x1a8] sm:$0xff] %vm690, %v685
    %745 = vst.msk [vmem:[#allocation2 + $0x1b0] sm:$0xff] %vm690, %v686
    %746 = vst.msk [vmem:[#allocation2 + $0x1b8] sm:$0xff] %vm690, %v687
    %747 = vst.msk [vmem:[#allocation2 + $0x1c0] sm:$0xff] %vm690, %v688
    %748 = vst.msk [vmem:[#allocation2 + $0x1c8] sm:$0xff] %vm690, %v689
    %v749 = vld [vmem:[#allocation2] sm:$0xff]
    %v750 = vld [vmem:[#allocation2 + $0x8] sm:$0xff]
    %v751 = vld [vmem:[#allocation2 + $0x10] sm:$0xff]
    %v752 = vld [vmem:[#allocation2 + $0x18] sm:$0xff]
    %v753 = vld [vmem:[#allocation2 + $0x20] sm:$0xff]
    %v754 = vld [vmem:[#allocation2 + $0x28] sm:$0xff]
    %v755 = vld [vmem:[#allocation2 + $0x30] sm:$0xff]
    %v756 = vld [vmem:[#allocation2 + $0x38] sm:$0xff]
    %v757 = vld [vmem:[#allocation2 + $0x40] sm:$0xff]
    %v758 = vld [vmem:[#allocation2 + $0x48] sm:$0xff]
    %v759 = vld [vmem:[#allocation2 + $0x50] sm:$0xff]
    %v760 = vld [vmem:[#allocation2 + $0x58] sm:$0xff]
    %v761 = vld [vmem:[#allocation2 + $0x60] sm:$0xff]
    %v762 = vld [vmem:[#allocation2 + $0x68] sm:$0xff]
    %v763 = vld [vmem:[#allocation2 + $0x70] sm:$0xff]
    %v764 = vld [vmem:[#allocation2 + $0x78] sm:$0xff]
    %v765 = vld [vmem:[#allocation2 + $0x80] sm:$0xff]
    %v766 = vld [vmem:[#allocation2 + $0x88] sm:$0xff]
    %v767 = vld [vmem:[#allocation2 + $0x90] sm:$0xff]
    %v768 = vld [vmem:[#allocation2 + $0x98] sm:$0xff]
    %v769 = vld [vmem:[#allocation2 + $0xa0] sm:$0xff]
    %v770 = vld [vmem:[#allocation2 + $0xa8] sm:$0xff]
    %v771 = vld [vmem:[#allocation2 + $0xb0] sm:$0xff]
    %v772 = vld [vmem:[#allocation2 + $0xb8] sm:$0xff]
    %v773 = vld [vmem:[#allocation2 + $0xc0] sm:$0xff]
    %v774 = vld [vmem:[#allocation2 + $0xc8] sm:$0xff]
    %v775 = vld [vmem:[#allocation2 + $0xd0] sm:$0xff]
    %v776 = vld [vmem:[#allocation2 + $0xd8] sm:$0xff]
    %v777 = vld [vmem:[#allocation2 + $0xe0] sm:$0xff]
    %v778 = vld [vmem:[#allocation2 + $0xe8] sm:$0xff]
    %v779 = vld [vmem:[#allocation2 + $0xf0] sm:$0xff]
    %v780 = vld [vmem:[#allocation2 + $0xf8] sm:$0xff]
    %v781 = vld [vmem:[#allocation2 + $0x100] sm:$0xff]
    %v782 = vld [vmem:[#allocation2 + $0x108] sm:$0xff]
    %v783 = vld [vmem:[#allocation2 + $0x110] sm:$0xff]
    %v784 = vld [vmem:[#allocation2 + $0x118] sm:$0xff]
    %v785 = vld [vmem:[#allocation2 + $0x120] sm:$0xff]
    %v786 = vld [vmem:[#allocation2 + $0x128] sm:$0xff]
    %v787 = vld [vmem:[#allocation2 + $0x130] sm:$0xff]
    %v788 = vld [vmem:[#allocation2 + $0x138] sm:$0xff]
    %v789 = vld [vmem:[#allocation2 + $0x140] sm:$0xff]
    %v790 = vld [vmem:[#allocation2 + $0x148] sm:$0xff]
    %v791 = vld [vmem:[#allocation2 + $0x150] sm:$0xff]
    %v792 = vld [vmem:[#allocation2 + $0x158] sm:$0xff]
    %v793 = vld [vmem:[#allocation2 + $0x160] sm:$0xff]
    %v794 = vld [vmem:[#allocation2 + $0x168] sm:$0xff]
    %v795 = vld [vmem:[#allocation2 + $0x170] sm:$0xff]
    %v796 = vld [vmem:[#allocation2 + $0x178] sm:$0xff]
    %v797 = vld [vmem:[#allocation2 + $0x180] sm:$0xff]
    %v798 = vld [vmem:[#allocation2 + $0x188] sm:$0xff]
    %v799 = vld [vmem:[#allocation2 + $0x190] sm:$0xff]
    %v800 = vld [vmem:[#allocation2 + $0x198] sm:$0xff]
    %v801 = vld [vmem:[#allocation2 + $0x1a0] sm:$0xff]
    %802 = vst.msk [vmem:[#allocation3] sm:$0xff] %vm690, %v749
    %803 = vst.msk [vmem:[#allocation3 + $0x10] sm:$0xff] %vm690, %v750
    %804 = vst.msk [vmem:[#allocation3 + $0x20] sm:$0xff] %vm690, %v751
    %805 = vst.msk [vmem:[#allocation3 + $0x30] sm:$0xff] %vm690, %v752
    %806 = vst.msk [vmem:[#allocation3 + $0x40] sm:$0xff] %vm690, %v753
    %807 = vst.msk [vmem:[#allocation3 + $0x50] sm:$0xff] %vm690, %v754
    %808 = vst.msk [vmem:[#allocation3 + $0x60] sm:$0xff] %vm690, %v755
    %809 = vst.msk [vmem:[#allocation3 + $0x70] sm:$0xff] %vm690, %v756
    %810 = vst.msk [vmem:[#allocation3 + $0x80] sm:$0xff] %vm690, %v757
    %811 = vst.msk [vmem:[#allocation3 + $0x90] sm:$0xff] %vm690, %v758
    %812 = vst.msk [vmem:[#allocation3 + $0xa0] sm:$0xff] %vm690, %v759
    %813 = vst.msk [vmem:[#allocation3 + $0xb0] sm:$0xff] %vm690, %v760
    %814 = vst.msk [vmem:[#allocation3 + $0xc0] sm:$0xff] %vm690, %v761
    %815 = vst.msk [vmem:[#allocation3 + $0xd0] sm:$0xff] %vm690, %v762
    %816 = vst.msk [vmem:[#allocation3 + $0xe0] sm:$0xff] %vm690, %v763
    %817 = vst.msk [vmem:[#allocation3 + $0xf0] sm:$0xff] %vm690, %v764
    %818 = vst.msk [vmem:[#allocation3 + $0x100] sm:$0xff] %vm690, %v765
    %819 = vst.msk [vmem:[#allocation3 + $0x110] sm:$0xff] %vm690, %v766
    %820 = vst.msk [vmem:[#allocation3 + $0x120] sm:$0xff] %vm690, %v767
    %821 = vst.msk [vmem:[#allocation3 + $0x130] sm:$0xff] %vm690, %v768
    %822 = vst.msk [vmem:[#allocation3 + $0x140] sm:$0xff] %vm690, %v769
    %823 = vst.msk [vmem:[#allocation3 + $0x150] sm:$0xff] %vm690, %v770
    %824 = vst.msk [vmem:[#allocation3 + $0x160] sm:$0xff] %vm690, %v771
    %825 = vst.msk [vmem:[#allocation3 + $0x170] sm:$0xff] %vm690, %v772
    %826 = vst.msk [vmem:[#allocation3 + $0x180] sm:$0xff] %vm690, %v773
    %827 = vst.msk [vmem:[#allocation3 + $0x190] sm:$0xff] %vm690, %v774
    %828 = vst.msk [vmem:[#allocation3 + $0x1a0] sm:$0xff] %vm690, %v775
    %829 = vst.msk [vmem:[#allocation3 + $0x1b0] sm:$0xff] %vm690, %v776
    %830 = vst.msk [vmem:[#allocation3 + $0x1c0] sm:$0xff] %vm690, %v777
    %831 = vst.msk [vmem:[#allocation3 + $0x1d0] sm:$0xff] %vm690, %v778
    %832 = vst.msk [vmem:[#allocation3 + $0x1e0] sm:$0xff] %vm690, %v779
    %833 = vst.msk [vmem:[#allocation3 + $0x1f0] sm:$0xff] %vm690, %v780
    %834 = vst.msk [vmem:[#allocation3 + $0x200] sm:$0xff] %vm690, %v781
    %835 = vst.msk [vmem:[#allocation3 + $0x210] sm:$0xff] %vm690, %v782
    %836 = vst.msk [vmem:[#allocation3 + $0x220] sm:$0xff] %vm690, %v783
    %837 = vst.msk [vmem:[#allocation3 + $0x230] sm:$0xff] %vm690, %v784
    %838 = vst.msk [vmem:[#allocation3 + $0x240] sm:$0xff] %vm690, %v785
    %839 = vst.msk [vmem:[#allocation3 + $0x250] sm:$0xff] %vm690, %v786
    %840 = vst.msk [vmem:[#allocation3 + $0x260] sm:$0xff] %vm690, %v787
    %841 = vst.msk [vmem:[#allocation3 + $0x270] sm:$0xff] %vm690, %v788
    %842 = vst.msk [vmem:[#allocation3 + $0x280] sm:$0xff] %vm690, %v789
    %843 = vst.msk [vmem:[#allocation3 + $0x290] sm:$0xff] %vm690, %v790
    %844 = vst.msk [vmem:[#allocation3 + $0x2a0] sm:$0xff] %vm690, %v791
    %845 = vst.msk [vmem:[#allocation3 + $0x2b0] sm:$0xff] %vm690, %v792
    %846 = vst.msk [vmem:[#allocation3 + $0x2c0] sm:$0xff] %vm690, %v793
    %847 = vst.msk [vmem:[#allocation3 + $0x2d0] sm:$0xff] %vm690, %v794
    %848 = vst.msk [vmem:[#allocation3 + $0x2e0] sm:$0xff] %vm690, %v795
    %849 = vst.msk [vmem:[#allocation3 + $0x2f0] sm:$0xff] %vm690, %v796
    %850 = vst.msk [vmem:[#allocation3 + $0x300] sm:$0xff] %vm690, %v797
    %851 = vst.msk [vmem:[#allocation3 + $0x310] sm:$0xff] %vm690, %v798
    %852 = vst.msk [vmem:[#allocation3 + $0x320] sm:$0xff] %vm690, %v799
    %853 = vst.msk [vmem:[#allocation3 + $0x330] sm:$0xff] %vm690, %v800
    %854 = vst.msk [vmem:[#allocation3 + $0x340] sm:$0xff] %vm690, %v801
    %v855 = vld [vmem:[#allocation2 + $0x1] sm:$0xff]
    %v856 = vld [vmem:[#allocation2 + $0x9] sm:$0xff]
    %v857 = vld [vmem:[#allocation2 + $0x11] sm:$0xff]
    %v858 = vld [vmem:[#allocation2 + $0x19] sm:$0xff]
    %v859 = vld [vmem:[#allocation2 + $0x21] sm:$0xff]
    %v860 = vld [vmem:[#allocation2 + $0x29] sm:$0xff]
    %v861 = vld [vmem:[#allocation2 + $0x31] sm:$0xff]
    %v862 = vld [vmem:[#allocation2 + $0x39] sm:$0xff]
    %v863 = vld [vmem:[#allocation2 + $0x41] sm:$0xff]
    %v864 = vld [vmem:[#allocation2 + $0x49] sm:$0xff]
    %v865 = vld [vmem:[#allocation2 + $0x51] sm:$0xff]
    %v866 = vld [vmem:[#allocation2 + $0x59] sm:$0xff]
    %v867 = vld [vmem:[#allocation2 + $0x61] sm:$0xff]
    %v868 = vld [vmem:[#allocation2 + $0x69] sm:$0xff]
    %v869 = vld [vmem:[#allocation2 + $0x71] sm:$0xff]
    %v870 = vld [vmem:[#allocation2 + $0x79] sm:$0xff]
    %v871 = vld [vmem:[#allocation2 + $0x81] sm:$0xff]
    %v872 = vld [vmem:[#allocation2 + $0x89] sm:$0xff]
    %v873 = vld [vmem:[#allocation2 + $0x91] sm:$0xff]
    %v874 = vld [vmem:[#allocation2 + $0x99] sm:$0xff]
    %v875 = vld [vmem:[#allocation2 + $0xa1] sm:$0xff]
    %v876 = vld [vmem:[#allocation2 + $0xa9] sm:$0xff]
    %v877 = vld [vmem:[#allocation2 + $0xb1] sm:$0xff]
    %v878 = vld [vmem:[#allocation2 + $0xb9] sm:$0xff]
    %v879 = vld [vmem:[#allocation2 + $0xc1] sm:$0xff]
    %v880 = vld [vmem:[#allocation2 + $0xc9] sm:$0xff]
    %v881 = vld [vmem:[#allocation2 + $0xd1] sm:$0xff]
    %v882 = vld [vmem:[#allocation2 + $0xd9] sm:$0xff]
    %v883 = vld [vmem:[#allocation2 + $0xe1] sm:$0xff]
    %v884 = vld [vmem:[#allocation2 + $0xe9] sm:$0xff]
    %v885 = vld [vmem:[#allocation2 + $0xf1] sm:$0xff]
    %v886 = vld [vmem:[#allocation2 + $0xf9] sm:$0xff]
    %v887 = vld [vmem:[#allocation2 + $0x101] sm:$0xff]
    %v888 = vld [vmem:[#allocation2 + $0x109] sm:$0xff]
    %v889 = vld [vmem:[#allocation2 + $0x111] sm:$0xff]
    %v890 = vld [vmem:[#allocation2 + $0x119] sm:$0xff]
    %v891 = vld [vmem:[#allocation2 + $0x121] sm:$0xff]
    %v892 = vld [vmem:[#allocation2 + $0x129] sm:$0xff]
    %v893 = vld [vmem:[#allocation2 + $0x131] sm:$0xff]
    %v894 = vld [vmem:[#allocation2 + $0x139] sm:$0xff]
    %v895 = vld [vmem:[#allocation2 + $0x141] sm:$0xff]
    %v896 = vld [vmem:[#allocation2 + $0x149] sm:$0xff]
    %v897 = vld [vmem:[#allocation2 + $0x151] sm:$0xff]
    %v898 = vld [vmem:[#allocation2 + $0x159] sm:$0xff]
    %v899 = vld [vmem:[#allocation2 + $0x161] sm:$0xff]
    %v900 = vld [vmem:[#allocation2 + $0x169] sm:$0xff]
    %v901 = vld [vmem:[#allocation2 + $0x171] sm:$0xff]
    %v902 = vld [vmem:[#allocation2 + $0x179] sm:$0xff]
    %v903 = vld [vmem:[#allocation2 + $0x181] sm:$0xff]
    %v904 = vld [vmem:[#allocation2 + $0x189] sm:$0xff]
    %v905 = vld [vmem:[#allocation2 + $0x191] sm:$0xff]
    %v906 = vld [vmem:[#allocation2 + $0x199] sm:$0xff]
    %v907 = vld [vmem:[#allocation2 + $0x1a1] sm:$0xff]
    %961 = vrot.lane.b32.xlu0 %v855, 16
    %v962 = vpop.permute.xlu0 %961
    %963 = vrot.lane.b32.xlu0 %v856, 16
    %v964 = vpop.permute.xlu0 %963
    %965 = vrot.lane.b32.xlu0 %v857, 16
    %v966 = vpop.permute.xlu0 %965
    %967 = vrot.lane.b32.xlu0 %v858, 16
    %v968 = vpop.permute.xlu0 %967
    %969 = vrot.lane.b32.xlu0 %v859, 16
    %v970 = vpop.permute.xlu0 %969
    %971 = vrot.lane.b32.xlu0 %v860, 16
    %v972 = vpop.permute.xlu0 %971
    %973 = vrot.lane.b32.xlu0 %v861, 16
    %v974 = vpop.permute.xlu0 %973
    %975 = vrot.lane.b32.xlu0 %v862, 16
    %v976 = vpop.permute.xlu0 %975
    %977 = vrot.lane.b32.xlu0 %v863, 16
    %v978 = vpop.permute.xlu0 %977
    %979 = vrot.lane.b32.xlu0 %v864, 16
    %v980 = vpop.permute.xlu0 %979
    %981 = vrot.lane.b32.xlu0 %v865, 16
    %v982 = vpop.permute.xlu0 %981
    %983 = vrot.lane.b32.xlu0 %v866, 16
    %v984 = vpop.permute.xlu0 %983
    %985 = vrot.lane.b32.xlu0 %v867, 16
    %v986 = vpop.permute.xlu0 %985
    %987 = vrot.lane.b32.xlu0 %v868, 16
    %v988 = vpop.permute.xlu0 %987
    %989 = vrot.lane.b32.xlu0 %v869, 16
    %v990 = vpop.permute.xlu0 %989
    %991 = vrot.lane.b32.xlu0 %v870, 16
    %v992 = vpop.permute.xlu0 %991
    %993 = vrot.lane.b32.xlu0 %v871, 16
    %v994 = vpop.permute.xlu0 %993
    %995 = vrot.lane.b32.xlu0 %v872, 16
    %v996 = vpop.permute.xlu0 %995
    %997 = vrot.lane.b32.xlu0 %v873, 16
    %v998 = vpop.permute.xlu0 %997
    %999 = vrot.lane.b32.xlu0 %v874, 16
    %v1000 = vpop.permute.xlu0 %999
    %1001 = vrot.lane.b32.xlu0 %v875, 16
    %v1002 = vpop.permute.xlu0 %1001
    %1003 = vrot.lane.b32.xlu0 %v876, 16
    %v1004 = vpop.permute.xlu0 %1003
    %1005 = vrot.lane.b32.xlu0 %v877, 16
    %v1006 = vpop.permute.xlu0 %1005
    %1007 = vrot.lane.b32.xlu0 %v878, 16
    %v1008 = vpop.permute.xlu0 %1007
    %1009 = vrot.lane.b32.xlu0 %v879, 16
    %v1010 = vpop.permute.xlu0 %1009
    %1011 = vrot.lane.b32.xlu0 %v880, 16
    %v1012 = vpop.permute.xlu0 %1011
    %1013 = vrot.lane.b32.xlu0 %v881, 16
    %v1014 = vpop.permute.xlu0 %1013
    %1015 = vrot.lane.b32.xlu0 %v882, 16
    %v1016 = vpop.permute.xlu0 %1015
    %1017 = vrot.lane.b32.xlu0 %v883, 16
    %v1018 = vpop.permute.xlu0 %1017
    %1019 = vrot.lane.b32.xlu0 %v884, 16
    %v1020 = vpop.permute.xlu0 %1019
    %1021 = vrot.lane.b32.xlu0 %v885, 16
    %v1022 = vpop.permute.xlu0 %1021
    %1023 = vrot.lane.b32.xlu0 %v886, 16
    %v1024 = vpop.permute.xlu0 %1023
    %1025 = vrot.lane.b32.xlu0 %v887, 16
    %v1026 = vpop.permute.xlu0 %1025
    %1027 = vrot.lane.b32.xlu0 %v888, 16
    %v1028 = vpop.permute.xlu0 %1027
    %1029 = vrot.lane.b32.xlu0 %v889, 16
    %v1030 = vpop.permute.xlu0 %1029
    %1031 = vrot.lane.b32.xlu0 %v890, 16
    %v1032 = vpop.permute.xlu0 %1031
    %1033 = vrot.lane.b32.xlu0 %v891, 16
    %v1034 = vpop.permute.xlu0 %1033
    %1035 = vrot.lane.b32.xlu0 %v892, 16
    %v1036 = vpop.permute.xlu0 %1035
    %1037 = vrot.lane.b32.xlu0 %v893, 16
    %v1038 = vpop.permute.xlu0 %1037
    %1039 = vrot.lane.b32.xlu0 %v894, 16
    %v1040 = vpop.permute.xlu0 %1039
    %1041 = vrot.lane.b32.xlu0 %v895, 16
    %v1042 = vpop.permute.xlu0 %1041
    %1043 = vrot.lane.b32.xlu0 %v896, 16
    %v1044 = vpop.permute.xlu0 %1043
    %1045 = vrot.lane.b32.xlu0 %v897, 16
    %v1046 = vpop.permute.xlu0 %1045
    %1047 = vrot.lane.b32.xlu0 %v898, 16
    %v1048 = vpop.permute.xlu0 %1047
    %1049 = vrot.lane.b32.xlu0 %v899, 16
    %v1050 = vpop.permute.xlu0 %1049
    %1051 = vrot.lane.b32.xlu0 %v900, 16
    %v1052 = vpop.permute.xlu0 %1051
    %1053 = vrot.lane.b32.xlu0 %v901, 16
    %v1054 = vpop.permute.xlu0 %1053
    %1055 = vrot.lane.b32.xlu0 %v902, 16
    %v1056 = vpop.permute.xlu0 %1055
    %1057 = vrot.lane.b32.xlu0 %v903, 16
    %v1058 = vpop.permute.xlu0 %1057
    %1059 = vrot.lane.b32.xlu0 %v904, 16
    %v1060 = vpop.permute.xlu0 %1059
    %1061 = vrot.lane.b32.xlu0 %v905, 16
    %v1062 = vpop.permute.xlu0 %1061
    %1063 = vrot.lane.b32.xlu0 %v906, 16
    %v1064 = vpop.permute.xlu0 %1063
    %1065 = vrot.lane.b32.xlu0 %v907, 16
    %v1066 = vpop.permute.xlu0 %1065
    %vm1120 = vcmask 261248
    %1121 = vst.msk [vmem:[#allocation3] sm:$0xff] %vm1120, %v962
    %1122 = vst.msk [vmem:[#allocation3 + $0x10] sm:$0xff] %vm1120, %v964
    %1123 = vst.msk [vmem:[#allocation3 + $0x20] sm:$0xff] %vm1120, %v966
    %1124 = vst.msk [vmem:[#allocation3 + $0x30] sm:$0xff] %vm1120, %v968
    %1125 = vst.msk [vmem:[#allocation3 + $0x40] sm:$0xff] %vm1120, %v970
    %1126 = vst.msk [vmem:[#allocation3 + $0x50] sm:$0xff] %vm1120, %v972
    %1127 = vst.msk [vmem:[#allocation3 + $0x60] sm:$0xff] %vm1120, %v974
    %1128 = vst.msk [vmem:[#allocation3 + $0x70] sm:$0xff] %vm1120, %v976
    %1129 = vst.msk [vmem:[#allocation3 + $0x80] sm:$0xff] %vm1120, %v978
    %1130 = vst.msk [vmem:[#allocation3 + $0x90] sm:$0xff] %vm1120, %v980
    %1131 = vst.msk [vmem:[#allocation3 + $0xa0] sm:$0xff] %vm1120, %v982
    %1132 = vst.msk [vmem:[#allocation3 + $0xb0] sm:$0xff] %vm1120, %v984
    %1133 = vst.msk [vmem:[#allocation3 + $0xc0] sm:$0xff] %vm1120, %v986
    %1134 = vst.msk [vmem:[#allocation3 + $0xd0] sm:$0xff] %vm1120, %v988
    %1135 = vst.msk [vmem:[#allocation3 + $0xe0] sm:$0xff] %vm1120, %v990
    %1136 = vst.msk [vmem:[#allocation3 + $0xf0] sm:$0xff] %vm1120, %v992
    %1137 = vst.msk [vmem:[#allocation3 + $0x100] sm:$0xff] %vm1120, %v994
    %1138 = vst.msk [vmem:[#allocation3 + $0x110] sm:$0xff] %vm1120, %v996
    %1139 = vst.msk [vmem:[#allocation3 + $0x120] sm:$0xff] %vm1120, %v998
    %1140 = vst.msk [vmem:[#allocation3 + $0x130] sm:$0xff] %vm1120, %v1000
    %1141 = vst.msk [vmem:[#allocation3 + $0x140] sm:$0xff] %vm1120, %v1002
    %1142 = vst.msk [vmem:[#allocation3 + $0x150] sm:$0xff] %vm1120, %v1004
    %1143 = vst.msk [vmem:[#allocation3 + $0x160] sm:$0xff] %vm1120, %v1006
    %1144 = vst.msk [vmem:[#allocation3 + $0x170] sm:$0xff] %vm1120, %v1008
    %1145 = vst.msk [vmem:[#allocation3 + $0x180] sm:$0xff] %vm1120, %v1010
    %1146 = vst.msk [vmem:[#allocation3 + $0x190] sm:$0xff] %vm1120, %v1012
    %1147 = vst.msk [vmem:[#allocation3 + $0x1a0] sm:$0xff] %vm1120, %v1014
    %1148 = vst.msk [vmem:[#allocation3 + $0x1b0] sm:$0xff] %vm1120, %v1016
    %1149 = vst.msk [vmem:[#allocation3 + $0x1c0] sm:$0xff] %vm1120, %v1018
    %1150 = vst.msk [vmem:[#allocation3 + $0x1d0] sm:$0xff] %vm1120, %v1020
    %1151 = vst.msk [vmem:[#allocation3 + $0x1e0] sm:$0xff] %vm1120, %v1022
    %1152 = vst.msk [vmem:[#allocation3 + $0x1f0] sm:$0xff] %vm1120, %v1024
    %1153 = vst.msk [vmem:[#allocation3 + $0x200] sm:$0xff] %vm1120, %v1026
    %1154 = vst.msk [vmem:[#allocation3 + $0x210] sm:$0xff] %vm1120, %v1028
    %1155 = vst.msk [vmem:[#allocation3 + $0x220] sm:$0xff] %vm1120, %v1030
    %1156 = vst.msk [vmem:[#allocation3 + $0x230] sm:$0xff] %vm1120, %v1032
    %1157 = vst.msk [vmem:[#allocation3 + $0x240] sm:$0xff] %vm1120, %v1034
    %1158 = vst.msk [vmem:[#allocation3 + $0x250] sm:$0xff] %vm1120, %v1036
    %1159 = vst.msk [vmem:[#allocation3 + $0x260] sm:$0xff] %vm1120, %v1038
    %1160 = vst.msk [vmem:[#allocation3 + $0x270] sm:$0xff] %vm1120, %v1040
    %1161 = vst.msk [vmem:[#allocation3 + $0x280] sm:$0xff] %vm1120, %v1042
    %1162 = vst.msk [vmem:[#allocation3 + $0x290] sm:$0xff] %vm1120, %v1044
    %1163 = vst.msk [vmem:[#allocation3 + $0x2a0] sm:$0xff] %vm1120, %v1046
    %1164 = vst.msk [vmem:[#allocation3 + $0x2b0] sm:$0xff] %vm1120, %v1048
    %1165 = vst.msk [vmem:[#allocation3 + $0x2c0] sm:$0xff] %vm1120, %v1050
    %1166 = vst.msk [vmem:[#allocation3 + $0x2d0] sm:$0xff] %vm1120, %v1052
    %1167 = vst.msk [vmem:[#allocation3 + $0x2e0] sm:$0xff] %vm1120, %v1054
    %1168 = vst.msk [vmem:[#allocation3 + $0x2f0] sm:$0xff] %vm1120, %v1056
    %1169 = vst.msk [vmem:[#allocation3 + $0x300] sm:$0xff] %vm1120, %v1058
    %1170 = vst.msk [vmem:[#allocation3 + $0x310] sm:$0xff] %vm1120, %v1060
    %1171 = vst.msk [vmem:[#allocation3 + $0x320] sm:$0xff] %vm1120, %v1062
    %1172 = vst.msk [vmem:[#allocation3 + $0x330] sm:$0xff] %vm1120, %v1064
    %1173 = vst.msk [vmem:[#allocation3 + $0x340] sm:$0xff] %vm1120, %v1066
    %v1174 = vld [vmem:[#allocation2 + $0x2] sm:$0xff]
    %v1175 = vld [vmem:[#allocation2 + $0xa] sm:$0xff]
    %v1176 = vld [vmem:[#allocation2 + $0x12] sm:$0xff]
    %v1177 = vld [vmem:[#allocation2 + $0x1a] sm:$0xff]
    %v1178 = vld [vmem:[#allocation2 + $0x22] sm:$0xff]
    %v1179 = vld [vmem:[#allocation2 + $0x2a] sm:$0xff]
    %v1180 = vld [vmem:[#allocation2 + $0x32] sm:$0xff]
    %v1181 = vld [vmem:[#allocation2 + $0x3a] sm:$0xff]
    %v1182 = vld [vmem:[#allocation2 + $0x42] sm:$0xff]
    %v1183 = vld [vmem:[#allocation2 + $0x4a] sm:$0xff]
    %v1184 = vld [vmem:[#allocation2 + $0x52] sm:$0xff]
    %v1185 = vld [vmem:[#allocation2 + $0x5a] sm:$0xff]
    %v1186 = vld [vmem:[#allocation2 + $0x62] sm:$0xff]
    %v1187 = vld [vmem:[#allocation2 + $0x6a] sm:$0xff]
    %v1188 = vld [vmem:[#allocation2 + $0x72] sm:$0xff]
    %v1189 = vld [vmem:[#allocation2 + $0x7a] sm:$0xff]
    %v1190 = vld [vmem:[#allocation2 + $0x82] sm:$0xff]
    %v1191 = vld [vmem:[#allocation2 + $0x8a] sm:$0xff]
    %v1192 = vld [vmem:[#allocation2 + $0x92] sm:$0xff]
    %v1193 = vld [vmem:[#allocation2 + $0x9a] sm:$0xff]
    %v1194 = vld [vmem:[#allocation2 + $0xa2] sm:$0xff]
    %v1195 = vld [vmem:[#allocation2 + $0xaa] sm:$0xff]
    %v1196 = vld [vmem:[#allocation2 + $0xb2] sm:$0xff]
    %v1197 = vld [vmem:[#allocation2 + $0xba] sm:$0xff]
    %v1198 = vld [vmem:[#allocation2 + $0xc2] sm:$0xff]
    %v1199 = vld [vmem:[#allocation2 + $0xca] sm:$0xff]
    %v1200 = vld [vmem:[#allocation2 + $0xd2] sm:$0xff]
    %v1201 = vld [vmem:[#allocation2 + $0xda] sm:$0xff]
    %v1202 = vld [vmem:[#allocation2 + $0xe2] sm:$0xff]
    %v1203 = vld [vmem:[#allocation2 + $0xea] sm:$0xff]
    %v1204 = vld [vmem:[#allocation2 + $0xf2] sm:$0xff]
    %v1205 = vld [vmem:[#allocation2 + $0xfa] sm:$0xff]
    %v1206 = vld [vmem:[#allocation2 + $0x102] sm:$0xff]
    %v1207 = vld [vmem:[#allocation2 + $0x10a] sm:$0xff]
    %v1208 = vld [vmem:[#allocation2 + $0x112] sm:$0xff]
    %v1209 = vld [vmem:[#allocation2 + $0x11a] sm:$0xff]
    %v1210 = vld [vmem:[#allocation2 + $0x122] sm:$0xff]
    %v1211 = vld [vmem:[#allocation2 + $0x12a] sm:$0xff]
    %v1212 = vld [vmem:[#allocation2 + $0x132] sm:$0xff]
    %v1213 = vld [vmem:[#allocation2 + $0x13a] sm:$0xff]
    %v1214 = vld [vmem:[#allocation2 + $0x142] sm:$0xff]
    %v1215 = vld [vmem:[#allocation2 + $0x14a] sm:$0xff]
    %v1216 = vld [vmem:[#allocation2 + $0x152] sm:$0xff]
    %v1217 = vld [vmem:[#allocation2 + $0x15a] sm:$0xff]
    %v1218 = vld [vmem:[#allocation2 + $0x162] sm:$0xff]
    %v1219 = vld [vmem:[#allocation2 + $0x16a] sm:$0xff]
    %v1220 = vld [vmem:[#allocation2 + $0x172] sm:$0xff]
    %v1221 = vld [vmem:[#allocation2 + $0x17a] sm:$0xff]
    %v1222 = vld [vmem:[#allocation2 + $0x182] sm:$0xff]
    %v1223 = vld [vmem:[#allocation2 + $0x18a] sm:$0xff]
    %v1224 = vld [vmem:[#allocation2 + $0x192] sm:$0xff]
    %v1225 = vld [vmem:[#allocation2 + $0x19a] sm:$0xff]
    %v1226 = vld [vmem:[#allocation2 + $0x1a2] sm:$0xff]
    %1280 = vrot.lane.b32.xlu0 %v1174, 32
    %v1281 = vpop.permute.xlu0 %1280
    %1282 = vrot.lane.b32.xlu0 %v1175, 32
    %v1283 = vpop.permute.xlu0 %1282
    %1284 = vrot.lane.b32.xlu0 %v1176, 32
    %v1285 = vpop.permute.xlu0 %1284
    %1286 = vrot.lane.b32.xlu0 %v1177, 32
    %v1287 = vpop.permute.xlu0 %1286
    %1288 = vrot.lane.b32.xlu0 %v1178, 32
    %v1289 = vpop.permute.xlu0 %1288
    %1290 = vrot.lane.b32.xlu0 %v1179, 32
    %v1291 = vpop.permute.xlu0 %1290
    %1292 = vrot.lane.b32.xlu0 %v1180, 32
    %v1293 = vpop.permute.xlu0 %1292
    %1294 = vrot.lane.b32.xlu0 %v1181, 32
    %v1295 = vpop.permute.xlu0 %1294
    %1296 = vrot.lane.b32.xlu0 %v1182, 32
    %v1297 = vpop.permute.xlu0 %1296
    %1298 = vrot.lane.b32.xlu0 %v1183, 32
    %v1299 = vpop.permute.xlu0 %1298
    %1300 = vrot.lane.b32.xlu0 %v1184, 32
    %v1301 = vpop.permute.xlu0 %1300
    %1302 = vrot.lane.b32.xlu0 %v1185, 32
    %v1303 = vpop.permute.xlu0 %1302
    %1304 = vrot.lane.b32.xlu0 %v1186, 32
    %v1305 = vpop.permute.xlu0 %1304
    %1306 = vrot.lane.b32.xlu0 %v1187, 32
    %v1307 = vpop.permute.xlu0 %1306
    %1308 = vrot.lane.b32.xlu0 %v1188, 32
    %v1309 = vpop.permute.xlu0 %1308
    %1310 = vrot.lane.b32.xlu0 %v1189, 32
    %v1311 = vpop.permute.xlu0 %1310
    %1312 = vrot.lane.b32.xlu0 %v1190, 32
    %v1313 = vpop.permute.xlu0 %1312
    %1314 = vrot.lane.b32.xlu0 %v1191, 32
    %v1315 = vpop.permute.xlu0 %1314
    %1316 = vrot.lane.b32.xlu0 %v1192, 32
    %v1317 = vpop.permute.xlu0 %1316
    %1318 = vrot.lane.b32.xlu0 %v1193, 32
    %v1319 = vpop.permute.xlu0 %1318
    %1320 = vrot.lane.b32.xlu0 %v1194, 32
    %v1321 = vpop.permute.xlu0 %1320
    %1322 = vrot.lane.b32.xlu0 %v1195, 32
    %v1323 = vpop.permute.xlu0 %1322
    %1324 = vrot.lane.b32.xlu0 %v1196, 32
    %v1325 = vpop.permute.xlu0 %1324
    %1326 = vrot.lane.b32.xlu0 %v1197, 32
    %v1327 = vpop.permute.xlu0 %1326
    %1328 = vrot.lane.b32.xlu0 %v1198, 32
    %v1329 = vpop.permute.xlu0 %1328
    %1330 = vrot.lane.b32.xlu0 %v1199, 32
    %v1331 = vpop.permute.xlu0 %1330
    %1332 = vrot.lane.b32.xlu0 %v1200, 32
    %v1333 = vpop.permute.xlu0 %1332
    %1334 = vrot.lane.b32.xlu0 %v1201, 32
    %v1335 = vpop.permute.xlu0 %1334
    %1336 = vrot.lane.b32.xlu0 %v1202, 32
    %v1337 = vpop.permute.xlu0 %1336
    %1338 = vrot.lane.b32.xlu0 %v1203, 32
    %v1339 = vpop.permute.xlu0 %1338
    %1340 = vrot.lane.b32.xlu0 %v1204, 32
    %v1341 = vpop.permute.xlu0 %1340
    %1342 = vrot.lane.b32.xlu0 %v1205, 32
    %v1343 = vpop.permute.xlu0 %1342
    %1344 = vrot.lane.b32.xlu0 %v1206, 32
    %v1345 = vpop.permute.xlu0 %1344
    %1346 = vrot.lane.b32.xlu0 %v1207, 32
    %v1347 = vpop.permute.xlu0 %1346
    %1348 = vrot.lane.b32.xlu0 %v1208, 32
    %v1349 = vpop.permute.xlu0 %1348
    %1350 = vrot.lane.b32.xlu0 %v1209, 32
    %v1351 = vpop.permute.xlu0 %1350
    %1352 = vrot.lane.b32.xlu0 %v1210, 32
    %v1353 = vpop.permute.xlu0 %1352
    %1354 = vrot.lane.b32.xlu0 %v1211, 32
    %v1355 = vpop.permute.xlu0 %1354
    %1356 = vrot.lane.b32.xlu0 %v1212, 32
    %v1357 = vpop.permute.xlu0 %1356
    %1358 = vrot.lane.b32.xlu0 %v1213, 32
    %v1359 = vpop.permute.xlu0 %1358
    %1360 = vrot.lane.b32.xlu0 %v1214, 32
    %v1361 = vpop.permute.xlu0 %1360
    %1362 = vrot.lane.b32.xlu0 %v1215, 32
    %v1363 = vpop.permute.xlu0 %1362
    %1364 = vrot.lane.b32.xlu0 %v1216, 32
    %v1365 = vpop.permute.xlu0 %1364
    %1366 = vrot.lane.b32.xlu0 %v1217, 32
    %v1367 = vpop.permute.xlu0 %1366
    %1368 = vrot.lane.b32.xlu0 %v1218, 32
    %v1369 = vpop.permute.xlu0 %1368
    %1370 = vrot.lane.b32.xlu0 %v1219, 32
    %v1371 = vpop.permute.xlu0 %1370
    %1372 = vrot.lane.b32.xlu0 %v1220, 32
    %v1373 = vpop.permute.xlu0 %1372
    %1374 = vrot.lane.b32.xlu0 %v1221, 32
    %v1375 = vpop.permute.xlu0 %1374
    %1376 = vrot.lane.b32.xlu0 %v1222, 32
    %v1377 = vpop.permute.xlu0 %1376
    %1378 = vrot.lane.b32.xlu0 %v1223, 32
    %v1379 = vpop.permute.xlu0 %1378
    %1380 = vrot.lane.b32.xlu0 %v1224, 32
    %v1381 = vpop.permute.xlu0 %1380
    %1382 = vrot.lane.b32.xlu0 %v1225, 32
    %v1383 = vpop.permute.xlu0 %1382
    %1384 = vrot.lane.b32.xlu0 %v1226, 32
    %v1385 = vpop.permute.xlu0 %1384
    %vm1439 = vcmask 392448
    %1440 = vst.msk [vmem:[#allocation3] sm:$0xff] %vm1439, %v1281
    %1441 = vst.msk [vmem:[#allocation3 + $0x10] sm:$0xff] %vm1439, %v1283
    %1442 = vst.msk [vmem:[#allocation3 + $0x20] sm:$0xff] %vm1439, %v1285
    %1443 = vst.msk [vmem:[#allocation3 + $0x30] sm:$0xff] %vm1439, %v1287
    %1444 = vst.msk [vmem:[#allocation3 + $0x40] sm:$0xff] %vm1439, %v1289
    %1445 = vst.msk [vmem:[#allocation3 + $0x50] sm:$0xff] %vm1439, %v1291
    %1446 = vst.msk [vmem:[#allocation3 + $0x60] sm:$0xff] %vm1439, %v1293
    %1447 = vst.msk [vmem:[#allocation3 + $0x70] sm:$0xff] %vm1439, %v1295
    %1448 = vst.msk [vmem:[#allocation3 + $0x80] sm:$0xff] %vm1439, %v1297
    %1449 = vst.msk [vmem:[#allocation3 + $0x90] sm:$0xff] %vm1439, %v1299
    %1450 = vst.msk [vmem:[#allocation3 + $0xa0] sm:$0xff] %vm1439, %v1301
    %1451 = vst.msk [vmem:[#allocation3 + $0xb0] sm:$0xff] %vm1439, %v1303
    %1452 = vst.msk [vmem:[#allocation3 + $0xc0] sm:$0xff] %vm1439, %v1305
    %1453 = vst.msk [vmem:[#allocation3 + $0xd0] sm:$0xff] %vm1439, %v1307
    %1454 = vst.msk [vmem:[#allocation3 + $0xe0] sm:$0xff] %vm1439, %v1309
    %1455 = vst.msk [vmem:[#allocation3 + $0xf0] sm:$0xff] %vm1439, %v1311
    %1456 = vst.msk [vmem:[#allocation3 + $0x100] sm:$0xff] %vm1439, %v1313
    %1457 = vst.msk [vmem:[#allocation3 + $0x110] sm:$0xff] %vm1439, %v1315
    %1458 = vst.msk [vmem:[#allocation3 + $0x120] sm:$0xff] %vm1439, %v1317
    %1459 = vst.msk [vmem:[#allocation3 + $0x130] sm:$0xff] %vm1439, %v1319
    %1460 = vst.msk [vmem:[#allocation3 + $0x140] sm:$0xff] %vm1439, %v1321
    %1461 = vst.msk [vmem:[#allocation3 + $0x150] sm:$0xff] %vm1439, %v1323
    %1462 = vst.msk [vmem:[#allocation3 + $0x160] sm:$0xff] %vm1439, %v1325
    %1463 = vst.msk [vmem:[#allocation3 + $0x170] sm:$0xff] %vm1439, %v1327
    %1464 = vst.msk [vmem:[#allocation3 + $0x180] sm:$0xff] %vm1439, %v1329
    %1465 = vst.msk [vmem:[#allocation3 + $0x190] sm:$0xff] %vm1439, %v1331
    %1466 = vst.msk [vmem:[#allocation3 + $0x1a0] sm:$0xff] %vm1439, %v1333
    %1467 = vst.msk [vmem:[#allocation3 + $0x1b0] sm:$0xff] %vm1439, %v1335
    %1468 = vst.msk [vmem:[#allocation3 + $0x1c0] sm:$0xff] %vm1439, %v1337
    %1469 = vst.msk [vmem:[#allocation3 + $0x1d0] sm:$0xff] %vm1439, %v1339
    %1470 = vst.msk [vmem:[#allocation3 + $0x1e0] sm:$0xff] %vm1439, %v1341
    %1471 = vst.msk [vmem:[#allocation3 + $0x1f0] sm:$0xff] %vm1439, %v1343
    %1472 = vst.msk [vmem:[#allocation3 + $0x200] sm:$0xff] %vm1439, %v1345
    %1473 = vst.msk [vmem:[#allocation3 + $0x210] sm:$0xff] %vm1439, %v1347
    %1474 = vst.msk [vmem:[#allocation3 + $0x220] sm:$0xff] %vm1439, %v1349
    %1475 = vst.msk [vmem:[#allocation3 + $0x230] sm:$0xff] %vm1439, %v1351
    %1476 = vst.msk [vmem:[#allocation3 + $0x240] sm:$0xff] %vm1439, %v1353
    %1477 = vst.msk [vmem:[#allocation3 + $0x250] sm:$0xff] %vm1439, %v1355
    %1478 = vst.msk [vmem:[#allocation3 + $0x260] sm:$0xff] %vm1439, %v1357
    %1479 = vst.msk [vmem:[#allocation3 + $0x270] sm:$0xff] %vm1439, %v1359
    %1480 = vst.msk [vmem:[#allocation3 + $0x280] sm:$0xff] %vm1439, %v1361
    %1481 = vst.msk [vmem:[#allocation3 + $0x290] sm:$0xff] %vm1439, %v1363
    %1482 = vst.msk [vmem:[#allocation3 + $0x2a0] sm:$0xff] %vm1439, %v1365
    %1483 = vst.msk [vmem:[#allocation3 + $0x2b0] sm:$0xff] %vm1439, %v1367
    %1484 = vst.msk [vmem:[#allocation3 + $0x2c0] sm:$0xff] %vm1439, %v1369
    %1485 = vst.msk [vmem:[#allocation3 + $0x2d0] sm:$0xff] %vm1439, %v1371
    %1486 = vst.msk [vmem:[#allocation3 + $0x2e0] sm:$0xff] %vm1439, %v1373
    %1487 = vst.msk [vmem:[#allocation3 + $0x2f0] sm:$0xff] %vm1439, %v1375
    %1488 = vst.msk [vmem:[#allocation3 + $0x300] sm:$0xff] %vm1439, %v1377
    %1489 = vst.msk [vmem:[#allocation3 + $0x310] sm:$0xff] %vm1439, %v1379
    %1490 = vst.msk [vmem:[#allocation3 + $0x320] sm:$0xff] %vm1439, %v1381
    %1491 = vst.msk [vmem:[#allocation3 + $0x330] sm:$0xff] %vm1439, %v1383
    %1492 = vst.msk [vmem:[#allocation3 + $0x340] sm:$0xff] %vm1439, %v1385
    %v1493 = vld [vmem:[#allocation2 + $0x10] sm:$0xff]
    %v1494 = vld [vmem:[#allocation2 + $0x18] sm:$0xff]
    %v1495 = vld [vmem:[#allocation2 + $0x20] sm:$0xff]
    %v1496 = vld [vmem:[#allocation2 + $0x28] sm:$0xff]
    %v1497 = vld [vmem:[#allocation2 + $0x30] sm:$0xff]
    %v1498 = vld [vmem:[#allocation2 + $0x38] sm:$0xff]
    %v1499 = vld [vmem:[#allocation2 + $0x40] sm:$0xff]
    %v1500 = vld [vmem:[#allocation2 + $0x48] sm:$0xff]
    %v1501 = vld [vmem:[#allocation2 + $0x50] sm:$0xff]
    %v1502 = vld [vmem:[#allocation2 + $0x58] sm:$0xff]
    %v1503 = vld [vmem:[#allocation2 + $0x60] sm:$0xff]
    %v1504 = vld [vmem:[#allocation2 + $0x68] sm:$0xff]
    %v1505 = vld [vmem:[#allocation2 + $0x70] sm:$0xff]
    %v1506 = vld [vmem:[#allocation2 + $0x78] sm:$0xff]
    %v1507 = vld [vmem:[#allocation2 + $0x80] sm:$0xff]
    %v1508 = vld [vmem:[#allocation2 + $0x88] sm:$0xff]
    %v1509 = vld [vmem:[#allocation2 + $0x90] sm:$0xff]
    %v1510 = vld [vmem:[#allocation2 + $0x98] sm:$0xff]
    %v1511 = vld [vmem:[#allocation2 + $0xa0] sm:$0xff]
    %v1512 = vld [vmem:[#allocation2 + $0xa8] sm:$0xff]
    %v1513 = vld [vmem:[#allocation2 + $0xb0] sm:$0xff]
    %v1514 = vld [vmem:[#allocation2 + $0xb8] sm:$0xff]
    %v1515 = vld [vmem:[#allocation2 + $0xc0] sm:$0xff]
    %v1516 = vld [vmem:[#allocation2 + $0xc8] sm:$0xff]
    %v1517 = vld [vmem:[#allocation2 + $0xd0] sm:$0xff]
    %v1518 = vld [vmem:[#allocation2 + $0xd8] sm:$0xff]
    %v1519 = vld [vmem:[#allocation2 + $0xe0] sm:$0xff]
    %v1520 = vld [vmem:[#allocation2 + $0xe8] sm:$0xff]
    %v1521 = vld [vmem:[#allocation2 + $0xf0] sm:$0xff]
    %v1522 = vld [vmem:[#allocation2 + $0xf8] sm:$0xff]
    %v1523 = vld [vmem:[#allocation2 + $0x100] sm:$0xff]
    %v1524 = vld [vmem:[#allocation2 + $0x108] sm:$0xff]
    %v1525 = vld [vmem:[#allocation2 + $0x110] sm:$0xff]
    %v1526 = vld [vmem:[#allocation2 + $0x118] sm:$0xff]
    %v1527 = vld [vmem:[#allocation2 + $0x120] sm:$0xff]
    %v1528 = vld [vmem:[#allocation2 + $0x128] sm:$0xff]
    %v1529 = vld [vmem:[#allocation2 + $0x130] sm:$0xff]
    %v1530 = vld [vmem:[#allocation2 + $0x138] sm:$0xff]
    %v1531 = vld [vmem:[#allocation2 + $0x140] sm:$0xff]
    %v1532 = vld [vmem:[#allocation2 + $0x148] sm:$0xff]
    %v1533 = vld [vmem:[#allocation2 + $0x150] sm:$0xff]
    %v1534 = vld [vmem:[#allocation2 + $0x158] sm:$0xff]
    %v1535 = vld [vmem:[#allocation2 + $0x160] sm:$0xff]
    %v1536 = vld [vmem:[#allocation2 + $0x168] sm:$0xff]
    %v1537 = vld [vmem:[#allocation2 + $0x170] sm:$0xff]
    %v1538 = vld [vmem:[#allocation2 + $0x178] sm:$0xff]
    %v1539 = vld [vmem:[#allocation2 + $0x180] sm:$0xff]
    %v1540 = vld [vmem:[#allocation2 + $0x188] sm:$0xff]
    %v1541 = vld [vmem:[#allocation2 + $0x190] sm:$0xff]
    %v1542 = vld [vmem:[#allocation2 + $0x198] sm:$0xff]
    %v1543 = vld [vmem:[#allocation2 + $0x1a0] sm:$0xff]
    %v1544 = vld [vmem:[#allocation2 + $0x1a8] sm:$0xff]
    %v1545 = vld [vmem:[#allocation2 + $0x1b0] sm:$0xff]
    %1599 = vrot.lane.b32.xlu0 %v1493, 48
    %v1600 = vpop.permute.xlu0 %1599
    %1601 = vrot.lane.b32.xlu0 %v1494, 48
    %v1602 = vpop.permute.xlu0 %1601
    %1603 = vrot.lane.b32.xlu0 %v1495, 48
    %v1604 = vpop.permute.xlu0 %1603
    %1605 = vrot.lane.b32.xlu0 %v1496, 48
    %v1606 = vpop.permute.xlu0 %1605
    %1607 = vrot.lane.b32.xlu0 %v1497, 48
    %v1608 = vpop.permute.xlu0 %1607
    %1609 = vrot.lane.b32.xlu0 %v1498, 48
    %v1610 = vpop.permute.xlu0 %1609
    %1611 = vrot.lane.b32.xlu0 %v1499, 48
    %v1612 = vpop.permute.xlu0 %1611
    %1613 = vrot.lane.b32.xlu0 %v1500, 48
    %v1614 = vpop.permute.xlu0 %1613
    %1615 = vrot.lane.b32.xlu0 %v1501, 48
    %v1616 = vpop.permute.xlu0 %1615
    %1617 = vrot.lane.b32.xlu0 %v1502, 48
    %v1618 = vpop.permute.xlu0 %1617
    %1619 = vrot.lane.b32.xlu0 %v1503, 48
    %v1620 = vpop.permute.xlu0 %1619
    %1621 = vrot.lane.b32.xlu0 %v1504, 48
    %v1622 = vpop.permute.xlu0 %1621
    %1623 = vrot.lane.b32.xlu0 %v1505, 48
    %v1624 = vpop.permute.xlu0 %1623
    %1625 = vrot.lane.b32.xlu0 %v1506, 48
    %v1626 = vpop.permute.xlu0 %1625
    %1627 = vrot.lane.b32.xlu0 %v1507, 48
    %v1628 = vpop.permute.xlu0 %1627
    %1629 = vrot.lane.b32.xlu0 %v1508, 48
    %v1630 = vpop.permute.xlu0 %1629
    %1631 = vrot.lane.b32.xlu0 %v1509, 48
    %v1632 = vpop.permute.xlu0 %1631
    %1633 = vrot.lane.b32.xlu0 %v1510, 48
    %v1634 = vpop.permute.xlu0 %1633
    %1635 = vrot.lane.b32.xlu0 %v1511, 48
    %v1636 = vpop.permute.xlu0 %1635
    %1637 = vrot.lane.b32.xlu0 %v1512, 48
    %v1638 = vpop.permute.xlu0 %1637
    %1639 = vrot.lane.b32.xlu0 %v1513, 48
    %v1640 = vpop.permute.xlu0 %1639
    %1641 = vrot.lane.b32.xlu0 %v1514, 48
    %v1642 = vpop.permute.xlu0 %1641
    %1643 = vrot.lane.b32.xlu0 %v1515, 48
    %v1644 = vpop.permute.xlu0 %1643
    %1645 = vrot.lane.b32.xlu0 %v1516, 48
    %v1646 = vpop.permute.xlu0 %1645
    %1647 = vrot.lane.b32.xlu0 %v1517, 48
    %v1648 = vpop.permute.xlu0 %1647
    %1649 = vrot.lane.b32.xlu0 %v1518, 48
    %v1650 = vpop.permute.xlu0 %1649
    %1651 = vrot.lane.b32.xlu0 %v1519, 48
    %v1652 = vpop.permute.xlu0 %1651
    %1653 = vrot.lane.b32.xlu0 %v1520, 48
    %v1654 = vpop.permute.xlu0 %1653
    %1655 = vrot.lane.b32.xlu0 %v1521, 48
    %v1656 = vpop.permute.xlu0 %1655
    %1657 = vrot.lane.b32.xlu0 %v1522, 48
    %v1658 = vpop.permute.xlu0 %1657
    %1659 = vrot.lane.b32.xlu0 %v1523, 48
    %v1660 = vpop.permute.xlu0 %1659
    %1661 = vrot.lane.b32.xlu0 %v1524, 48
    %v1662 = vpop.permute.xlu0 %1661
    %1663 = vrot.lane.b32.xlu0 %v1525, 48
    %v1664 = vpop.permute.xlu0 %1663
    %1665 = vrot.lane.b32.xlu0 %v1526, 48
    %v1666 = vpop.permute.xlu0 %1665
    %1667 = vrot.lane.b32.xlu0 %v1527, 48
    %v1668 = vpop.permute.xlu0 %1667
    %1669 = vrot.lane.b32.xlu0 %v1528, 48
    %v1670 = vpop.permute.xlu0 %1669
    %1671 = vrot.lane.b32.xlu0 %v1529, 48
    %v1672 = vpop.permute.xlu0 %1671
    %1673 = vrot.lane.b32.xlu0 %v1530, 48
    %v1674 = vpop.permute.xlu0 %1673
    %1675 = vrot.lane.b32.xlu0 %v1531, 48
    %v1676 = vpop.permute.xlu0 %1675
    %1677 = vrot.lane.b32.xlu0 %v1532, 48
    %v1678 = vpop.permute.xlu0 %1677
    %1679 = vrot.lane.b32.xlu0 %v1533, 48
    %v1680 = vpop.permute.xlu0 %1679
    %1681 = vrot.lane.b32.xlu0 %v1534, 48
    %v1682 = vpop.permute.xlu0 %1681
    %1683 = vrot.lane.b32.xlu0 %v1535, 48
    %v1684 = vpop.permute.xlu0 %1683
    %1685 = vrot.lane.b32.xlu0 %v1536, 48
    %v1686 = vpop.permute.xlu0 %1685
    %1687 = vrot.lane.b32.xlu0 %v1537, 48
    %v1688 = vpop.permute.xlu0 %1687
    %1689 = vrot.lane.b32.xlu0 %v1538, 48
    %v1690 = vpop.permute.xlu0 %1689
    %1691 = vrot.lane.b32.xlu0 %v1539, 48
    %v1692 = vpop.permute.xlu0 %1691
    %1693 = vrot.lane.b32.xlu0 %v1540, 48
    %v1694 = vpop.permute.xlu0 %1693
    %1695 = vrot.lane.b32.xlu0 %v1541, 48
    %v1696 = vpop.permute.xlu0 %1695
    %1697 = vrot.lane.b32.xlu0 %v1542, 48
    %v1698 = vpop.permute.xlu0 %1697
    %1699 = vrot.lane.b32.xlu0 %v1543, 48
    %v1700 = vpop.permute.xlu0 %1699
    %1701 = vrot.lane.b32.xlu0 %v1544, 48
    %v1702 = vpop.permute.xlu0 %1701
    %1703 = vrot.lane.b32.xlu0 %v1545, 48
    %v1704 = vpop.permute.xlu0 %1703
    %vm1758 = vcmask 523648
    %1759 = vst.msk [vmem:[#allocation3] sm:$0xff] %vm1758, %v1600
    %1760 = vst.msk [vmem:[#allocation3 + $0x10] sm:$0xff] %vm1758, %v1602
    %1761 = vst.msk [vmem:[#allocation3 + $0x20] sm:$0xff] %vm1758, %v1604
    %1762 = vst.msk [vmem:[#allocation3 + $0x30] sm:$0xff] %vm1758, %v1606
    %1763 = vst.msk [vmem:[#allocation3 + $0x40] sm:$0xff] %vm1758, %v1608
    %1764 = vst.msk [vmem:[#allocation3 + $0x50] sm:$0xff] %vm1758, %v1610
    %1765 = vst.msk [vmem:[#allocation3 + $0x60] sm:$0xff] %vm1758, %v1612
    %1766 = vst.msk [vmem:[#allocation3 + $0x70] sm:$0xff] %vm1758, %v1614
    %1767 = vst.msk [vmem:[#allocation3 + $0x80] sm:$0xff] %vm1758, %v1616
    %1768 = vst.msk [vmem:[#allocation3 + $0x90] sm:$0xff] %vm1758, %v1618
    %1769 = vst.msk [vmem:[#allocation3 + $0xa0] sm:$0xff] %vm1758, %v1620
    %1770 = vst.msk [vmem:[#allocation3 + $0xb0] sm:$0xff] %vm1758, %v1622
    %1771 = vst.msk [vmem:[#allocation3 + $0xc0] sm:$0xff] %vm1758, %v1624
    %1772 = vst.msk [vmem:[#allocation3 + $0xd0] sm:$0xff] %vm1758, %v1626
    %1773 = vst.msk [vmem:[#allocation3 + $0xe0] sm:$0xff] %vm1758, %v1628
    %1774 = vst.msk [vmem:[#allocation3 + $0xf0] sm:$0xff] %vm1758, %v1630
    %1775 = vst.msk [vmem:[#allocation3 + $0x100] sm:$0xff] %vm1758, %v1632
    %1776 = vst.msk [vmem:[#allocation3 + $0x110] sm:$0xff] %vm1758, %v1634
    %1777 = vst.msk [vmem:[#allocation3 + $0x120] sm:$0xff] %vm1758, %v1636
    %1778 = vst.msk [vmem:[#allocation3 + $0x130] sm:$0xff] %vm1758, %v1638
    %1779 = vst.msk [vmem:[#allocation3 + $0x140] sm:$0xff] %vm1758, %v1640
    %1780 = vst.msk [vmem:[#allocation3 + $0x150] sm:$0xff] %vm1758, %v1642
    %1781 = vst.msk [vmem:[#allocation3 + $0x160] sm:$0xff] %vm1758, %v1644
    %1782 = vst.msk [vmem:[#allocation3 + $0x170] sm:$0xff] %vm1758, %v1646
    %1783 = vst.msk [vmem:[#allocation3 + $0x180] sm:$0xff] %vm1758, %v1648
    %1784 = vst.msk [vmem:[#allocation3 + $0x190] sm:$0xff] %vm1758, %v1650
    %1785 = vst.msk [vmem:[#allocation3 + $0x1a0] sm:$0xff] %vm1758, %v1652
    %1786 = vst.msk [vmem:[#allocation3 + $0x1b0] sm:$0xff] %vm1758, %v1654
    %1787 = vst.msk [vmem:[#allocation3 + $0x1c0] sm:$0xff] %vm1758, %v1656
    %1788 = vst.msk [vmem:[#allocation3 + $0x1d0] sm:$0xff] %vm1758, %v1658
    %1789 = vst.msk [vmem:[#allocation3 + $0x1e0] sm:$0xff] %vm1758, %v1660
    %1790 = vst.msk [vmem:[#allocation3 + $0x1f0] sm:$0xff] %vm1758, %v1662
    %1791 = vst.msk [vmem:[#allocation3 + $0x200] sm:$0xff] %vm1758, %v1664
    %1792 = vst.msk [vmem:[#allocation3 + $0x210] sm:$0xff] %vm1758, %v1666
    %1793 = vst.msk [vmem:[#allocation3 + $0x220] sm:$0xff] %vm1758, %v1668
    %1794 = vst.msk [vmem:[#allocation3 + $0x230] sm:$0xff] %vm1758, %v1670
    %1795 = vst.msk [vmem:[#allocation3 + $0x240] sm:$0xff] %vm1758, %v1672
    %1796 = vst.msk [vmem:[#allocation3 + $0x250] sm:$0xff] %vm1758, %v1674
    %1797 = vst.msk [vmem:[#allocation3 + $0x260] sm:$0xff] %vm1758, %v1676
    %1798 = vst.msk [vmem:[#allocation3 + $0x270] sm:$0xff] %vm1758, %v1678
    %1799 = vst.msk [vmem:[#allocation3 + $0x280] sm:$0xff] %vm1758, %v1680
    %1800 = vst.msk [vmem:[#allocation3 + $0x290] sm:$0xff] %vm1758, %v1682
    %1801 = vst.msk [vmem:[#allocation3 + $0x2a0] sm:$0xff] %vm1758, %v1684
    %1802 = vst.msk [vmem:[#allocation3 + $0x2b0] sm:$0xff] %vm1758, %v1686
    %1803 = vst.msk [vmem:[#allocation3 + $0x2c0] sm:$0xff] %vm1758, %v1688
    %1804 = vst.msk [vmem:[#allocation3 + $0x2d0] sm:$0xff] %vm1758, %v1690
    %1805 = vst.msk [vmem:[#allocation3 + $0x2e0] sm:$0xff] %vm1758, %v1692
    %1806 = vst.msk [vmem:[#allocation3 + $0x2f0] sm:$0xff] %vm1758, %v1694
    %1807 = vst.msk [vmem:[#allocation3 + $0x300] sm:$0xff] %vm1758, %v1696
    %1808 = vst.msk [vmem:[#allocation3 + $0x310] sm:$0xff] %vm1758, %v1698
    %1809 = vst.msk [vmem:[#allocation3 + $0x320] sm:$0xff] %vm1758, %v1700
    %1810 = vst.msk [vmem:[#allocation3 + $0x330] sm:$0xff] %vm1758, %v1702
    %1811 = vst.msk [vmem:[#allocation3 + $0x340] sm:$0xff] %vm1758, %v1704
    %v1812 = vld [vmem:[#allocation2 + $0x11] sm:$0xff]
    %v1813 = vld [vmem:[#allocation2 + $0x19] sm:$0xff]
    %v1814 = vld [vmem:[#allocation2 + $0x21] sm:$0xff]
    %v1815 = vld [vmem:[#allocation2 + $0x29] sm:$0xff]
    %v1816 = vld [vmem:[#allocation2 + $0x31] sm:$0xff]
    %v1817 = vld [vmem:[#allocation2 + $0x39] sm:$0xff]
    %v1818 = vld [vmem:[#allocation2 + $0x41] sm:$0xff]
    %v1819 = vld [vmem:[#allocation2 + $0x49] sm:$0xff]
    %v1820 = vld [vmem:[#allocation2 + $0x51] sm:$0xff]
    %v1821 = vld [vmem:[#allocation2 + $0x59] sm:$0xff]
    %v1822 = vld [vmem:[#allocation2 + $0x61] sm:$0xff]
    %v1823 = vld [vmem:[#allocation2 + $0x69] sm:$0xff]
    %v1824 = vld [vmem:[#allocation2 + $0x71] sm:$0xff]
    %v1825 = vld [vmem:[#allocation2 + $0x79] sm:$0xff]
    %v1826 = vld [vmem:[#allocation2 + $0x81] sm:$0xff]
    %v1827 = vld [vmem:[#allocation2 + $0x89] sm:$0xff]
    %v1828 = vld [vmem:[#allocation2 + $0x91] sm:$0xff]
    %v1829 = vld [vmem:[#allocation2 + $0x99] sm:$0xff]
    %v1830 = vld [vmem:[#allocation2 + $0xa1] sm:$0xff]
    %v1831 = vld [vmem:[#allocation2 + $0xa9] sm:$0xff]
    %v1832 = vld [vmem:[#allocation2 + $0xb1] sm:$0xff]
    %v1833 = vld [vmem:[#allocation2 + $0xb9] sm:$0xff]
    %v1834 = vld [vmem:[#allocation2 + $0xc1] sm:$0xff]
    %v1835 = vld [vmem:[#allocation2 + $0xc9] sm:$0xff]
    %v1836 = vld [vmem:[#allocation2 + $0xd1] sm:$0xff]
    %v1837 = vld [vmem:[#allocation2 + $0xd9] sm:$0xff]
    %v1838 = vld [vmem:[#allocation2 + $0xe1] sm:$0xff]
    %v1839 = vld [vmem:[#allocation2 + $0xe9] sm:$0xff]
    %v1840 = vld [vmem:[#allocation2 + $0xf1] sm:$0xff]
    %v1841 = vld [vmem:[#allocation2 + $0xf9] sm:$0xff]
    %v1842 = vld [vmem:[#allocation2 + $0x101] sm:$0xff]
    %v1843 = vld [vmem:[#allocation2 + $0x109] sm:$0xff]
    %v1844 = vld [vmem:[#allocation2 + $0x111] sm:$0xff]
    %v1845 = vld [vmem:[#allocation2 + $0x119] sm:$0xff]
    %v1846 = vld [vmem:[#allocation2 + $0x121] sm:$0xff]
    %v1847 = vld [vmem:[#allocation2 + $0x129] sm:$0xff]
    %v1848 = vld [vmem:[#allocation2 + $0x131] sm:$0xff]
    %v1849 = vld [vmem:[#allocation2 + $0x139] sm:$0xff]
    %v1850 = vld [vmem:[#allocation2 + $0x141] sm:$0xff]
    %v1851 = vld [vmem:[#allocation2 + $0x149] sm:$0xff]
    %v1852 = vld [vmem:[#allocation2 + $0x151] sm:$0xff]
    %v1853 = vld [vmem:[#allocation2 + $0x159] sm:$0xff]
    %v1854 = vld [vmem:[#allocation2 + $0x161] sm:$0xff]
    %v1855 = vld [vmem:[#allocation2 + $0x169] sm:$0xff]
    %v1856 = vld [vmem:[#allocation2 + $0x171] sm:$0xff]
    %v1857 = vld [vmem:[#allocation2 + $0x179] sm:$0xff]
    %v1858 = vld [vmem:[#allocation2 + $0x181] sm:$0xff]
    %v1859 = vld [vmem:[#allocation2 + $0x189] sm:$0xff]
    %v1860 = vld [vmem:[#allocation2 + $0x191] sm:$0xff]
    %v1861 = vld [vmem:[#allocation2 + $0x199] sm:$0xff]
    %v1862 = vld [vmem:[#allocation2 + $0x1a1] sm:$0xff]
    %v1863 = vld [vmem:[#allocation2 + $0x1a9] sm:$0xff]
    %v1864 = vld [vmem:[#allocation2 + $0x1b1] sm:$0xff]
    %1918 = vrot.lane.b32.xlu0 %v1812, 64
    %v1919 = vpop.permute.xlu0 %1918
    %1920 = vrot.lane.b32.xlu0 %v1813, 64
    %v1921 = vpop.permute.xlu0 %1920
    %1922 = vrot.lane.b32.xlu0 %v1814, 64
    %v1923 = vpop.permute.xlu0 %1922
    %1924 = vrot.lane.b32.xlu0 %v1815, 64
    %v1925 = vpop.permute.xlu0 %1924
    %1926 = vrot.lane.b32.xlu0 %v1816, 64
    %v1927 = vpop.permute.xlu0 %1926
    %1928 = vrot.lane.b32.xlu0 %v1817, 64
    %v1929 = vpop.permute.xlu0 %1928
    %1930 = vrot.lane.b32.xlu0 %v1818, 64
    %v1931 = vpop.permute.xlu0 %1930
    %1932 = vrot.lane.b32.xlu0 %v1819, 64
    %v1933 = vpop.permute.xlu0 %1932
    %1934 = vrot.lane.b32.xlu0 %v1820, 64
    %v1935 = vpop.permute.xlu0 %1934
    %1936 = vrot.lane.b32.xlu0 %v1821, 64
    %v1937 = vpop.permute.xlu0 %1936
    %1938 = vrot.lane.b32.xlu0 %v1822, 64
    %v1939 = vpop.permute.xlu0 %1938
    %1940 = vrot.lane.b32.xlu0 %v1823, 64
    %v1941 = vpop.permute.xlu0 %1940
    %1942 = vrot.lane.b32.xlu0 %v1824, 64
    %v1943 = vpop.permute.xlu0 %1942
    %1944 = vrot.lane.b32.xlu0 %v1825, 64
    %v1945 = vpop.permute.xlu0 %1944
    %1946 = vrot.lane.b32.xlu0 %v1826, 64
    %v1947 = vpop.permute.xlu0 %1946
    %1948 = vrot.lane.b32.xlu0 %v1827, 64
    %v1949 = vpop.permute.xlu0 %1948
    %1950 = vrot.lane.b32.xlu0 %v1828, 64
    %v1951 = vpop.permute.xlu0 %1950
    %1952 = vrot.lane.b32.xlu0 %v1829, 64
    %v1953 = vpop.permute.xlu0 %1952
    %1954 = vrot.lane.b32.xlu0 %v1830, 64
    %v1955 = vpop.permute.xlu0 %1954
    %1956 = vrot.lane.b32.xlu0 %v1831, 64
    %v1957 = vpop.permute.xlu0 %1956
    %1958 = vrot.lane.b32.xlu0 %v1832, 64
    %v1959 = vpop.permute.xlu0 %1958
    %1960 = vrot.lane.b32.xlu0 %v1833, 64
    %v1961 = vpop.permute.xlu0 %1960
    %1962 = vrot.lane.b32.xlu0 %v1834, 64
    %v1963 = vpop.permute.xlu0 %1962
    %1964 = vrot.lane.b32.xlu0 %v1835, 64
    %v1965 = vpop.permute.xlu0 %1964
    %1966 = vrot.lane.b32.xlu0 %v1836, 64
    %v1967 = vpop.permute.xlu0 %1966
    %1968 = vrot.lane.b32.xlu0 %v1837, 64
    %v1969 = vpop.permute.xlu0 %1968
    %1970 = vrot.lane.b32.xlu0 %v1838, 64
    %v1971 = vpop.permute.xlu0 %1970
    %1972 = vrot.lane.b32.xlu0 %v1839, 64
    %v1973 = vpop.permute.xlu0 %1972
    %1974 = vrot.lane.b32.xlu0 %v1840, 64
    %v1975 = vpop.permute.xlu0 %1974
    %1976 = vrot.lane.b32.xlu0 %v1841, 64
    %v1977 = vpop.permute.xlu0 %1976
    %1978 = vrot.lane.b32.xlu0 %v1842, 64
    %v1979 = vpop.permute.xlu0 %1978
    %1980 = vrot.lane.b32.xlu0 %v1843, 64
    %v1981 = vpop.permute.xlu0 %1980
    %1982 = vrot.lane.b32.xlu0 %v1844, 64
    %v1983 = vpop.permute.xlu0 %1982
    %1984 = vrot.lane.b32.xlu0 %v1845, 64
    %v1985 = vpop.permute.xlu0 %1984
    %1986 = vrot.lane.b32.xlu0 %v1846, 64
    %v1987 = vpop.permute.xlu0 %1986
    %1988 = vrot.lane.b32.xlu0 %v1847, 64
    %v1989 = vpop.permute.xlu0 %1988
    %1990 = vrot.lane.b32.xlu0 %v1848, 64
    %v1991 = vpop.permute.xlu0 %1990
    %1992 = vrot.lane.b32.xlu0 %v1849, 64
    %v1993 = vpop.permute.xlu0 %1992
    %1994 = vrot.lane.b32.xlu0 %v1850, 64
    %v1995 = vpop.permute.xlu0 %1994
    %1996 = vrot.lane.b32.xlu0 %v1851, 64
    %v1997 = vpop.permute.xlu0 %1996
    %1998 = vrot.lane.b32.xlu0 %v1852, 64
    %v1999 = vpop.permute.xlu0 %1998
    %2000 = vrot.lane.b32.xlu0 %v1853, 64
    %v2001 = vpop.permute.xlu0 %2000
    %2002 = vrot.lane.b32.xlu0 %v1854, 64
    %v2003 = vpop.permute.xlu0 %2002
    %2004 = vrot.lane.b32.xlu0 %v1855, 64
    %v2005 = vpop.permute.xlu0 %2004
    %2006 = vrot.lane.b32.xlu0 %v1856, 64
    %v2007 = vpop.permute.xlu0 %2006
    %2008 = vrot.lane.b32.xlu0 %v1857, 64
    %v2009 = vpop.permute.xlu0 %2008
    %2010 = vrot.lane.b32.xlu0 %v1858, 64
    %v2011 = vpop.permute.xlu0 %2010
    %2012 = vrot.lane.b32.xlu0 %v1859, 64
    %v2013 = vpop.permute.xlu0 %2012
    %2014 = vrot.lane.b32.xlu0 %v1860, 64
    %v2015 = vpop.permute.xlu0 %2014
    %2016 = vrot.lane.b32.xlu0 %v1861, 64
    %v2017 = vpop.permute.xlu0 %2016
    %2018 = vrot.lane.b32.xlu0 %v1862, 64
    %v2019 = vpop.permute.xlu0 %2018
    %2020 = vrot.lane.b32.xlu0 %v1863, 64
    %v2021 = vpop.permute.xlu0 %2020
    %2022 = vrot.lane.b32.xlu0 %v1864, 64
    %v2023 = vpop.permute.xlu0 %2022
    %vm2077 = vcmask 654848
    %2078 = vst.msk [vmem:[#allocation3] sm:$0xff] %vm2077, %v1919
    %2079 = vst.msk [vmem:[#allocation3 + $0x10] sm:$0xff] %vm2077, %v1921
    %2080 = vst.msk [vmem:[#allocation3 + $0x20] sm:$0xff] %vm2077, %v1923
    %2081 = vst.msk [vmem:[#allocation3 + $0x30] sm:$0xff] %vm2077, %v1925
    %2082 = vst.msk [vmem:[#allocation3 + $0x40] sm:$0xff] %vm2077, %v1927
    %2083 = vst.msk [vmem:[#allocation3 + $0x50] sm:$0xff] %vm2077, %v1929
    %2084 = vst.msk [vmem:[#allocation3 + $0x60] sm:$0xff] %vm2077, %v1931
    %2085 = vst.msk [vmem:[#allocation3 + $0x70] sm:$0xff] %vm2077, %v1933
    %2086 = vst.msk [vmem:[#allocation3 + $0x80] sm:$0xff] %vm2077, %v1935
    %2087 = vst.msk [vmem:[#allocation3 + $0x90] sm:$0xff] %vm2077, %v1937
    %2088 = vst.msk [vmem:[#allocation3 + $0xa0] sm:$0xff] %vm2077, %v1939
    %2089 = vst.msk [vmem:[#allocation3 + $0xb0] sm:$0xff] %vm2077, %v1941
    %2090 = vst.msk [vmem:[#allocation3 + $0xc0] sm:$0xff] %vm2077, %v1943
    %2091 = vst.msk [vmem:[#allocation3 + $0xd0] sm:$0xff] %vm2077, %v1945
    %2092 = vst.msk [vmem:[#allocation3 + $0xe0] sm:$0xff] %vm2077, %v1947
    %2093 = vst.msk [vmem:[#allocation3 + $0xf0] sm:$0xff] %vm2077, %v1949
    %2094 = vst.msk [vmem:[#allocation3 + $0x100] sm:$0xff] %vm2077, %v1951
    %2095 = vst.msk [vmem:[#allocation3 + $0x110] sm:$0xff] %vm2077, %v1953
    %2096 = vst.msk [vmem:[#allocation3 + $0x120] sm:$0xff] %vm2077, %v1955
    %2097 = vst.msk [vmem:[#allocation3 + $0x130] sm:$0xff] %vm2077, %v1957
    %2098 = vst.msk [vmem:[#allocation3 + $0x140] sm:$0xff] %vm2077, %v1959
    %2099 = vst.msk [vmem:[#allocation3 + $0x150] sm:$0xff] %vm2077, %v1961
    %2100 = vst.msk [vmem:[#allocation3 + $0x160] sm:$0xff] %vm2077, %v1963
    %2101 = vst.msk [vmem:[#allocation3 + $0x170] sm:$0xff] %vm2077, %v1965
    %2102 = vst.msk [vmem:[#allocation3 + $0x180] sm:$0xff] %vm2077, %v1967
    %2103 = vst.msk [vmem:[#allocation3 + $0x190] sm:$0xff] %vm2077, %v1969
    %2104 = vst.msk [vmem:[#allocation3 + $0x1a0] sm:$0xff] %vm2077, %v1971
    %2105 = vst.msk [vmem:[#allocation3 + $0x1b0] sm:$0xff] %vm2077, %v1973
    %2106 = vst.msk [vmem:[#allocation3 + $0x1c0] sm:$0xff] %vm2077, %v1975
    %2107 = vst.msk [vmem:[#allocation3 + $0x1d0] sm:$0xff] %vm2077, %v1977
    %2108 = vst.msk [vmem:[#allocation3 + $0x1e0] sm:$0xff] %vm2077, %v1979
    %2109 = vst.msk [vmem:[#allocation3 + $0x1f0] sm:$0xff] %vm2077, %v1981
    %2110 = vst.msk [vmem:[#allocation3 + $0x200] sm:$0xff] %vm2077, %v1983
    %2111 = vst.msk [vmem:[#allocation3 + $0x210] sm:$0xff] %vm2077, %v1985
    %2112 = vst.msk [vmem:[#allocation3 + $0x220] sm:$0xff] %vm2077, %v1987
    %2113 = vst.msk [vmem:[#allocation3 + $0x230] sm:$0xff] %vm2077, %v1989
    %2114 = vst.msk [vmem:[#allocation3 + $0x240] sm:$0xff] %vm2077, %v1991
    %2115 = vst.msk [vmem:[#allocation3 + $0x250] sm:$0xff] %vm2077, %v1993
    %2116 = vst.msk [vmem:[#allocation3 + $0x260] sm:$0xff] %vm2077, %v1995
    %2117 = vst.msk [vmem:[#allocation3 + $0x270] sm:$0xff] %vm2077, %v1997
    %2118 = vst.msk [vmem:[#allocation3 + $0x280] sm:$0xff] %vm2077, %v1999
    %2119 = vst.msk [vmem:[#allocation3 + $0x290] sm:$0xff] %vm2077, %v2001
    %2120 = vst.msk [vmem:[#allocation3 + $0x2a0] sm:$0xff] %vm2077, %v2003
    %2121 = vst.msk [vmem:[#allocation3 + $0x2b0] sm:$0xff] %vm2077, %v2005
    %2122 = vst.msk [vmem:[#allocation3 + $0x2c0] sm:$0xff] %vm2077, %v2007
    %2123 = vst.msk [vmem:[#allocation3 + $0x2d0] sm:$0xff] %vm2077, %v2009
    %2124 = vst.msk [vmem:[#allocation3 + $0x2e0] sm:$0xff] %vm2077, %v2011
    %2125 = vst.msk [vmem:[#allocation3 + $0x2f0] sm:$0xff] %vm2077, %v2013
    %2126 = vst.msk [vmem:[#allocation3 + $0x300] sm:$0xff] %vm2077, %v2015
    %2127 = vst.msk [vmem:[#allocation3 + $0x310] sm:$0xff] %vm2077, %v2017
    %2128 = vst.msk [vmem:[#allocation3 + $0x320] sm:$0xff] %vm2077, %v2019
    %2129 = vst.msk [vmem:[#allocation3 + $0x330] sm:$0xff] %vm2077, %v2021
    %2130 = vst.msk [vmem:[#allocation3 + $0x340] sm:$0xff] %vm2077, %v2023
    %v2131 = vld [vmem:[#allocation2 + $0x12] sm:$0xff]
    %v2132 = vld [vmem:[#allocation2 + $0x1a] sm:$0xff]
    %v2133 = vld [vmem:[#allocation2 + $0x22] sm:$0xff]
    %v2134 = vld [vmem:[#allocation2 + $0x2a] sm:$0xff]
    %v2135 = vld [vmem:[#allocation2 + $0x32] sm:$0xff]
    %v2136 = vld [vmem:[#allocation2 + $0x3a] sm:$0xff]
    %v2137 = vld [vmem:[#allocation2 + $0x42] sm:$0xff]
    %v2138 = vld [vmem:[#allocation2 + $0x4a] sm:$0xff]
    %v2139 = vld [vmem:[#allocation2 + $0x52] sm:$0xff]
    %v2140 = vld [vmem:[#allocation2 + $0x5a] sm:$0xff]
    %v2141 = vld [vmem:[#allocation2 + $0x62] sm:$0xff]
    %v2142 = vld [vmem:[#allocation2 + $0x6a] sm:$0xff]
    %v2143 = vld [vmem:[#allocation2 + $0x72] sm:$0xff]
    %v2144 = vld [vmem:[#allocation2 + $0x7a] sm:$0xff]
    %v2145 = vld [vmem:[#allocation2 + $0x82] sm:$0xff]
    %v2146 = vld [vmem:[#allocation2 + $0x8a] sm:$0xff]
    %v2147 = vld [vmem:[#allocation2 + $0x92] sm:$0xff]
    %v2148 = vld [vmem:[#allocation2 + $0x9a] sm:$0xff]
    %v2149 = vld [vmem:[#allocation2 + $0xa2] sm:$0xff]
    %v2150 = vld [vmem:[#allocation2 + $0xaa] sm:$0xff]
    %v2151 = vld [vmem:[#allocation2 + $0xb2] sm:$0xff]
    %v2152 = vld [vmem:[#allocation2 + $0xba] sm:$0xff]
    %v2153 = vld [vmem:[#allocation2 + $0xc2] sm:$0xff]
    %v2154 = vld [vmem:[#allocation2 + $0xca] sm:$0xff]
    %v2155 = vld [vmem:[#allocation2 + $0xd2] sm:$0xff]
    %v2156 = vld [vmem:[#allocation2 + $0xda] sm:$0xff]
    %v2157 = vld [vmem:[#allocation2 + $0xe2] sm:$0xff]
    %v2158 = vld [vmem:[#allocation2 + $0xea] sm:$0xff]
    %v2159 = vld [vmem:[#allocation2 + $0xf2] sm:$0xff]
    %v2160 = vld [vmem:[#allocation2 + $0xfa] sm:$0xff]
    %v2161 = vld [vmem:[#allocation2 + $0x102] sm:$0xff]
    %v2162 = vld [vmem:[#allocation2 + $0x10a] sm:$0xff]
    %v2163 = vld [vmem:[#allocation2 + $0x112] sm:$0xff]
    %v2164 = vld [vmem:[#allocation2 + $0x11a] sm:$0xff]
    %v2165 = vld [vmem:[#allocation2 + $0x122] sm:$0xff]
    %v2166 = vld [vmem:[#allocation2 + $0x12a] sm:$0xff]
    %v2167 = vld [vmem:[#allocation2 + $0x132] sm:$0xff]
    %v2168 = vld [vmem:[#allocation2 + $0x13a] sm:$0xff]
    %v2169 = vld [vmem:[#allocation2 + $0x142] sm:$0xff]
    %v2170 = vld [vmem:[#allocation2 + $0x14a] sm:$0xff]
    %v2171 = vld [vmem:[#allocation2 + $0x152] sm:$0xff]
    %v2172 = vld [vmem:[#allocation2 + $0x15a] sm:$0xff]
    %v2173 = vld [vmem:[#allocation2 + $0x162] sm:$0xff]
    %v2174 = vld [vmem:[#allocation2 + $0x16a] sm:$0xff]
    %v2175 = vld [vmem:[#allocation2 + $0x172] sm:$0xff]
    %v2176 = vld [vmem:[#allocation2 + $0x17a] sm:$0xff]
    %v2177 = vld [vmem:[#allocation2 + $0x182] sm:$0xff]
    %v2178 = vld [vmem:[#allocation2 + $0x18a] sm:$0xff]
    %v2179 = vld [vmem:[#allocation2 + $0x192] sm:$0xff]
    %v2180 = vld [vmem:[#allocation2 + $0x19a] sm:$0xff]
    %v2181 = vld [vmem:[#allocation2 + $0x1a2] sm:$0xff]
    %v2182 = vld [vmem:[#allocation2 + $0x1aa] sm:$0xff]
    %v2183 = vld [vmem:[#allocation2 + $0x1b2] sm:$0xff]
    %2237 = vrot.lane.b32.xlu0 %v2131, 80
    %v2238 = vpop.permute.xlu0 %2237
    %2239 = vrot.lane.b32.xlu0 %v2132, 80
    %v2240 = vpop.permute.xlu0 %2239
    %2241 = vrot.lane.b32.xlu0 %v2133, 80
    %v2242 = vpop.permute.xlu0 %2241
    %2243 = vrot.lane.b32.xlu0 %v2134, 80
    %v2244 = vpop.permute.xlu0 %2243
    %2245 = vrot.lane.b32.xlu0 %v2135, 80
    %v2246 = vpop.permute.xlu0 %2245
    %2247 = vrot.lane.b32.xlu0 %v2136, 80
    %v2248 = vpop.permute.xlu0 %2247
    %2249 = vrot.lane.b32.xlu0 %v2137, 80
    %v2250 = vpop.permute.xlu0 %2249
    %2251 = vrot.lane.b32.xlu0 %v2138, 80
    %v2252 = vpop.permute.xlu0 %2251
    %2253 = vrot.lane.b32.xlu0 %v2139, 80
    %v2254 = vpop.permute.xlu0 %2253
    %2255 = vrot.lane.b32.xlu0 %v2140, 80
    %v2256 = vpop.permute.xlu0 %2255
    %2257 = vrot.lane.b32.xlu0 %v2141, 80
    %v2258 = vpop.permute.xlu0 %2257
    %2259 = vrot.lane.b32.xlu0 %v2142, 80
    %v2260 = vpop.permute.xlu0 %2259
    %2261 = vrot.lane.b32.xlu0 %v2143, 80
    %v2262 = vpop.permute.xlu0 %2261
    %2263 = vrot.lane.b32.xlu0 %v2144, 80
    %v2264 = vpop.permute.xlu0 %2263
    %2265 = vrot.lane.b32.xlu0 %v2145, 80
    %v2266 = vpop.permute.xlu0 %2265
    %2267 = vrot.lane.b32.xlu0 %v2146, 80
    %v2268 = vpop.permute.xlu0 %2267
    %2269 = vrot.lane.b32.xlu0 %v2147, 80
    %v2270 = vpop.permute.xlu0 %2269
    %2271 = vrot.lane.b32.xlu0 %v2148, 80
    %v2272 = vpop.permute.xlu0 %2271
    %2273 = vrot.lane.b32.xlu0 %v2149, 80
    %v2274 = vpop.permute.xlu0 %2273
    %2275 = vrot.lane.b32.xlu0 %v2150, 80
    %v2276 = vpop.permute.xlu0 %2275
    %2277 = vrot.lane.b32.xlu0 %v2151, 80
    %v2278 = vpop.permute.xlu0 %2277
    %2279 = vrot.lane.b32.xlu0 %v2152, 80
    %v2280 = vpop.permute.xlu0 %2279
    %2281 = vrot.lane.b32.xlu0 %v2153, 80
    %v2282 = vpop.permute.xlu0 %2281
    %2283 = vrot.lane.b32.xlu0 %v2154, 80
    %v2284 = vpop.permute.xlu0 %2283
    %2285 = vrot.lane.b32.xlu0 %v2155, 80
    %v2286 = vpop.permute.xlu0 %2285
    %2287 = vrot.lane.b32.xlu0 %v2156, 80
    %v2288 = vpop.permute.xlu0 %2287
    %2289 = vrot.lane.b32.xlu0 %v2157, 80
    %v2290 = vpop.permute.xlu0 %2289
    %2291 = vrot.lane.b32.xlu0 %v2158, 80
    %v2292 = vpop.permute.xlu0 %2291
    %2293 = vrot.lane.b32.xlu0 %v2159, 80
    %v2294 = vpop.permute.xlu0 %2293
    %2295 = vrot.lane.b32.xlu0 %v2160, 80
    %v2296 = vpop.permute.xlu0 %2295
    %2297 = vrot.lane.b32.xlu0 %v2161, 80
    %v2298 = vpop.permute.xlu0 %2297
    %2299 = vrot.lane.b32.xlu0 %v2162, 80
    %v2300 = vpop.permute.xlu0 %2299
    %2301 = vrot.lane.b32.xlu0 %v2163, 80
    %v2302 = vpop.permute.xlu0 %2301
    %2303 = vrot.lane.b32.xlu0 %v2164, 80
    %v2304 = vpop.permute.xlu0 %2303
    %2305 = vrot.lane.b32.xlu0 %v2165, 80
    %v2306 = vpop.permute.xlu0 %2305
    %2307 = vrot.lane.b32.xlu0 %v2166, 80
    %v2308 = vpop.permute.xlu0 %2307
    %2309 = vrot.lane.b32.xlu0 %v2167, 80
    %v2310 = vpop.permute.xlu0 %2309
    %2311 = vrot.lane.b32.xlu0 %v2168, 80
    %v2312 = vpop.permute.xlu0 %2311
    %2313 = vrot.lane.b32.xlu0 %v2169, 80
    %v2314 = vpop.permute.xlu0 %2313
    %2315 = vrot.lane.b32.xlu0 %v2170, 80
    %v2316 = vpop.permute.xlu0 %2315
    %2317 = vrot.lane.b32.xlu0 %v2171, 80
    %v2318 = vpop.permute.xlu0 %2317
    %2319 = vrot.lane.b32.xlu0 %v2172, 80
    %v2320 = vpop.permute.xlu0 %2319
    %2321 = vrot.lane.b32.xlu0 %v2173, 80
    %v2322 = vpop.permute.xlu0 %2321
    %2323 = vrot.lane.b32.xlu0 %v2174, 80
    %v2324 = vpop.permute.xlu0 %2323
    %2325 = vrot.lane.b32.xlu0 %v2175, 80
    %v2326 = vpop.permute.xlu0 %2325
    %2327 = vrot.lane.b32.xlu0 %v2176, 80
    %v2328 = vpop.permute.xlu0 %2327
    %2329 = vrot.lane.b32.xlu0 %v2177, 80
    %v2330 = vpop.permute.xlu0 %2329
    %2331 = vrot.lane.b32.xlu0 %v2178, 80
    %v2332 = vpop.permute.xlu0 %2331
    %2333 = vrot.lane.b32.xlu0 %v2179, 80
    %v2334 = vpop.permute.xlu0 %2333
    %2335 = vrot.lane.b32.xlu0 %v2180, 80
    %v2336 = vpop.permute.xlu0 %2335
    %2337 = vrot.lane.b32.xlu0 %v2181, 80
    %v2338 = vpop.permute.xlu0 %2337
    %2339 = vrot.lane.b32.xlu0 %v2182, 80
    %v2340 = vpop.permute.xlu0 %2339
    %2341 = vrot.lane.b32.xlu0 %v2183, 80
    %v2342 = vpop.permute.xlu0 %2341
    %vm2396 = vcmask 786048
    %2397 = vst.msk [vmem:[#allocation3] sm:$0xff] %vm2396, %v2238
    %2398 = vst.msk [vmem:[#allocation3 + $0x10] sm:$0xff] %vm2396, %v2240
    %2399 = vst.msk [vmem:[#allocation3 + $0x20] sm:$0xff] %vm2396, %v2242
    %2400 = vst.msk [vmem:[#allocation3 + $0x30] sm:$0xff] %vm2396, %v2244
    %2401 = vst.msk [vmem:[#allocation3 + $0x40] sm:$0xff] %vm2396, %v2246
    %2402 = vst.msk [vmem:[#allocation3 + $0x50] sm:$0xff] %vm2396, %v2248
    %2403 = vst.msk [vmem:[#allocation3 + $0x60] sm:$0xff] %vm2396, %v2250
    %2404 = vst.msk [vmem:[#allocation3 + $0x70] sm:$0xff] %vm2396, %v2252
    %2405 = vst.msk [vmem:[#allocation3 + $0x80] sm:$0xff] %vm2396, %v2254
    %2406 = vst.msk [vmem:[#allocation3 + $0x90] sm:$0xff] %vm2396, %v2256
    %2407 = vst.msk [vmem:[#allocation3 + $0xa0] sm:$0xff] %vm2396, %v2258
    %2408 = vst.msk [vmem:[#allocation3 + $0xb0] sm:$0xff] %vm2396, %v2260
    %2409 = vst.msk [vmem:[#allocation3 + $0xc0] sm:$0xff] %vm2396, %v2262
    %2410 = vst.msk [vmem:[#allocation3 + $0xd0] sm:$0xff] %vm2396, %v2264
    %2411 = vst.msk [vmem:[#allocation3 + $0xe0] sm:$0xff] %vm2396, %v2266
    %2412 = vst.msk [vmem:[#allocation3 + $0xf0] sm:$0xff] %vm2396, %v2268
    %2413 = vst.msk [vmem:[#allocation3 + $0x100] sm:$0xff] %vm2396, %v2270
    %2414 = vst.msk [vmem:[#allocation3 + $0x110] sm:$0xff] %vm2396, %v2272
    %2415 = vst.msk [vmem:[#allocation3 + $0x120] sm:$0xff] %vm2396, %v2274
    %2416 = vst.msk [vmem:[#allocation3 + $0x130] sm:$0xff] %vm2396, %v2276
    %2417 = vst.msk [vmem:[#allocation3 + $0x140] sm:$0xff] %vm2396, %v2278
    %2418 = vst.msk [vmem:[#allocation3 + $0x150] sm:$0xff] %vm2396, %v2280
    %2419 = vst.msk [vmem:[#allocation3 + $0x160] sm:$0xff] %vm2396, %v2282
    %2420 = vst.msk [vmem:[#allocation3 + $0x170] sm:$0xff] %vm2396, %v2284
    %2421 = vst.msk [vmem:[#allocation3 + $0x180] sm:$0xff] %vm2396, %v2286
    %2422 = vst.msk [vmem:[#allocation3 + $0x190] sm:$0xff] %vm2396, %v2288
    %2423 = vst.msk [vmem:[#allocation3 + $0x1a0] sm:$0xff] %vm2396, %v2290
    %2424 = vst.msk [vmem:[#allocation3 + $0x1b0] sm:$0xff] %vm2396, %v2292
    %2425 = vst.msk [vmem:[#allocation3 + $0x1c0] sm:$0xff] %vm2396, %v2294
    %2426 = vst.msk [vmem:[#allocation3 + $0x1d0] sm:$0xff] %vm2396, %v2296
    %2427 = vst.msk [vmem:[#allocation3 + $0x1e0] sm:$0xff] %vm2396, %v2298
    %2428 = vst.msk [vmem:[#allocation3 + $0x1f0] sm:$0xff] %vm2396, %v2300
    %2429 = vst.msk [vmem:[#allocation3 + $0x200] sm:$0xff] %vm2396, %v2302
    %2430 = vst.msk [vmem:[#allocation3 + $0x210] sm:$0xff] %vm2396, %v2304
    %2431 = vst.msk [vmem:[#allocation3 + $0x220] sm:$0xff] %vm2396, %v2306
    %2432 = vst.msk [vmem:[#allocation3 + $0x230] sm:$0xff] %vm2396, %v2308
    %2433 = vst.msk [vmem:[#allocation3 + $0x240] sm:$0xff] %vm2396, %v2310
    %2434 = vst.msk [vmem:[#allocation3 + $0x250] sm:$0xff] %vm2396, %v2312
    %2435 = vst.msk [vmem:[#allocation3 + $0x260] sm:$0xff] %vm2396, %v2314
    %2436 = vst.msk [vmem:[#allocation3 + $0x270] sm:$0xff] %vm2396, %v2316
    %2437 = vst.msk [vmem:[#allocation3 + $0x280] sm:$0xff] %vm2396, %v2318
    %2438 = vst.msk [vmem:[#allocation3 + $0x290] sm:$0xff] %vm2396, %v2320
    %2439 = vst.msk [vmem:[#allocation3 + $0x2a0] sm:$0xff] %vm2396, %v2322
    %2440 = vst.msk [vmem:[#allocation3 + $0x2b0] sm:$0xff] %vm2396, %v2324
    %2441 = vst.msk [vmem:[#allocation3 + $0x2c0] sm:$0xff] %vm2396, %v2326
    %2442 = vst.msk [vmem:[#allocation3 + $0x2d0] sm:$0xff] %vm2396, %v2328
    %2443 = vst.msk [vmem:[#allocation3 + $0x2e0] sm:$0xff] %vm2396, %v2330
    %2444 = vst.msk [vmem:[#allocation3 + $0x2f0] sm:$0xff] %vm2396, %v2332
    %2445 = vst.msk [vmem:[#allocation3 + $0x300] sm:$0xff] %vm2396, %v2334
    %2446 = vst.msk [vmem:[#allocation3 + $0x310] sm:$0xff] %vm2396, %v2336
    %2447 = vst.msk [vmem:[#allocation3 + $0x320] sm:$0xff] %vm2396, %v2338
    %2448 = vst.msk [vmem:[#allocation3 + $0x330] sm:$0xff] %vm2396, %v2340
    %2449 = vst.msk [vmem:[#allocation3 + $0x340] sm:$0xff] %vm2396, %v2342
    %v2450 = vld [vmem:[#allocation2 + $0x20] sm:$0xff]
    %v2451 = vld [vmem:[#allocation2 + $0x28] sm:$0xff]
    %v2452 = vld [vmem:[#allocation2 + $0x30] sm:$0xff]
    %v2453 = vld [vmem:[#allocation2 + $0x38] sm:$0xff]
    %v2454 = vld [vmem:[#allocation2 + $0x40] sm:$0xff]
    %v2455 = vld [vmem:[#allocation2 + $0x48] sm:$0xff]
    %v2456 = vld [vmem:[#allocation2 + $0x50] sm:$0xff]
    %v2457 = vld [vmem:[#allocation2 + $0x58] sm:$0xff]
    %v2458 = vld [vmem:[#allocation2 + $0x60] sm:$0xff]
    %v2459 = vld [vmem:[#allocation2 + $0x68] sm:$0xff]
    %v2460 = vld [vmem:[#allocation2 + $0x70] sm:$0xff]
    %v2461 = vld [vmem:[#allocation2 + $0x78] sm:$0xff]
    %v2462 = vld [vmem:[#allocation2 + $0x80] sm:$0xff]
    %v2463 = vld [vmem:[#allocation2 + $0x88] sm:$0xff]
    %v2464 = vld [vmem:[#allocation2 + $0x90] sm:$0xff]
    %v2465 = vld [vmem:[#allocation2 + $0x98] sm:$0xff]
    %v2466 = vld [vmem:[#allocation2 + $0xa0] sm:$0xff]
    %v2467 = vld [vmem:[#allocation2 + $0xa8] sm:$0xff]
    %v2468 = vld [vmem:[#allocation2 + $0xb0] sm:$0xff]
    %v2469 = vld [vmem:[#allocation2 + $0xb8] sm:$0xff]
    %v2470 = vld [vmem:[#allocation2 + $0xc0] sm:$0xff]
    %v2471 = vld [vmem:[#allocation2 + $0xc8] sm:$0xff]
    %v2472 = vld [vmem:[#allocation2 + $0xd0] sm:$0xff]
    %v2473 = vld [vmem:[#allocation2 + $0xd8] sm:$0xff]
    %v2474 = vld [vmem:[#allocation2 + $0xe0] sm:$0xff]
    %v2475 = vld [vmem:[#allocation2 + $0xe8] sm:$0xff]
    %v2476 = vld [vmem:[#allocation2 + $0xf0] sm:$0xff]
    %v2477 = vld [vmem:[#allocation2 + $0xf8] sm:$0xff]
    %v2478 = vld [vmem:[#allocation2 + $0x100] sm:$0xff]
    %v2479 = vld [vmem:[#allocation2 + $0x108] sm:$0xff]
    %v2480 = vld [vmem:[#allocation2 + $0x110] sm:$0xff]
    %v2481 = vld [vmem:[#allocation2 + $0x118] sm:$0xff]
    %v2482 = vld [vmem:[#allocation2 + $0x120] sm:$0xff]
    %v2483 = vld [vmem:[#allocation2 + $0x128] sm:$0xff]
    %v2484 = vld [vmem:[#allocation2 + $0x130] sm:$0xff]
    %v2485 = vld [vmem:[#allocation2 + $0x138] sm:$0xff]
    %v2486 = vld [vmem:[#allocation2 + $0x140] sm:$0xff]
    %v2487 = vld [vmem:[#allocation2 + $0x148] sm:$0xff]
    %v2488 = vld [vmem:[#allocation2 + $0x150] sm:$0xff]
    %v2489 = vld [vmem:[#allocation2 + $0x158] sm:$0xff]
    %v2490 = vld [vmem:[#allocation2 + $0x160] sm:$0xff]
    %v2491 = vld [vmem:[#allocation2 + $0x168] sm:$0xff]
    %v2492 = vld [vmem:[#allocation2 + $0x170] sm:$0xff]
    %v2493 = vld [vmem:[#allocation2 + $0x178] sm:$0xff]
    %v2494 = vld [vmem:[#allocation2 + $0x180] sm:$0xff]
    %v2495 = vld [vmem:[#allocation2 + $0x188] sm:$0xff]
    %v2496 = vld [vmem:[#allocation2 + $0x190] sm:$0xff]
    %v2497 = vld [vmem:[#allocation2 + $0x198] sm:$0xff]
    %v2498 = vld [vmem:[#allocation2 + $0x1a0] sm:$0xff]
    %v2499 = vld [vmem:[#allocation2 + $0x1a8] sm:$0xff]
    %v2500 = vld [vmem:[#allocation2 + $0x1b0] sm:$0xff]
    %v2501 = vld [vmem:[#allocation2 + $0x1b8] sm:$0xff]
    %v2502 = vld [vmem:[#allocation2 + $0x1c0] sm:$0xff]
    %2556 = vrot.lane.b32.xlu0 %v2450, 96
    %v2557 = vpop.permute.xlu0 %2556
    %2558 = vrot.lane.b32.xlu0 %v2451, 96
    %v2559 = vpop.permute.xlu0 %2558
    %2560 = vrot.lane.b32.xlu0 %v2452, 96
    %v2561 = vpop.permute.xlu0 %2560
    %2562 = vrot.lane.b32.xlu0 %v2453, 96
    %v2563 = vpop.permute.xlu0 %2562
    %2564 = vrot.lane.b32.xlu0 %v2454, 96
    %v2565 = vpop.permute.xlu0 %2564
    %2566 = vrot.lane.b32.xlu0 %v2455, 96
    %v2567 = vpop.permute.xlu0 %2566
    %2568 = vrot.lane.b32.xlu0 %v2456, 96
    %v2569 = vpop.permute.xlu0 %2568
    %2570 = vrot.lane.b32.xlu0 %v2457, 96
    %v2571 = vpop.permute.xlu0 %2570
    %2572 = vrot.lane.b32.xlu0 %v2458, 96
    %v2573 = vpop.permute.xlu0 %2572
    %2574 = vrot.lane.b32.xlu0 %v2459, 96
    %v2575 = vpop.permute.xlu0 %2574
    %2576 = vrot.lane.b32.xlu0 %v2460, 96
    %v2577 = vpop.permute.xlu0 %2576
    %2578 = vrot.lane.b32.xlu0 %v2461, 96
    %v2579 = vpop.permute.xlu0 %2578
    %2580 = vrot.lane.b32.xlu0 %v2462, 96
    %v2581 = vpop.permute.xlu0 %2580
    %2582 = vrot.lane.b32.xlu0 %v2463, 96
    %v2583 = vpop.permute.xlu0 %2582
    %2584 = vrot.lane.b32.xlu0 %v2464, 96
    %v2585 = vpop.permute.xlu0 %2584
    %2586 = vrot.lane.b32.xlu0 %v2465, 96
    %v2587 = vpop.permute.xlu0 %2586
    %2588 = vrot.lane.b32.xlu0 %v2466, 96
    %v2589 = vpop.permute.xlu0 %2588
    %2590 = vrot.lane.b32.xlu0 %v2467, 96
    %v2591 = vpop.permute.xlu0 %2590
    %2592 = vrot.lane.b32.xlu0 %v2468, 96
    %v2593 = vpop.permute.xlu0 %2592
    %2594 = vrot.lane.b32.xlu0 %v2469, 96
    %v2595 = vpop.permute.xlu0 %2594
    %2596 = vrot.lane.b32.xlu0 %v2470, 96
    %v2597 = vpop.permute.xlu0 %2596
    %2598 = vrot.lane.b32.xlu0 %v2471, 96
    %v2599 = vpop.permute.xlu0 %2598
    %2600 = vrot.lane.b32.xlu0 %v2472, 96
    %v2601 = vpop.permute.xlu0 %2600
    %2602 = vrot.lane.b32.xlu0 %v2473, 96
    %v2603 = vpop.permute.xlu0 %2602
    %2604 = vrot.lane.b32.xlu0 %v2474, 96
    %v2605 = vpop.permute.xlu0 %2604
    %2606 = vrot.lane.b32.xlu0 %v2475, 96
    %v2607 = vpop.permute.xlu0 %2606
    %2608 = vrot.lane.b32.xlu0 %v2476, 96
    %v2609 = vpop.permute.xlu0 %2608
    %2610 = vrot.lane.b32.xlu0 %v2477, 96
    %v2611 = vpop.permute.xlu0 %2610
    %2612 = vrot.lane.b32.xlu0 %v2478, 96
    %v2613 = vpop.permute.xlu0 %2612
    %2614 = vrot.lane.b32.xlu0 %v2479, 96
    %v2615 = vpop.permute.xlu0 %2614
    %2616 = vrot.lane.b32.xlu0 %v2480, 96
    %v2617 = vpop.permute.xlu0 %2616
    %2618 = vrot.lane.b32.xlu0 %v2481, 96
    %v2619 = vpop.permute.xlu0 %2618
    %2620 = vrot.lane.b32.xlu0 %v2482, 96
    %v2621 = vpop.permute.xlu0 %2620
    %2622 = vrot.lane.b32.xlu0 %v2483, 96
    %v2623 = vpop.permute.xlu0 %2622
    %2624 = vrot.lane.b32.xlu0 %v2484, 96
    %v2625 = vpop.permute.xlu0 %2624
    %2626 = vrot.lane.b32.xlu0 %v2485, 96
    %v2627 = vpop.permute.xlu0 %2626
    %2628 = vrot.lane.b32.xlu0 %v2486, 96
    %v2629 = vpop.permute.xlu0 %2628
    %2630 = vrot.lane.b32.xlu0 %v2487, 96
    %v2631 = vpop.permute.xlu0 %2630
    %2632 = vrot.lane.b32.xlu0 %v2488, 96
    %v2633 = vpop.permute.xlu0 %2632
    %2634 = vrot.lane.b32.xlu0 %v2489, 96
    %v2635 = vpop.permute.xlu0 %2634
    %2636 = vrot.lane.b32.xlu0 %v2490, 96
    %v2637 = vpop.permute.xlu0 %2636
    %2638 = vrot.lane.b32.xlu0 %v2491, 96
    %v2639 = vpop.permute.xlu0 %2638
    %2640 = vrot.lane.b32.xlu0 %v2492, 96
    %v2641 = vpop.permute.xlu0 %2640
    %2642 = vrot.lane.b32.xlu0 %v2493, 96
    %v2643 = vpop.permute.xlu0 %2642
    %2644 = vrot.lane.b32.xlu0 %v2494, 96
    %v2645 = vpop.permute.xlu0 %2644
    %2646 = vrot.lane.b32.xlu0 %v2495, 96
    %v2647 = vpop.permute.xlu0 %2646
    %2648 = vrot.lane.b32.xlu0 %v2496, 96
    %v2649 = vpop.permute.xlu0 %2648
    %2650 = vrot.lane.b32.xlu0 %v2497, 96
    %v2651 = vpop.permute.xlu0 %2650
    %2652 = vrot.lane.b32.xlu0 %v2498, 96
    %v2653 = vpop.permute.xlu0 %2652
    %2654 = vrot.lane.b32.xlu0 %v2499, 96
    %v2655 = vpop.permute.xlu0 %2654
    %2656 = vrot.lane.b32.xlu0 %v2500, 96
    %v2657 = vpop.permute.xlu0 %2656
    %2658 = vrot.lane.b32.xlu0 %v2501, 96
    %v2659 = vpop.permute.xlu0 %2658
    %2660 = vrot.lane.b32.xlu0 %v2502, 96
    %v2661 = vpop.permute.xlu0 %2660
    %vm2715 = vcmask 917248
    %2716 = vst.msk [vmem:[#allocation3] sm:$0xff] %vm2715, %v2557
    %2717 = vst.msk [vmem:[#allocation3 + $0x10] sm:$0xff] %vm2715, %v2559
    %2718 = vst.msk [vmem:[#allocation3 + $0x20] sm:$0xff] %vm2715, %v2561
    %2719 = vst.msk [vmem:[#allocation3 + $0x30] sm:$0xff] %vm2715, %v2563
    %2720 = vst.msk [vmem:[#allocation3 + $0x40] sm:$0xff] %vm2715, %v2565
    %2721 = vst.msk [vmem:[#allocation3 + $0x50] sm:$0xff] %vm2715, %v2567
    %2722 = vst.msk [vmem:[#allocation3 + $0x60] sm:$0xff] %vm2715, %v2569
    %2723 = vst.msk [vmem:[#allocation3 + $0x70] sm:$0xff] %vm2715, %v2571
    %2724 = vst.msk [vmem:[#allocation3 + $0x80] sm:$0xff] %vm2715, %v2573
    %2725 = vst.msk [vmem:[#allocation3 + $0x90] sm:$0xff] %vm2715, %v2575
    %2726 = vst.msk [vmem:[#allocation3 + $0xa0] sm:$0xff] %vm2715, %v2577
    %2727 = vst.msk [vmem:[#allocation3 + $0xb0] sm:$0xff] %vm2715, %v2579
    %2728 = vst.msk [vmem:[#allocation3 + $0xc0] sm:$0xff] %vm2715, %v2581
    %2729 = vst.msk [vmem:[#allocation3 + $0xd0] sm:$0xff] %vm2715, %v2583
    %2730 = vst.msk [vmem:[#allocation3 + $0xe0] sm:$0xff] %vm2715, %v2585
    %2731 = vst.msk [vmem:[#allocation3 + $0xf0] sm:$0xff] %vm2715, %v2587
    %2732 = vst.msk [vmem:[#allocation3 + $0x100] sm:$0xff] %vm2715, %v2589
    %2733 = vst.msk [vmem:[#allocation3 + $0x110] sm:$0xff] %vm2715, %v2591
    %2734 = vst.msk [vmem:[#allocation3 + $0x120] sm:$0xff] %vm2715, %v2593
    %2735 = vst.msk [vmem:[#allocation3 + $0x130] sm:$0xff] %vm2715, %v2595
    %2736 = vst.msk [vmem:[#allocation3 + $0x140] sm:$0xff] %vm2715, %v2597
    %2737 = vst.msk [vmem:[#allocation3 + $0x150] sm:$0xff] %vm2715, %v2599
    %2738 = vst.msk [vmem:[#allocation3 + $0x160] sm:$0xff] %vm2715, %v2601
    %2739 = vst.msk [vmem:[#allocation3 + $0x170] sm:$0xff] %vm2715, %v2603
    %2740 = vst.msk [vmem:[#allocation3 + $0x180] sm:$0xff] %vm2715, %v2605
    %2741 = vst.msk [vmem:[#allocation3 + $0x190] sm:$0xff] %vm2715, %v2607
    %2742 = vst.msk [vmem:[#allocation3 + $0x1a0] sm:$0xff] %vm2715, %v2609
    %2743 = vst.msk [vmem:[#allocation3 + $0x1b0] sm:$0xff] %vm2715, %v2611
    %2744 = vst.msk [vmem:[#allocation3 + $0x1c0] sm:$0xff] %vm2715, %v2613
    %2745 = vst.msk [vmem:[#allocation3 + $0x1d0] sm:$0xff] %vm2715, %v2615
    %2746 = vst.msk [vmem:[#allocation3 + $0x1e0] sm:$0xff] %vm2715, %v2617
    %2747 = vst.msk [vmem:[#allocation3 + $0x1f0] sm:$0xff] %vm2715, %v2619
    %2748 = vst.msk [vmem:[#allocation3 + $0x200] sm:$0xff] %vm2715, %v2621
    %2749 = vst.msk [vmem:[#allocation3 + $0x210] sm:$0xff] %vm2715, %v2623
    %2750 = vst.msk [vmem:[#allocation3 + $0x220] sm:$0xff] %vm2715, %v2625
    %2751 = vst.msk [vmem:[#allocation3 + $0x230] sm:$0xff] %vm2715, %v2627
    %2752 = vst.msk [vmem:[#allocation3 + $0x240] sm:$0xff] %vm2715, %v2629
    %2753 = vst.msk [vmem:[#allocation3 + $0x250] sm:$0xff] %vm2715, %v2631
    %2754 = vst.msk [vmem:[#allocation3 + $0x260] sm:$0xff] %vm2715, %v2633
    %2755 = vst.msk [vmem:[#allocation3 + $0x270] sm:$0xff] %vm2715, %v2635
    %2756 = vst.msk [vmem:[#allocation3 + $0x280] sm:$0xff] %vm2715, %v2637
    %2757 = vst.msk [vmem:[#allocation3 + $0x290] sm:$0xff] %vm2715, %v2639
    %2758 = vst.msk [vmem:[#allocation3 + $0x2a0] sm:$0xff] %vm2715, %v2641
    %2759 = vst.msk [vmem:[#allocation3 + $0x2b0] sm:$0xff] %vm2715, %v2643
    %2760 = vst.msk [vmem:[#allocation3 + $0x2c0] sm:$0xff] %vm2715, %v2645
    %2761 = vst.msk [vmem:[#allocation3 + $0x2d0] sm:$0xff] %vm2715, %v2647
    %2762 = vst.msk [vmem:[#allocation3 + $0x2e0] sm:$0xff] %vm2715, %v2649
    %2763 = vst.msk [vmem:[#allocation3 + $0x2f0] sm:$0xff] %vm2715, %v2651
    %2764 = vst.msk [vmem:[#allocation3 + $0x300] sm:$0xff] %vm2715, %v2653
    %2765 = vst.msk [vmem:[#allocation3 + $0x310] sm:$0xff] %vm2715, %v2655
    %2766 = vst.msk [vmem:[#allocation3 + $0x320] sm:$0xff] %vm2715, %v2657
    %2767 = vst.msk [vmem:[#allocation3 + $0x330] sm:$0xff] %vm2715, %v2659
    %2768 = vst.msk [vmem:[#allocation3 + $0x340] sm:$0xff] %vm2715, %v2661
    %v2769 = vld [vmem:[#allocation2 + $0x21] sm:$0xff]
    %v2770 = vld [vmem:[#allocation2 + $0x29] sm:$0xff]
    %v2771 = vld [vmem:[#allocation2 + $0x31] sm:$0xff]
    %v2772 = vld [vmem:[#allocation2 + $0x39] sm:$0xff]
    %v2773 = vld [vmem:[#allocation2 + $0x41] sm:$0xff]
    %v2774 = vld [vmem:[#allocation2 + $0x49] sm:$0xff]
    %v2775 = vld [vmem:[#allocation2 + $0x51] sm:$0xff]
    %v2776 = vld [vmem:[#allocation2 + $0x59] sm:$0xff]
    %v2777 = vld [vmem:[#allocation2 + $0x61] sm:$0xff]
    %v2778 = vld [vmem:[#allocation2 + $0x69] sm:$0xff]
    %v2779 = vld [vmem:[#allocation2 + $0x71] sm:$0xff]
    %v2780 = vld [vmem:[#allocation2 + $0x79] sm:$0xff]
    %v2781 = vld [vmem:[#allocation2 + $0x81] sm:$0xff]
    %v2782 = vld [vmem:[#allocation2 + $0x89] sm:$0xff]
    %v2783 = vld [vmem:[#allocation2 + $0x91] sm:$0xff]
    %v2784 = vld [vmem:[#allocation2 + $0x99] sm:$0xff]
    %v2785 = vld [vmem:[#allocation2 + $0xa1] sm:$0xff]
    %v2786 = vld [vmem:[#allocation2 + $0xa9] sm:$0xff]
    %v2787 = vld [vmem:[#allocation2 + $0xb1] sm:$0xff]
    %v2788 = vld [vmem:[#allocation2 + $0xb9] sm:$0xff]
    %v2789 = vld [vmem:[#allocation2 + $0xc1] sm:$0xff]
    %v2790 = vld [vmem:[#allocation2 + $0xc9] sm:$0xff]
    %v2791 = vld [vmem:[#allocation2 + $0xd1] sm:$0xff]
    %v2792 = vld [vmem:[#allocation2 + $0xd9] sm:$0xff]
    %v2793 = vld [vmem:[#allocation2 + $0xe1] sm:$0xff]
    %v2794 = vld [vmem:[#allocation2 + $0xe9] sm:$0xff]
    %v2795 = vld [vmem:[#allocation2 + $0xf1] sm:$0xff]
    %v2796 = vld [vmem:[#allocation2 + $0xf9] sm:$0xff]
    %v2797 = vld [vmem:[#allocation2 + $0x101] sm:$0xff]
    %v2798 = vld [vmem:[#allocation2 + $0x109] sm:$0xff]
    %v2799 = vld [vmem:[#allocation2 + $0x111] sm:$0xff]
    %v2800 = vld [vmem:[#allocation2 + $0x119] sm:$0xff]
    %v2801 = vld [vmem:[#allocation2 + $0x121] sm:$0xff]
    %v2802 = vld [vmem:[#allocation2 + $0x129] sm:$0xff]
    %v2803 = vld [vmem:[#allocation2 + $0x131] sm:$0xff]
    %v2804 = vld [vmem:[#allocation2 + $0x139] sm:$0xff]
    %v2805 = vld [vmem:[#allocation2 + $0x141] sm:$0xff]
    %v2806 = vld [vmem:[#allocation2 + $0x149] sm:$0xff]
    %v2807 = vld [vmem:[#allocation2 + $0x151] sm:$0xff]
    %v2808 = vld [vmem:[#allocation2 + $0x159] sm:$0xff]
    %v2809 = vld [vmem:[#allocation2 + $0x161] sm:$0xff]
    %v2810 = vld [vmem:[#allocation2 + $0x169] sm:$0xff]
    %v2811 = vld [vmem:[#allocation2 + $0x171] sm:$0xff]
    %v2812 = vld [vmem:[#allocation2 + $0x179] sm:$0xff]
    %v2813 = vld [vmem:[#allocation2 + $0x181] sm:$0xff]
    %v2814 = vld [vmem:[#allocation2 + $0x189] sm:$0xff]
    %v2815 = vld [vmem:[#allocation2 + $0x191] sm:$0xff]
    %v2816 = vld [vmem:[#allocation2 + $0x199] sm:$0xff]
    %v2817 = vld [vmem:[#allocation2 + $0x1a1] sm:$0xff]
    %v2818 = vld [vmem:[#allocation2 + $0x1a9] sm:$0xff]
    %v2819 = vld [vmem:[#allocation2 + $0x1b1] sm:$0xff]
    %v2820 = vld [vmem:[#allocation2 + $0x1b9] sm:$0xff]
    %v2821 = vld [vmem:[#allocation2 + $0x1c1] sm:$0xff]
    %2875 = vrot.lane.b32.xlu0 %v2769, 112
    %v2876 = vpop.permute.xlu0 %2875
    %2877 = vrot.lane.b32.xlu0 %v2770, 112
    %v2878 = vpop.permute.xlu0 %2877
    %2879 = vrot.lane.b32.xlu0 %v2771, 112
    %v2880 = vpop.permute.xlu0 %2879
    %2881 = vrot.lane.b32.xlu0 %v2772, 112
    %v2882 = vpop.permute.xlu0 %2881
    %2883 = vrot.lane.b32.xlu0 %v2773, 112
    %v2884 = vpop.permute.xlu0 %2883
    %2885 = vrot.lane.b32.xlu0 %v2774, 112
    %v2886 = vpop.permute.xlu0 %2885
    %2887 = vrot.lane.b32.xlu0 %v2775, 112
    %v2888 = vpop.permute.xlu0 %2887
    %2889 = vrot.lane.b32.xlu0 %v2776, 112
    %v2890 = vpop.permute.xlu0 %2889
    %2891 = vrot.lane.b32.xlu0 %v2777, 112
    %v2892 = vpop.permute.xlu0 %2891
    %2893 = vrot.lane.b32.xlu0 %v2778, 112
    %v2894 = vpop.permute.xlu0 %2893
    %2895 = vrot.lane.b32.xlu0 %v2779, 112
    %v2896 = vpop.permute.xlu0 %2895
    %2897 = vrot.lane.b32.xlu0 %v2780, 112
    %v2898 = vpop.permute.xlu0 %2897
    %2899 = vrot.lane.b32.xlu0 %v2781, 112
    %v2900 = vpop.permute.xlu0 %2899
    %2901 = vrot.lane.b32.xlu0 %v2782, 112
    %v2902 = vpop.permute.xlu0 %2901
    %2903 = vrot.lane.b32.xlu0 %v2783, 112
    %v2904 = vpop.permute.xlu0 %2903
    %2905 = vrot.lane.b32.xlu0 %v2784, 112
    %v2906 = vpop.permute.xlu0 %2905
    %2907 = vrot.lane.b32.xlu0 %v2785, 112
    %v2908 = vpop.permute.xlu0 %2907
    %2909 = vrot.lane.b32.xlu0 %v2786, 112
    %v2910 = vpop.permute.xlu0 %2909
    %2911 = vrot.lane.b32.xlu0 %v2787, 112
    %v2912 = vpop.permute.xlu0 %2911
    %2913 = vrot.lane.b32.xlu0 %v2788, 112
    %v2914 = vpop.permute.xlu0 %2913
    %2915 = vrot.lane.b32.xlu0 %v2789, 112
    %v2916 = vpop.permute.xlu0 %2915
    %2917 = vrot.lane.b32.xlu0 %v2790, 112
    %v2918 = vpop.permute.xlu0 %2917
    %2919 = vrot.lane.b32.xlu0 %v2791, 112
    %v2920 = vpop.permute.xlu0 %2919
    %2921 = vrot.lane.b32.xlu0 %v2792, 112
    %v2922 = vpop.permute.xlu0 %2921
    %2923 = vrot.lane.b32.xlu0 %v2793, 112
    %v2924 = vpop.permute.xlu0 %2923
    %2925 = vrot.lane.b32.xlu0 %v2794, 112
    %v2926 = vpop.permute.xlu0 %2925
    %2927 = vrot.lane.b32.xlu0 %v2795, 112
    %v2928 = vpop.permute.xlu0 %2927
    %2929 = vrot.lane.b32.xlu0 %v2796, 112
    %v2930 = vpop.permute.xlu0 %2929
    %2931 = vrot.lane.b32.xlu0 %v2797, 112
    %v2932 = vpop.permute.xlu0 %2931
    %2933 = vrot.lane.b32.xlu0 %v2798, 112
    %v2934 = vpop.permute.xlu0 %2933
    %2935 = vrot.lane.b32.xlu0 %v2799, 112
    %v2936 = vpop.permute.xlu0 %2935
    %2937 = vrot.lane.b32.xlu0 %v2800, 112
    %v2938 = vpop.permute.xlu0 %2937
    %2939 = vrot.lane.b32.xlu0 %v2801, 112
    %v2940 = vpop.permute.xlu0 %2939
    %2941 = vrot.lane.b32.xlu0 %v2802, 112
    %v2942 = vpop.permute.xlu0 %2941
    %2943 = vrot.lane.b32.xlu0 %v2803, 112
    %v2944 = vpop.permute.xlu0 %2943
    %2945 = vrot.lane.b32.xlu0 %v2804, 112
    %v2946 = vpop.permute.xlu0 %2945
    %2947 = vrot.lane.b32.xlu0 %v2805, 112
    %v2948 = vpop.permute.xlu0 %2947
    %2949 = vrot.lane.b32.xlu0 %v2806, 112
    %v2950 = vpop.permute.xlu0 %2949
    %2951 = vrot.lane.b32.xlu0 %v2807, 112
    %v2952 = vpop.permute.xlu0 %2951
    %2953 = vrot.lane.b32.xlu0 %v2808, 112
    %v2954 = vpop.permute.xlu0 %2953
    %2955 = vrot.lane.b32.xlu0 %v2809, 112
    %v2956 = vpop.permute.xlu0 %2955
    %2957 = vrot.lane.b32.xlu0 %v2810, 112
    %v2958 = vpop.permute.xlu0 %2957
    %2959 = vrot.lane.b32.xlu0 %v2811, 112
    %v2960 = vpop.permute.xlu0 %2959
    %2961 = vrot.lane.b32.xlu0 %v2812, 112
    %v2962 = vpop.permute.xlu0 %2961
    %2963 = vrot.lane.b32.xlu0 %v2813, 112
    %v2964 = vpop.permute.xlu0 %2963
    %2965 = vrot.lane.b32.xlu0 %v2814, 112
    %v2966 = vpop.permute.xlu0 %2965
    %2967 = vrot.lane.b32.xlu0 %v2815, 112
    %v2968 = vpop.permute.xlu0 %2967
    %2969 = vrot.lane.b32.xlu0 %v2816, 112
    %v2970 = vpop.permute.xlu0 %2969
    %2971 = vrot.lane.b32.xlu0 %v2817, 112
    %v2972 = vpop.permute.xlu0 %2971
    %2973 = vrot.lane.b32.xlu0 %v2818, 112
    %v2974 = vpop.permute.xlu0 %2973
    %2975 = vrot.lane.b32.xlu0 %v2819, 112
    %v2976 = vpop.permute.xlu0 %2975
    %2977 = vrot.lane.b32.xlu0 %v2820, 112
    %v2978 = vpop.permute.xlu0 %2977
    %2979 = vrot.lane.b32.xlu0 %v2821, 112
    %v2980 = vpop.permute.xlu0 %2979
    %vm3034 = vcmask 1048448
    %3035 = vst.msk [vmem:[#allocation3] sm:$0xff] %vm3034, %v2876
    %3036 = vst.msk [vmem:[#allocation3 + $0x10] sm:$0xff] %vm3034, %v2878
    %3037 = vst.msk [vmem:[#allocation3 + $0x20] sm:$0xff] %vm3034, %v2880
    %3038 = vst.msk [vmem:[#allocation3 + $0x30] sm:$0xff] %vm3034, %v2882
    %3039 = vst.msk [vmem:[#allocation3 + $0x40] sm:$0xff] %vm3034, %v2884
    %3040 = vst.msk [vmem:[#allocation3 + $0x50] sm:$0xff] %vm3034, %v2886
    %3041 = vst.msk [vmem:[#allocation3 + $0x60] sm:$0xff] %vm3034, %v2888
    %3042 = vst.msk [vmem:[#allocation3 + $0x70] sm:$0xff] %vm3034, %v2890
    %3043 = vst.msk [vmem:[#allocation3 + $0x80] sm:$0xff] %vm3034, %v2892
    %3044 = vst.msk [vmem:[#allocation3 + $0x90] sm:$0xff] %vm3034, %v2894
    %3045 = vst.msk [vmem:[#allocation3 + $0xa0] sm:$0xff] %vm3034, %v2896
    %3046 = vst.msk [vmem:[#allocation3 + $0xb0] sm:$0xff] %vm3034, %v2898
    %3047 = vst.msk [vmem:[#allocation3 + $0xc0] sm:$0xff] %vm3034, %v2900
    %3048 = vst.msk [vmem:[#allocation3 + $0xd0] sm:$0xff] %vm3034, %v2902
    %3049 = vst.msk [vmem:[#allocation3 + $0xe0] sm:$0xff] %vm3034, %v2904
    %3050 = vst.msk [vmem:[#allocation3 + $0xf0] sm:$0xff] %vm3034, %v2906
    %3051 = vst.msk [vmem:[#allocation3 + $0x100] sm:$0xff] %vm3034, %v2908
    %3052 = vst.msk [vmem:[#allocation3 + $0x110] sm:$0xff] %vm3034, %v2910
    %3053 = vst.msk [vmem:[#allocation3 + $0x120] sm:$0xff] %vm3034, %v2912
    %3054 = vst.msk [vmem:[#allocation3 + $0x130] sm:$0xff] %vm3034, %v2914
    %3055 = vst.msk [vmem:[#allocation3 + $0x140] sm:$0xff] %vm3034, %v2916
    %3056 = vst.msk [vmem:[#allocation3 + $0x150] sm:$0xff] %vm3034, %v2918
    %3057 = vst.msk [vmem:[#allocation3 + $0x160] sm:$0xff] %vm3034, %v2920
    %3058 = vst.msk [vmem:[#allocation3 + $0x170] sm:$0xff] %vm3034, %v2922
    %3059 = vst.msk [vmem:[#allocation3 + $0x180] sm:$0xff] %vm3034, %v2924
    %3060 = vst.msk [vmem:[#allocation3 + $0x190] sm:$0xff] %vm3034, %v2926
    %3061 = vst.msk [vmem:[#allocation3 + $0x1a0] sm:$0xff] %vm3034, %v2928
    %3062 = vst.msk [vmem:[#allocation3 + $0x1b0] sm:$0xff] %vm3034, %v2930
    %3063 = vst.msk [vmem:[#allocation3 + $0x1c0] sm:$0xff] %vm3034, %v2932
    %3064 = vst.msk [vmem:[#allocation3 + $0x1d0] sm:$0xff] %vm3034, %v2934
    %3065 = vst.msk [vmem:[#allocation3 + $0x1e0] sm:$0xff] %vm3034, %v2936
    %3066 = vst.msk [vmem:[#allocation3 + $0x1f0] sm:$0xff] %vm3034, %v2938
    %3067 = vst.msk [vmem:[#allocation3 + $0x200] sm:$0xff] %vm3034, %v2940
    %3068 = vst.msk [vmem:[#allocation3 + $0x210] sm:$0xff] %vm3034, %v2942
    %3069 = vst.msk [vmem:[#allocation3 + $0x220] sm:$0xff] %vm3034, %v2944
    %3070 = vst.msk [vmem:[#allocation3 + $0x230] sm:$0xff] %vm3034, %v2946
    %3071 = vst.msk [vmem:[#allocation3 + $0x240] sm:$0xff] %vm3034, %v2948
    %3072 = vst.msk [vmem:[#allocation3 + $0x250] sm:$0xff] %vm3034, %v2950
    %3073 = vst.msk [vmem:[#allocation3 + $0x260] sm:$0xff] %vm3034, %v2952
    %3074 = vst.msk [vmem:[#allocation3 + $0x270] sm:$0xff] %vm3034, %v2954
    %3075 = vst.msk [vmem:[#allocation3 + $0x280] sm:$0xff] %vm3034, %v2956
    %3076 = vst.msk [vmem:[#allocation3 + $0x290] sm:$0xff] %vm3034, %v2958
    %3077 = vst.msk [vmem:[#allocation3 + $0x2a0] sm:$0xff] %vm3034, %v2960
    %3078 = vst.msk [vmem:[#allocation3 + $0x2b0] sm:$0xff] %vm3034, %v2962
    %3079 = vst.msk [vmem:[#allocation3 + $0x2c0] sm:$0xff] %vm3034, %v2964
    %3080 = vst.msk [vmem:[#allocation3 + $0x2d0] sm:$0xff] %vm3034, %v2966
    %3081 = vst.msk [vmem:[#allocation3 + $0x2e0] sm:$0xff] %vm3034, %v2968
    %3082 = vst.msk [vmem:[#allocation3 + $0x2f0] sm:$0xff] %vm3034, %v2970
    %3083 = vst.msk [vmem:[#allocation3 + $0x300] sm:$0xff] %vm3034, %v2972
    %3084 = vst.msk [vmem:[#allocation3 + $0x310] sm:$0xff] %vm3034, %v2974
    %3085 = vst.msk [vmem:[#allocation3 + $0x320] sm:$0xff] %vm3034, %v2976
    %3086 = vst.msk [vmem:[#allocation3 + $0x330] sm:$0xff] %vm3034, %v2978
    %3087 = vst.msk [vmem:[#allocation3 + $0x340] sm:$0xff] %vm3034, %v2980
    %v3088 = vld [vmem:[#allocation2 + $0x22] sm:$0xff]
    %v3089 = vld [vmem:[#allocation2 + $0x2a] sm:$0xff]
    %v3090 = vld [vmem:[#allocation2 + $0x32] sm:$0xff]
    %v3091 = vld [vmem:[#allocation2 + $0x3a] sm:$0xff]
    %v3092 = vld [vmem:[#allocation2 + $0x42] sm:$0xff]
    %v3093 = vld [vmem:[#allocation2 + $0x4a] sm:$0xff]
    %v3094 = vld [vmem:[#allocation2 + $0x52] sm:$0xff]
    %v3095 = vld [vmem:[#allocation2 + $0x5a] sm:$0xff]
    %v3096 = vld [vmem:[#allocation2 + $0x62] sm:$0xff]
    %v3097 = vld [vmem:[#allocation2 + $0x6a] sm:$0xff]
    %v3098 = vld [vmem:[#allocation2 + $0x72] sm:$0xff]
    %v3099 = vld [vmem:[#allocation2 + $0x7a] sm:$0xff]
    %v3100 = vld [vmem:[#allocation2 + $0x82] sm:$0xff]
    %v3101 = vld [vmem:[#allocation2 + $0x8a] sm:$0xff]
    %v3102 = vld [vmem:[#allocation2 + $0x92] sm:$0xff]
    %v3103 = vld [vmem:[#allocation2 + $0x9a] sm:$0xff]
    %v3104 = vld [vmem:[#allocation2 + $0xa2] sm:$0xff]
    %v3105 = vld [vmem:[#allocation2 + $0xaa] sm:$0xff]
    %v3106 = vld [vmem:[#allocation2 + $0xb2] sm:$0xff]
    %v3107 = vld [vmem:[#allocation2 + $0xba] sm:$0xff]
    %v3108 = vld [vmem:[#allocation2 + $0xc2] sm:$0xff]
    %v3109 = vld [vmem:[#allocation2 + $0xca] sm:$0xff]
    %v3110 = vld [vmem:[#allocation2 + $0xd2] sm:$0xff]
    %v3111 = vld [vmem:[#allocation2 + $0xda] sm:$0xff]
    %v3112 = vld [vmem:[#allocation2 + $0xe2] sm:$0xff]
    %v3113 = vld [vmem:[#allocation2 + $0xea] sm:$0xff]
    %v3114 = vld [vmem:[#allocation2 + $0xf2] sm:$0xff]
    %v3115 = vld [vmem:[#allocation2 + $0xfa] sm:$0xff]
    %v3116 = vld [vmem:[#allocation2 + $0x102] sm:$0xff]
    %v3117 = vld [vmem:[#allocation2 + $0x10a] sm:$0xff]
    %v3118 = vld [vmem:[#allocation2 + $0x112] sm:$0xff]
    %v3119 = vld [vmem:[#allocation2 + $0x11a] sm:$0xff]
    %v3120 = vld [vmem:[#allocation2 + $0x122] sm:$0xff]
    %v3121 = vld [vmem:[#allocation2 + $0x12a] sm:$0xff]
    %v3122 = vld [vmem:[#allocation2 + $0x132] sm:$0xff]
    %v3123 = vld [vmem:[#allocation2 + $0x13a] sm:$0xff]
    %v3124 = vld [vmem:[#allocation2 + $0x142] sm:$0xff]
    %v3125 = vld [vmem:[#allocation2 + $0x14a] sm:$0xff]
    %v3126 = vld [vmem:[#allocation2 + $0x152] sm:$0xff]
    %v3127 = vld [vmem:[#allocation2 + $0x15a] sm:$0xff]
    %v3128 = vld [vmem:[#allocation2 + $0x162] sm:$0xff]
    %v3129 = vld [vmem:[#allocation2 + $0x16a] sm:$0xff]
    %v3130 = vld [vmem:[#allocation2 + $0x172] sm:$0xff]
    %v3131 = vld [vmem:[#allocation2 + $0x17a] sm:$0xff]
    %v3132 = vld [vmem:[#allocation2 + $0x182] sm:$0xff]
    %v3133 = vld [vmem:[#allocation2 + $0x18a] sm:$0xff]
    %v3134 = vld [vmem:[#allocation2 + $0x192] sm:$0xff]
    %v3135 = vld [vmem:[#allocation2 + $0x19a] sm:$0xff]
    %v3136 = vld [vmem:[#allocation2 + $0x1a2] sm:$0xff]
    %v3137 = vld [vmem:[#allocation2 + $0x1aa] sm:$0xff]
    %v3138 = vld [vmem:[#allocation2 + $0x1b2] sm:$0xff]
    %v3139 = vld [vmem:[#allocation2 + $0x1ba] sm:$0xff]
    %v3140 = vld [vmem:[#allocation2 + $0x1c2] sm:$0xff]
    %3141 = vst.msk [vmem:[#allocation3 + $0x8] sm:$0xff] %vm690, %v3088
    %3142 = vst.msk [vmem:[#allocation3 + $0x18] sm:$0xff] %vm690, %v3089
    %3143 = vst.msk [vmem:[#allocation3 + $0x28] sm:$0xff] %vm690, %v3090
    %3144 = vst.msk [vmem:[#allocation3 + $0x38] sm:$0xff] %vm690, %v3091
    %3145 = vst.msk [vmem:[#allocation3 + $0x48] sm:$0xff] %vm690, %v3092
    %3146 = vst.msk [vmem:[#allocation3 + $0x58] sm:$0xff] %vm690, %v3093
    %3147 = vst.msk [vmem:[#allocation3 + $0x68] sm:$0xff] %vm690, %v3094
    %3148 = vst.msk [vmem:[#allocation3 + $0x78] sm:$0xff] %vm690, %v3095
    %3149 = vst.msk [vmem:[#allocation3 + $0x88] sm:$0xff] %vm690, %v3096
    %3150 = vst.msk [vmem:[#allocation3 + $0x98] sm:$0xff] %vm690, %v3097
    %3151 = vst.msk [vmem:[#allocation3 + $0xa8] sm:$0xff] %vm690, %v3098
    %3152 = vst.msk [vmem:[#allocation3 + $0xb8] sm:$0xff] %vm690, %v3099
    %3153 = vst.msk [vmem:[#allocation3 + $0xc8] sm:$0xff] %vm690, %v3100
    %3154 = vst.msk [vmem:[#allocation3 + $0xd8] sm:$0xff] %vm690, %v3101
    %3155 = vst.msk [vmem:[#allocation3 + $0xe8] sm:$0xff] %vm690, %v3102
    %3156 = vst.msk [vmem:[#allocation3 + $0xf8] sm:$0xff] %vm690, %v3103
    %3157 = vst.msk [vmem:[#allocation3 + $0x108] sm:$0xff] %vm690, %v3104
    %3158 = vst.msk [vmem:[#allocation3 + $0x118] sm:$0xff] %vm690, %v3105
    %3159 = vst.msk [vmem:[#allocation3 + $0x128] sm:$0xff] %vm690, %v3106
    %3160 = vst.msk [vmem:[#allocation3 + $0x138] sm:$0xff] %vm690, %v3107
    %3161 = vst.msk [vmem:[#allocation3 + $0x148] sm:$0xff] %vm690, %v3108
    %3162 = vst.msk [vmem:[#allocation3 + $0x158] sm:$0xff] %vm690, %v3109
    %3163 = vst.msk [vmem:[#allocation3 + $0x168] sm:$0xff] %vm690, %v3110
    %3164 = vst.msk [vmem:[#allocation3 + $0x178] sm:$0xff] %vm690, %v3111
    %3165 = vst.msk [vmem:[#allocation3 + $0x188] sm:$0xff] %vm690, %v3112
    %3166 = vst.msk [vmem:[#allocation3 + $0x198] sm:$0xff] %vm690, %v3113
    %3167 = vst.msk [vmem:[#allocation3 + $0x1a8] sm:$0xff] %vm690, %v3114
    %3168 = vst.msk [vmem:[#allocation3 + $0x1b8] sm:$0xff] %vm690, %v3115
    %3169 = vst.msk [vmem:[#allocation3 + $0x1c8] sm:$0xff] %vm690, %v3116
    %3170 = vst.msk [vmem:[#allocation3 + $0x1d8] sm:$0xff] %vm690, %v3117
    %3171 = vst.msk [vmem:[#allocation3 + $0x1e8] sm:$0xff] %vm690, %v3118
    %3172 = vst.msk [vmem:[#allocation3 + $0x1f8] sm:$0xff] %vm690, %v3119
    %3173 = vst.msk [vmem:[#allocation3 + $0x208] sm:$0xff] %vm690, %v3120
    %3174 = vst.msk [vmem:[#allocation3 + $0x218] sm:$0xff] %vm690, %v3121
    %3175 = vst.msk [vmem:[#allocation3 + $0x228] sm:$0xff] %vm690, %v3122
    %3176 = vst.msk [vmem:[#allocation3 + $0x238] sm:$0xff] %vm690, %v3123
    %3177 = vst.msk [vmem:[#allocation3 + $0x248] sm:$0xff] %vm690, %v3124
    %3178 = vst.msk [vmem:[#allocation3 + $0x258] sm:$0xff] %vm690, %v3125
    %3179 = vst.msk [vmem:[#allocation3 + $0x268] sm:$0xff] %vm690, %v3126
    %3180 = vst.msk [vmem:[#allocation3 + $0x278] sm:$0xff] %vm690, %v3127
    %3181 = vst.msk [vmem:[#allocation3 + $0x288] sm:$0xff] %vm690, %v3128
    %3182 = vst.msk [vmem:[#allocation3 + $0x298] sm:$0xff] %vm690, %v3129
    %3183 = vst.msk [vmem:[#allocation3 + $0x2a8] sm:$0xff] %vm690, %v3130
    %3184 = vst.msk [vmem:[#allocation3 + $0x2b8] sm:$0xff] %vm690, %v3131
    %3185 = vst.msk [vmem:[#allocation3 + $0x2c8] sm:$0xff] %vm690, %v3132
    %3186 = vst.msk [vmem:[#allocation3 + $0x2d8] sm:$0xff] %vm690, %v3133
    %3187 = vst.msk [vmem:[#allocation3 + $0x2e8] sm:$0xff] %vm690, %v3134
    %3188 = vst.msk [vmem:[#allocation3 + $0x2f8] sm:$0xff] %vm690, %v3135
    %3189 = vst.msk [vmem:[#allocation3 + $0x308] sm:$0xff] %vm690, %v3136
    %3190 = vst.msk [vmem:[#allocation3 + $0x318] sm:$0xff] %vm690, %v3137
    %3191 = vst.msk [vmem:[#allocation3 + $0x328] sm:$0xff] %vm690, %v3138
    %3192 = vst.msk [vmem:[#allocation3 + $0x338] sm:$0xff] %vm690, %v3139
    %3193 = vst.msk [vmem:[#allocation3 + $0x348] sm:$0xff] %vm690, %v3140
    %v3194 = vld [vmem:[#allocation3] sm:$0xff]
    %v3195 = vld [vmem:[#allocation3 + $0x8] sm:$0xff]
    %v3196 = vld [vmem:[#allocation3 + $0x10] sm:$0xff]
    %v3197 = vld [vmem:[#allocation3 + $0x18] sm:$0xff]
    %v3198 = vld [vmem:[#allocation3 + $0x20] sm:$0xff]
    %v3199 = vld [vmem:[#allocation3 + $0x28] sm:$0xff]
    %v3200 = vld [vmem:[#allocation3 + $0x30] sm:$0xff]
    %v3201 = vld [vmem:[#allocation3 + $0x38] sm:$0xff]
    %v3202 = vld [vmem:[#allocation3 + $0x40] sm:$0xff]
    %v3203 = vld [vmem:[#allocation3 + $0x48] sm:$0xff]
    %v3204 = vld [vmem:[#allocation3 + $0x50] sm:$0xff]
    %v3205 = vld [vmem:[#allocation3 + $0x58] sm:$0xff]
    %v3206 = vld [vmem:[#allocation3 + $0x60] sm:$0xff]
    %v3207 = vld [vmem:[#allocation3 + $0x68] sm:$0xff]
    %v3208 = vld [vmem:[#allocation3 + $0x70] sm:$0xff]
    %v3209 = vld [vmem:[#allocation3 + $0x78] sm:$0xff]
    %v3210 = vld [vmem:[#allocation3 + $0x80] sm:$0xff]
    %v3211 = vld [vmem:[#allocation3 + $0x88] sm:$0xff]
    %v3212 = vld [vmem:[#allocation3 + $0x90] sm:$0xff]
    %v3213 = vld [vmem:[#allocation3 + $0x98] sm:$0xff]
    %v3214 = vld [vmem:[#allocation3 + $0xa0] sm:$0xff]
    %v3215 = vld [vmem:[#allocation3 + $0xa8] sm:$0xff]
    %v3216 = vld [vmem:[#allocation3 + $0xb0] sm:$0xff]
    %v3217 = vld [vmem:[#allocation3 + $0xb8] sm:$0xff]
    %v3218 = vld [vmem:[#allocation3 + $0xc0] sm:$0xff]
    %v3219 = vld [vmem:[#allocation3 + $0xc8] sm:$0xff]
    %v3220 = vld [vmem:[#allocation3 + $0xd0] sm:$0xff]
    %v3221 = vld [vmem:[#allocation3 + $0xd8] sm:$0xff]
    %v3222 = vld [vmem:[#allocation3 + $0xe0] sm:$0xff]
    %v3223 = vld [vmem:[#allocation3 + $0xe8] sm:$0xff]
    %v3224 = vld [vmem:[#allocation3 + $0xf0] sm:$0xff]
    %v3225 = vld [vmem:[#allocation3 + $0xf8] sm:$0xff]
    %v3226 = vld [vmem:[#allocation3 + $0x100] sm:$0xff]
    %v3227 = vld [vmem:[#allocation3 + $0x108] sm:$0xff]
    %v3228 = vld [vmem:[#allocation3 + $0x110] sm:$0xff]
    %v3229 = vld [vmem:[#allocation3 + $0x118] sm:$0xff]
    %v3230 = vld [vmem:[#allocation3 + $0x120] sm:$0xff]
    %v3231 = vld [vmem:[#allocation3 + $0x128] sm:$0xff]
    %v3232 = vld [vmem:[#allocation3 + $0x130] sm:$0xff]
    %v3233 = vld [vmem:[#allocation3 + $0x138] sm:$0xff]
    %v3234 = vld [vmem:[#allocation3 + $0x140] sm:$0xff]
    %v3235 = vld [vmem:[#allocation3 + $0x148] sm:$0xff]
    %v3236 = vld [vmem:[#allocation3 + $0x150] sm:$0xff]
    %v3237 = vld [vmem:[#allocation3 + $0x158] sm:$0xff]
    %v3238 = vld [vmem:[#allocation3 + $0x160] sm:$0xff]
    %v3239 = vld [vmem:[#allocation3 + $0x168] sm:$0xff]
    %v3240 = vld [vmem:[#allocation3 + $0x170] sm:$0xff]
    %v3241 = vld [vmem:[#allocation3 + $0x178] sm:$0xff]
    %v3242 = vld [vmem:[#allocation3 + $0x180] sm:$0xff]
    %v3243 = vld [vmem:[#allocation3 + $0x188] sm:$0xff]
    %v3244 = vld [vmem:[#allocation3 + $0x190] sm:$0xff]
    %v3245 = vld [vmem:[#allocation3 + $0x198] sm:$0xff]
    %v3246 = vld [vmem:[#allocation3 + $0x1a0] sm:$0xff]
    %v3247 = vld [vmem:[#allocation3 + $0x1a8] sm:$0xff]
    %v3248 = vld [vmem:[#allocation3 + $0x1b0] sm:$0xff]
    %v3249 = vld [vmem:[#allocation3 + $0x1b8] sm:$0xff]
    %v3250 = vld [vmem:[#allocation3 + $0x1c0] sm:$0xff]
    %v3251 = vld [vmem:[#allocation3 + $0x1c8] sm:$0xff]
    %v3252 = vld [vmem:[#allocation3 + $0x1d0] sm:$0xff]
    %v3253 = vld [vmem:[#allocation3 + $0x1d8] sm:$0xff]
    %v3254 = vld [vmem:[#allocation3 + $0x1e0] sm:$0xff]
    %v3255 = vld [vmem:[#allocation3 + $0x1e8] sm:$0xff]
    %v3256 = vld [vmem:[#allocation3 + $0x1f0] sm:$0xff]
    %v3257 = vld [vmem:[#allocation3 + $0x1f8] sm:$0xff]
    %v3258 = vld [vmem:[#allocation3 + $0x200] sm:$0xff]
    %v3259 = vld [vmem:[#allocation3 + $0x208] sm:$0xff]
    %v3260 = vld [vmem:[#allocation3 + $0x210] sm:$0xff]
    %v3261 = vld [vmem:[#allocation3 + $0x218] sm:$0xff]
    %v3262 = vld [vmem:[#allocation3 + $0x220] sm:$0xff]
    %v3263 = vld [vmem:[#allocation3 + $0x228] sm:$0xff]
    %v3264 = vld [vmem:[#allocation3 + $0x230] sm:$0xff]
    %v3265 = vld [vmem:[#allocation3 + $0x238] sm:$0xff]
    %v3266 = vld [vmem:[#allocation3 + $0x240] sm:$0xff]
    %v3267 = vld [vmem:[#allocation3 + $0x248] sm:$0xff]
    %v3268 = vld [vmem:[#allocation3 + $0x250] sm:$0xff]
    %v3269 = vld [vmem:[#allocation3 + $0x258] sm:$0xff]
    %v3270 = vld [vmem:[#allocation3 + $0x260] sm:$0xff]
    %v3271 = vld [vmem:[#allocation3 + $0x268] sm:$0xff]
    %v3272 = vld [vmem:[#allocation3 + $0x270] sm:$0xff]
    %v3273 = vld [vmem:[#allocation3 + $0x278] sm:$0xff]
    %v3274 = vld [vmem:[#allocation3 + $0x280] sm:$0xff]
    %v3275 = vld [vmem:[#allocation3 + $0x288] sm:$0xff]
    %v3276 = vld [vmem:[#allocation3 + $0x290] sm:$0xff]
    %v3277 = vld [vmem:[#allocation3 + $0x298] sm:$0xff]
    %v3278 = vld [vmem:[#allocation3 + $0x2a0] sm:$0xff]
    %v3279 = vld [vmem:[#allocation3 + $0x2a8] sm:$0xff]
    %v3280 = vld [vmem:[#allocation3 + $0x2b0] sm:$0xff]
    %v3281 = vld [vmem:[#allocation3 + $0x2b8] sm:$0xff]
    %v3282 = vld [vmem:[#allocation3 + $0x2c0] sm:$0xff]
    %v3283 = vld [vmem:[#allocation3 + $0x2c8] sm:$0xff]
    %v3284 = vld [vmem:[#allocation3 + $0x2d0] sm:$0xff]
    %v3285 = vld [vmem:[#allocation3 + $0x2d8] sm:$0xff]
    %v3286 = vld [vmem:[#allocation3 + $0x2e0] sm:$0xff]
    %v3287 = vld [vmem:[#allocation3 + $0x2e8] sm:$0xff]
    %v3288 = vld [vmem:[#allocation3 + $0x2f0] sm:$0xff]
    %v3289 = vld [vmem:[#allocation3 + $0x2f8] sm:$0xff]
    %v3290 = vld [vmem:[#allocation3 + $0x300] sm:$0xff]
    %v3291 = vld [vmem:[#allocation3 + $0x308] sm:$0xff]
    %v3292 = vld [vmem:[#allocation3 + $0x310] sm:$0xff]
    %v3293 = vld [vmem:[#allocation3 + $0x318] sm:$0xff]
    %v3294 = vld [vmem:[#allocation3 + $0x320] sm:$0xff]
    %v3295 = vld [vmem:[#allocation3 + $0x328] sm:$0xff]
    %v3296 = vld [vmem:[#allocation3 + $0x330] sm:$0xff]
    %v3297 = vld [vmem:[#allocation3 + $0x338] sm:$0xff]
    %v3298 = vld [vmem:[#allocation3 + $0x340] sm:$0xff]
    %v3299 = vld [vmem:[#allocation3 + $0x348] sm:$0xff]
    %v3300 = vpack.c.bf16 %v3196, %v3194
    %v3301 = vpack.c.bf16 %v3197, %v3195
    %v3302 = vpack.c.bf16 %v3200, %v3198
    %v3303 = vpack.c.bf16 %v3201, %v3199
    %v3304 = vpack.c.bf16 %v3204, %v3202
    %v3305 = vpack.c.bf16 %v3205, %v3203
    %v3306 = vpack.c.bf16 %v3208, %v3206
    %v3307 = vpack.c.bf16 %v3209, %v3207
    %v3308 = vpack.c.bf16 %v3212, %v3210
    %v3309 = vpack.c.bf16 %v3213, %v3211
    %v3310 = vpack.c.bf16 %v3216, %v3214
    %v3311 = vpack.c.bf16 %v3217, %v3215
    %v3312 = vpack.c.bf16 %v3220, %v3218
    %v3313 = vpack.c.bf16 %v3221, %v3219
    %v3314 = vpack.c.bf16 %v3224, %v3222
    %v3315 = vpack.c.bf16 %v3225, %v3223
    %v3316 = vpack.c.bf16 %v3228, %v3226
    %v3317 = vpack.c.bf16 %v3229, %v3227
    %v3318 = vpack.c.bf16 %v3232, %v3230
    %v3319 = vpack.c.bf16 %v3233, %v3231
    %v3320 = vpack.c.bf16 %v3236, %v3234
    %v3321 = vpack.c.bf16 %v3237, %v3235
    %v3322 = vpack.c.bf16 %v3240, %v3238
    %v3323 = vpack.c.bf16 %v3241, %v3239
    %v3324 = vpack.c.bf16 %v3244, %v3242
    %v3325 = vpack.c.bf16 %v3245, %v3243
    %v3326 = vpack.c.bf16 %v3248, %v3246
    %v3327 = vpack.c.bf16 %v3249, %v3247
    %v3328 = vpack.c.bf16 %v3252, %v3250
    %v3329 = vpack.c.bf16 %v3253, %v3251
    %v3330 = vpack.c.bf16 %v3256, %v3254
    %v3331 = vpack.c.bf16 %v3257, %v3255
    %v3332 = vpack.c.bf16 %v3260, %v3258
    %v3333 = vpack.c.bf16 %v3261, %v3259
    %v3334 = vpack.c.bf16 %v3264, %v3262
    %v3335 = vpack.c.bf16 %v3265, %v3263
    %v3336 = vpack.c.bf16 %v3268, %v3266
    %v3337 = vpack.c.bf16 %v3269, %v3267
    %v3338 = vpack.c.bf16 %v3272, %v3270
    %v3339 = vpack.c.bf16 %v3273, %v3271
    %v3340 = vpack.c.bf16 %v3276, %v3274
    %v3341 = vpack.c.bf16 %v3277, %v3275
    %v3342 = vpack.c.bf16 %v3280, %v3278
    %v3343 = vpack.c.bf16 %v3281, %v3279
    %v3344 = vpack.c.bf16 %v3284, %v3282
    %v3345 = vpack.c.bf16 %v3285, %v3283
    %v3346 = vpack.c.bf16 %v3288, %v3286
    %v3347 = vpack.c.bf16 %v3289, %v3287
    %v3348 = vpack.c.bf16 %v3292, %v3290
    %v3349 = vpack.c.bf16 %v3293, %v3291
    %v3350 = vpack.c.bf16 %v3296, %v3294
    %v3351 = vpack.c.bf16 %v3297, %v3295
    %v3352 = vpack.c.bf16 %v3298, %v3298
    %v3353 = vpack.c.bf16 %v3299, %v3299
    %v3354 = vld [vmem:[%s3] sm:$0xf]
    %v3355 = vld [vmem:[%s3 + $0x4] sm:$0xf]
    %v3356 = vld [vmem:[%s3 + $0x8] sm:$0xf]
    %v3357 = vld [vmem:[%s3 + $0xc] sm:$0xf]
    %v3358 = vld [vmem:[%s3 + $0x10] sm:$0xf]
    %v3359 = vld [vmem:[%s3 + $0x14] sm:$0xf]
    %v3360 = vld [vmem:[%s3 + $0x18] sm:$0xf]
    %v3361 = vld [vmem:[%s3 + $0x1c] sm:$0xf]
    %v3362 = vld [vmem:[%s3 + $0x20] sm:$0xf]
    %v3363 = vld [vmem:[%s3 + $0x24] sm:$0xf]
    %v3364 = vld [vmem:[%s3 + $0x28] sm:$0xf]
    %v3365 = vld [vmem:[%s3 + $0x2c] sm:$0xf]
    %v3366 = vld [vmem:[%s3 + $0x30] sm:$0xf]
    %v3367 = vld [vmem:[%s3 + $0x34] sm:$0xf]
    %v3368 = vld [vmem:[%s3 + $0x38] sm:$0xf]
    %v3369 = vld [vmem:[%s3 + $0x3c] sm:$0xf]
    %v3370 = vld [vmem:[%s3 + $0x40] sm:$0xf]
    %v3371 = vld [vmem:[%s3 + $0x44] sm:$0xf]
    %v3372 = vld [vmem:[#allocation6] sm:$0x1]
    %v3374 = vlaneseq
    %v3375 = vshrl.u32 %v3374, 7
    %v3376 = vsub.s32 0, %v3375
    %v3377 = vrot.slane %v3372, %v3376
    %v3397 = vunpack.c.l.b16 %v3354
    %v3398 = vunpack.c.l.b16 %v3355
    %v3399 = vunpack.c.l.b16 %v3356
    %v3400 = vunpack.c.l.b16 %v3357
    %v3401 = vunpack.c.l.b16 %v3358
    %v3402 = vunpack.c.l.b16 %v3359
    %v3403 = vunpack.c.l.b16 %v3360
    %v3404 = vunpack.c.l.b16 %v3361
    %v3405 = vunpack.c.l.b16 %v3362
    %v3406 = vunpack.c.l.b16 %v3363
    %v3407 = vunpack.c.l.b16 %v3364
    %v3408 = vunpack.c.l.b16 %v3365
    %v3409 = vunpack.c.l.b16 %v3366
    %v3410 = vunpack.c.l.b16 %v3367
    %v3411 = vunpack.c.l.b16 %v3368
    %v3412 = vunpack.c.l.b16 %v3369
    %v3413 = vunpack.c.l.b16 %v3370
    %v3414 = vunpack.c.l.b16 %v3371
    %v3415 = vpack.c.b16 %v3398, %v3397
    %v3416 = vpack.c.b16 %v3400, %v3399
    %v3417 = vpack.c.b16 %v3402, %v3401
    %v3418 = vpack.c.b16 %v3404, %v3403
    %v3419 = vpack.c.b16 %v3406, %v3405
    %v3420 = vpack.c.b16 %v3408, %v3407
    %v3421 = vpack.c.b16 %v3410, %v3409
    %v3422 = vpack.c.b16 %v3412, %v3411
    %v3423 = vpack.c.b16 %v3414, %v3413
    %v3434 = vsel %vm690, %v3301, 0
    %v3437 = vsel %vm690, %v3303, 0
    %v3440 = vsel %vm690, %v3305, 0
    %v3443 = vsel %vm690, %v3307, 0
    %v3446 = vsel %vm690, %v3309, 0
    %v3449 = vsel %vm690, %v3311, 0
    %v3452 = vsel %vm690, %v3313, 0
    %v3455 = vsel %vm690, %v3315, 0
    %v3458 = vsel %vm690, %v3317, 0
    %v3461 = vsel %vm690, %v3319, 0
    %v3464 = vsel %vm690, %v3321, 0
    %v3467 = vsel %vm690, %v3323, 0
    %v3470 = vsel %vm690, %v3325, 0
    %v3473 = vsel %vm690, %v3327, 0
    %v3476 = vsel %vm690, %v3329, 0
    %v3479 = vsel %vm690, %v3331, 0
    %v3482 = vsel %vm690, %v3333, 0
    %v3485 = vsel %vm690, %v3335, 0
    %v3488 = vsel %vm690, %v3337, 0
    %v3491 = vsel %vm690, %v3339, 0
    %v3494 = vsel %vm690, %v3341, 0
    %v3497 = vsel %vm690, %v3343, 0
    %v3500 = vsel %vm690, %v3345, 0
    %v3503 = vsel %vm690, %v3347, 0
    %v3506 = vsel %vm690, %v3349, 0
    %v3509 = vsel %vm690, %v3351, 0
    %v3512 = vsel %vm690, %v3353, 0
    %3514 = vmatprep.subr.bf16.mxu0 0
    %3515 = vmatpush1.bf16.msra.mxu0 %v3415
    %3516 = vmatprep.subr.bf16.mxu0 0
    %3517 = vmatpush1.bf16.msra.mxu0 %v3416
    %3518 = vmatprep.subr.bf16.mxu0 0
    %3519 = vmatpush1.bf16.msra.mxu0 %v3417
    %3520 = vmatprep.subr.bf16.mxu0 0
    %3521 = vmatpush1.bf16.msra.mxu0 %v3418
    %3522 = vmatprep.subr.bf16.mxu0 0
    %3523 = vmatpush1.bf16.msra.mxu0 %v3419
    %3524 = vmatprep.subr.bf16.mxu0 0
    %3525 = vmatpush1.bf16.msra.mxu0 %v3420
    %3526 = vmatprep.subr.bf16.mxu0 0
    %3527 = vmatpush1.bf16.msra.mxu0 %v3421
    %3528 = vmatprep.subr.bf16.mxu0 0
    %3529 = vmatpush1.bf16.msra.mxu0 %v3422
    %3530 = vmatprep.subr.bf16.mxu0 0
    %3531 = vmatpush1.bf16.msra.mxu0 %v3423
    %3532 = vmatprep.subr.bf16.mxu0 0
    %3533 = vmatpush1.bf16.msra.mxu0 0
    %3534 = vmatprep.subr.bf16.mxu0 0
    %3535 = vmatpush1.bf16.msra.mxu0 0
    %3536 = vmatprep.subr.bf16.mxu0 0
    %3537 = vmatpush1.bf16.msra.mxu0 0
    %3538 = vmatprep.subr.bf16.mxu0 0
    %3539 = vmatpush1.bf16.msra.mxu0 0
    %3540 = vmatprep.subr.bf16.mxu0 0
    %3541 = vmatpush1.bf16.msra.mxu0 0
    %3542 = vmatprep.subr.bf16.mxu0 0
    %3543 = vmatpush1.bf16.msra.mxu0 0
    %3544 = vmatprep.subr.bf16.mxu0 0
    %3545 = vmatpush1.bf16.msra.mxu0 0
    %3546 = vmatprep.mubr.bf16.mxu0 %v3434
    %3547 = vmatmul.mubr.bf16.gmra.mrb[0].mxu0 %v3300
    %v3548 = vpop.f32.mrb[0].mxu0
    %v3549 = vadd.f32 %v3377, %v3548
    %v3550 = vpop.f32.mrb[0].mxu0
    %v3551 = vpop.f32.mrb[0].mxu0
    %v3552 = vadd.f32 %v3377, %v3551
    %v3553 = vpop.f32.mrb[0].mxu0
    %3554 = vmatprep.mubr.bf16.mxu0 %v3437
    %3555 = vmatmul.mubr.bf16.gmra.mrb[0].mxu0 %v3302
    %v3556 = vpop.f32.mrb[0].mxu0
    %v3557 = vadd.f32 %v3377, %v3556
    %v3558 = vpop.f32.mrb[0].mxu0
    %v3559 = vpop.f32.mrb[0].mxu0
    %v3560 = vadd.f32 %v3377, %v3559
    %v3561 = vpop.f32.mrb[0].mxu0
    %3562 = vmatprep.mubr.bf16.mxu0 %v3440
    %3563 = vmatmul.mubr.bf16.gmra.mrb[0].mxu0 %v3304
    %v3564 = vpop.f32.mrb[0].mxu0
    %v3565 = vadd.f32 %v3377, %v3564
    %v3566 = vpop.f32.mrb[0].mxu0
    %v3567 = vpop.f32.mrb[0].mxu0
    %v3568 = vadd.f32 %v3377, %v3567
    %v3569 = vpop.f32.mrb[0].mxu0
    %3570 = vmatprep.mubr.bf16.mxu0 %v3443
    %3571 = vmatmul.mubr.bf16.gmra.mrb[0].mxu0 %v3306
    %v3572 = vpop.f32.mrb[0].mxu0
    %v3573 = vadd.f32 %v3377, %v3572
    %v3574 = vpop.f32.mrb[0].mxu0
    %v3575 = vpop.f32.mrb[0].mxu0
    %v3576 = vadd.f32 %v3377, %v3575
    %v3577 = vpop.f32.mrb[0].mxu0
    %3578 = vmatprep.mubr.bf16.mxu0 %v3446
    %3579 = vmatmul.mubr.bf16.gmra.mrb[0].mxu0 %v3308
    %v3580 = vpop.f32.mrb[0].mxu0
    %v3581 = vadd.f32 %v3377, %v3580
    %v3582 = vpop.f32.mrb[0].mxu0
    %v3583 = vpop.f32.mrb[0].mxu0
    %v3584 = vadd.f32 %v3377, %v3583
    %v3585 = vpop.f32.mrb[0].mxu0
    %3586 = vmatprep.mubr.bf16.mxu0 %v3449
    %3587 = vmatmul.mubr.bf16.gmra.mrb[0].mxu0 %v3310
    %v3588 = vpop.f32.mrb[0].mxu0
    %v3589 = vadd.f32 %v3377, %v3588
    %v3590 = vpop.f32.mrb[0].mxu0
    %v3591 = vpop.f32.mrb[0].mxu0
    %v3592 = vadd.f32 %v3377, %v3591
    %v3593 = vpop.f32.mrb[0].mxu0
    %3594 = vmatprep.mubr.bf16.mxu0 %v3452
    %3595 = vmatmul.mubr.bf16.gmra.mrb[0].mxu0 %v3312
    %v3596 = vpop.f32.mrb[0].mxu0
    %v3597 = vadd.f32 %v3377, %v3596
    %v3598 = vpop.f32.mrb[0].mxu0
    %v3599 = vpop.f32.mrb[0].mxu0
    %v3600 = vadd.f32 %v3377, %v3599
    %v3601 = vpop.f32.mrb[0].mxu0
    %3602 = vmatprep.mubr.bf16.mxu0 %v3455
    %3603 = vmatmul.mubr.bf16.gmra.mrb[0].mxu0 %v3314
    %v3604 = vpop.f32.mrb[0].mxu0
    %v3605 = vadd.f32 %v3377, %v3604
    %v3606 = vpop.f32.mrb[0].mxu0
    %v3607 = vpop.f32.mrb[0].mxu0
    %v3608 = vadd.f32 %v3377, %v3607
    %v3609 = vpop.f32.mrb[0].mxu0
    %3610 = vmatprep.mubr.bf16.mxu0 %v3458
    %3611 = vmatmul.mubr.bf16.gmra.mrb[0].mxu0 %v3316
    %v3612 = vpop.f32.mrb[0].mxu0
    %v3613 = vadd.f32 %v3377, %v3612
    %v3614 = vpop.f32.mrb[0].mxu0
    %v3615 = vpop.f32.mrb[0].mxu0
    %v3616 = vadd.f32 %v3377, %v3615
    %v3617 = vpop.f32.mrb[0].mxu0
    %3618 = vmatprep.mubr.bf16.mxu0 %v3461
    %3619 = vmatmul.mubr.bf16.gmra.mrb[0].mxu0 %v3318
    %v3620 = vpop.f32.mrb[0].mxu0
    %v3621 = vadd.f32 %v3377, %v3620
    %v3622 = vpop.f32.mrb[0].mxu0
    %v3623 = vpop.f32.mrb[0].mxu0
    %v3624 = vadd.f32 %v3377, %v3623
    %v3625 = vpop.f32.mrb[0].mxu0
    %3626 = vmatprep.mubr.bf16.mxu0 %v3464
    %3627 = vmatmul.mubr.bf16.gmra.mrb[0].mxu0 %v3320
    %v3628 = vpop.f32.mrb[0].mxu0
    %v3629 = vadd.f32 %v3377, %v3628
    %v3630 = vpop.f32.mrb[0].mxu0
    %v3631 = vpop.f32.mrb[0].mxu0
    %v3632 = vadd.f32 %v3377, %v3631
    %v3633 = vpop.f32.mrb[0].mxu0
    %3634 = vmatprep.mubr.bf16.mxu0 %v3467
    %3635 = vmatmul.mubr.bf16.gmra.mrb[0].mxu0 %v3322
    %v3636 = vpop.f32.mrb[0].mxu0
    %v3637 = vadd.f32 %v3377, %v3636
    %v3638 = vpop.f32.mrb[0].mxu0
    %v3639 = vpop.f32.mrb[0].mxu0
    %v3640 = vadd.f32 %v3377, %v3639
    %v3641 = vpop.f32.mrb[0].mxu0
    %3642 = vmatprep.mubr.bf16.mxu0 %v3470
    %3643 = vmatmul.mubr.bf16.gmra.mrb[0].mxu0 %v3324
    %v3644 = vpop.f32.mrb[0].mxu0
    %v3645 = vpop.f32.mrb[0].mxu0
    %v3646 = vpop.f32.mrb[0].mxu0
    %v3647 = vpop.f32.mrb[0].mxu0
    %3648 = vmatprep.mubr.bf16.mxu0 %v3473
    %3649 = vmatmul.mubr.bf16.gmra.mrb[0].mxu0 %v3326
    %v3650 = vpop.f32.mrb[0].mxu0
    %v3651 = vpop.f32.mrb[0].mxu0
    %v3652 = vpop.f32.mrb[0].mxu0
    %v3653 = vpop.f32.mrb[0].mxu0
    %3654 = vmatprep.mubr.bf16.mxu0 %v3476
    %3655 = vmatmul.mubr.bf16.gmra.mrb[0].mxu0 %v3328
    %v3656 = vpop.f32.mrb[0].mxu0
    %v3657 = vpop.f32.mrb[0].mxu0
    %v3658 = vpop.f32.mrb[0].mxu0
    %v3659 = vadd.f32 %v3377, %v3658
    %v3660 = vpop.f32.mrb[0].mxu0
    %3661 = vmatprep.mubr.bf16.mxu0 %v3479
    %3662 = vmatmul.mubr.bf16.gmra.mrb[0].mxu0 %v3330
    %v3663 = vpop.f32.mrb[0].mxu0
    %v3664 = vadd.f32 %v3377, %v3663
    %v3665 = vpop.f32.mrb[0].mxu0
    %v3666 = vpop.f32.mrb[0].mxu0
    %v3667 = vadd.f32 %v3377, %v3666
    %v3668 = vpop.f32.mrb[0].mxu0
    %3669 = vmatprep.mubr.bf16.mxu0 %v3482
    %3670 = vmatmul.mubr.bf16.gmra.mrb[0].mxu0 %v3332
    %v3671 = vpop.f32.mrb[0].mxu0
    %v3672 = vadd.f32 %v3377, %v3671
    %v3673 = vpop.f32.mrb[0].mxu0
    %v3674 = vpop.f32.mrb[0].mxu0
    %v3675 = vadd.f32 %v3377, %v3674
    %v3676 = vpop.f32.mrb[0].mxu0
    %3677 = vmatprep.mubr.bf16.mxu0 %v3485
    %3678 = vmatmul.mubr.bf16.gmra.mrb[0].mxu0 %v3334
    %v3679 = vpop.f32.mrb[0].mxu0
    %v3680 = vadd.f32 %v3377, %v3679
    %v3681 = vpop.f32.mrb[0].mxu0
    %v3682 = vpop.f32.mrb[0].mxu0
    %v3683 = vadd.f32 %v3377, %v3682
    %v3684 = vpop.f32.mrb[0].mxu0
    %3685 = vmatprep.mubr.bf16.mxu0 %v3488
    %3686 = vmatmul.mubr.bf16.gmra.mrb[0].mxu0 %v3336
    %v3687 = vpop.f32.mrb[0].mxu0
    %v3688 = vadd.f32 %v3377, %v3687
    %v3689 = vpop.f32.mrb[0].mxu0
    %v3690 = vpop.f32.mrb[0].mxu0
    %v3691 = vadd.f32 %v3377, %v3690
    %v3692 = vpop.f32.mrb[0].mxu0
    %3693 = vmatprep.mubr.bf16.mxu0 %v3491
    %3694 = vmatmul.mubr.bf16.gmra.mrb[0].mxu0 %v3338
    %v3695 = vpop.f32.mrb[0].mxu0
    %v3696 = vadd.f32 %v3377, %v3695
    %v3697 = vpop.f32.mrb[0].mxu0
    %v3698 = vpop.f32.mrb[0].mxu0
    %v3699 = vadd.f32 %v3377, %v3698
    %v3700 = vpop.f32.mrb[0].mxu0
    %3701 = vmatprep.mubr.bf16.mxu0 %v3494
    %3702 = vmatmul.mubr.bf16.gmra.mrb[0].mxu0 %v3340
    %v3703 = vpop.f32.mrb[0].mxu0
    %v3704 = vadd.f32 %v3377, %v3703
    %v3705 = vpop.f32.mrb[0].mxu0
    %v3706 = vpop.f32.mrb[0].mxu0
    %v3707 = vadd.f32 %v3377, %v3706
    %v3708 = vpop.f32.mrb[0].mxu0
    %3709 = vmatprep.mubr.bf16.mxu0 %v3497
    %3710 = vmatmul.mubr.bf16.gmra.mrb[0].mxu0 %v3342
    %v3711 = vpop.f32.mrb[0].mxu0
    %v3712 = vadd.f32 %v3377, %v3711
    %v3713 = vpop.f32.mrb[0].mxu0
    %v3714 = vpop.f32.mrb[0].mxu0
    %v3715 = vadd.f32 %v3377, %v3714
    %v3716 = vpop.f32.mrb[0].mxu0
    %3717 = vmatprep.mubr.bf16.mxu0 %v3500
    %3718 = vmatmul.mubr.bf16.gmra.mrb[0].mxu0 %v3344
    %v3719 = vpop.f32.mrb[0].mxu0
    %v3720 = vadd.f32 %v3377, %v3719
    %v3721 = vpop.f32.mrb[0].mxu0
    %v3722 = vpop.f32.mrb[0].mxu0
    %v3723 = vadd.f32 %v3377, %v3722
    %v3724 = vpop.f32.mrb[0].mxu0
    %3725 = vmatprep.mubr.bf16.mxu0 %v3503
    %3726 = vmatmul.mubr.bf16.gmra.mrb[0].mxu0 %v3346
    %v3727 = vpop.f32.mrb[0].mxu0
    %v3728 = vadd.f32 %v3377, %v3727
    %v3729 = vpop.f32.mrb[0].mxu0
    %v3730 = vpop.f32.mrb[0].mxu0
    %v3731 = vadd.f32 %v3377, %v3730
    %v3732 = vpop.f32.mrb[0].mxu0
    %3733 = vmatprep.mubr.bf16.mxu0 %v3506
    %3734 = vmatmul.mubr.bf16.gmra.mrb[0].mxu0 %v3348
    %v3735 = vpop.f32.mrb[0].mxu0
    %v3736 = vadd.f32 %v3377, %v3735
    %v3737 = vpop.f32.mrb[0].mxu0
    %v3738 = vpop.f32.mrb[0].mxu0
    %v3739 = vadd.f32 %v3377, %v3738
    %v3740 = vpop.f32.mrb[0].mxu0
    %3741 = vmatprep.mubr.bf16.mxu0 %v3509
    %3742 = vmatmul.mubr.bf16.gmra.mrb[0].mxu0 %v3350
    %v3743 = vpop.f32.mrb[0].mxu0
    %v3744 = vadd.f32 %v3377, %v3743
    %v3745 = vpop.f32.mrb[0].mxu0
    %v3746 = vpop.f32.mrb[0].mxu0
    %v3747 = vadd.f32 %v3377, %v3746
    %v3748 = vpop.f32.mrb[0].mxu0
    %3749 = vmatprep.mubr.bf16.mxu0 %v3512
    %3750 = vmatmul.mubr.bf16.gmra.mrb[0].mxu0 %v3352
    %v3751 = vpop.f32.mrb[0].mxu0
    %v3752 = vadd.f32 %v3377, %v3751
    %v3753 = vpop.f32.mrb[0].mxu0
    %v3754 = vpop.f32.mrb[0].mxu0
    %v3755 = vpop.f32.mrb[0].mxu0
    %3756 = vdwg.mxu0
    %v3757 = vmax.f32 %v3549, 0.0
    %v3758 = vmax.f32 %v3552, 0.0
    %v3759 = vmax.f32 %v3557, 0.0
    %v3760 = vmax.f32 %v3560, 0.0
    %v3761 = vmax.f32 %v3565, 0.0
    %v3762 = vmax.f32 %v3568, 0.0
    %v3763 = vmax.f32 %v3573, 0.0
    %v3764 = vmax.f32 %v3576, 0.0
    %v3765 = vmax.f32 %v3581, 0.0
    %v3766 = vmax.f32 %v3584, 0.0
    %v3767 = vmax.f32 %v3589, 0.0
    %v3768 = vmax.f32 %v3592, 0.0
    %v3769 = vmax.f32 %v3597, 0.0
    %v3770 = vmax.f32 %v3600, 0.0
    %v3771 = vmax.f32 %v3605, 0.0
    %v3772 = vmax.f32 %v3608, 0.0
    %v3773 = vmax.f32 %v3613, 0.0
    %v3774 = vmax.f32 %v3616, 0.0
    %v3775 = vmax.f32 %v3621, 0.0
    %v3776 = vmax.f32 %v3624, 0.0
    %v3777 = vmax.f32 %v3629, 0.0
    %v3778 = vmax.f32 %v3632, 0.0
    %v3779 = vmax.f32 %v3637, 0.0
    %v3780 = vmax.f32 %v3640, 0.0
    %v3781 = vmax.f32 %v3659, 0.0
    %v3782 = vmax.f32 %v3664, 0.0
    %v3783 = vmax.f32 %v3667, 0.0
    %v3784 = vmax.f32 %v3672, 0.0
    %v3785 = vmax.f32 %v3675, 0.0
    %v3786 = vmax.f32 %v3680, 0.0
    %v3787 = vmax.f32 %v3683, 0.0
    %v3788 = vmax.f32 %v3688, 0.0
    %v3789 = vmax.f32 %v3691, 0.0
    %v3790 = vmax.f32 %v3696, 0.0
    %v3791 = vmax.f32 %v3699, 0.0
    %v3792 = vmax.f32 %v3704, 0.0
    %v3793 = vmax.f32 %v3707, 0.0
    %v3794 = vmax.f32 %v3712, 0.0
    %v3795 = vmax.f32 %v3715, 0.0
    %v3796 = vmax.f32 %v3720, 0.0
    %v3797 = vmax.f32 %v3723, 0.0
    %v3798 = vmax.f32 %v3728, 0.0
    %v3799 = vmax.f32 %v3731, 0.0
    %v3800 = vmax.f32 %v3736, 0.0
    %v3801 = vmax.f32 %v3739, 0.0
    %v3802 = vmax.f32 %v3744, 0.0
    %v3803 = vmax.f32 %v3747, 0.0
    %v3804 = vmax.f32 %v3752, 0.0
    %v3805 = vpack.c.bf16 %v3758, %v3757
    %v3806 = vpack.c.bf16 %v3760, %v3759
    %v3807 = vpack.c.bf16 %v3762, %v3761
    %v3808 = vpack.c.bf16 %v3764, %v3763
    %v3809 = vpack.c.bf16 %v3766, %v3765
    %v3810 = vpack.c.bf16 %v3768, %v3767
    %v3811 = vpack.c.bf16 %v3770, %v3769
    %v3812 = vpack.c.bf16 %v3772, %v3771
    %v3813 = vpack.c.bf16 %v3774, %v3773
    %v3814 = vpack.c.bf16 %v3776, %v3775
    %v3815 = vpack.c.bf16 %v3778, %v3777
    %v3816 = vpack.c.bf16 %v3780, %v3779
    %v3829 = vunpack.c.l.b16 %v3805
    %v3830 = vunpack.c.h.b16 %v3805
    %v3831 = vunpack.c.l.b16 %v3806
    %v3832 = vunpack.c.h.b16 %v3806
    %v3833 = vunpack.c.l.b16 %v3807
    %v3834 = vunpack.c.h.b16 %v3807
    %v3835 = vunpack.c.l.b16 %v3808
    %v3836 = vunpack.c.h.b16 %v3808
    %v3837 = vunpack.c.l.b16 %v3809
    %v3838 = vunpack.c.h.b16 %v3809
    %v3839 = vunpack.c.l.b16 %v3810
    %v3840 = vunpack.c.h.b16 %v3810
    %v3841 = vunpack.c.l.b16 %v3811
    %v3842 = vunpack.c.h.b16 %v3811
    %v3843 = vunpack.c.l.b16 %v3812
    %v3844 = vunpack.c.h.b16 %v3812
    %v3845 = vunpack.c.l.b16 %v3813
    %v3846 = vunpack.c.h.b16 %v3813
    %v3847 = vunpack.c.l.b16 %v3814
    %v3848 = vunpack.c.h.b16 %v3814
    %v3849 = vunpack.c.l.b16 %v3815
    %v3850 = vunpack.c.h.b16 %v3815
    %v3851 = vunpack.c.l.b16 %v3816
    %v3852 = vunpack.c.h.b16 %v3816
    %v3853 = vpack.c.b16 %v3829, %v3829
    %v3854 = vpack.c.b16 %v3830, %v3830
    %v3855 = vpack.c.b16 %v3831, %v3831
    %v3856 = vpack.c.b16 %v3832, %v3832
    %v3857 = vpack.c.b16 %v3833, %v3833
    %v3858 = vpack.c.b16 %v3834, %v3834
    %v3859 = vpack.c.b16 %v3835, %v3835
    %v3860 = vpack.c.b16 %v3836, %v3836
    %v3861 = vpack.c.b16 %v3837, %v3837
    %v3862 = vpack.c.b16 %v3838, %v3838
    %v3863 = vpack.c.b16 %v3839, %v3839
    %v3864 = vpack.c.b16 %v3840, %v3840
    %v3865 = vpack.c.b16 %v3841, %v3841
    %v3866 = vpack.c.b16 %v3842, %v3842
    %v3867 = vpack.c.b16 %v3843, %v3843
    %v3868 = vpack.c.b16 %v3844, %v3844
    %v3869 = vpack.c.b16 %v3845, %v3845
    %v3870 = vpack.c.b16 %v3846, %v3846
    %v3871 = vpack.c.b16 %v3847, %v3847
    %v3872 = vpack.c.b16 %v3848, %v3848
    %v3873 = vpack.c.b16 %v3849, %v3849
    %v3874 = vpack.c.b16 %v3850, %v3850
    %v3875 = vpack.c.b16 %v3851, %v3851
    %v3876 = vpack.c.b16 %v3852, %v3852
    %vm3901 = vcmask 257024
    %3902 = vst.msk [vmem:[%s5] sm:$0xf] %vm3901, %v3853
    %3903 = vst.msk [vmem:[%s5 + $0x4] sm:$0xf] %vm3901, %v3854
    %3904 = vst.msk [vmem:[%s5 + $0x8] sm:$0xf] %vm3901, %v3855
    %3905 = vst.msk [vmem:[%s5 + $0xc] sm:$0xf] %vm3901, %v3856
    %3906 = vst.msk [vmem:[%s5 + $0x10] sm:$0xf] %vm3901, %v3857
    %3907 = vst.msk [vmem:[%s5 + $0x14] sm:$0xf] %vm3901, %v3858
    %3908 = vst.msk [vmem:[%s5 + $0x18] sm:$0xf] %vm3901, %v3859
    %3909 = vst.msk [vmem:[%s5 + $0x1c] sm:$0xf] %vm3901, %v3860
    %3910 = vst.msk [vmem:[%s5 + $0x20] sm:$0xf] %vm3901, %v3861
    %3911 = vst.msk [vmem:[%s5 + $0x24] sm:$0xf] %vm3901, %v3862
    %3912 = vst.msk [vmem:[%s5 + $0x28] sm:$0xf] %vm3901, %v3863
    %3913 = vst.msk [vmem:[%s5 + $0x2c] sm:$0xf] %vm3901, %v3864
    %3914 = vst.msk [vmem:[%s5 + $0x30] sm:$0xf] %vm3901, %v3865
    %3915 = vst.msk [vmem:[%s5 + $0x34] sm:$0xf] %vm3901, %v3866
    %3916 = vst.msk [vmem:[%s5 + $0x38] sm:$0xf] %vm3901, %v3867
    %3917 = vst.msk [vmem:[%s5 + $0x3c] sm:$0xf] %vm3901, %v3868
    %3918 = vst.msk [vmem:[%s5 + $0x40] sm:$0xf] %vm3901, %v3869
    %3919 = vst.msk [vmem:[%s5 + $0x44] sm:$0xf] %vm3901, %v3870
    %3920 = vst.msk [vmem:[%s5 + $0x48] sm:$0xf] %vm3901, %v3871
    %3921 = vst.msk [vmem:[%s5 + $0x4c] sm:$0xf] %vm3901, %v3872
    %3922 = vst.msk [vmem:[%s5 + $0x50] sm:$0xf] %vm3901, %v3873
    %3923 = vst.msk [vmem:[%s5 + $0x54] sm:$0xf] %vm3901, %v3874
    %3924 = vst.msk [vmem:[%s5 + $0x58] sm:$0xf] %vm3901, %v3875
    %3925 = vst.msk [vmem:[%s5 + $0x5c] sm:$0xf] %vm3901, %v3876
    %v3926 = vpack.c.bf16 %v3782, %v3781
    %v3927 = vpack.c.bf16 %v3784, %v3783
    %v3928 = vpack.c.bf16 %v3786, %v3785
    %v3929 = vpack.c.bf16 %v3788, %v3787
    %v3930 = vpack.c.bf16 %v3790, %v3789
    %v3931 = vpack.c.bf16 %v3792, %v3791
    %v3932 = vpack.c.bf16 %v3794, %v3793
    %v3933 = vpack.c.bf16 %v3796, %v3795
    %v3934 = vpack.c.bf16 %v3798, %v3797
    %v3935 = vpack.c.bf16 %v3800, %v3799
    %v3936 = vpack.c.bf16 %v3802, %v3801
    %v3937 = vpack.c.bf16 %v3804, %v3803
    %v3950 = vunpack.c.l.b16 %v3926
    %v3951 = vunpack.c.h.b16 %v3926
    %v3952 = vunpack.c.l.b16 %v3927
    %v3953 = vunpack.c.h.b16 %v3927
    %v3954 = vunpack.c.l.b16 %v3928
    %v3955 = vunpack.c.h.b16 %v3928
    %v3956 = vunpack.c.l.b16 %v3929
    %v3957 = vunpack.c.h.b16 %v3929
    %v3958 = vunpack.c.l.b16 %v3930
    %v3959 = vunpack.c.h.b16 %v3930
    %v3960 = vunpack.c.l.b16 %v3931
    %v3961 = vunpack.c.h.b16 %v3931
    %v3962 = vunpack.c.l.b16 %v3932
    %v3963 = vunpack.c.h.b16 %v3932
    %v3964 = vunpack.c.l.b16 %v3933
    %v3965 = vunpack.c.h.b16 %v3933
    %v3966 = vunpack.c.l.b16 %v3934
    %v3967 = vunpack.c.h.b16 %v3934
    %v3968 = vunpack.c.l.b16 %v3935
    %v3969 = vunpack.c.h.b16 %v3935
    %v3970 = vunpack.c.l.b16 %v3936
    %v3971 = vunpack.c.h.b16 %v3936
    %v3972 = vunpack.c.l.b16 %v3937
    %v3973 = vunpack.c.h.b16 %v3937
    %v3974 = vpack.c.b16 %v3950, %v3950
    %v3975 = vpack.c.b16 %v3951, %v3951
    %v3976 = vpack.c.b16 %v3952, %v3952
    %v3977 = vpack.c.b16 %v3953, %v3953
    %v3978 = vpack.c.b16 %v3954, %v3954
    %v3979 = vpack.c.b16 %v3955, %v3955
    %v3980 = vpack.c.b16 %v3956, %v3956
    %v3981 = vpack.c.b16 %v3957, %v3957
    %v3982 = vpack.c.b16 %v3958, %v3958
    %v3983 = vpack.c.b16 %v3959, %v3959
    %v3984 = vpack.c.b16 %v3960, %v3960
    %v3985 = vpack.c.b16 %v3961, %v3961
    %v3986 = vpack.c.b16 %v3962, %v3962
    %v3987 = vpack.c.b16 %v3963, %v3963
    %v3988 = vpack.c.b16 %v3964, %v3964
    %v3989 = vpack.c.b16 %v3965, %v3965
    %v3990 = vpack.c.b16 %v3966, %v3966
    %v3991 = vpack.c.b16 %v3967, %v3967
    %v3992 = vpack.c.b16 %v3968, %v3968
    %v3993 = vpack.c.b16 %v3969, %v3969
    %v3994 = vpack.c.b16 %v3970, %v3970
    %v3995 = vpack.c.b16 %v3971, %v3971
    %v3996 = vpack.c.b16 %v3972, %v3972
    %v3997 = vpack.c.b16 %v3973, %v3973
    %s4022 = scalar_lea.vmem %s5, 96
    %4023 = vst.msk [vmem:[%s4022] sm:$0xf] %vm3901, %v3974
    %4024 = vst.msk [vmem:[%s4022 + $0x4] sm:$0xf] %vm3901, %v3975
    %4025 = vst.msk [vmem:[%s4022 + $0x8] sm:$0xf] %vm3901, %v3976
    %4026 = vst.msk [vmem:[%s4022 + $0xc] sm:$0xf] %vm3901, %v3977
    %4027 = vst.msk [vmem:[%s4022 + $0x10] sm:$0xf] %vm3901, %v3978
    %4028 = vst.msk [vmem:[%s4022 + $0x14] sm:$0xf] %vm3901, %v3979
    %4029 = vst.msk [vmem:[%s4022 + $0x18] sm:$0xf] %vm3901, %v3980
    %4030 = vst.msk [vmem:[%s4022 + $0x1c] sm:$0xf] %vm3901, %v3981
    %4031 = vst.msk [vmem:[%s4022 + $0x20] sm:$0xf] %vm3901, %v3982
    %4032 = vst.msk [vmem:[%s4022 + $0x24] sm:$0xf] %vm3901, %v3983
    %4033 = vst.msk [vmem:[%s4022 + $0x28] sm:$0xf] %vm3901, %v3984
    %4034 = vst.msk [vmem:[%s4022 + $0x2c] sm:$0xf] %vm3901, %v3985
    %4035 = vst.msk [vmem:[%s4022 + $0x30] sm:$0xf] %vm3901, %v3986
    %4036 = vst.msk [vmem:[%s4022 + $0x34] sm:$0xf] %vm3901, %v3987
    %4037 = vst.msk [vmem:[%s4022 + $0x38] sm:$0xf] %vm3901, %v3988
    %4038 = vst.msk [vmem:[%s4022 + $0x3c] sm:$0xf] %vm3901, %v3989
    %4039 = vst.msk [vmem:[%s4022 + $0x40] sm:$0xf] %vm3901, %v3990
    %4040 = vst.msk [vmem:[%s4022 + $0x44] sm:$0xf] %vm3901, %v3991
    %4041 = vst.msk [vmem:[%s4022 + $0x48] sm:$0xf] %vm3901, %v3992
    %4042 = vst.msk [vmem:[%s4022 + $0x4c] sm:$0xf] %vm3901, %v3993
    %4043 = vst.msk [vmem:[%s4022 + $0x50] sm:$0xf] %vm3901, %v3994
    %4044 = vst.msk [vmem:[%s4022 + $0x54] sm:$0xf] %vm3901, %v3995
    %4045 = vst.msk [vmem:[%s4022 + $0x58] sm:$0xf] %vm3901, %v3996
    %4046 = vst.msk [vmem:[%s4022 + $0x5c] sm:$0xf] %vm3901, %v3997
    // Predicated region
    $region30: #{forward.2} parent=1 // pred_check
      _
    $region31: #{forward.2} parent=1 // pred_check_branch
      %4048 = sbr.rel (0) target = $region33
    $region32: #{forward.2} parent=1 // pred_region
      _
    $region33: #{forward.2} parent=1 // pred_fallthru
      _
    // Predicated region
    $region34: #{forward.2} parent=1 // pred_check
      _
    $region35: #{forward.2} parent=1 // pred_check_branch
      %4050 = sbr.rel (0) target = $region37
    $region36: #{forward.2} parent=1 // pred_region
      _
    $region37: #{forward.2} parent=1 // pred_fallthru
      _
    %4051 = vsyncpa [#allocation5], 1
    %4052 = vsyncpa [#allocation7], 1

// kernel: forward.3
$region0: #{forward.3}
  #allocation0 [shape = 'u32[]', space=smem, size = 0x4, offset = 0x4, fixed_abs, tag = 'smem constant byte address 0x4 - core index']
  #allocation1 [shape = 'u32[144,128]{1,0:T(1,128)}', space=vmem, size = 0x12000, scoped, tag = 'internal scratch']
  %s0 = inlined_call_operand.vmem [shape: bf16[2,6144], index: 0, kind: input, shape index: {}]
  %s1 = inlined_call_operand.hbm [shape: bf16[6144,256], index: 1, kind: input, shape index: {}]
  %s2 = inlined_call_operand.hbm [shape: f32[1,256], index: 2, kind: input, shape index: {}]
  %s3 = inlined_call_operand.vmem [shape: f32[256,8], index: 3, kind: input, shape index: {}]
  %s4 = inlined_call_operand.hbm [shape: f32[1,8], index: 4, kind: input, shape index: {}]
  %s5 = inlined_call_operand.hbm [shape: f32[2,4], index: 5, kind: output, shape index: {}]
  %s6 = sld [smem:[#allocation0]]
  $region42: #{forward.3} parent=0
    _
  %s8 = ssub.s32 1, %s6
  %s9 = scalar_select 0, %s8, %s6
  $region1: #{forward.3} parent=0
    #allocation2 [shape = 'u8[3145728]{0}', space=vmem, size = 0x300000, scoped, tag = 'input window, operand 1, single buffered']
    #allocation3 [shape = 's32[1]{0}', space=sflag, size = 0x4, scoped, tag = 'scoped memory for forward.3']
    #allocation4 [shape = 's32[1]{0}', space=sflag, size = 0x4, scoped, tag = 'scoped memory for forward.3']
    #allocation5 [shape = 'u8[1024]{0}', space=vmem, size = 0x400, scoped, tag = 'input window, operand 2, single buffered']
    #allocation6 [shape = 's32[1]{0}', space=sflag, size = 0x4, scoped, tag = 'scoped memory for forward.3']
    #allocation7 [shape = 'u8[512]{0}', space=vmem, size = 0x400, scoped, tag = 'input window, operand 4, single buffered']
    #allocation8 [shape = 'u8[1024]{0}', space=vmem, size = 0x400, scoped, tag = 'output window, operand 0, single buffered']
    %10 = vsyncpa [#allocation3], 0
    %11 = vsyncpa [#allocation6], 0
    %12 = vsyncpa [#allocation4], 0
    // Predicated region
    $region2: #{forward.3} parent=1 // pred_check
      _
    $region3: #{forward.3} parent=1 // pred_check_branch
      %14 = sbr.rel (0) target = $region5
    $region4: #{forward.3} parent=1 // pred_region
      _
    $region5: #{forward.3} parent=1 // pred_fallthru
      _
    // Predicated region
    $region6: #{forward.3} parent=1 // pred_check
      _
    $region7: #{forward.3} parent=1 // pred_check_branch
      %16 = sbr.rel (0) target = $region9
    $region8: #{forward.3} parent=1 // pred_region
      %s18 = ssub.s32 98304, 98304
      %19 = vsyncadd [#allocation3], %s18
      %s20 = sshll.u32 [#allocation2], 4
      %s21 = int_to_ptr.vmem [resolvable:$true] %s20
      %26 = dma.hbm_to_vmem [thread:$0]  %s1, 98304, %s21, [#allocation3], 128, 128, 8
    $region9: #{forward.3} parent=1 // pred_fallthru
      _
    // Predicated region
    $region10: #{forward.3} parent=1 // pred_check
      _
    $region11: #{forward.3} parent=1 // pred_check_branch
      %28 = sbr.rel (0) target = $region13
    $region12: #{forward.3} parent=1 // pred_region
      %s30 = ssub.s32 32, 32
      %31 = vsyncadd [#allocation6], %s30
      %s33 = sshll.u32 [#allocation5], 4
      %s34 = int_to_ptr.vmem [resolvable:$true] %s33
      %36 = dma.hbm_to_vmem [thread:$0]  %s2, 32, %s34, [#allocation6]
    $region13: #{forward.3} parent=1 // pred_fallthru
      _
    // Predicated region
    $region14: #{forward.3} parent=1 // pred_check
      _
    $region15: #{forward.3} parent=1 // pred_check_branch
      %38 = sbr.rel (0) target = $region17
    $region16: #{forward.3} parent=1 // pred_region
      _
    $region17: #{forward.3} parent=1 // pred_fallthru
      _
    // Predicated region
    $region18: #{forward.3} parent=1 // pred_check
      _
    $region19: #{forward.3} parent=1 // pred_check_branch
      %40 = sbr.rel (0) target = $region21
    $region20: #{forward.3} parent=1 // pred_region
      %s42 = ssub.s32 16, 16
      %43 = vsyncadd [#allocation6], %s42
      %s45 = sshll.u32 [#allocation7], 4
      %s46 = int_to_ptr.vmem [resolvable:$true] %s45
      %48 = dma.hbm_to_vmem [thread:$0]  %s4, 16, %s46, [#allocation6]
    $region21: #{forward.3} parent=1 // pred_fallthru
      _
    // Predicated region
    $region22: #{forward.3} parent=1 // pred_check
      _
    $region23: #{forward.3} parent=1 // pred_check_branch
      %50 = sbr.rel (0) target = $region25
    $region24: #{forward.3} parent=1 // pred_region
      %51 = dma.done [#allocation3], 98304
    $region25: #{forward.3} parent=1 // pred_fallthru
      _
    // Predicated region
    $region26: #{forward.3} parent=1 // pred_check
      _
    $region27: #{forward.3} parent=1 // pred_check_branch
      %53 = sbr.rel (0) target = $region29
    $region28: #{forward.3} parent=1 // pred_region
      %54 = dma.done [#allocation6], 32
    $region29: #{forward.3} parent=1 // pred_fallthru
      _
    // Predicated region
    $region30: #{forward.3} parent=1 // pred_check
      _
    $region31: #{forward.3} parent=1 // pred_check_branch
      %56 = sbr.rel (0) target = $region33
    $region32: #{forward.3} parent=1 // pred_region
      %57 = dma.done [#allocation6], 16
    $region33: #{forward.3} parent=1 // pred_fallthru
      _
    %v58 = vld [vmem:[%s0] sm:$0xff]
    %v59 = vld [vmem:[%s0 + $0x8] sm:$0xff]
    %v60 = vld [vmem:[%s0 + $0x10] sm:$0xff]
    %v61 = vld [vmem:[%s0 + $0x18] sm:$0xff]
    %v62 = vld [vmem:[%s0 + $0x20] sm:$0xff]
    %v63 = vld [vmem:[%s0 + $0x28] sm:$0xff]
    %v64 = vld [vmem:[#allocation2] sm:$0xff]
    %v65 = vld [vmem:[#allocation2 + $0x8] sm:$0xff]
    %v66 = vld [vmem:[#allocation2 + $0x10] sm:$0xff]
    %v67 = vld [vmem:[#allocation2 + $0x18] sm:$0xff]
    %v68 = vld [vmem:[#allocation2 + $0x20] sm:$0xff]
    %v69 = vld [vmem:[#allocation2 + $0x28] sm:$0xff]
    %v70 = vld [vmem:[#allocation2 + $0x30] sm:$0xff]
    %v71 = vld [vmem:[#allocation2 + $0x38] sm:$0xff]
    %v72 = vld [vmem:[#allocation2 + $0x40] sm:$0xff]
    %v73 = vld [vmem:[#allocation2 + $0x48] sm:$0xff]
    %v74 = vld [vmem:[#allocation2 + $0x50] sm:$0xff]
    %v75 = vld [vmem:[#allocation2 + $0x58] sm:$0xff]
    %v76 = vld [vmem:[#allocation2 + $0x60] sm:$0xff]
    %v77 = vld [vmem:[#allocation2 + $0x68] sm:$0xff]
    %v78 = vld [vmem:[#allocation2 + $0x70] sm:$0xff]
    %v79 = vld [vmem:[#allocation2 + $0x78] sm:$0xff]
    %v80 = vld [vmem:[#allocation2 + $0x80] sm:$0xff]
    %v81 = vld [vmem:[#allocation2 + $0x88] sm:$0xff]
    %v82 = vld [vmem:[#allocation2 + $0x90] sm:$0xff]
    %v83 = vld [vmem:[#allocation2 + $0x98] sm:$0xff]
    %v84 = vld [vmem:[#allocation2 + $0xa0] sm:$0xff]
    %v85 = vld [vmem:[#allocation2 + $0xa8] sm:$0xff]
    %v86 = vld [vmem:[#allocation2 + $0xb0] sm:$0xff]
    %v87 = vld [vmem:[#allocation2 + $0xb8] sm:$0xff]
    %v88 = vld [vmem:[#allocation2 + $0xc0] sm:$0xff]
    %v89 = vld [vmem:[#allocation2 + $0xc8] sm:$0xff]
    %v90 = vld [vmem:[#allocation2 + $0xd0] sm:$0xff]
    %v91 = vld [vmem:[#allocation2 + $0xd8] sm:$0xff]
    %v92 = vld [vmem:[#allocation2 + $0xe0] sm:$0xff]
    %v93 = vld [vmem:[#allocation2 + $0xe8] sm:$0xff]
    %v94 = vld [vmem:[#allocation2 + $0xf0] sm:$0xff]
    %v95 = vld [vmem:[#allocation2 + $0xf8] sm:$0xff]
    %v96 = vld [vmem:[#allocation2 + $0x100] sm:$0xff]
    %v97 = vld [vmem:[#allocation2 + $0x108] sm:$0xff]
    %v98 = vld [vmem:[#allocation2 + $0x110] sm:$0xff]
    %v99 = vld [vmem:[#allocation2 + $0x118] sm:$0xff]
    %v100 = vld [vmem:[#allocation2 + $0x120] sm:$0xff]
    %v101 = vld [vmem:[#allocation2 + $0x128] sm:$0xff]
    %v102 = vld [vmem:[#allocation2 + $0x130] sm:$0xff]
    %v103 = vld [vmem:[#allocation2 + $0x138] sm:$0xff]
    %v104 = vld [vmem:[#allocation2 + $0x140] sm:$0xff]
    %v105 = vld [vmem:[#allocation2 + $0x148] sm:$0xff]
    %v106 = vld [vmem:[#allocation2 + $0x150] sm:$0xff]
    %v107 = vld [vmem:[#allocation2 + $0x158] sm:$0xff]
    %v108 = vld [vmem:[#allocation2 + $0x160] sm:$0xff]
    %v109 = vld [vmem:[#allocation2 + $0x168] sm:$0xff]
    %v110 = vld [vmem:[#allocation2 + $0x170] sm:$0xff]
    %v111 = vld [vmem:[#allocation2 + $0x178] sm:$0xff]
    %v112 = vld [vmem:[#allocation2 + $0x180] sm:$0xff]
    %v113 = vld [vmem:[#allocation2 + $0x188] sm:$0xff]
    %v114 = vld [vmem:[#allocation2 + $0x190] sm:$0xff]
    %v115 = vld [vmem:[#allocation2 + $0x198] sm:$0xff]
    %v116 = vld [vmem:[#allocation2 + $0x1a0] sm:$0xff]
    %v117 = vld [vmem:[#allocation2 + $0x1a8] sm:$0xff]
    %v118 = vld [vmem:[#allocation2 + $0x1b0] sm:$0xff]
    %v119 = vld [vmem:[#allocation2 + $0x1b8] sm:$0xff]
    %v120 = vld [vmem:[#allocation2 + $0x1c0] sm:$0xff]
    %v121 = vld [vmem:[#allocation2 + $0x1c8] sm:$0xff]
    %v122 = vld [vmem:[#allocation2 + $0x1d0] sm:$0xff]
    %v123 = vld [vmem:[#allocation2 + $0x1d8] sm:$0xff]
    %v124 = vld [vmem:[#allocation2 + $0x1e0] sm:$0xff]
    %v125 = vld [vmem:[#allocation2 + $0x1e8] sm:$0xff]
    %v126 = vld [vmem:[#allocation2 + $0x1f0] sm:$0xff]
    %v127 = vld [vmem:[#allocation2 + $0x1f8] sm:$0xff]
    %v128 = vld [vmem:[#allocation2 + $0x200] sm:$0xff]
    %v129 = vld [vmem:[#allocation2 + $0x208] sm:$0xff]
    %v130 = vld [vmem:[#allocation2 + $0x210] sm:$0xff]
    %v131 = vld [vmem:[#allocation2 + $0x218] sm:$0xff]
    %v132 = vld [vmem:[#allocation2 + $0x220] sm:$0xff]
    %v133 = vld [vmem:[#allocation2 + $0x228] sm:$0xff]
    %v134 = vld [vmem:[#allocation2 + $0x230] sm:$0xff]
    %v135 = vld [vmem:[#allocation2 + $0x238] sm:$0xff]
    %v136 = vld [vmem:[#allocation2 + $0x240] sm:$0xff]
    %v137 = vld [vmem:[#allocation2 + $0x248] sm:$0xff]
    %v138 = vld [vmem:[#allocation2 + $0x250] sm:$0xff]
    %v139 = vld [vmem:[#allocation2 + $0x258] sm:$0xff]
    %v140 = vld [vmem:[#allocation2 + $0x260] sm:$0xff]
    %v141 = vld [vmem:[#allocation2 + $0x268] sm:$0xff]
    %v142 = vld [vmem:[#allocation2 + $0x270] sm:$0xff]
    %v143 = vld [vmem:[#allocation2 + $0x278] sm:$0xff]
    %v144 = vld [vmem:[#allocation2 + $0x280] sm:$0xff]
    %v145 = vld [vmem:[#allocation2 + $0x288] sm:$0xff]
    %v146 = vld [vmem:[#allocation2 + $0x290] sm:$0xff]
    %v147 = vld [vmem:[#allocation2 + $0x298] sm:$0xff]
    %v148 = vld [vmem:[#allocation2 + $0x2a0] sm:$0xff]
    %v149 = vld [vmem:[#allocation2 + $0x2a8] sm:$0xff]
    %v150 = vld [vmem:[#allocation2 + $0x2b0] sm:$0xff]
    %v151 = vld [vmem:[#allocation2 + $0x2b8] sm:$0xff]
    %v152 = vld [vmem:[#allocation2 + $0x2c0] sm:$0xff]
    %v153 = vld [vmem:[#allocation2 + $0x2c8] sm:$0xff]
    %v154 = vld [vmem:[#allocation2 + $0x2d0] sm:$0xff]
    %v155 = vld [vmem:[#allocation2 + $0x2d8] sm:$0xff]
    %v156 = vld [vmem:[#allocation2 + $0x2e0] sm:$0xff]
    %v157 = vld [vmem:[#allocation2 + $0x2e8] sm:$0xff]
    %v158 = vld [vmem:[#allocation2 + $0x2f0] sm:$0xff]
    %v159 = vld [vmem:[#allocation2 + $0x2f8] sm:$0xff]
    %v160 = vld [vmem:[#allocation2 + $0x300] sm:$0xff]
    %v161 = vld [vmem:[#allocation2 + $0x308] sm:$0xff]
    %v162 = vld [vmem:[#allocation2 + $0x310] sm:$0xff]
    %v163 = vld [vmem:[#allocation2 + $0x318] sm:$0xff]
    %v164 = vld [vmem:[#allocation2 + $0x320] sm:$0xff]
    %v165 = vld [vmem:[#allocation2 + $0x328] sm:$0xff]
    %v166 = vld [vmem:[#allocation2 + $0x330] sm:$0xff]
    %v167 = vld [vmem:[#allocation2 + $0x338] sm:$0xff]
    %v168 = vld [vmem:[#allocation2 + $0x340] sm:$0xff]
    %v169 = vld [vmem:[#allocation2 + $0x348] sm:$0xff]
    %v170 = vld [vmem:[#allocation2 + $0x350] sm:$0xff]
    %v171 = vld [vmem:[#allocation2 + $0x358] sm:$0xff]
    %v172 = vld [vmem:[#allocation2 + $0x360] sm:$0xff]
    %v173 = vld [vmem:[#allocation2 + $0x368] sm:$0xff]
    %v174 = vld [vmem:[#allocation2 + $0x370] sm:$0xff]
    %v175 = vld [vmem:[#allocation2 + $0x378] sm:$0xff]
    %v176 = vld [vmem:[#allocation2 + $0x380] sm:$0xff]
    %v177 = vld [vmem:[#allocation2 + $0x388] sm:$0xff]
    %v178 = vld [vmem:[#allocation2 + $0x390] sm:$0xff]
    %v179 = vld [vmem:[#allocation2 + $0x398] sm:$0xff]
    %v180 = vld [vmem:[#allocation2 + $0x3a0] sm:$0xff]
    %v181 = vld [vmem:[#allocation2 + $0x3a8] sm:$0xff]
    %v182 = vld [vmem:[#allocation2 + $0x3b0] sm:$0xff]
    %v183 = vld [vmem:[#allocation2 + $0x3b8] sm:$0xff]
    %v184 = vld [vmem:[#allocation2 + $0x3c0] sm:$0xff]
    %v185 = vld [vmem:[#allocation2 + $0x3c8] sm:$0xff]
    %v186 = vld [vmem:[#allocation2 + $0x3d0] sm:$0xff]
    %v187 = vld [vmem:[#allocation2 + $0x3d8] sm:$0xff]
    %v188 = vld [vmem:[#allocation2 + $0x3e0] sm:$0xff]
    %v189 = vld [vmem:[#allocation2 + $0x3e8] sm:$0xff]
    %v190 = vld [vmem:[#allocation2 + $0x3f0] sm:$0xff]
    %v191 = vld [vmem:[#allocation2 + $0x3f8] sm:$0xff]
    %v192 = vld [vmem:[#allocation2 + $0x400] sm:$0xff]
    %v193 = vld [vmem:[#allocation2 + $0x408] sm:$0xff]
    %v194 = vld [vmem:[#allocation2 + $0x410] sm:$0xff]
    %v195 = vld [vmem:[#allocation2 + $0x418] sm:$0xff]
    %v196 = vld [vmem:[#allocation2 + $0x420] sm:$0xff]
    %v197 = vld [vmem:[#allocation2 + $0x428] sm:$0xff]
    %v198 = vld [vmem:[#allocation2 + $0x430] sm:$0xff]
    %v199 = vld [vmem:[#allocation2 + $0x438] sm:$0xff]
    %v200 = vld [vmem:[#allocation2 + $0x440] sm:$0xff]
    %v201 = vld [vmem:[#allocation2 + $0x448] sm:$0xff]
    %v202 = vld [vmem:[#allocation2 + $0x450] sm:$0xff]
    %v203 = vld [vmem:[#allocation2 + $0x458] sm:$0xff]
    %v204 = vld [vmem:[#allocation2 + $0x460] sm:$0xff]
    %v205 = vld [vmem:[#allocation2 + $0x468] sm:$0xff]
    %v206 = vld [vmem:[#allocation2 + $0x470] sm:$0xff]
    %v207 = vld [vmem:[#allocation2 + $0x478] sm:$0xff]
    %v208 = vld [vmem:[#allocation2 + $0x480] sm:$0xff]
    %v209 = vld [vmem:[#allocation2 + $0x488] sm:$0xff]
    %v210 = vld [vmem:[#allocation2 + $0x490] sm:$0xff]
    %v211 = vld [vmem:[#allocation2 + $0x498] sm:$0xff]
    %v212 = vld [vmem:[#allocation2 + $0x4a0] sm:$0xff]
    %v213 = vld [vmem:[#allocation2 + $0x4a8] sm:$0xff]
    %v214 = vld [vmem:[#allocation2 + $0x4b0] sm:$0xff]
    %v215 = vld [vmem:[#allocation2 + $0x4b8] sm:$0xff]
    %v216 = vld [vmem:[#allocation2 + $0x4c0] sm:$0xff]
    %v217 = vld [vmem:[#allocation2 + $0x4c8] sm:$0xff]
    %v218 = vld [vmem:[#allocation2 + $0x4d0] sm:$0xff]
    %v219 = vld [vmem:[#allocation2 + $0x4d8] sm:$0xff]
    %v220 = vld [vmem:[#allocation2 + $0x4e0] sm:$0xff]
    %v221 = vld [vmem:[#allocation2 + $0x4e8] sm:$0xff]
    %v222 = vld [vmem:[#allocation2 + $0x4f0] sm:$0xff]
    %v223 = vld [vmem:[#allocation2 + $0x4f8] sm:$0xff]
    %v224 = vld [vmem:[#allocation2 + $0x500] sm:$0xff]
    %v225 = vld [vmem:[#allocation2 + $0x508] sm:$0xff]
    %v226 = vld [vmem:[#allocation2 + $0x510] sm:$0xff]
    %v227 = vld [vmem:[#allocation2 + $0x518] sm:$0xff]
    %v228 = vld [vmem:[#allocation2 + $0x520] sm:$0xff]
    %v229 = vld [vmem:[#allocation2 + $0x528] sm:$0xff]
    %v230 = vld [vmem:[#allocation2 + $0x530] sm:$0xff]
    %v231 = vld [vmem:[#allocation2 + $0x538] sm:$0xff]
    %v232 = vld [vmem:[#allocation2 + $0x540] sm:$0xff]
    %v233 = vld [vmem:[#allocation2 + $0x548] sm:$0xff]
    %v234 = vld [vmem:[#allocation2 + $0x550] sm:$0xff]
    %v235 = vld [vmem:[#allocation2 + $0x558] sm:$0xff]
    %v236 = vld [vmem:[#allocation2 + $0x560] sm:$0xff]
    %v237 = vld [vmem:[#allocation2 + $0x568] sm:$0xff]
    %v238 = vld [vmem:[#allocation2 + $0x570] sm:$0xff]
    %v239 = vld [vmem:[#allocation2 + $0x578] sm:$0xff]
    %v240 = vld [vmem:[#allocation2 + $0x580] sm:$0xff]
    %v241 = vld [vmem:[#allocation2 + $0x588] sm:$0xff]
    %v242 = vld [vmem:[#allocation2 + $0x590] sm:$0xff]
    %v243 = vld [vmem:[#allocation2 + $0x598] sm:$0xff]
    %v244 = vld [vmem:[#allocation2 + $0x5a0] sm:$0xff]
    %v245 = vld [vmem:[#allocation2 + $0x5a8] sm:$0xff]
    %v246 = vld [vmem:[#allocation2 + $0x5b0] sm:$0xff]
    %v247 = vld [vmem:[#allocation2 + $0x5b8] sm:$0xff]
    %v248 = vld [vmem:[#allocation2 + $0x5c0] sm:$0xff]
    %v249 = vld [vmem:[#allocation2 + $0x5c8] sm:$0xff]
    %v250 = vld [vmem:[#allocation2 + $0x5d0] sm:$0xff]
    %v251 = vld [vmem:[#allocation2 + $0x5d8] sm:$0xff]
    %v252 = vld [vmem:[#allocation2 + $0x5e0] sm:$0xff]
    %v253 = vld [vmem:[#allocation2 + $0x5e8] sm:$0xff]
    %v254 = vld [vmem:[#allocation2 + $0x5f0] sm:$0xff]
    %v255 = vld [vmem:[#allocation2 + $0x5f8] sm:$0xff]
    %v256 = vld [vmem:[#allocation2 + $0x600] sm:$0xff]
    %v257 = vld [vmem:[#allocation2 + $0x608] sm:$0xff]
    %v258 = vld [vmem:[#allocation2 + $0x610] sm:$0xff]
    %v259 = vld [vmem:[#allocation2 + $0x618] sm:$0xff]
    %v260 = vld [vmem:[#allocation2 + $0x620] sm:$0xff]
    %v261 = vld [vmem:[#allocation2 + $0x628] sm:$0xff]
    %v262 = vld [vmem:[#allocation2 + $0x630] sm:$0xff]
    %v263 = vld [vmem:[#allocation2 + $0x638] sm:$0xff]
    %v264 = vld [vmem:[#allocation2 + $0x640] sm:$0xff]
    %v265 = vld [vmem:[#allocation2 + $0x648] sm:$0xff]
    %v266 = vld [vmem:[#allocation2 + $0x650] sm:$0xff]
    %v267 = vld [vmem:[#allocation2 + $0x658] sm:$0xff]
    %v268 = vld [vmem:[#allocation2 + $0x660] sm:$0xff]
    %v269 = vld [vmem:[#allocation2 + $0x668] sm:$0xff]
    %v270 = vld [vmem:[#allocation2 + $0x670] sm:$0xff]
    %v271 = vld [vmem:[#allocation2 + $0x678] sm:$0xff]
    %v272 = vld [vmem:[#allocation2 + $0x680] sm:$0xff]
    %v273 = vld [vmem:[#allocation2 + $0x688] sm:$0xff]
    %v274 = vld [vmem:[#allocation2 + $0x690] sm:$0xff]
    %v275 = vld [vmem:[#allocation2 + $0x698] sm:$0xff]
    %v276 = vld [vmem:[#allocation2 + $0x6a0] sm:$0xff]
    %v277 = vld [vmem:[#allocation2 + $0x6a8] sm:$0xff]
    %v278 = vld [vmem:[#allocation2 + $0x6b0] sm:$0xff]
    %v279 = vld [vmem:[#allocation2 + $0x6b8] sm:$0xff]
    %v280 = vld [vmem:[#allocation2 + $0x6c0] sm:$0xff]
    %v281 = vld [vmem:[#allocation2 + $0x6c8] sm:$0xff]
    %v282 = vld [vmem:[#allocation2 + $0x6d0] sm:$0xff]
    %v283 = vld [vmem:[#allocation2 + $0x6d8] sm:$0xff]
    %v284 = vld [vmem:[#allocation2 + $0x6e0] sm:$0xff]
    %v285 = vld [vmem:[#allocation2 + $0x6e8] sm:$0xff]
    %v286 = vld [vmem:[#allocation2 + $0x6f0] sm:$0xff]
    %v287 = vld [vmem:[#allocation2 + $0x6f8] sm:$0xff]
    %v288 = vld [vmem:[#allocation2 + $0x700] sm:$0xff]
    %v289 = vld [vmem:[#allocation2 + $0x708] sm:$0xff]
    %v290 = vld [vmem:[#allocation2 + $0x710] sm:$0xff]
    %v291 = vld [vmem:[#allocation2 + $0x718] sm:$0xff]
    %v292 = vld [vmem:[#allocation2 + $0x720] sm:$0xff]
    %v293 = vld [vmem:[#allocation2 + $0x728] sm:$0xff]
    %v294 = vld [vmem:[#allocation2 + $0x730] sm:$0xff]
    %v295 = vld [vmem:[#allocation2 + $0x738] sm:$0xff]
    %v296 = vld [vmem:[#allocation2 + $0x740] sm:$0xff]
    %v297 = vld [vmem:[#allocation2 + $0x748] sm:$0xff]
    %v298 = vld [vmem:[#allocation2 + $0x750] sm:$0xff]
    %v299 = vld [vmem:[#allocation2 + $0x758] sm:$0xff]
    %v300 = vld [vmem:[#allocation2 + $0x760] sm:$0xff]
    %v301 = vld [vmem:[#allocation2 + $0x768] sm:$0xff]
    %v302 = vld [vmem:[#allocation2 + $0x770] sm:$0xff]
    %v303 = vld [vmem:[#allocation2 + $0x778] sm:$0xff]
    %v304 = vld [vmem:[#allocation2 + $0x780] sm:$0xff]
    %v305 = vld [vmem:[#allocation2 + $0x788] sm:$0xff]
    %v306 = vld [vmem:[#allocation2 + $0x790] sm:$0xff]
    %v307 = vld [vmem:[#allocation2 + $0x798] sm:$0xff]
    %v308 = vld [vmem:[#allocation2 + $0x7a0] sm:$0xff]
    %v309 = vld [vmem:[#allocation2 + $0x7a8] sm:$0xff]
    %v310 = vld [vmem:[#allocation2 + $0x7b0] sm:$0xff]
    %v311 = vld [vmem:[#allocation2 + $0x7b8] sm:$0xff]
    %v312 = vld [vmem:[#allocation2 + $0x7c0] sm:$0xff]
    %v313 = vld [vmem:[#allocation2 + $0x7c8] sm:$0xff]
    %v314 = vld [vmem:[#allocation2 + $0x7d0] sm:$0xff]
    %v315 = vld [vmem:[#allocation2 + $0x7d8] sm:$0xff]
    %v316 = vld [vmem:[#allocation2 + $0x7e0] sm:$0xff]
    %v317 = vld [vmem:[#allocation2 + $0x7e8] sm:$0xff]
    %v318 = vld [vmem:[#allocation2 + $0x7f0] sm:$0xff]
    %v319 = vld [vmem:[#allocation2 + $0x7f8] sm:$0xff]
    %v320 = vld [vmem:[#allocation2 + $0x800] sm:$0xff]
    %v321 = vld [vmem:[#allocation2 + $0x808] sm:$0xff]
    %v322 = vld [vmem:[#allocation2 + $0x810] sm:$0xff]
    %v323 = vld [vmem:[#allocation2 + $0x818] sm:$0xff]
    %v324 = vld [vmem:[#allocation2 + $0x820] sm:$0xff]
    %v325 = vld [vmem:[#allocation2 + $0x828] sm:$0xff]
    %v326 = vld [vmem:[#allocation2 + $0x830] sm:$0xff]
    %v327 = vld [vmem:[#allocation2 + $0x838] sm:$0xff]
    %v328 = vld [vmem:[#allocation2 + $0x840] sm:$0xff]
    %v329 = vld [vmem:[#allocation2 + $0x848] sm:$0xff]
    %v330 = vld [vmem:[#allocation2 + $0x850] sm:$0xff]
    %v331 = vld [vmem:[#allocation2 + $0x858] sm:$0xff]
    %v332 = vld [vmem:[#allocation2 + $0x860] sm:$0xff]
    %v333 = vld [vmem:[#allocation2 + $0x868] sm:$0xff]
    %v334 = vld [vmem:[#allocation2 + $0x870] sm:$0xff]
    %v335 = vld [vmem:[#allocation2 + $0x878] sm:$0xff]
    %v336 = vld [vmem:[#allocation2 + $0x880] sm:$0xff]
    %v337 = vld [vmem:[#allocation2 + $0x888] sm:$0xff]
    %v338 = vld [vmem:[#allocation2 + $0x890] sm:$0xff]
    %v339 = vld [vmem:[#allocation2 + $0x898] sm:$0xff]
    %v340 = vld [vmem:[#allocation2 + $0x8a0] sm:$0xff]
    %v341 = vld [vmem:[#allocation2 + $0x8a8] sm:$0xff]
    %v342 = vld [vmem:[#allocation2 + $0x8b0] sm:$0xff]
    %v343 = vld [vmem:[#allocation2 + $0x8b8] sm:$0xff]
    %v344 = vld [vmem:[#allocation2 + $0x8c0] sm:$0xff]
    %v345 = vld [vmem:[#allocation2 + $0x8c8] sm:$0xff]
    %v346 = vld [vmem:[#allocation2 + $0x8d0] sm:$0xff]
    %v347 = vld [vmem:[#allocation2 + $0x8d8] sm:$0xff]
    %v348 = vld [vmem:[#allocation2 + $0x8e0] sm:$0xff]
    %v349 = vld [vmem:[#allocation2 + $0x8e8] sm:$0xff]
    %v350 = vld [vmem:[#allocation2 + $0x8f0] sm:$0xff]
    %v351 = vld [vmem:[#allocation2 + $0x8f8] sm:$0xff]
    %v352 = vld [vmem:[#allocation2 + $0x900] sm:$0xff]
    %v353 = vld [vmem:[#allocation2 + $0x908] sm:$0xff]
    %v354 = vld [vmem:[#allocation2 + $0x910] sm:$0xff]
    %v355 = vld [vmem:[#allocation2 + $0x918] sm:$0xff]
    %v356 = vld [vmem:[#allocation2 + $0x920] sm:$0xff]
    %v357 = vld [vmem:[#allocation2 + $0x928] sm:$0xff]
    %v358 = vld [vmem:[#allocation2 + $0x930] sm:$0xff]
    %v359 = vld [vmem:[#allocation2 + $0x938] sm:$0xff]
    %v360 = vld [vmem:[#allocation2 + $0x940] sm:$0xff]
    %v361 = vld [vmem:[#allocation2 + $0x948] sm:$0xff]
    %v362 = vld [vmem:[#allocation2 + $0x950] sm:$0xff]
    %v363 = vld [vmem:[#allocation2 + $0x958] sm:$0xff]
    %v364 = vld [vmem:[#allocation2 + $0x960] sm:$0xff]
    %v365 = vld [vmem:[#allocation2 + $0x968] sm:$0xff]
    %v366 = vld [vmem:[#allocation2 + $0x970] sm:$0xff]
    %v367 = vld [vmem:[#allocation2 + $0x978] sm:$0xff]
    %v368 = vld [vmem:[#allocation2 + $0x980] sm:$0xff]
    %v369 = vld [vmem:[#allocation2 + $0x988] sm:$0xff]
    %v370 = vld [vmem:[#allocation2 + $0x990] sm:$0xff]
    %v371 = vld [vmem:[#allocation2 + $0x998] sm:$0xff]
    %v372 = vld [vmem:[#allocation2 + $0x9a0] sm:$0xff]
    %v373 = vld [vmem:[#allocation2 + $0x9a8] sm:$0xff]
    %v374 = vld [vmem:[#allocation2 + $0x9b0] sm:$0xff]
    %v375 = vld [vmem:[#allocation2 + $0x9b8] sm:$0xff]
    %v376 = vld [vmem:[#allocation2 + $0x9c0] sm:$0xff]
    %v377 = vld [vmem:[#allocation2 + $0x9c8] sm:$0xff]
    %v378 = vld [vmem:[#allocation2 + $0x9d0] sm:$0xff]
    %v379 = vld [vmem:[#allocation2 + $0x9d8] sm:$0xff]
    %v380 = vld [vmem:[#allocation2 + $0x9e0] sm:$0xff]
    %v381 = vld [vmem:[#allocation2 + $0x9e8] sm:$0xff]
    %v382 = vld [vmem:[#allocation2 + $0x9f0] sm:$0xff]
    %v383 = vld [vmem:[#allocation2 + $0x9f8] sm:$0xff]
    %v384 = vld [vmem:[#allocation2 + $0xa00] sm:$0xff]
    %v385 = vld [vmem:[#allocation2 + $0xa08] sm:$0xff]
    %v386 = vld [vmem:[#allocation2 + $0xa10] sm:$0xff]
    %v387 = vld [vmem:[#allocation2 + $0xa18] sm:$0xff]
    %v388 = vld [vmem:[#allocation2 + $0xa20] sm:$0xff]
    %v389 = vld [vmem:[#allocation2 + $0xa28] sm:$0xff]
    %v390 = vld [vmem:[#allocation2 + $0xa30] sm:$0xff]
    %v391 = vld [vmem:[#allocation2 + $0xa38] sm:$0xff]
    %v392 = vld [vmem:[#allocation2 + $0xa40] sm:$0xff]
    %v393 = vld [vmem:[#allocation2 + $0xa48] sm:$0xff]
    %v394 = vld [vmem:[#allocation2 + $0xa50] sm:$0xff]
    %v395 = vld [vmem:[#allocation2 + $0xa58] sm:$0xff]
    %v396 = vld [vmem:[#allocation2 + $0xa60] sm:$0xff]
    %v397 = vld [vmem:[#allocation2 + $0xa68] sm:$0xff]
    %v398 = vld [vmem:[#allocation2 + $0xa70] sm:$0xff]
    %v399 = vld [vmem:[#allocation2 + $0xa78] sm:$0xff]
    %v400 = vld [vmem:[#allocation2 + $0xa80] sm:$0xff]
    %v401 = vld [vmem:[#allocation2 + $0xa88] sm:$0xff]
    %v402 = vld [vmem:[#allocation2 + $0xa90] sm:$0xff]
    %v403 = vld [vmem:[#allocation2 + $0xa98] sm:$0xff]
    %v404 = vld [vmem:[#allocation2 + $0xaa0] sm:$0xff]
    %v405 = vld [vmem:[#allocation2 + $0xaa8] sm:$0xff]
    %v406 = vld [vmem:[#allocation2 + $0xab0] sm:$0xff]
    %v407 = vld [vmem:[#allocation2 + $0xab8] sm:$0xff]
    %v408 = vld [vmem:[#allocation2 + $0xac0] sm:$0xff]
    %v409 = vld [vmem:[#allocation2 + $0xac8] sm:$0xff]
    %v410 = vld [vmem:[#allocation2 + $0xad0] sm:$0xff]
    %v411 = vld [vmem:[#allocation2 + $0xad8] sm:$0xff]
    %v412 = vld [vmem:[#allocation2 + $0xae0] sm:$0xff]
    %v413 = vld [vmem:[#allocation2 + $0xae8] sm:$0xff]
    %v414 = vld [vmem:[#allocation2 + $0xaf0] sm:$0xff]
    %v415 = vld [vmem:[#allocation2 + $0xaf8] sm:$0xff]
    %v416 = vld [vmem:[#allocation2 + $0xb00] sm:$0xff]
    %v417 = vld [vmem:[#allocation2 + $0xb08] sm:$0xff]
    %v418 = vld [vmem:[#allocation2 + $0xb10] sm:$0xff]
    %v419 = vld [vmem:[#allocation2 + $0xb18] sm:$0xff]
    %v420 = vld [vmem:[#allocation2 + $0xb20] sm:$0xff]
    %v421 = vld [vmem:[#allocation2 + $0xb28] sm:$0xff]
    %v422 = vld [vmem:[#allocation2 + $0xb30] sm:$0xff]
    %v423 = vld [vmem:[#allocation2 + $0xb38] sm:$0xff]
    %v424 = vld [vmem:[#allocation2 + $0xb40] sm:$0xff]
    %v425 = vld [vmem:[#allocation2 + $0xb48] sm:$0xff]
    %v426 = vld [vmem:[#allocation2 + $0xb50] sm:$0xff]
    %v427 = vld [vmem:[#allocation2 + $0xb58] sm:$0xff]
    %v428 = vld [vmem:[#allocation2 + $0xb60] sm:$0xff]
    %v429 = vld [vmem:[#allocation2 + $0xb68] sm:$0xff]
    %v430 = vld [vmem:[#allocation2 + $0xb70] sm:$0xff]
    %v431 = vld [vmem:[#allocation2 + $0xb78] sm:$0xff]
    %v432 = vld [vmem:[#allocation2 + $0xb80] sm:$0xff]
    %v433 = vld [vmem:[#allocation2 + $0xb88] sm:$0xff]
    %v434 = vld [vmem:[#allocation2 + $0xb90] sm:$0xff]
    %v435 = vld [vmem:[#allocation2 + $0xb98] sm:$0xff]
    %v436 = vld [vmem:[#allocation2 + $0xba0] sm:$0xff]
    %v437 = vld [vmem:[#allocation2 + $0xba8] sm:$0xff]
    %v438 = vld [vmem:[#allocation2 + $0xbb0] sm:$0xff]
    %v439 = vld [vmem:[#allocation2 + $0xbb8] sm:$0xff]
    %v440 = vld [vmem:[#allocation2 + $0xbc0] sm:$0xff]
    %v441 = vld [vmem:[#allocation2 + $0xbc8] sm:$0xff]
    %v442 = vld [vmem:[#allocation2 + $0xbd0] sm:$0xff]
    %v443 = vld [vmem:[#allocation2 + $0xbd8] sm:$0xff]
    %v444 = vld [vmem:[#allocation2 + $0xbe0] sm:$0xff]
    %v445 = vld [vmem:[#allocation2 + $0xbe8] sm:$0xff]
    %v446 = vld [vmem:[#allocation2 + $0xbf0] sm:$0xff]
    %v447 = vld [vmem:[#allocation2 + $0xbf8] sm:$0xff]
    %v448 = vld [vmem:[#allocation2 + $0xc00] sm:$0xff]
    %v449 = vld [vmem:[#allocation2 + $0xc08] sm:$0xff]
    %v450 = vld [vmem:[#allocation2 + $0xc10] sm:$0xff]
    %v451 = vld [vmem:[#allocation2 + $0xc18] sm:$0xff]
    %v452 = vld [vmem:[#allocation2 + $0xc20] sm:$0xff]
    %v453 = vld [vmem:[#allocation2 + $0xc28] sm:$0xff]
    %v454 = vld [vmem:[#allocation2 + $0xc30] sm:$0xff]
    %v455 = vld [vmem:[#allocation2 + $0xc38] sm:$0xff]
    %v456 = vld [vmem:[#allocation2 + $0xc40] sm:$0xff]
    %v457 = vld [vmem:[#allocation2 + $0xc48] sm:$0xff]
    %v458 = vld [vmem:[#allocation2 + $0xc50] sm:$0xff]
    %v459 = vld [vmem:[#allocation2 + $0xc58] sm:$0xff]
    %v460 = vld [vmem:[#allocation2 + $0xc60] sm:$0xff]
    %v461 = vld [vmem:[#allocation2 + $0xc68] sm:$0xff]
    %v462 = vld [vmem:[#allocation2 + $0xc70] sm:$0xff]
    %v463 = vld [vmem:[#allocation2 + $0xc78] sm:$0xff]
    %v464 = vld [vmem:[#allocation2 + $0xc80] sm:$0xff]
    %v465 = vld [vmem:[#allocation2 + $0xc88] sm:$0xff]
    %v466 = vld [vmem:[#allocation2 + $0xc90] sm:$0xff]
    %v467 = vld [vmem:[#allocation2 + $0xc98] sm:$0xff]
    %v468 = vld [vmem:[#allocation2 + $0xca0] sm:$0xff]
    %v469 = vld [vmem:[#allocation2 + $0xca8] sm:$0xff]
    %v470 = vld [vmem:[#allocation2 + $0xcb0] sm:$0xff]
    %v471 = vld [vmem:[#allocation2 + $0xcb8] sm:$0xff]
    %v472 = vld [vmem:[#allocation2 + $0xcc0] sm:$0xff]
    %v473 = vld [vmem:[#allocation2 + $0xcc8] sm:$0xff]
    %v474 = vld [vmem:[#allocation2 + $0xcd0] sm:$0xff]
    %v475 = vld [vmem:[#allocation2 + $0xcd8] sm:$0xff]
    %v476 = vld [vmem:[#allocation2 + $0xce0] sm:$0xff]
    %v477 = vld [vmem:[#allocation2 + $0xce8] sm:$0xff]
    %v478 = vld [vmem:[#allocation2 + $0xcf0] sm:$0xff]
    %v479 = vld [vmem:[#allocation2 + $0xcf8] sm:$0xff]
    %v480 = vld [vmem:[#allocation2 + $0xd00] sm:$0xff]
    %v481 = vld [vmem:[#allocation2 + $0xd08] sm:$0xff]
    %v482 = vld [vmem:[#allocation2 + $0xd10] sm:$0xff]
    %v483 = vld [vmem:[#allocation2 + $0xd18] sm:$0xff]
    %v484 = vld [vmem:[#allocation2 + $0xd20] sm:$0xff]
    %v485 = vld [vmem:[#allocation2 + $0xd28] sm:$0xff]
    %v486 = vld [vmem:[#allocation2 + $0xd30] sm:$0xff]
    %v487 = vld [vmem:[#allocation2 + $0xd38] sm:$0xff]
    %v488 = vld [vmem:[#allocation2 + $0xd40] sm:$0xff]
    %v489 = vld [vmem:[#allocation2 + $0xd48] sm:$0xff]
    %v490 = vld [vmem:[#allocation2 + $0xd50] sm:$0xff]
    %v491 = vld [vmem:[#allocation2 + $0xd58] sm:$0xff]
    %v492 = vld [vmem:[#allocation2 + $0xd60] sm:$0xff]
    %v493 = vld [vmem:[#allocation2 + $0xd68] sm:$0xff]
    %v494 = vld [vmem:[#allocation2 + $0xd70] sm:$0xff]
    %v495 = vld [vmem:[#allocation2 + $0xd78] sm:$0xff]
    %v496 = vld [vmem:[#allocation2 + $0xd80] sm:$0xff]
    %v497 = vld [vmem:[#allocation2 + $0xd88] sm:$0xff]
    %v498 = vld [vmem:[#allocation2 + $0xd90] sm:$0xff]
    %v499 = vld [vmem:[#allocation2 + $0xd98] sm:$0xff]
    %v500 = vld [vmem:[#allocation2 + $0xda0] sm:$0xff]
    %v501 = vld [vmem:[#allocation2 + $0xda8] sm:$0xff]
    %v502 = vld [vmem:[#allocation2 + $0xdb0] sm:$0xff]
    %v503 = vld [vmem:[#allocation2 + $0xdb8] sm:$0xff]
    %v504 = vld [vmem:[#allocation2 + $0xdc0] sm:$0xff]
    %v505 = vld [vmem:[#allocation2 + $0xdc8] sm:$0xff]
    %v506 = vld [vmem:[#allocation2 + $0xdd0] sm:$0xff]
    %v507 = vld [vmem:[#allocation2 + $0xdd8] sm:$0xff]
    %v508 = vld [vmem:[#allocation2 + $0xde0] sm:$0xff]
    %v509 = vld [vmem:[#allocation2 + $0xde8] sm:$0xff]
    %v510 = vld [vmem:[#allocation2 + $0xdf0] sm:$0xff]
    %v511 = vld [vmem:[#allocation2 + $0xdf8] sm:$0xff]
    %v512 = vld [vmem:[#allocation2 + $0xe00] sm:$0xff]
    %v513 = vld [vmem:[#allocation2 + $0xe08] sm:$0xff]
    %v514 = vld [vmem:[#allocation2 + $0xe10] sm:$0xff]
    %v515 = vld [vmem:[#allocation2 + $0xe18] sm:$0xff]
    %v516 = vld [vmem:[#allocation2 + $0xe20] sm:$0xff]
    %v517 = vld [vmem:[#allocation2 + $0xe28] sm:$0xff]
    %v518 = vld [vmem:[#allocation2 + $0xe30] sm:$0xff]
    %v519 = vld [vmem:[#allocation2 + $0xe38] sm:$0xff]
    %v520 = vld [vmem:[#allocation2 + $0xe40] sm:$0xff]
    %v521 = vld [vmem:[#allocation2 + $0xe48] sm:$0xff]
    %v522 = vld [vmem:[#allocation2 + $0xe50] sm:$0xff]
    %v523 = vld [vmem:[#allocation2 + $0xe58] sm:$0xff]
    %v524 = vld [vmem:[#allocation2 + $0xe60] sm:$0xff]
    %v525 = vld [vmem:[#allocation2 + $0xe68] sm:$0xff]
    %v526 = vld [vmem:[#allocation2 + $0xe70] sm:$0xff]
    %v527 = vld [vmem:[#allocation2 + $0xe78] sm:$0xff]
    %v528 = vld [vmem:[#allocation2 + $0xe80] sm:$0xff]
    %v529 = vld [vmem:[#allocation2 + $0xe88] sm:$0xff]
    %v530 = vld [vmem:[#allocation2 + $0xe90] sm:$0xff]
    %v531 = vld [vmem:[#allocation2 + $0xe98] sm:$0xff]
    %v532 = vld [vmem:[#allocation2 + $0xea0] sm:$0xff]
    %v533 = vld [vmem:[#allocation2 + $0xea8] sm:$0xff]
    %v534 = vld [vmem:[#allocation2 + $0xeb0] sm:$0xff]
    %v535 = vld [vmem:[#allocation2 + $0xeb8] sm:$0xff]
    %v536 = vld [vmem:[#allocation2 + $0xec0] sm:$0xff]
    %v537 = vld [vmem:[#allocation2 + $0xec8] sm:$0xff]
    %v538 = vld [vmem:[#allocation2 + $0xed0] sm:$0xff]
    %v539 = vld [vmem:[#allocation2 + $0xed8] sm:$0xff]
    %v540 = vld [vmem:[#allocation2 + $0xee0] sm:$0xff]
    %v541 = vld [vmem:[#allocation2 + $0xee8] sm:$0xff]
    %v542 = vld [vmem:[#allocation2 + $0xef0] sm:$0xff]
    %v543 = vld [vmem:[#allocation2 + $0xef8] sm:$0xff]
    %v544 = vld [vmem:[#allocation2 + $0xf00] sm:$0xff]
    %v545 = vld [vmem:[#allocation2 + $0xf08] sm:$0xff]
    %v546 = vld [vmem:[#allocation2 + $0xf10] sm:$0xff]
    %v547 = vld [vmem:[#allocation2 + $0xf18] sm:$0xff]
    %v548 = vld [vmem:[#allocation2 + $0xf20] sm:$0xff]
    %v549 = vld [vmem:[#allocation2 + $0xf28] sm:$0xff]
    %v550 = vld [vmem:[#allocation2 + $0xf30] sm:$0xff]
    %v551 = vld [vmem:[#allocation2 + $0xf38] sm:$0xff]
    %v552 = vld [vmem:[#allocation2 + $0xf40] sm:$0xff]
    %v553 = vld [vmem:[#allocation2 + $0xf48] sm:$0xff]
    %v554 = vld [vmem:[#allocation2 + $0xf50] sm:$0xff]
    %v555 = vld [vmem:[#allocation2 + $0xf58] sm:$0xff]
    %v556 = vld [vmem:[#allocation2 + $0xf60] sm:$0xff]
    %v557 = vld [vmem:[#allocation2 + $0xf68] sm:$0xff]
    %v558 = vld [vmem:[#allocation2 + $0xf70] sm:$0xff]
    %v559 = vld [vmem:[#allocation2 + $0xf78] sm:$0xff]
    %v560 = vld [vmem:[#allocation2 + $0xf80] sm:$0xff]
    %v561 = vld [vmem:[#allocation2 + $0xf88] sm:$0xff]
    %v562 = vld [vmem:[#allocation2 + $0xf90] sm:$0xff]
    %v563 = vld [vmem:[#allocation2 + $0xf98] sm:$0xff]
    %v564 = vld [vmem:[#allocation2 + $0xfa0] sm:$0xff]
    %v565 = vld [vmem:[#allocation2 + $0xfa8] sm:$0xff]
    %v566 = vld [vmem:[#allocation2 + $0xfb0] sm:$0xff]
    %v567 = vld [vmem:[#allocation2 + $0xfb8] sm:$0xff]
    %v568 = vld [vmem:[#allocation2 + $0xfc0] sm:$0xff]
    %v569 = vld [vmem:[#allocation2 + $0xfc8] sm:$0xff]
    %v570 = vld [vmem:[#allocation2 + $0xfd0] sm:$0xff]
    %v571 = vld [vmem:[#allocation2 + $0xfd8] sm:$0xff]
    %v572 = vld [vmem:[#allocation2 + $0xfe0] sm:$0xff]
    %v573 = vld [vmem:[#allocation2 + $0xfe8] sm:$0xff]
    %v574 = vld [vmem:[#allocation2 + $0xff0] sm:$0xff]
    %v575 = vld [vmem:[#allocation2 + $0xff8] sm:$0xff]
    %v576 = vld [vmem:[#allocation2 + $0x1000] sm:$0xff]
    %v577 = vld [vmem:[#allocation2 + $0x1008] sm:$0xff]
    %v578 = vld [vmem:[#allocation2 + $0x1010] sm:$0xff]
    %v579 = vld [vmem:[#allocation2 + $0x1018] sm:$0xff]
    %v580 = vld [vmem:[#allocation2 + $0x1020] sm:$0xff]
    %v581 = vld [vmem:[#allocation2 + $0x1028] sm:$0xff]
    %v582 = vld [vmem:[#allocation2 + $0x1030] sm:$0xff]
    %v583 = vld [vmem:[#allocation2 + $0x1038] sm:$0xff]
    %v584 = vld [vmem:[#allocation2 + $0x1040] sm:$0xff]
    %v585 = vld [vmem:[#allocation2 + $0x1048] sm:$0xff]
    %v586 = vld [vmem:[#allocation2 + $0x1050] sm:$0xff]
    %v587 = vld [vmem:[#allocation2 + $0x1058] sm:$0xff]
    %v588 = vld [vmem:[#allocation2 + $0x1060] sm:$0xff]
    %v589 = vld [vmem:[#allocation2 + $0x1068] sm:$0xff]
    %v590 = vld [vmem:[#allocation2 + $0x1070] sm:$0xff]
    %v591 = vld [vmem:[#allocation2 + $0x1078] sm:$0xff]
    %v592 = vld [vmem:[#allocation2 + $0x1080] sm:$0xff]
    %v593 = vld [vmem:[#allocation2 + $0x1088] sm:$0xff]
    %v594 = vld [vmem:[#allocation2 + $0x1090] sm:$0xff]
    %v595 = vld [vmem:[#allocation2 + $0x1098] sm:$0xff]
    %v596 = vld [vmem:[#allocation2 + $0x10a0] sm:$0xff]
    %v597 = vld [vmem:[#allocation2 + $0x10a8] sm:$0xff]
    %v598 = vld [vmem:[#allocation2 + $0x10b0] sm:$0xff]
    %v599 = vld [vmem:[#allocation2 + $0x10b8] sm:$0xff]
    %v600 = vld [vmem:[#allocation2 + $0x10c0] sm:$0xff]
    %v601 = vld [vmem:[#allocation2 + $0x10c8] sm:$0xff]
    %v602 = vld [vmem:[#allocation2 + $0x10d0] sm:$0xff]
    %v603 = vld [vmem:[#allocation2 + $0x10d8] sm:$0xff]
    %v604 = vld [vmem:[#allocation2 + $0x10e0] sm:$0xff]
    %v605 = vld [vmem:[#allocation2 + $0x10e8] sm:$0xff]
    %v606 = vld [vmem:[#allocation2 + $0x10f0] sm:$0xff]
    %v607 = vld [vmem:[#allocation2 + $0x10f8] sm:$0xff]
    %v608 = vld [vmem:[#allocation2 + $0x1100] sm:$0xff]
    %v609 = vld [vmem:[#allocation2 + $0x1108] sm:$0xff]
    %v610 = vld [vmem:[#allocation2 + $0x1110] sm:$0xff]
    %v611 = vld [vmem:[#allocation2 + $0x1118] sm:$0xff]
    %v612 = vld [vmem:[#allocation2 + $0x1120] sm:$0xff]
    %v613 = vld [vmem:[#allocation2 + $0x1128] sm:$0xff]
    %v614 = vld [vmem:[#allocation2 + $0x1130] sm:$0xff]
    %v615 = vld [vmem:[#allocation2 + $0x1138] sm:$0xff]
    %v616 = vld [vmem:[#allocation2 + $0x1140] sm:$0xff]
    %v617 = vld [vmem:[#allocation2 + $0x1148] sm:$0xff]
    %v618 = vld [vmem:[#allocation2 + $0x1150] sm:$0xff]
    %v619 = vld [vmem:[#allocation2 + $0x1158] sm:$0xff]
    %v620 = vld [vmem:[#allocation2 + $0x1160] sm:$0xff]
    %v621 = vld [vmem:[#allocation2 + $0x1168] sm:$0xff]
    %v622 = vld [vmem:[#allocation2 + $0x1170] sm:$0xff]
    %v623 = vld [vmem:[#allocation2 + $0x1178] sm:$0xff]
    %v624 = vld [vmem:[#allocation2 + $0x1180] sm:$0xff]
    %v625 = vld [vmem:[#allocation2 + $0x1188] sm:$0xff]
    %v626 = vld [vmem:[#allocation2 + $0x1190] sm:$0xff]
    %v627 = vld [vmem:[#allocation2 + $0x1198] sm:$0xff]
    %v628 = vld [vmem:[#allocation2 + $0x11a0] sm:$0xff]
    %v629 = vld [vmem:[#allocation2 + $0x11a8] sm:$0xff]
    %v630 = vld [vmem:[#allocation2 + $0x11b0] sm:$0xff]
    %v631 = vld [vmem:[#allocation2 + $0x11b8] sm:$0xff]
    %v632 = vld [vmem:[#allocation2 + $0x11c0] sm:$0xff]
    %v633 = vld [vmem:[#allocation2 + $0x11c8] sm:$0xff]
    %v634 = vld [vmem:[#allocation2 + $0x11d0] sm:$0xff]
    %v635 = vld [vmem:[#allocation2 + $0x11d8] sm:$0xff]
    %v636 = vld [vmem:[#allocation2 + $0x11e0] sm:$0xff]
    %v637 = vld [vmem:[#allocation2 + $0x11e8] sm:$0xff]
    %v638 = vld [vmem:[#allocation2 + $0x11f0] sm:$0xff]
    %v639 = vld [vmem:[#allocation2 + $0x11f8] sm:$0xff]
    %v640 = vld [vmem:[#allocation2 + $0x1200] sm:$0xff]
    %v641 = vld [vmem:[#allocation2 + $0x1208] sm:$0xff]
    %v642 = vld [vmem:[#allocation2 + $0x1210] sm:$0xff]
    %v643 = vld [vmem:[#allocation2 + $0x1218] sm:$0xff]
    %v644 = vld [vmem:[#allocation2 + $0x1220] sm:$0xff]
    %v645 = vld [vmem:[#allocation2 + $0x1228] sm:$0xff]
    %v646 = vld [vmem:[#allocation2 + $0x1230] sm:$0xff]
    %v647 = vld [vmem:[#allocation2 + $0x1238] sm:$0xff]
    %v648 = vld [vmem:[#allocation2 + $0x1240] sm:$0xff]
    %v649 = vld [vmem:[#allocation2 + $0x1248] sm:$0xff]
    %v650 = vld [vmem:[#allocation2 + $0x1250] sm:$0xff]
    %v651 = vld [vmem:[#allocation2 + $0x1258] sm:$0xff]
    %v652 = vld [vmem:[#allocation2 + $0x1260] sm:$0xff]
    %v653 = vld [vmem:[#allocation2 + $0x1268] sm:$0xff]
    %v654 = vld [vmem:[#allocation2 + $0x1270] sm:$0xff]
    %v655 = vld [vmem:[#allocation2 + $0x1278] sm:$0xff]
    %v656 = vld [vmem:[#allocation2 + $0x1280] sm:$0xff]
    %v657 = vld [vmem:[#allocation2 + $0x1288] sm:$0xff]
    %v658 = vld [vmem:[#allocation2 + $0x1290] sm:$0xff]
    %v659 = vld [vmem:[#allocation2 + $0x1298] sm:$0xff]
    %v660 = vld [vmem:[#allocation2 + $0x12a0] sm:$0xff]
    %v661 = vld [vmem:[#allocation2 + $0x12a8] sm:$0xff]
    %v662 = vld [vmem:[#allocation2 + $0x12b0] sm:$0xff]
    %v663 = vld [vmem:[#allocation2 + $0x12b8] sm:$0xff]
    %v664 = vld [vmem:[#allocation2 + $0x12c0] sm:$0xff]
    %v665 = vld [vmem:[#allocation2 + $0x12c8] sm:$0xff]
    %v666 = vld [vmem:[#allocation2 + $0x12d0] sm:$0xff]
    %v667 = vld [vmem:[#allocation2 + $0x12d8] sm:$0xff]
    %v668 = vld [vmem:[#allocation2 + $0x12e0] sm:$0xff]
    %v669 = vld [vmem:[#allocation2 + $0x12e8] sm:$0xff]
    %v670 = vld [vmem:[#allocation2 + $0x12f0] sm:$0xff]
    %v671 = vld [vmem:[#allocation2 + $0x12f8] sm:$0xff]
    %v672 = vld [vmem:[#allocation2 + $0x1300] sm:$0xff]
    %v673 = vld [vmem:[#allocation2 + $0x1308] sm:$0xff]
    %v674 = vld [vmem:[#allocation2 + $0x1310] sm:$0xff]
    %v675 = vld [vmem:[#allocation2 + $0x1318] sm:$0xff]
    %v676 = vld [vmem:[#allocation2 + $0x1320] sm:$0xff]
    %v677 = vld [vmem:[#allocation2 + $0x1328] sm:$0xff]
    %v678 = vld [vmem:[#allocation2 + $0x1330] sm:$0xff]
    %v679 = vld [vmem:[#allocation2 + $0x1338] sm:$0xff]
    %v680 = vld [vmem:[#allocation2 + $0x1340] sm:$0xff]
    %v681 = vld [vmem:[#allocation2 + $0x1348] sm:$0xff]
    %v682 = vld [vmem:[#allocation2 + $0x1350] sm:$0xff]
    %v683 = vld [vmem:[#allocation2 + $0x1358] sm:$0xff]
    %v684 = vld [vmem:[#allocation2 + $0x1360] sm:$0xff]
    %v685 = vld [vmem:[#allocation2 + $0x1368] sm:$0xff]
    %v686 = vld [vmem:[#allocation2 + $0x1370] sm:$0xff]
    %v687 = vld [vmem:[#allocation2 + $0x1378] sm:$0xff]
    %v688 = vld [vmem:[#allocation2 + $0x1380] sm:$0xff]
    %v689 = vld [vmem:[#allocation2 + $0x1388] sm:$0xff]
    %v690 = vld [vmem:[#allocation2 + $0x1390] sm:$0xff]
    %v691 = vld [vmem:[#allocation2 + $0x1398] sm:$0xff]
    %v692 = vld [vmem:[#allocation2 + $0x13a0] sm:$0xff]
    %v693 = vld [vmem:[#allocation2 + $0x13a8] sm:$0xff]
    %v694 = vld [vmem:[#allocation2 + $0x13b0] sm:$0xff]
    %v695 = vld [vmem:[#allocation2 + $0x13b8] sm:$0xff]
    %v696 = vld [vmem:[#allocation2 + $0x13c0] sm:$0xff]
    %v697 = vld [vmem:[#allocation2 + $0x13c8] sm:$0xff]
    %v698 = vld [vmem:[#allocation2 + $0x13d0] sm:$0xff]
    %v699 = vld [vmem:[#allocation2 + $0x13d8] sm:$0xff]
    %v700 = vld [vmem:[#allocation2 + $0x13e0] sm:$0xff]
    %v701 = vld [vmem:[#allocation2 + $0x13e8] sm:$0xff]
    %v702 = vld [vmem:[#allocation2 + $0x13f0] sm:$0xff]
    %v703 = vld [vmem:[#allocation2 + $0x13f8] sm:$0xff]
    %v704 = vld [vmem:[#allocation2 + $0x1400] sm:$0xff]
    %v705 = vld [vmem:[#allocation2 + $0x1408] sm:$0xff]
    %v706 = vld [vmem:[#allocation2 + $0x1410] sm:$0xff]
    %v707 = vld [vmem:[#allocation2 + $0x1418] sm:$0xff]
    %v708 = vld [vmem:[#allocation2 + $0x1420] sm:$0xff]
    %v709 = vld [vmem:[#allocation2 + $0x1428] sm:$0xff]
    %v710 = vld [vmem:[#allocation2 + $0x1430] sm:$0xff]
    %v711 = vld [vmem:[#allocation2 + $0x1438] sm:$0xff]
    %v712 = vld [vmem:[#allocation2 + $0x1440] sm:$0xff]
    %v713 = vld [vmem:[#allocation2 + $0x1448] sm:$0xff]
    %v714 = vld [vmem:[#allocation2 + $0x1450] sm:$0xff]
    %v715 = vld [vmem:[#allocation2 + $0x1458] sm:$0xff]
    %v716 = vld [vmem:[#allocation2 + $0x1460] sm:$0xff]
    %v717 = vld [vmem:[#allocation2 + $0x1468] sm:$0xff]
    %v718 = vld [vmem:[#allocation2 + $0x1470] sm:$0xff]
    %v719 = vld [vmem:[#allocation2 + $0x1478] sm:$0xff]
    %v720 = vld [vmem:[#allocation2 + $0x1480] sm:$0xff]
    %v721 = vld [vmem:[#allocation2 + $0x1488] sm:$0xff]
    %v722 = vld [vmem:[#allocation2 + $0x1490] sm:$0xff]
    %v723 = vld [vmem:[#allocation2 + $0x1498] sm:$0xff]
    %v724 = vld [vmem:[#allocation2 + $0x14a0] sm:$0xff]
    %v725 = vld [vmem:[#allocation2 + $0x14a8] sm:$0xff]
    %v726 = vld [vmem:[#allocation2 + $0x14b0] sm:$0xff]
    %v727 = vld [vmem:[#allocation2 + $0x14b8] sm:$0xff]
    %v728 = vld [vmem:[#allocation2 + $0x14c0] sm:$0xff]
    %v729 = vld [vmem:[#allocation2 + $0x14c8] sm:$0xff]
    %v730 = vld [vmem:[#allocation2 + $0x14d0] sm:$0xff]
    %v731 = vld [vmem:[#allocation2 + $0x14d8] sm:$0xff]
    %v732 = vld [vmem:[#allocation2 + $0x14e0] sm:$0xff]
    %v733 = vld [vmem:[#allocation2 + $0x14e8] sm:$0xff]
    %v734 = vld [vmem:[#allocation2 + $0x14f0] sm:$0xff]
    %v735 = vld [vmem:[#allocation2 + $0x14f8] sm:$0xff]
    %v736 = vld [vmem:[#allocation2 + $0x1500] sm:$0xff]
    %v737 = vld [vmem:[#allocation2 + $0x1508] sm:$0xff]
    %v738 = vld [vmem:[#allocation2 + $0x1510] sm:$0xff]
    %v739 = vld [vmem:[#allocation2 + $0x1518] sm:$0xff]
    %v740 = vld [vmem:[#allocation2 + $0x1520] sm:$0xff]
    %v741 = vld [vmem:[#allocation2 + $0x1528] sm:$0xff]
    %v742 = vld [vmem:[#allocation2 + $0x1530] sm:$0xff]
    %v743 = vld [vmem:[#allocation2 + $0x1538] sm:$0xff]
    %v744 = vld [vmem:[#allocation2 + $0x1540] sm:$0xff]
    %v745 = vld [vmem:[#allocation2 + $0x1548] sm:$0xff]
    %v746 = vld [vmem:[#allocation2 + $0x1550] sm:$0xff]
    %v747 = vld [vmem:[#allocation2 + $0x1558] sm:$0xff]
    %v748 = vld [vmem:[#allocation2 + $0x1560] sm:$0xff]
    %v749 = vld [vmem:[#allocation2 + $0x1568] sm:$0xff]
    %v750 = vld [vmem:[#allocation2 + $0x1570] sm:$0xff]
    %v751 = vld [vmem:[#allocation2 + $0x1578] sm:$0xff]
    %v752 = vld [vmem:[#allocation2 + $0x1580] sm:$0xff]
    %v753 = vld [vmem:[#allocation2 + $0x1588] sm:$0xff]
    %v754 = vld [vmem:[#allocation2 + $0x1590] sm:$0xff]
    %v755 = vld [vmem:[#allocation2 + $0x1598] sm:$0xff]
    %v756 = vld [vmem:[#allocation2 + $0x15a0] sm:$0xff]
    %v757 = vld [vmem:[#allocation2 + $0x15a8] sm:$0xff]
    %v758 = vld [vmem:[#allocation2 + $0x15b0] sm:$0xff]
    %v759 = vld [vmem:[#allocation2 + $0x15b8] sm:$0xff]
    %v760 = vld [vmem:[#allocation2 + $0x15c0] sm:$0xff]
    %v761 = vld [vmem:[#allocation2 + $0x15c8] sm:$0xff]
    %v762 = vld [vmem:[#allocation2 + $0x15d0] sm:$0xff]
    %v763 = vld [vmem:[#allocation2 + $0x15d8] sm:$0xff]
    %v764 = vld [vmem:[#allocation2 + $0x15e0] sm:$0xff]
    %v765 = vld [vmem:[#allocation2 + $0x15e8] sm:$0xff]
    %v766 = vld [vmem:[#allocation2 + $0x15f0] sm:$0xff]
    %v767 = vld [vmem:[#allocation2 + $0x15f8] sm:$0xff]
    %v768 = vld [vmem:[#allocation2 + $0x1600] sm:$0xff]
    %v769 = vld [vmem:[#allocation2 + $0x1608] sm:$0xff]
    %v770 = vld [vmem:[#allocation2 + $0x1610] sm:$0xff]
    %v771 = vld [vmem:[#allocation2 + $0x1618] sm:$0xff]
    %v772 = vld [vmem:[#allocation2 + $0x1620] sm:$0xff]
    %v773 = vld [vmem:[#allocation2 + $0x1628] sm:$0xff]
    %v774 = vld [vmem:[#allocation2 + $0x1630] sm:$0xff]
    %v775 = vld [vmem:[#allocation2 + $0x1638] sm:$0xff]
    %v776 = vld [vmem:[#allocation2 + $0x1640] sm:$0xff]
    %v777 = vld [vmem:[#allocation2 + $0x1648] sm:$0xff]
    %v778 = vld [vmem:[#allocation2 + $0x1650] sm:$0xff]
    %v779 = vld [vmem:[#allocation2 + $0x1658] sm:$0xff]
    %v780 = vld [vmem:[#allocation2 + $0x1660] sm:$0xff]
    %v781 = vld [vmem:[#allocation2 + $0x1668] sm:$0xff]
    %v782 = vld [vmem:[#allocation2 + $0x1670] sm:$0xff]
    %v783 = vld [vmem:[#allocation2 + $0x1678] sm:$0xff]
    %v784 = vld [vmem:[#allocation2 + $0x1680] sm:$0xff]
    %v785 = vld [vmem:[#allocation2 + $0x1688] sm:$0xff]
    %v786 = vld [vmem:[#allocation2 + $0x1690] sm:$0xff]
    %v787 = vld [vmem:[#allocation2 + $0x1698] sm:$0xff]
    %v788 = vld [vmem:[#allocation2 + $0x16a0] sm:$0xff]
    %v789 = vld [vmem:[#allocation2 + $0x16a8] sm:$0xff]
    %v790 = vld [vmem:[#allocation2 + $0x16b0] sm:$0xff]
    %v791 = vld [vmem:[#allocation2 + $0x16b8] sm:$0xff]
    %v792 = vld [vmem:[#allocation2 + $0x16c0] sm:$0xff]
    %v793 = vld [vmem:[#allocation2 + $0x16c8] sm:$0xff]
    %v794 = vld [vmem:[#allocation2 + $0x16d0] sm:$0xff]
    %v795 = vld [vmem:[#allocation2 + $0x16d8] sm:$0xff]
    %v796 = vld [vmem:[#allocation2 + $0x16e0] sm:$0xff]
    %v797 = vld [vmem:[#allocation2 + $0x16e8] sm:$0xff]
    %v798 = vld [vmem:[#allocation2 + $0x16f0] sm:$0xff]
    %v799 = vld [vmem:[#allocation2 + $0x16f8] sm:$0xff]
    %v800 = vld [vmem:[#allocation2 + $0x1700] sm:$0xff]
    %v801 = vld [vmem:[#allocation2 + $0x1708] sm:$0xff]
    %v802 = vld [vmem:[#allocation2 + $0x1710] sm:$0xff]
    %v803 = vld [vmem:[#allocation2 + $0x1718] sm:$0xff]
    %v804 = vld [vmem:[#allocation2 + $0x1720] sm:$0xff]
    %v805 = vld [vmem:[#allocation2 + $0x1728] sm:$0xff]
    %v806 = vld [vmem:[#allocation2 + $0x1730] sm:$0xff]
    %v807 = vld [vmem:[#allocation2 + $0x1738] sm:$0xff]
    %v808 = vld [vmem:[#allocation2 + $0x1740] sm:$0xff]
    %v809 = vld [vmem:[#allocation2 + $0x1748] sm:$0xff]
    %v810 = vld [vmem:[#allocation2 + $0x1750] sm:$0xff]
    %v811 = vld [vmem:[#allocation2 + $0x1758] sm:$0xff]
    %v812 = vld [vmem:[#allocation2 + $0x1760] sm:$0xff]
    %v813 = vld [vmem:[#allocation2 + $0x1768] sm:$0xff]
    %v814 = vld [vmem:[#allocation2 + $0x1770] sm:$0xff]
    %v815 = vld [vmem:[#allocation2 + $0x1778] sm:$0xff]
    %v816 = vld [vmem:[#allocation2 + $0x1780] sm:$0xff]
    %v817 = vld [vmem:[#allocation2 + $0x1788] sm:$0xff]
    %v818 = vld [vmem:[#allocation2 + $0x1790] sm:$0xff]
    %v819 = vld [vmem:[#allocation2 + $0x1798] sm:$0xff]
    %v820 = vld [vmem:[#allocation2 + $0x17a0] sm:$0xff]
    %v821 = vld [vmem:[#allocation2 + $0x17a8] sm:$0xff]
    %v822 = vld [vmem:[#allocation2 + $0x17b0] sm:$0xff]
    %v823 = vld [vmem:[#allocation2 + $0x17b8] sm:$0xff]
    %v824 = vld [vmem:[#allocation2 + $0x17c0] sm:$0xff]
    %v825 = vld [vmem:[#allocation2 + $0x17c8] sm:$0xff]
    %v826 = vld [vmem:[#allocation2 + $0x17d0] sm:$0xff]
    %v827 = vld [vmem:[#allocation2 + $0x17d8] sm:$0xff]
    %v828 = vld [vmem:[#allocation2 + $0x17e0] sm:$0xff]
    %v829 = vld [vmem:[#allocation2 + $0x17e8] sm:$0xff]
    %v830 = vld [vmem:[#allocation2 + $0x17f0] sm:$0xff]
    %v831 = vld [vmem:[#allocation2 + $0x17f8] sm:$0xff]
    %v832 = vld [vmem:[#allocation5] sm:$0x3]
    %v834 = vlaneseq
    %v835 = vshrl.u32 %v834, 7
    %v836 = vsub.s32 0, %v835
    %v837 = vrot.slane %v832, %v836
    %v838 = vlaneseq
    %v839 = vshrl.u32 %v838, 7
    %v840 = vsub.s32 1, %v839
    %v841 = vrot.slane %v832, %v840
    %v850 = vcombine.high %v58, %v58
    %v852 = vunpack.c.l.s4 1966171168
    %v853 = vunpack.c.0.s8 %v852
    %v854 = vlaneseq
    %v855 = vshrl.u32 %v854, 7
    %v856 = vsub.s32 %v853, %v855
    %v857 = vrot.slane %v58, %v856
    %v859 = vunpack.c.l.s4 1966171168
    %v860 = vunpack.c.0.s8 %v859
    %v861 = vlaneseq
    %v862 = vshrl.u32 %v861, 7
    %v863 = vsub.s32 %v860, %v862
    %v864 = vrot.slane %v850, %v863
    %v865 = vcombine.high %v857, %v857
    %v866 = vcombine.high %v864, %v864
    %v868 = vunpack.c.l.s4 1966171168
    %v869 = vunpack.c.0.s8 %v868
    %v870 = vlaneseq
    %v871 = vshrl.u32 %v870, 7
    %v872 = vsub.s32 %v869, %v871
    %v873 = vrot.slane %v857, %v872
    %v875 = vunpack.c.l.s4 1966171168
    %v876 = vunpack.c.0.s8 %v875
    %v877 = vlaneseq
    %v878 = vshrl.u32 %v877, 7
    %v879 = vsub.s32 %v876, %v878
    %v880 = vrot.slane %v864, %v879
    %v882 = vunpack.c.l.s4 1966171168
    %v883 = vunpack.c.0.s8 %v882
    %v884 = vlaneseq
    %v885 = vshrl.u32 %v884, 7
    %v886 = vsub.s32 %v883, %v885
    %v887 = vrot.slane %v865, %v886
    %v889 = vunpack.c.l.s4 1966171168
    %v890 = vunpack.c.0.s8 %v889
    %v891 = vlaneseq
    %v892 = vshrl.u32 %v891, 7
    %v893 = vsub.s32 %v890, %v892
    %v894 = vrot.slane %v866, %v893
    %v895 = vcombine.high %v873, %v873
    %v896 = vcombine.high %v880, %v880
    %v897 = vcombine.high %v887, %v887
    %v898 = vcombine.high %v894, %v894
    %v899 = vcombine.high %v59, %v59
    %v901 = vunpack.c.l.s4 1966171168
    %v902 = vunpack.c.0.s8 %v901
    %v903 = vlaneseq
    %v904 = vshrl.u32 %v903, 7
    %v905 = vsub.s32 %v902, %v904
    %v906 = vrot.slane %v59, %v905
    %v908 = vunpack.c.l.s4 1966171168
    %v909 = vunpack.c.0.s8 %v908
    %v910 = vlaneseq
    %v911 = vshrl.u32 %v910, 7
    %v912 = vsub.s32 %v909, %v911
    %v913 = vrot.slane %v899, %v912
    %v914 = vcombine.high %v906, %v906
    %v915 = vcombine.high %v913, %v913
    %v917 = vunpack.c.l.s4 1966171168
    %v918 = vunpack.c.0.s8 %v917
    %v919 = vlaneseq
    %v920 = vshrl.u32 %v919, 7
    %v921 = vsub.s32 %v918, %v920
    %v922 = vrot.slane %v906, %v921
    %v924 = vunpack.c.l.s4 1966171168
    %v925 = vunpack.c.0.s8 %v924
    %v926 = vlaneseq
    %v927 = vshrl.u32 %v926, 7
    %v928 = vsub.s32 %v925, %v927
    %v929 = vrot.slane %v913, %v928
    %v931 = vunpack.c.l.s4 1966171168
    %v932 = vunpack.c.0.s8 %v931
    %v933 = vlaneseq
    %v934 = vshrl.u32 %v933, 7
    %v935 = vsub.s32 %v932, %v934
    %v936 = vrot.slane %v914, %v935
    %v938 = vunpack.c.l.s4 1966171168
    %v939 = vunpack.c.0.s8 %v938
    %v940 = vlaneseq
    %v941 = vshrl.u32 %v940, 7
    %v942 = vsub.s32 %v939, %v941
    %v943 = vrot.slane %v915, %v942
    %v944 = vcombine.high %v922, %v922
    %v945 = vcombine.high %v929, %v929
    %v946 = vcombine.high %v936, %v936
    %v947 = vcombine.high %v943, %v943
    %v948 = vcombine.high %v60, %v60
    %v950 = vunpack.c.l.s4 1966171168
    %v951 = vunpack.c.0.s8 %v950
    %v952 = vlaneseq
    %v953 = vshrl.u32 %v952, 7
    %v954 = vsub.s32 %v951, %v953
    %v955 = vrot.slane %v60, %v954
    %v957 = vunpack.c.l.s4 1966171168
    %v958 = vunpack.c.0.s8 %v957
    %v959 = vlaneseq
    %v960 = vshrl.u32 %v959, 7
    %v961 = vsub.s32 %v958, %v960
    %v962 = vrot.slane %v948, %v961
    %v963 = vcombine.high %v955, %v955
    %v964 = vcombine.high %v962, %v962
    %v966 = vunpack.c.l.s4 1966171168
    %v967 = vunpack.c.0.s8 %v966
    %v968 = vlaneseq
    %v969 = vshrl.u32 %v968, 7
    %v970 = vsub.s32 %v967, %v969
    %v971 = vrot.slane %v955, %v970
    %v973 = vunpack.c.l.s4 1966171168
    %v974 = vunpack.c.0.s8 %v973
    %v975 = vlaneseq
    %v976 = vshrl.u32 %v975, 7
    %v977 = vsub.s32 %v974, %v976
    %v978 = vrot.slane %v962, %v977
    %v980 = vunpack.c.l.s4 1966171168
    %v981 = vunpack.c.0.s8 %v980
    %v982 = vlaneseq
    %v983 = vshrl.u32 %v982, 7
    %v984 = vsub.s32 %v981, %v983
    %v985 = vrot.slane %v963, %v984
    %v987 = vunpack.c.l.s4 1966171168
    %v988 = vunpack.c.0.s8 %v987
    %v989 = vlaneseq
    %v990 = vshrl.u32 %v989, 7
    %v991 = vsub.s32 %v988, %v990
    %v992 = vrot.slane %v964, %v991
    %v993 = vcombine.high %v971, %v971
    %v994 = vcombine.high %v978, %v978
    %v995 = vcombine.high %v985, %v985
    %v996 = vcombine.high %v992, %v992
    %v997 = vcombine.high %v61, %v61
    %v999 = vunpack.c.l.s4 1966171168
    %v1000 = vunpack.c.0.s8 %v999
    %v1001 = vlaneseq
    %v1002 = vshrl.u32 %v1001, 7
    %v1003 = vsub.s32 %v1000, %v1002
    %v1004 = vrot.slane %v61, %v1003
    %v1006 = vunpack.c.l.s4 1966171168
    %v1007 = vunpack.c.0.s8 %v1006
    %v1008 = vlaneseq
    %v1009 = vshrl.u32 %v1008, 7
    %v1010 = vsub.s32 %v1007, %v1009
    %v1011 = vrot.slane %v997, %v1010
    %v1012 = vcombine.high %v1004, %v1004
    %v1013 = vcombine.high %v1011, %v1011
    %v1015 = vunpack.c.l.s4 1966171168
    %v1016 = vunpack.c.0.s8 %v1015
    %v1017 = vlaneseq
    %v1018 = vshrl.u32 %v1017, 7
    %v1019 = vsub.s32 %v1016, %v1018
    %v1020 = vrot.slane %v1004, %v1019
    %v1022 = vunpack.c.l.s4 1966171168
    %v1023 = vunpack.c.0.s8 %v1022
    %v1024 = vlaneseq
    %v1025 = vshrl.u32 %v1024, 7
    %v1026 = vsub.s32 %v1023, %v1025
    %v1027 = vrot.slane %v1011, %v1026
    %v1029 = vunpack.c.l.s4 1966171168
    %v1030 = vunpack.c.0.s8 %v1029
    %v1031 = vlaneseq
    %v1032 = vshrl.u32 %v1031, 7
    %v1033 = vsub.s32 %v1030, %v1032
    %v1034 = vrot.slane %v1012, %v1033
    %v1036 = vunpack.c.l.s4 1966171168
    %v1037 = vunpack.c.0.s8 %v1036
    %v1038 = vlaneseq
    %v1039 = vshrl.u32 %v1038, 7
    %v1040 = vsub.s32 %v1037, %v1039
    %v1041 = vrot.slane %v1013, %v1040
    %v1042 = vcombine.high %v1020, %v1020
    %v1043 = vcombine.high %v1027, %v1027
    %v1044 = vcombine.high %v1034, %v1034
    %v1045 = vcombine.high %v1041, %v1041
    %v1046 = vcombine.high %v62, %v62
    %v1048 = vunpack.c.l.s4 1966171168
    %v1049 = vunpack.c.0.s8 %v1048
    %v1050 = vlaneseq
    %v1051 = vshrl.u32 %v1050, 7
    %v1052 = vsub.s32 %v1049, %v1051
    %v1053 = vrot.slane %v62, %v1052
    %v1055 = vunpack.c.l.s4 1966171168
    %v1056 = vunpack.c.0.s8 %v1055
    %v1057 = vlaneseq
    %v1058 = vshrl.u32 %v1057, 7
    %v1059 = vsub.s32 %v1056, %v1058
    %v1060 = vrot.slane %v1046, %v1059
    %v1061 = vcombine.high %v1053, %v1053
    %v1062 = vcombine.high %v1060, %v1060
    %v1064 = vunpack.c.l.s4 1966171168
    %v1065 = vunpack.c.0.s8 %v1064
    %v1066 = vlaneseq
    %v1067 = vshrl.u32 %v1066, 7
    %v1068 = vsub.s32 %v1065, %v1067
    %v1069 = vrot.slane %v1053, %v1068
    %v1071 = vunpack.c.l.s4 1966171168
    %v1072 = vunpack.c.0.s8 %v1071
    %v1073 = vlaneseq
    %v1074 = vshrl.u32 %v1073, 7
    %v1075 = vsub.s32 %v1072, %v1074
    %v1076 = vrot.slane %v1060, %v1075
    %v1078 = vunpack.c.l.s4 1966171168
    %v1079 = vunpack.c.0.s8 %v1078
    %v1080 = vlaneseq
    %v1081 = vshrl.u32 %v1080, 7
    %v1082 = vsub.s32 %v1079, %v1081
    %v1083 = vrot.slane %v1061, %v1082
    %v1085 = vunpack.c.l.s4 1966171168
    %v1086 = vunpack.c.0.s8 %v1085
    %v1087 = vlaneseq
    %v1088 = vshrl.u32 %v1087, 7
    %v1089 = vsub.s32 %v1086, %v1088
    %v1090 = vrot.slane %v1062, %v1089
    %v1091 = vcombine.high %v1069, %v1069
    %v1092 = vcombine.high %v1076, %v1076
    %v1093 = vcombine.high %v1083, %v1083
    %v1094 = vcombine.high %v1090, %v1090
    %v1095 = vcombine.high %v63, %v63
    %v1097 = vunpack.c.l.s4 1966171168
    %v1098 = vunpack.c.0.s8 %v1097
    %v1099 = vlaneseq
    %v1100 = vshrl.u32 %v1099, 7
    %v1101 = vsub.s32 %v1098, %v1100
    %v1102 = vrot.slane %v63, %v1101
    %v1104 = vunpack.c.l.s4 1966171168
    %v1105 = vunpack.c.0.s8 %v1104
    %v1106 = vlaneseq
    %v1107 = vshrl.u32 %v1106, 7
    %v1108 = vsub.s32 %v1105, %v1107
    %v1109 = vrot.slane %v1095, %v1108
    %v1110 = vcombine.high %v1102, %v1102
    %v1111 = vcombine.high %v1109, %v1109
    %v1113 = vunpack.c.l.s4 1966171168
    %v1114 = vunpack.c.0.s8 %v1113
    %v1115 = vlaneseq
    %v1116 = vshrl.u32 %v1115, 7
    %v1117 = vsub.s32 %v1114, %v1116
    %v1118 = vrot.slane %v1102, %v1117
    %v1120 = vunpack.c.l.s4 1966171168
    %v1121 = vunpack.c.0.s8 %v1120
    %v1122 = vlaneseq
    %v1123 = vshrl.u32 %v1122, 7
    %v1124 = vsub.s32 %v1121, %v1123
    %v1125 = vrot.slane %v1109, %v1124
    %v1127 = vunpack.c.l.s4 1966171168
    %v1128 = vunpack.c.0.s8 %v1127
    %v1129 = vlaneseq
    %v1130 = vshrl.u32 %v1129, 7
    %v1131 = vsub.s32 %v1128, %v1130
    %v1132 = vrot.slane %v1110, %v1131
    %v1134 = vunpack.c.l.s4 1966171168
    %v1135 = vunpack.c.0.s8 %v1134
    %v1136 = vlaneseq
    %v1137 = vshrl.u32 %v1136, 7
    %v1138 = vsub.s32 %v1135, %v1137
    %v1139 = vrot.slane %v1111, %v1138
    %v1140 = vcombine.high %v1118, %v1118
    %v1141 = vcombine.high %v1125, %v1125
    %v1142 = vcombine.high %v1132, %v1132
    %v1143 = vcombine.high %v1139, %v1139
    %v1960 = vunpack.c.l.b16 %v64
    %v1961 = vunpack.c.h.b16 %v64
    %v1962 = vunpack.c.l.b16 %v65
    %v1963 = vunpack.c.h.b16 %v65
    %v1964 = vunpack.c.l.b16 %v66
    %v1965 = vunpack.c.h.b16 %v66
    %v1966 = vunpack.c.l.b16 %v67
    %v1967 = vunpack.c.h.b16 %v67
    %v1968 = vunpack.c.l.b16 %v68
    %v1969 = vunpack.c.h.b16 %v68
    %v1970 = vunpack.c.l.b16 %v69
    %v1971 = vunpack.c.h.b16 %v69
    %v1972 = vunpack.c.l.b16 %v70
    %v1973 = vunpack.c.h.b16 %v70
    %v1974 = vunpack.c.l.b16 %v71
    %v1975 = vunpack.c.h.b16 %v71
    %v1976 = vunpack.c.l.b16 %v72
    %v1977 = vunpack.c.h.b16 %v72
    %v1978 = vunpack.c.l.b16 %v73
    %v1979 = vunpack.c.h.b16 %v73
    %v1980 = vunpack.c.l.b16 %v74
    %v1981 = vunpack.c.h.b16 %v74
    %v1982 = vunpack.c.l.b16 %v75
    %v1983 = vunpack.c.h.b16 %v75
    %v1984 = vunpack.c.l.b16 %v76
    %v1985 = vunpack.c.h.b16 %v76
    %v1986 = vunpack.c.l.b16 %v77
    %v1987 = vunpack.c.h.b16 %v77
    %v1988 = vunpack.c.l.b16 %v78
    %v1989 = vunpack.c.h.b16 %v78
    %v1990 = vunpack.c.l.b16 %v79
    %v1991 = vunpack.c.h.b16 %v79
    %v1992 = vunpack.c.l.b16 %v80
    %v1993 = vunpack.c.h.b16 %v80
    %v1994 = vunpack.c.l.b16 %v81
    %v1995 = vunpack.c.h.b16 %v81
    %v1996 = vunpack.c.l.b16 %v82
    %v1997 = vunpack.c.h.b16 %v82
    %v1998 = vunpack.c.l.b16 %v83
    %v1999 = vunpack.c.h.b16 %v83
    %v2000 = vunpack.c.l.b16 %v84
    %v2001 = vunpack.c.h.b16 %v84
    %v2002 = vunpack.c.l.b16 %v85
    %v2003 = vunpack.c.h.b16 %v85
    %v2004 = vunpack.c.l.b16 %v86
    %v2005 = vunpack.c.h.b16 %v86
    %v2006 = vunpack.c.l.b16 %v87
    %v2007 = vunpack.c.h.b16 %v87
    %v2008 = vunpack.c.l.b16 %v88
    %v2009 = vunpack.c.h.b16 %v88
    %v2010 = vunpack.c.l.b16 %v89
    %v2011 = vunpack.c.h.b16 %v89
    %v2012 = vunpack.c.l.b16 %v90
    %v2013 = vunpack.c.h.b16 %v90
    %v2014 = vunpack.c.l.b16 %v91
    %v2015 = vunpack.c.h.b16 %v91
    %v2016 = vunpack.c.l.b16 %v92
    %v2017 = vunpack.c.h.b16 %v92
    %v2018 = vunpack.c.l.b16 %v93
    %v2019 = vunpack.c.h.b16 %v93
    %v2020 = vunpack.c.l.b16 %v94
    %v2021 = vunpack.c.h.b16 %v94
    %v2022 = vunpack.c.l.b16 %v95
    %v2023 = vunpack.c.h.b16 %v95
    %v2024 = vunpack.c.l.b16 %v96
    %v2025 = vunpack.c.h.b16 %v96
    %v2026 = vunpack.c.l.b16 %v97
    %v2027 = vunpack.c.h.b16 %v97
    %v2028 = vunpack.c.l.b16 %v98
    %v2029 = vunpack.c.h.b16 %v98
    %v2030 = vunpack.c.l.b16 %v99
    %v2031 = vunpack.c.h.b16 %v99
    %v2032 = vunpack.c.l.b16 %v100
    %v2033 = vunpack.c.h.b16 %v100
    %v2034 = vunpack.c.l.b16 %v101
    %v2035 = vunpack.c.h.b16 %v101
    %v2036 = vunpack.c.l.b16 %v102
    %v2037 = vunpack.c.h.b16 %v102
    %v2038 = vunpack.c.l.b16 %v103
    %v2039 = vunpack.c.h.b16 %v103
    %v2040 = vunpack.c.l.b16 %v104
    %v2041 = vunpack.c.h.b16 %v104
    %v2042 = vunpack.c.l.b16 %v105
    %v2043 = vunpack.c.h.b16 %v105
    %v2044 = vunpack.c.l.b16 %v106
    %v2045 = vunpack.c.h.b16 %v106
    %v2046 = vunpack.c.l.b16 %v107
    %v2047 = vunpack.c.h.b16 %v107
    %v2048 = vunpack.c.l.b16 %v108
    %v2049 = vunpack.c.h.b16 %v108
    %v2050 = vunpack.c.l.b16 %v109
    %v2051 = vunpack.c.h.b16 %v109
    %v2052 = vunpack.c.l.b16 %v110
    %v2053 = vunpack.c.h.b16 %v110
    %v2054 = vunpack.c.l.b16 %v111
    %v2055 = vunpack.c.h.b16 %v111
    %v2056 = vunpack.c.l.b16 %v112
    %v2057 = vunpack.c.h.b16 %v112
    %v2058 = vunpack.c.l.b16 %v113
    %v2059 = vunpack.c.h.b16 %v113
    %v2060 = vunpack.c.l.b16 %v114
    %v2061 = vunpack.c.h.b16 %v114
    %v2062 = vunpack.c.l.b16 %v115
    %v2063 = vunpack.c.h.b16 %v115
    %v2064 = vunpack.c.l.b16 %v116
    %v2065 = vunpack.c.h.b16 %v116
    %v2066 = vunpack.c.l.b16 %v117
    %v2067 = vunpack.c.h.b16 %v117
    %v2068 = vunpack.c.l.b16 %v118
    %v2069 = vunpack.c.h.b16 %v118
    %v2070 = vunpack.c.l.b16 %v119
    %v2071 = vunpack.c.h.b16 %v119
    %v2072 = vunpack.c.l.b16 %v120
    %v2073 = vunpack.c.h.b16 %v120
    %v2074 = vunpack.c.l.b16 %v121
    %v2075 = vunpack.c.h.b16 %v121
    %v2076 = vunpack.c.l.b16 %v122
    %v2077 = vunpack.c.h.b16 %v122
    %v2078 = vunpack.c.l.b16 %v123
    %v2079 = vunpack.c.h.b16 %v123
    %v2080 = vunpack.c.l.b16 %v124
    %v2081 = vunpack.c.h.b16 %v124
    %v2082 = vunpack.c.l.b16 %v125
    %v2083 = vunpack.c.h.b16 %v125
    %v2084 = vunpack.c.l.b16 %v126
    %v2085 = vunpack.c.h.b16 %v126
    %v2086 = vunpack.c.l.b16 %v127
    %v2087 = vunpack.c.h.b16 %v127
    %v2088 = vunpack.c.l.b16 %v128
    %v2089 = vunpack.c.h.b16 %v128
    %v2090 = vunpack.c.l.b16 %v129
    %v2091 = vunpack.c.h.b16 %v129
    %v2092 = vunpack.c.l.b16 %v130
    %v2093 = vunpack.c.h.b16 %v130
    %v2094 = vunpack.c.l.b16 %v131
    %v2095 = vunpack.c.h.b16 %v131
    %v2096 = vunpack.c.l.b16 %v132
    %v2097 = vunpack.c.h.b16 %v132
    %v2098 = vunpack.c.l.b16 %v133
    %v2099 = vunpack.c.h.b16 %v133
    %v2100 = vunpack.c.l.b16 %v134
    %v2101 = vunpack.c.h.b16 %v134
    %v2102 = vunpack.c.l.b16 %v135
    %v2103 = vunpack.c.h.b16 %v135
    %v2104 = vunpack.c.l.b16 %v136
    %v2105 = vunpack.c.h.b16 %v136
    %v2106 = vunpack.c.l.b16 %v137
    %v2107 = vunpack.c.h.b16 %v137
    %v2108 = vunpack.c.l.b16 %v138
    %v2109 = vunpack.c.h.b16 %v138
    %v2110 = vunpack.c.l.b16 %v139
    %v2111 = vunpack.c.h.b16 %v139
    %v2112 = vunpack.c.l.b16 %v140
    %v2113 = vunpack.c.h.b16 %v140
    %v2114 = vunpack.c.l.b16 %v141
    %v2115 = vunpack.c.h.b16 %v141
    %v2116 = vunpack.c.l.b16 %v142
    %v2117 = vunpack.c.h.b16 %v142
    %v2118 = vunpack.c.l.b16 %v143
    %v2119 = vunpack.c.h.b16 %v143
    %v2120 = vunpack.c.l.b16 %v144
    %v2121 = vunpack.c.h.b16 %v144
    %v2122 = vunpack.c.l.b16 %v145
    %v2123 = vunpack.c.h.b16 %v145
    %v2124 = vunpack.c.l.b16 %v146
    %v2125 = vunpack.c.h.b16 %v146
    %v2126 = vunpack.c.l.b16 %v147
    %v2127 = vunpack.c.h.b16 %v147
    %v2128 = vunpack.c.l.b16 %v148
    %v2129 = vunpack.c.h.b16 %v148
    %v2130 = vunpack.c.l.b16 %v149
    %v2131 = vunpack.c.h.b16 %v149
    %v2132 = vunpack.c.l.b16 %v150
    %v2133 = vunpack.c.h.b16 %v150
    %v2134 = vunpack.c.l.b16 %v151
    %v2135 = vunpack.c.h.b16 %v151
    %v2136 = vunpack.c.l.b16 %v152
    %v2137 = vunpack.c.h.b16 %v152
    %v2138 = vunpack.c.l.b16 %v153
    %v2139 = vunpack.c.h.b16 %v153
    %v2140 = vunpack.c.l.b16 %v154
    %v2141 = vunpack.c.h.b16 %v154
    %v2142 = vunpack.c.l.b16 %v155
    %v2143 = vunpack.c.h.b16 %v155
    %v2144 = vunpack.c.l.b16 %v156
    %v2145 = vunpack.c.h.b16 %v156
    %v2146 = vunpack.c.l.b16 %v157
    %v2147 = vunpack.c.h.b16 %v157
    %v2148 = vunpack.c.l.b16 %v158
    %v2149 = vunpack.c.h.b16 %v158
    %v2150 = vunpack.c.l.b16 %v159
    %v2151 = vunpack.c.h.b16 %v159
    %v2152 = vunpack.c.l.b16 %v160
    %v2153 = vunpack.c.h.b16 %v160
    %v2154 = vunpack.c.l.b16 %v161
    %v2155 = vunpack.c.h.b16 %v161
    %v2156 = vunpack.c.l.b16 %v162
    %v2157 = vunpack.c.h.b16 %v162
    %v2158 = vunpack.c.l.b16 %v163
    %v2159 = vunpack.c.h.b16 %v163
    %v2160 = vunpack.c.l.b16 %v164
    %v2161 = vunpack.c.h.b16 %v164
    %v2162 = vunpack.c.l.b16 %v165
    %v2163 = vunpack.c.h.b16 %v165
    %v2164 = vunpack.c.l.b16 %v166
    %v2165 = vunpack.c.h.b16 %v166
    %v2166 = vunpack.c.l.b16 %v167
    %v2167 = vunpack.c.h.b16 %v167
    %v2168 = vunpack.c.l.b16 %v168
    %v2169 = vunpack.c.h.b16 %v168
    %v2170 = vunpack.c.l.b16 %v169
    %v2171 = vunpack.c.h.b16 %v169
    %v2172 = vunpack.c.l.b16 %v170
    %v2173 = vunpack.c.h.b16 %v170
    %v2174 = vunpack.c.l.b16 %v171
    %v2175 = vunpack.c.h.b16 %v171
    %v2176 = vunpack.c.l.b16 %v172
    %v2177 = vunpack.c.h.b16 %v172
    %v2178 = vunpack.c.l.b16 %v173
    %v2179 = vunpack.c.h.b16 %v173
    %v2180 = vunpack.c.l.b16 %v174
    %v2181 = vunpack.c.h.b16 %v174
    %v2182 = vunpack.c.l.b16 %v175
    %v2183 = vunpack.c.h.b16 %v175
    %v2184 = vunpack.c.l.b16 %v176
    %v2185 = vunpack.c.h.b16 %v176
    %v2186 = vunpack.c.l.b16 %v177
    %v2187 = vunpack.c.h.b16 %v177
    %v2188 = vunpack.c.l.b16 %v178
    %v2189 = vunpack.c.h.b16 %v178
    %v2190 = vunpack.c.l.b16 %v179
    %v2191 = vunpack.c.h.b16 %v179
    %v2192 = vunpack.c.l.b16 %v180
    %v2193 = vunpack.c.h.b16 %v180
    %v2194 = vunpack.c.l.b16 %v181
    %v2195 = vunpack.c.h.b16 %v181
    %v2196 = vunpack.c.l.b16 %v182
    %v2197 = vunpack.c.h.b16 %v182
    %v2198 = vunpack.c.l.b16 %v183
    %v2199 = vunpack.c.h.b16 %v183
    %v2200 = vunpack.c.l.b16 %v184
    %v2201 = vunpack.c.h.b16 %v184
    %v2202 = vunpack.c.l.b16 %v185
    %v2203 = vunpack.c.h.b16 %v185
    %v2204 = vunpack.c.l.b16 %v186
    %v2205 = vunpack.c.h.b16 %v186
    %v2206 = vunpack.c.l.b16 %v187
    %v2207 = vunpack.c.h.b16 %v187
    %v2208 = vunpack.c.l.b16 %v188
    %v2209 = vunpack.c.h.b16 %v188
    %v2210 = vunpack.c.l.b16 %v189
    %v2211 = vunpack.c.h.b16 %v189
    %v2212 = vunpack.c.l.b16 %v190
    %v2213 = vunpack.c.h.b16 %v190
    %v2214 = vunpack.c.l.b16 %v191
    %v2215 = vunpack.c.h.b16 %v191
    %v2216 = vunpack.c.l.b16 %v192
    %v2217 = vunpack.c.h.b16 %v192
    %v2218 = vunpack.c.l.b16 %v193
    %v2219 = vunpack.c.h.b16 %v193
    %v2220 = vunpack.c.l.b16 %v194
    %v2221 = vunpack.c.h.b16 %v194
    %v2222 = vunpack.c.l.b16 %v195
    %v2223 = vunpack.c.h.b16 %v195
    %v2224 = vunpack.c.l.b16 %v196
    %v2225 = vunpack.c.h.b16 %v196
    %v2226 = vunpack.c.l.b16 %v197
    %v2227 = vunpack.c.h.b16 %v197
    %v2228 = vunpack.c.l.b16 %v198
    %v2229 = vunpack.c.h.b16 %v198
    %v2230 = vunpack.c.l.b16 %v199
    %v2231 = vunpack.c.h.b16 %v199
    %v2232 = vunpack.c.l.b16 %v200
    %v2233 = vunpack.c.h.b16 %v200
    %v2234 = vunpack.c.l.b16 %v201
    %v2235 = vunpack.c.h.b16 %v201
    %v2236 = vunpack.c.l.b16 %v202
    %v2237 = vunpack.c.h.b16 %v202
    %v2238 = vunpack.c.l.b16 %v203
    %v2239 = vunpack.c.h.b16 %v203
    %v2240 = vunpack.c.l.b16 %v204
    %v2241 = vunpack.c.h.b16 %v204
    %v2242 = vunpack.c.l.b16 %v205
    %v2243 = vunpack.c.h.b16 %v205
    %v2244 = vunpack.c.l.b16 %v206
    %v2245 = vunpack.c.h.b16 %v206
    %v2246 = vunpack.c.l.b16 %v207
    %v2247 = vunpack.c.h.b16 %v207
    %v2248 = vunpack.c.l.b16 %v208
    %v2249 = vunpack.c.h.b16 %v208
    %v2250 = vunpack.c.l.b16 %v209
    %v2251 = vunpack.c.h.b16 %v209
    %v2252 = vunpack.c.l.b16 %v210
    %v2253 = vunpack.c.h.b16 %v210
    %v2254 = vunpack.c.l.b16 %v211
    %v2255 = vunpack.c.h.b16 %v211
    %v2256 = vunpack.c.l.b16 %v212
    %v2257 = vunpack.c.h.b16 %v212
    %v2258 = vunpack.c.l.b16 %v213
    %v2259 = vunpack.c.h.b16 %v213
    %v2260 = vunpack.c.l.b16 %v214
    %v2261 = vunpack.c.h.b16 %v214
    %v2262 = vunpack.c.l.b16 %v215
    %v2263 = vunpack.c.h.b16 %v215
    %v2264 = vunpack.c.l.b16 %v216
    %v2265 = vunpack.c.h.b16 %v216
    %v2266 = vunpack.c.l.b16 %v217
    %v2267 = vunpack.c.h.b16 %v217
    %v2268 = vunpack.c.l.b16 %v218
    %v2269 = vunpack.c.h.b16 %v218
    %v2270 = vunpack.c.l.b16 %v219
    %v2271 = vunpack.c.h.b16 %v219
    %v2272 = vunpack.c.l.b16 %v220
    %v2273 = vunpack.c.h.b16 %v220
    %v2274 = vunpack.c.l.b16 %v221
    %v2275 = vunpack.c.h.b16 %v221
    %v2276 = vunpack.c.l.b16 %v222
    %v2277 = vunpack.c.h.b16 %v222
    %v2278 = vunpack.c.l.b16 %v223
    %v2279 = vunpack.c.h.b16 %v223
    %v2280 = vunpack.c.l.b16 %v224
    %v2281 = vunpack.c.h.b16 %v224
    %v2282 = vunpack.c.l.b16 %v225
    %v2283 = vunpack.c.h.b16 %v225
    %v2284 = vunpack.c.l.b16 %v226
    %v2285 = vunpack.c.h.b16 %v226
    %v2286 = vunpack.c.l.b16 %v227
    %v2287 = vunpack.c.h.b16 %v227
    %v2288 = vunpack.c.l.b16 %v228
    %v2289 = vunpack.c.h.b16 %v228
    %v2290 = vunpack.c.l.b16 %v229
    %v2291 = vunpack.c.h.b16 %v229
    %v2292 = vunpack.c.l.b16 %v230
    %v2293 = vunpack.c.h.b16 %v230
    %v2294 = vunpack.c.l.b16 %v231
    %v2295 = vunpack.c.h.b16 %v231
    %v2296 = vunpack.c.l.b16 %v232
    %v2297 = vunpack.c.h.b16 %v232
    %v2298 = vunpack.c.l.b16 %v233
    %v2299 = vunpack.c.h.b16 %v233
    %v2300 = vunpack.c.l.b16 %v234
    %v2301 = vunpack.c.h.b16 %v234
    %v2302 = vunpack.c.l.b16 %v235
    %v2303 = vunpack.c.h.b16 %v235
    %v2304 = vunpack.c.l.b16 %v236
    %v2305 = vunpack.c.h.b16 %v236
    %v2306 = vunpack.c.l.b16 %v237
    %v2307 = vunpack.c.h.b16 %v237
    %v2308 = vunpack.c.l.b16 %v238
    %v2309 = vunpack.c.h.b16 %v238
    %v2310 = vunpack.c.l.b16 %v239
    %v2311 = vunpack.c.h.b16 %v239
    %v2312 = vunpack.c.l.b16 %v240
    %v2313 = vunpack.c.h.b16 %v240
    %v2314 = vunpack.c.l.b16 %v241
    %v2315 = vunpack.c.h.b16 %v241
    %v2316 = vunpack.c.l.b16 %v242
    %v2317 = vunpack.c.h.b16 %v242
    %v2318 = vunpack.c.l.b16 %v243
    %v2319 = vunpack.c.h.b16 %v243
    %v2320 = vunpack.c.l.b16 %v244
    %v2321 = vunpack.c.h.b16 %v244
    %v2322 = vunpack.c.l.b16 %v245
    %v2323 = vunpack.c.h.b16 %v245
    %v2324 = vunpack.c.l.b16 %v246
    %v2325 = vunpack.c.h.b16 %v246
    %v2326 = vunpack.c.l.b16 %v247
    %v2327 = vunpack.c.h.b16 %v247
    %v2328 = vunpack.c.l.b16 %v248
    %v2329 = vunpack.c.h.b16 %v248
    %v2330 = vunpack.c.l.b16 %v249
    %v2331 = vunpack.c.h.b16 %v249
    %v2332 = vunpack.c.l.b16 %v250
    %v2333 = vunpack.c.h.b16 %v250
    %v2334 = vunpack.c.l.b16 %v251
    %v2335 = vunpack.c.h.b16 %v251
    %v2336 = vunpack.c.l.b16 %v252
    %v2337 = vunpack.c.h.b16 %v252
    %v2338 = vunpack.c.l.b16 %v253
    %v2339 = vunpack.c.h.b16 %v253
    %v2340 = vunpack.c.l.b16 %v254
    %v2341 = vunpack.c.h.b16 %v254
    %v2342 = vunpack.c.l.b16 %v255
    %v2343 = vunpack.c.h.b16 %v255
    %v2344 = vunpack.c.l.b16 %v256
    %v2345 = vunpack.c.h.b16 %v256
    %v2346 = vunpack.c.l.b16 %v257
    %v2347 = vunpack.c.h.b16 %v257
    %v2348 = vunpack.c.l.b16 %v258
    %v2349 = vunpack.c.h.b16 %v258
    %v2350 = vunpack.c.l.b16 %v259
    %v2351 = vunpack.c.h.b16 %v259
    %v2352 = vunpack.c.l.b16 %v260
    %v2353 = vunpack.c.h.b16 %v260
    %v2354 = vunpack.c.l.b16 %v261
    %v2355 = vunpack.c.h.b16 %v261
    %v2356 = vunpack.c.l.b16 %v262
    %v2357 = vunpack.c.h.b16 %v262
    %v2358 = vunpack.c.l.b16 %v263
    %v2359 = vunpack.c.h.b16 %v263
    %v2360 = vunpack.c.l.b16 %v264
    %v2361 = vunpack.c.h.b16 %v264
    %v2362 = vunpack.c.l.b16 %v265
    %v2363 = vunpack.c.h.b16 %v265
    %v2364 = vunpack.c.l.b16 %v266
    %v2365 = vunpack.c.h.b16 %v266
    %v2366 = vunpack.c.l.b16 %v267
    %v2367 = vunpack.c.h.b16 %v267
    %v2368 = vunpack.c.l.b16 %v268
    %v2369 = vunpack.c.h.b16 %v268
    %v2370 = vunpack.c.l.b16 %v269
    %v2371 = vunpack.c.h.b16 %v269
    %v2372 = vunpack.c.l.b16 %v270
    %v2373 = vunpack.c.h.b16 %v270
    %v2374 = vunpack.c.l.b16 %v271
    %v2375 = vunpack.c.h.b16 %v271
    %v2376 = vunpack.c.l.b16 %v272
    %v2377 = vunpack.c.h.b16 %v272
    %v2378 = vunpack.c.l.b16 %v273
    %v2379 = vunpack.c.h.b16 %v273
    %v2380 = vunpack.c.l.b16 %v274
    %v2381 = vunpack.c.h.b16 %v274
    %v2382 = vunpack.c.l.b16 %v275
    %v2383 = vunpack.c.h.b16 %v275
    %v2384 = vunpack.c.l.b16 %v276
    %v2385 = vunpack.c.h.b16 %v276
    %v2386 = vunpack.c.l.b16 %v277
    %v2387 = vunpack.c.h.b16 %v277
    %v2388 = vunpack.c.l.b16 %v278
    %v2389 = vunpack.c.h.b16 %v278
    %v2390 = vunpack.c.l.b16 %v279
    %v2391 = vunpack.c.h.b16 %v279
    %v2392 = vunpack.c.l.b16 %v280
    %v2393 = vunpack.c.h.b16 %v280
    %v2394 = vunpack.c.l.b16 %v281
    %v2395 = vunpack.c.h.b16 %v281
    %v2396 = vunpack.c.l.b16 %v282
    %v2397 = vunpack.c.h.b16 %v282
    %v2398 = vunpack.c.l.b16 %v283
    %v2399 = vunpack.c.h.b16 %v283
    %v2400 = vunpack.c.l.b16 %v284
    %v2401 = vunpack.c.h.b16 %v284
    %v2402 = vunpack.c.l.b16 %v285
    %v2403 = vunpack.c.h.b16 %v285
    %v2404 = vunpack.c.l.b16 %v286
    %v2405 = vunpack.c.h.b16 %v286
    %v2406 = vunpack.c.l.b16 %v287
    %v2407 = vunpack.c.h.b16 %v287
    %v2408 = vunpack.c.l.b16 %v288
    %v2409 = vunpack.c.h.b16 %v288
    %v2410 = vunpack.c.l.b16 %v289
    %v2411 = vunpack.c.h.b16 %v289
    %v2412 = vunpack.c.l.b16 %v290
    %v2413 = vunpack.c.h.b16 %v290
    %v2414 = vunpack.c.l.b16 %v291
    %v2415 = vunpack.c.h.b16 %v291
    %v2416 = vunpack.c.l.b16 %v292
    %v2417 = vunpack.c.h.b16 %v292
    %v2418 = vunpack.c.l.b16 %v293
    %v2419 = vunpack.c.h.b16 %v293
    %v2420 = vunpack.c.l.b16 %v294
    %v2421 = vunpack.c.h.b16 %v294
    %v2422 = vunpack.c.l.b16 %v295
    %v2423 = vunpack.c.h.b16 %v295
    %v2424 = vunpack.c.l.b16 %v296
    %v2425 = vunpack.c.h.b16 %v296
    %v2426 = vunpack.c.l.b16 %v297
    %v2427 = vunpack.c.h.b16 %v297
    %v2428 = vunpack.c.l.b16 %v298
    %v2429 = vunpack.c.h.b16 %v298
    %v2430 = vunpack.c.l.b16 %v299
    %v2431 = vunpack.c.h.b16 %v299
    %v2432 = vunpack.c.l.b16 %v300
    %v2433 = vunpack.c.h.b16 %v300
    %v2434 = vunpack.c.l.b16 %v301
    %v2435 = vunpack.c.h.b16 %v301
    %v2436 = vunpack.c.l.b16 %v302
    %v2437 = vunpack.c.h.b16 %v302
    %v2438 = vunpack.c.l.b16 %v303
    %v2439 = vunpack.c.h.b16 %v303
    %v2440 = vunpack.c.l.b16 %v304
    %v2441 = vunpack.c.h.b16 %v304
    %v2442 = vunpack.c.l.b16 %v305
    %v2443 = vunpack.c.h.b16 %v305
    %v2444 = vunpack.c.l.b16 %v306
    %v2445 = vunpack.c.h.b16 %v306
    %v2446 = vunpack.c.l.b16 %v307
    %v2447 = vunpack.c.h.b16 %v307
    %v2448 = vunpack.c.l.b16 %v308
    %v2449 = vunpack.c.h.b16 %v308
    %v2450 = vunpack.c.l.b16 %v309
    %v2451 = vunpack.c.h.b16 %v309
    %v2452 = vunpack.c.l.b16 %v310
    %v2453 = vunpack.c.h.b16 %v310
    %v2454 = vunpack.c.l.b16 %v311
    %v2455 = vunpack.c.h.b16 %v311
    %v2456 = vunpack.c.l.b16 %v312
    %v2457 = vunpack.c.h.b16 %v312
    %v2458 = vunpack.c.l.b16 %v313
    %v2459 = vunpack.c.h.b16 %v313
    %v2460 = vunpack.c.l.b16 %v314
    %v2461 = vunpack.c.h.b16 %v314
    %v2462 = vunpack.c.l.b16 %v315
    %v2463 = vunpack.c.h.b16 %v315
    %v2464 = vunpack.c.l.b16 %v316
    %v2465 = vunpack.c.h.b16 %v316
    %v2466 = vunpack.c.l.b16 %v317
    %v2467 = vunpack.c.h.b16 %v317
    %v2468 = vunpack.c.l.b16 %v318
    %v2469 = vunpack.c.h.b16 %v318
    %v2470 = vunpack.c.l.b16 %v319
    %v2471 = vunpack.c.h.b16 %v319
    %v2472 = vunpack.c.l.b16 %v320
    %v2473 = vunpack.c.h.b16 %v320
    %v2474 = vunpack.c.l.b16 %v321
    %v2475 = vunpack.c.h.b16 %v321
    %v2476 = vunpack.c.l.b16 %v322
    %v2477 = vunpack.c.h.b16 %v322
    %v2478 = vunpack.c.l.b16 %v323
    %v2479 = vunpack.c.h.b16 %v323
    %v2480 = vunpack.c.l.b16 %v324
    %v2481 = vunpack.c.h.b16 %v324
    %v2482 = vunpack.c.l.b16 %v325
    %v2483 = vunpack.c.h.b16 %v325
    %v2484 = vunpack.c.l.b16 %v326
    %v2485 = vunpack.c.h.b16 %v326
    %v2486 = vunpack.c.l.b16 %v327
    %v2487 = vunpack.c.h.b16 %v327
    %v2488 = vunpack.c.l.b16 %v328
    %v2489 = vunpack.c.h.b16 %v328
    %v2490 = vunpack.c.l.b16 %v329
    %v2491 = vunpack.c.h.b16 %v329
    %v2492 = vunpack.c.l.b16 %v330
    %v2493 = vunpack.c.h.b16 %v330
    %v2494 = vunpack.c.l.b16 %v331
    %v2495 = vunpack.c.h.b16 %v331
    %v2496 = vunpack.c.l.b16 %v332
    %v2497 = vunpack.c.h.b16 %v332
    %v2498 = vunpack.c.l.b16 %v333
    %v2499 = vunpack.c.h.b16 %v333
    %v2500 = vunpack.c.l.b16 %v334
    %v2501 = vunpack.c.h.b16 %v334
    %v2502 = vunpack.c.l.b16 %v335
    %v2503 = vunpack.c.h.b16 %v335
    %v2504 = vunpack.c.l.b16 %v336
    %v2505 = vunpack.c.h.b16 %v336
    %v2506 = vunpack.c.l.b16 %v337
    %v2507 = vunpack.c.h.b16 %v337
    %v2508 = vunpack.c.l.b16 %v338
    %v2509 = vunpack.c.h.b16 %v338
    %v2510 = vunpack.c.l.b16 %v339
    %v2511 = vunpack.c.h.b16 %v339
    %v2512 = vunpack.c.l.b16 %v340
    %v2513 = vunpack.c.h.b16 %v340
    %v2514 = vunpack.c.l.b16 %v341
    %v2515 = vunpack.c.h.b16 %v341
    %v2516 = vunpack.c.l.b16 %v342
    %v2517 = vunpack.c.h.b16 %v342
    %v2518 = vunpack.c.l.b16 %v343
    %v2519 = vunpack.c.h.b16 %v343
    %v2520 = vunpack.c.l.b16 %v344
    %v2521 = vunpack.c.h.b16 %v344
    %v2522 = vunpack.c.l.b16 %v345
    %v2523 = vunpack.c.h.b16 %v345
    %v2524 = vunpack.c.l.b16 %v346
    %v2525 = vunpack.c.h.b16 %v346
    %v2526 = vunpack.c.l.b16 %v347
    %v2527 = vunpack.c.h.b16 %v347
    %v2528 = vunpack.c.l.b16 %v348
    %v2529 = vunpack.c.h.b16 %v348
    %v2530 = vunpack.c.l.b16 %v349
    %v2531 = vunpack.c.h.b16 %v349
    %v2532 = vunpack.c.l.b16 %v350
    %v2533 = vunpack.c.h.b16 %v350
    %v2534 = vunpack.c.l.b16 %v351
    %v2535 = vunpack.c.h.b16 %v351
    %v2536 = vunpack.c.l.b16 %v352
    %v2537 = vunpack.c.h.b16 %v352
    %v2538 = vunpack.c.l.b16 %v353
    %v2539 = vunpack.c.h.b16 %v353
    %v2540 = vunpack.c.l.b16 %v354
    %v2541 = vunpack.c.h.b16 %v354
    %v2542 = vunpack.c.l.b16 %v355
    %v2543 = vunpack.c.h.b16 %v355
    %v2544 = vunpack.c.l.b16 %v356
    %v2545 = vunpack.c.h.b16 %v356
    %v2546 = vunpack.c.l.b16 %v357
    %v2547 = vunpack.c.h.b16 %v357
    %v2548 = vunpack.c.l.b16 %v358
    %v2549 = vunpack.c.h.b16 %v358
    %v2550 = vunpack.c.l.b16 %v359
    %v2551 = vunpack.c.h.b16 %v359
    %v2552 = vunpack.c.l.b16 %v360
    %v2553 = vunpack.c.h.b16 %v360
    %v2554 = vunpack.c.l.b16 %v361
    %v2555 = vunpack.c.h.b16 %v361
    %v2556 = vunpack.c.l.b16 %v362
    %v2557 = vunpack.c.h.b16 %v362
    %v2558 = vunpack.c.l.b16 %v363
    %v2559 = vunpack.c.h.b16 %v363
    %v2560 = vunpack.c.l.b16 %v364
    %v2561 = vunpack.c.h.b16 %v364
    %v2562 = vunpack.c.l.b16 %v365
    %v2563 = vunpack.c.h.b16 %v365
    %v2564 = vunpack.c.l.b16 %v366
    %v2565 = vunpack.c.h.b16 %v366
    %v2566 = vunpack.c.l.b16 %v367
    %v2567 = vunpack.c.h.b16 %v367
    %v2568 = vunpack.c.l.b16 %v368
    %v2569 = vunpack.c.h.b16 %v368
    %v2570 = vunpack.c.l.b16 %v369
    %v2571 = vunpack.c.h.b16 %v369
    %v2572 = vunpack.c.l.b16 %v370
    %v2573 = vunpack.c.h.b16 %v370
    %v2574 = vunpack.c.l.b16 %v371
    %v2575 = vunpack.c.h.b16 %v371
    %v2576 = vunpack.c.l.b16 %v372
    %v2577 = vunpack.c.h.b16 %v372
    %v2578 = vunpack.c.l.b16 %v373
    %v2579 = vunpack.c.h.b16 %v373
    %v2580 = vunpack.c.l.b16 %v374
    %v2581 = vunpack.c.h.b16 %v374
    %v2582 = vunpack.c.l.b16 %v375
    %v2583 = vunpack.c.h.b16 %v375
    %v2584 = vunpack.c.l.b16 %v376
    %v2585 = vunpack.c.h.b16 %v376
    %v2586 = vunpack.c.l.b16 %v377
    %v2587 = vunpack.c.h.b16 %v377
    %v2588 = vunpack.c.l.b16 %v378
    %v2589 = vunpack.c.h.b16 %v378
    %v2590 = vunpack.c.l.b16 %v379
    %v2591 = vunpack.c.h.b16 %v379
    %v2592 = vunpack.c.l.b16 %v380
    %v2593 = vunpack.c.h.b16 %v380
    %v2594 = vunpack.c.l.b16 %v381
    %v2595 = vunpack.c.h.b16 %v381
    %v2596 = vunpack.c.l.b16 %v382
    %v2597 = vunpack.c.h.b16 %v382
    %v2598 = vunpack.c.l.b16 %v383
    %v2599 = vunpack.c.h.b16 %v383
    %v2600 = vunpack.c.l.b16 %v384
    %v2601 = vunpack.c.h.b16 %v384
    %v2602 = vunpack.c.l.b16 %v385
    %v2603 = vunpack.c.h.b16 %v385
    %v2604 = vunpack.c.l.b16 %v386
    %v2605 = vunpack.c.h.b16 %v386
    %v2606 = vunpack.c.l.b16 %v387
    %v2607 = vunpack.c.h.b16 %v387
    %v2608 = vunpack.c.l.b16 %v388
    %v2609 = vunpack.c.h.b16 %v388
    %v2610 = vunpack.c.l.b16 %v389
    %v2611 = vunpack.c.h.b16 %v389
    %v2612 = vunpack.c.l.b16 %v390
    %v2613 = vunpack.c.h.b16 %v390
    %v2614 = vunpack.c.l.b16 %v391
    %v2615 = vunpack.c.h.b16 %v391
    %v2616 = vunpack.c.l.b16 %v392
    %v2617 = vunpack.c.h.b16 %v392
    %v2618 = vunpack.c.l.b16 %v393
    %v2619 = vunpack.c.h.b16 %v393
    %v2620 = vunpack.c.l.b16 %v394
    %v2621 = vunpack.c.h.b16 %v394
    %v2622 = vunpack.c.l.b16 %v395
    %v2623 = vunpack.c.h.b16 %v395
    %v2624 = vunpack.c.l.b16 %v396
    %v2625 = vunpack.c.h.b16 %v396
    %v2626 = vunpack.c.l.b16 %v397
    %v2627 = vunpack.c.h.b16 %v397
    %v2628 = vunpack.c.l.b16 %v398
    %v2629 = vunpack.c.h.b16 %v398
    %v2630 = vunpack.c.l.b16 %v399
    %v2631 = vunpack.c.h.b16 %v399
    %v2632 = vunpack.c.l.b16 %v400
    %v2633 = vunpack.c.h.b16 %v400
    %v2634 = vunpack.c.l.b16 %v401
    %v2635 = vunpack.c.h.b16 %v401
    %v2636 = vunpack.c.l.b16 %v402
    %v2637 = vunpack.c.h.b16 %v402
    %v2638 = vunpack.c.l.b16 %v403
    %v2639 = vunpack.c.h.b16 %v403
    %v2640 = vunpack.c.l.b16 %v404
    %v2641 = vunpack.c.h.b16 %v404
    %v2642 = vunpack.c.l.b16 %v405
    %v2643 = vunpack.c.h.b16 %v405
    %v2644 = vunpack.c.l.b16 %v406
    %v2645 = vunpack.c.h.b16 %v406
    %v2646 = vunpack.c.l.b16 %v407
    %v2647 = vunpack.c.h.b16 %v407
    %v2648 = vunpack.c.l.b16 %v408
    %v2649 = vunpack.c.h.b16 %v408
    %v2650 = vunpack.c.l.b16 %v409
    %v2651 = vunpack.c.h.b16 %v409
    %v2652 = vunpack.c.l.b16 %v410
    %v2653 = vunpack.c.h.b16 %v410
    %v2654 = vunpack.c.l.b16 %v411
    %v2655 = vunpack.c.h.b16 %v411
    %v2656 = vunpack.c.l.b16 %v412
    %v2657 = vunpack.c.h.b16 %v412
    %v2658 = vunpack.c.l.b16 %v413
    %v2659 = vunpack.c.h.b16 %v413
    %v2660 = vunpack.c.l.b16 %v414
    %v2661 = vunpack.c.h.b16 %v414
    %v2662 = vunpack.c.l.b16 %v415
    %v2663 = vunpack.c.h.b16 %v415
    %v2664 = vunpack.c.l.b16 %v416
    %v2665 = vunpack.c.h.b16 %v416
    %v2666 = vunpack.c.l.b16 %v417
    %v2667 = vunpack.c.h.b16 %v417
    %v2668 = vunpack.c.l.b16 %v418
    %v2669 = vunpack.c.h.b16 %v418
    %v2670 = vunpack.c.l.b16 %v419
    %v2671 = vunpack.c.h.b16 %v419
    %v2672 = vunpack.c.l.b16 %v420
    %v2673 = vunpack.c.h.b16 %v420
    %v2674 = vunpack.c.l.b16 %v421
    %v2675 = vunpack.c.h.b16 %v421
    %v2676 = vunpack.c.l.b16 %v422
    %v2677 = vunpack.c.h.b16 %v422
    %v2678 = vunpack.c.l.b16 %v423
    %v2679 = vunpack.c.h.b16 %v423
    %v2680 = vunpack.c.l.b16 %v424
    %v2681 = vunpack.c.h.b16 %v424
    %v2682 = vunpack.c.l.b16 %v425
    %v2683 = vunpack.c.h.b16 %v425
    %v2684 = vunpack.c.l.b16 %v426
    %v2685 = vunpack.c.h.b16 %v426
    %v2686 = vunpack.c.l.b16 %v427
    %v2687 = vunpack.c.h.b16 %v427
    %v2688 = vunpack.c.l.b16 %v428
    %v2689 = vunpack.c.h.b16 %v428
    %v2690 = vunpack.c.l.b16 %v429
    %v2691 = vunpack.c.h.b16 %v429
    %v2692 = vunpack.c.l.b16 %v430
    %v2693 = vunpack.c.h.b16 %v430
    %v2694 = vunpack.c.l.b16 %v431
    %v2695 = vunpack.c.h.b16 %v431
    %v2696 = vunpack.c.l.b16 %v432
    %v2697 = vunpack.c.h.b16 %v432
    %v2698 = vunpack.c.l.b16 %v433
    %v2699 = vunpack.c.h.b16 %v433
    %v2700 = vunpack.c.l.b16 %v434
    %v2701 = vunpack.c.h.b16 %v434
    %v2702 = vunpack.c.l.b16 %v435
    %v2703 = vunpack.c.h.b16 %v435
    %v2704 = vunpack.c.l.b16 %v436
    %v2705 = vunpack.c.h.b16 %v436
    %v2706 = vunpack.c.l.b16 %v437
    %v2707 = vunpack.c.h.b16 %v437
    %v2708 = vunpack.c.l.b16 %v438
    %v2709 = vunpack.c.h.b16 %v438
    %v2710 = vunpack.c.l.b16 %v439
    %v2711 = vunpack.c.h.b16 %v439
    %v2712 = vunpack.c.l.b16 %v440
    %v2713 = vunpack.c.h.b16 %v440
    %v2714 = vunpack.c.l.b16 %v441
    %v2715 = vunpack.c.h.b16 %v441
    %v2716 = vunpack.c.l.b16 %v442
    %v2717 = vunpack.c.h.b16 %v442
    %v2718 = vunpack.c.l.b16 %v443
    %v2719 = vunpack.c.h.b16 %v443
    %v2720 = vunpack.c.l.b16 %v444
    %v2721 = vunpack.c.h.b16 %v444
    %v2722 = vunpack.c.l.b16 %v445
    %v2723 = vunpack.c.h.b16 %v445
    %v2724 = vunpack.c.l.b16 %v446
    %v2725 = vunpack.c.h.b16 %v446
    %v2726 = vunpack.c.l.b16 %v447
    %v2727 = vunpack.c.h.b16 %v447
    %v2728 = vunpack.c.l.b16 %v448
    %v2729 = vunpack.c.h.b16 %v448
    %v2730 = vunpack.c.l.b16 %v449
    %v2731 = vunpack.c.h.b16 %v449
    %v2732 = vunpack.c.l.b16 %v450
    %v2733 = vunpack.c.h.b16 %v450
    %v2734 = vunpack.c.l.b16 %v451
    %v2735 = vunpack.c.h.b16 %v451
    %v2736 = vunpack.c.l.b16 %v452
    %v2737 = vunpack.c.h.b16 %v452
    %v2738 = vunpack.c.l.b16 %v453
    %v2739 = vunpack.c.h.b16 %v453
    %v2740 = vunpack.c.l.b16 %v454
    %v2741 = vunpack.c.h.b16 %v454
    %v2742 = vunpack.c.l.b16 %v455
    %v2743 = vunpack.c.h.b16 %v455
    %v2744 = vunpack.c.l.b16 %v456
    %v2745 = vunpack.c.h.b16 %v456
    %v2746 = vunpack.c.l.b16 %v457
    %v2747 = vunpack.c.h.b16 %v457
    %v2748 = vunpack.c.l.b16 %v458
    %v2749 = vunpack.c.h.b16 %v458
    %v2750 = vunpack.c.l.b16 %v459
    %v2751 = vunpack.c.h.b16 %v459
    %v2752 = vunpack.c.l.b16 %v460
    %v2753 = vunpack.c.h.b16 %v460
    %v2754 = vunpack.c.l.b16 %v461
    %v2755 = vunpack.c.h.b16 %v461
    %v2756 = vunpack.c.l.b16 %v462
    %v2757 = vunpack.c.h.b16 %v462
    %v2758 = vunpack.c.l.b16 %v463
    %v2759 = vunpack.c.h.b16 %v463
    %v2760 = vunpack.c.l.b16 %v464
    %v2761 = vunpack.c.h.b16 %v464
    %v2762 = vunpack.c.l.b16 %v465
    %v2763 = vunpack.c.h.b16 %v465
    %v2764 = vunpack.c.l.b16 %v466
    %v2765 = vunpack.c.h.b16 %v466
    %v2766 = vunpack.c.l.b16 %v467
    %v2767 = vunpack.c.h.b16 %v467
    %v2768 = vunpack.c.l.b16 %v468
    %v2769 = vunpack.c.h.b16 %v468
    %v2770 = vunpack.c.l.b16 %v469
    %v2771 = vunpack.c.h.b16 %v469
    %v2772 = vunpack.c.l.b16 %v470
    %v2773 = vunpack.c.h.b16 %v470
    %v2774 = vunpack.c.l.b16 %v471
    %v2775 = vunpack.c.h.b16 %v471
    %v2776 = vunpack.c.l.b16 %v472
    %v2777 = vunpack.c.h.b16 %v472
    %v2778 = vunpack.c.l.b16 %v473
    %v2779 = vunpack.c.h.b16 %v473
    %v2780 = vunpack.c.l.b16 %v474
    %v2781 = vunpack.c.h.b16 %v474
    %v2782 = vunpack.c.l.b16 %v475
    %v2783 = vunpack.c.h.b16 %v475
    %v2784 = vunpack.c.l.b16 %v476
    %v2785 = vunpack.c.h.b16 %v476
    %v2786 = vunpack.c.l.b16 %v477
    %v2787 = vunpack.c.h.b16 %v477
    %v2788 = vunpack.c.l.b16 %v478
    %v2789 = vunpack.c.h.b16 %v478
    %v2790 = vunpack.c.l.b16 %v479
    %v2791 = vunpack.c.h.b16 %v479
    %v2792 = vunpack.c.l.b16 %v480
    %v2793 = vunpack.c.h.b16 %v480
    %v2794 = vunpack.c.l.b16 %v481
    %v2795 = vunpack.c.h.b16 %v481
    %v2796 = vunpack.c.l.b16 %v482
    %v2797 = vunpack.c.h.b16 %v482
    %v2798 = vunpack.c.l.b16 %v483
    %v2799 = vunpack.c.h.b16 %v483
    %v2800 = vunpack.c.l.b16 %v484
    %v2801 = vunpack.c.h.b16 %v484
    %v2802 = vunpack.c.l.b16 %v485
    %v2803 = vunpack.c.h.b16 %v485
    %v2804 = vunpack.c.l.b16 %v486
    %v2805 = vunpack.c.h.b16 %v486
    %v2806 = vunpack.c.l.b16 %v487
    %v2807 = vunpack.c.h.b16 %v487
    %v2808 = vunpack.c.l.b16 %v488
    %v2809 = vunpack.c.h.b16 %v488
    %v2810 = vunpack.c.l.b16 %v489
    %v2811 = vunpack.c.h.b16 %v489
    %v2812 = vunpack.c.l.b16 %v490
    %v2813 = vunpack.c.h.b16 %v490
    %v2814 = vunpack.c.l.b16 %v491
    %v2815 = vunpack.c.h.b16 %v491
    %v2816 = vunpack.c.l.b16 %v492
    %v2817 = vunpack.c.h.b16 %v492
    %v2818 = vunpack.c.l.b16 %v493
    %v2819 = vunpack.c.h.b16 %v493
    %v2820 = vunpack.c.l.b16 %v494
    %v2821 = vunpack.c.h.b16 %v494
    %v2822 = vunpack.c.l.b16 %v495
    %v2823 = vunpack.c.h.b16 %v495
    %v2824 = vunpack.c.l.b16 %v496
    %v2825 = vunpack.c.h.b16 %v496
    %v2826 = vunpack.c.l.b16 %v497
    %v2827 = vunpack.c.h.b16 %v497
    %v2828 = vunpack.c.l.b16 %v498
    %v2829 = vunpack.c.h.b16 %v498
    %v2830 = vunpack.c.l.b16 %v499
    %v2831 = vunpack.c.h.b16 %v499
    %v2832 = vunpack.c.l.b16 %v500
    %v2833 = vunpack.c.h.b16 %v500
    %v2834 = vunpack.c.l.b16 %v501
    %v2835 = vunpack.c.h.b16 %v501
    %v2836 = vunpack.c.l.b16 %v502
    %v2837 = vunpack.c.h.b16 %v502
    %v2838 = vunpack.c.l.b16 %v503
    %v2839 = vunpack.c.h.b16 %v503
    %v2840 = vunpack.c.l.b16 %v504
    %v2841 = vunpack.c.h.b16 %v504
    %v2842 = vunpack.c.l.b16 %v505
    %v2843 = vunpack.c.h.b16 %v505
    %v2844 = vunpack.c.l.b16 %v506
    %v2845 = vunpack.c.h.b16 %v506
    %v2846 = vunpack.c.l.b16 %v507
    %v2847 = vunpack.c.h.b16 %v507
    %v2848 = vunpack.c.l.b16 %v508
    %v2849 = vunpack.c.h.b16 %v508
    %v2850 = vunpack.c.l.b16 %v509
    %v2851 = vunpack.c.h.b16 %v509
    %v2852 = vunpack.c.l.b16 %v510
    %v2853 = vunpack.c.h.b16 %v510
    %v2854 = vunpack.c.l.b16 %v511
    %v2855 = vunpack.c.h.b16 %v511
    %v2856 = vunpack.c.l.b16 %v512
    %v2857 = vunpack.c.h.b16 %v512
    %v2858 = vunpack.c.l.b16 %v513
    %v2859 = vunpack.c.h.b16 %v513
    %v2860 = vunpack.c.l.b16 %v514
    %v2861 = vunpack.c.h.b16 %v514
    %v2862 = vunpack.c.l.b16 %v515
    %v2863 = vunpack.c.h.b16 %v515
    %v2864 = vunpack.c.l.b16 %v516
    %v2865 = vunpack.c.h.b16 %v516
    %v2866 = vunpack.c.l.b16 %v517
    %v2867 = vunpack.c.h.b16 %v517
    %v2868 = vunpack.c.l.b16 %v518
    %v2869 = vunpack.c.h.b16 %v518
    %v2870 = vunpack.c.l.b16 %v519
    %v2871 = vunpack.c.h.b16 %v519
    %v2872 = vunpack.c.l.b16 %v520
    %v2873 = vunpack.c.h.b16 %v520
    %v2874 = vunpack.c.l.b16 %v521
    %v2875 = vunpack.c.h.b16 %v521
    %v2876 = vunpack.c.l.b16 %v522
    %v2877 = vunpack.c.h.b16 %v522
    %v2878 = vunpack.c.l.b16 %v523
    %v2879 = vunpack.c.h.b16 %v523
    %v2880 = vunpack.c.l.b16 %v524
    %v2881 = vunpack.c.h.b16 %v524
    %v2882 = vunpack.c.l.b16 %v525
    %v2883 = vunpack.c.h.b16 %v525
    %v2884 = vunpack.c.l.b16 %v526
    %v2885 = vunpack.c.h.b16 %v526
    %v2886 = vunpack.c.l.b16 %v527
    %v2887 = vunpack.c.h.b16 %v527
    %v2888 = vunpack.c.l.b16 %v528
    %v2889 = vunpack.c.h.b16 %v528
    %v2890 = vunpack.c.l.b16 %v529
    %v2891 = vunpack.c.h.b16 %v529
    %v2892 = vunpack.c.l.b16 %v530
    %v2893 = vunpack.c.h.b16 %v530
    %v2894 = vunpack.c.l.b16 %v531
    %v2895 = vunpack.c.h.b16 %v531
    %v2896 = vunpack.c.l.b16 %v532
    %v2897 = vunpack.c.h.b16 %v532
    %v2898 = vunpack.c.l.b16 %v533
    %v2899 = vunpack.c.h.b16 %v533
    %v2900 = vunpack.c.l.b16 %v534
    %v2901 = vunpack.c.h.b16 %v534
    %v2902 = vunpack.c.l.b16 %v535
    %v2903 = vunpack.c.h.b16 %v535
    %v2904 = vunpack.c.l.b16 %v536
    %v2905 = vunpack.c.h.b16 %v536
    %v2906 = vunpack.c.l.b16 %v537
    %v2907 = vunpack.c.h.b16 %v537
    %v2908 = vunpack.c.l.b16 %v538
    %v2909 = vunpack.c.h.b16 %v538
    %v2910 = vunpack.c.l.b16 %v539
    %v2911 = vunpack.c.h.b16 %v539
    %v2912 = vunpack.c.l.b16 %v540
    %v2913 = vunpack.c.h.b16 %v540
    %v2914 = vunpack.c.l.b16 %v541
    %v2915 = vunpack.c.h.b16 %v541
    %v2916 = vunpack.c.l.b16 %v542
    %v2917 = vunpack.c.h.b16 %v542
    %v2918 = vunpack.c.l.b16 %v543
    %v2919 = vunpack.c.h.b16 %v543
    %v2920 = vunpack.c.l.b16 %v544
    %v2921 = vunpack.c.h.b16 %v544
    %v2922 = vunpack.c.l.b16 %v545
    %v2923 = vunpack.c.h.b16 %v545
    %v2924 = vunpack.c.l.b16 %v546
    %v2925 = vunpack.c.h.b16 %v546
    %v2926 = vunpack.c.l.b16 %v547
    %v2927 = vunpack.c.h.b16 %v547
    %v2928 = vunpack.c.l.b16 %v548
    %v2929 = vunpack.c.h.b16 %v548
    %v2930 = vunpack.c.l.b16 %v549
    %v2931 = vunpack.c.h.b16 %v549
    %v2932 = vunpack.c.l.b16 %v550
    %v2933 = vunpack.c.h.b16 %v550
    %v2934 = vunpack.c.l.b16 %v551
    %v2935 = vunpack.c.h.b16 %v551
    %v2936 = vunpack.c.l.b16 %v552
    %v2937 = vunpack.c.h.b16 %v552
    %v2938 = vunpack.c.l.b16 %v553
    %v2939 = vunpack.c.h.b16 %v553
    %v2940 = vunpack.c.l.b16 %v554
    %v2941 = vunpack.c.h.b16 %v554
    %v2942 = vunpack.c.l.b16 %v555
    %v2943 = vunpack.c.h.b16 %v555
    %v2944 = vunpack.c.l.b16 %v556
    %v2945 = vunpack.c.h.b16 %v556
    %v2946 = vunpack.c.l.b16 %v557
    %v2947 = vunpack.c.h.b16 %v557
    %v2948 = vunpack.c.l.b16 %v558
    %v2949 = vunpack.c.h.b16 %v558
    %v2950 = vunpack.c.l.b16 %v559
    %v2951 = vunpack.c.h.b16 %v559
    %v2952 = vunpack.c.l.b16 %v560
    %v2953 = vunpack.c.h.b16 %v560
    %v2954 = vunpack.c.l.b16 %v561
    %v2955 = vunpack.c.h.b16 %v561
    %v2956 = vunpack.c.l.b16 %v562
    %v2957 = vunpack.c.h.b16 %v562
    %v2958 = vunpack.c.l.b16 %v563
    %v2959 = vunpack.c.h.b16 %v563
    %v2960 = vunpack.c.l.b16 %v564
    %v2961 = vunpack.c.h.b16 %v564
    %v2962 = vunpack.c.l.b16 %v565
    %v2963 = vunpack.c.h.b16 %v565
    %v2964 = vunpack.c.l.b16 %v566
    %v2965 = vunpack.c.h.b16 %v566
    %v2966 = vunpack.c.l.b16 %v567
    %v2967 = vunpack.c.h.b16 %v567
    %v2968 = vunpack.c.l.b16 %v568
    %v2969 = vunpack.c.h.b16 %v568
    %v2970 = vunpack.c.l.b16 %v569
    %v2971 = vunpack.c.h.b16 %v569
    %v2972 = vunpack.c.l.b16 %v570
    %v2973 = vunpack.c.h.b16 %v570
    %v2974 = vunpack.c.l.b16 %v571
    %v2975 = vunpack.c.h.b16 %v571
    %v2976 = vunpack.c.l.b16 %v572
    %v2977 = vunpack.c.h.b16 %v572
    %v2978 = vunpack.c.l.b16 %v573
    %v2979 = vunpack.c.h.b16 %v573
    %v2980 = vunpack.c.l.b16 %v574
    %v2981 = vunpack.c.h.b16 %v574
    %v2982 = vunpack.c.l.b16 %v575
    %v2983 = vunpack.c.h.b16 %v575
    %v2984 = vunpack.c.l.b16 %v576
    %v2985 = vunpack.c.h.b16 %v576
    %v2986 = vunpack.c.l.b16 %v577
    %v2987 = vunpack.c.h.b16 %v577
    %v2988 = vunpack.c.l.b16 %v578
    %v2989 = vunpack.c.h.b16 %v578
    %v2990 = vunpack.c.l.b16 %v579
    %v2991 = vunpack.c.h.b16 %v579
    %v2992 = vunpack.c.l.b16 %v580
    %v2993 = vunpack.c.h.b16 %v580
    %v2994 = vunpack.c.l.b16 %v581
    %v2995 = vunpack.c.h.b16 %v581
    %v2996 = vunpack.c.l.b16 %v582
    %v2997 = vunpack.c.h.b16 %v582
    %v2998 = vunpack.c.l.b16 %v583
    %v2999 = vunpack.c.h.b16 %v583
    %v3000 = vunpack.c.l.b16 %v584
    %v3001 = vunpack.c.h.b16 %v584
    %v3002 = vunpack.c.l.b16 %v585
    %v3003 = vunpack.c.h.b16 %v585
    %v3004 = vunpack.c.l.b16 %v586
    %v3005 = vunpack.c.h.b16 %v586
    %v3006 = vunpack.c.l.b16 %v587
    %v3007 = vunpack.c.h.b16 %v587
    %v3008 = vunpack.c.l.b16 %v588
    %v3009 = vunpack.c.h.b16 %v588
    %v3010 = vunpack.c.l.b16 %v589
    %v3011 = vunpack.c.h.b16 %v589
    %v3012 = vunpack.c.l.b16 %v590
    %v3013 = vunpack.c.h.b16 %v590
    %v3014 = vunpack.c.l.b16 %v591
    %v3015 = vunpack.c.h.b16 %v591
    %v3016 = vunpack.c.l.b16 %v592
    %v3017 = vunpack.c.h.b16 %v592
    %v3018 = vunpack.c.l.b16 %v593
    %v3019 = vunpack.c.h.b16 %v593
    %v3020 = vunpack.c.l.b16 %v594
    %v3021 = vunpack.c.h.b16 %v594
    %v3022 = vunpack.c.l.b16 %v595
    %v3023 = vunpack.c.h.b16 %v595
    %v3024 = vunpack.c.l.b16 %v596
    %v3025 = vunpack.c.h.b16 %v596
    %v3026 = vunpack.c.l.b16 %v597
    %v3027 = vunpack.c.h.b16 %v597
    %v3028 = vunpack.c.l.b16 %v598
    %v3029 = vunpack.c.h.b16 %v598
    %v3030 = vunpack.c.l.b16 %v599
    %v3031 = vunpack.c.h.b16 %v599
    %v3032 = vunpack.c.l.b16 %v600
    %v3033 = vunpack.c.h.b16 %v600
    %v3034 = vunpack.c.l.b16 %v601
    %v3035 = vunpack.c.h.b16 %v601
    %v3036 = vunpack.c.l.b16 %v602
    %v3037 = vunpack.c.h.b16 %v602
    %v3038 = vunpack.c.l.b16 %v603
    %v3039 = vunpack.c.h.b16 %v603
    %v3040 = vunpack.c.l.b16 %v604
    %v3041 = vunpack.c.h.b16 %v604
    %v3042 = vunpack.c.l.b16 %v605
    %v3043 = vunpack.c.h.b16 %v605
    %v3044 = vunpack.c.l.b16 %v606
    %v3045 = vunpack.c.h.b16 %v606
    %v3046 = vunpack.c.l.b16 %v607
    %v3047 = vunpack.c.h.b16 %v607
    %v3048 = vunpack.c.l.b16 %v608
    %v3049 = vunpack.c.h.b16 %v608
    %v3050 = vunpack.c.l.b16 %v609
    %v3051 = vunpack.c.h.b16 %v609
    %v3052 = vunpack.c.l.b16 %v610
    %v3053 = vunpack.c.h.b16 %v610
    %v3054 = vunpack.c.l.b16 %v611
    %v3055 = vunpack.c.h.b16 %v611
    %v3056 = vunpack.c.l.b16 %v612
    %v3057 = vunpack.c.h.b16 %v612
    %v3058 = vunpack.c.l.b16 %v613
    %v3059 = vunpack.c.h.b16 %v613
    %v3060 = vunpack.c.l.b16 %v614
    %v3061 = vunpack.c.h.b16 %v614
    %v3062 = vunpack.c.l.b16 %v615
    %v3063 = vunpack.c.h.b16 %v615
    %v3064 = vunpack.c.l.b16 %v616
    %v3065 = vunpack.c.h.b16 %v616
    %v3066 = vunpack.c.l.b16 %v617
    %v3067 = vunpack.c.h.b16 %v617
    %v3068 = vunpack.c.l.b16 %v618
    %v3069 = vunpack.c.h.b16 %v618
    %v3070 = vunpack.c.l.b16 %v619
    %v3071 = vunpack.c.h.b16 %v619
    %v3072 = vunpack.c.l.b16 %v620
    %v3073 = vunpack.c.h.b16 %v620
    %v3074 = vunpack.c.l.b16 %v621
    %v3075 = vunpack.c.h.b16 %v621
    %v3076 = vunpack.c.l.b16 %v622
    %v3077 = vunpack.c.h.b16 %v622
    %v3078 = vunpack.c.l.b16 %v623
    %v3079 = vunpack.c.h.b16 %v623
    %v3080 = vunpack.c.l.b16 %v624
    %v3081 = vunpack.c.h.b16 %v624
    %v3082 = vunpack.c.l.b16 %v625
    %v3083 = vunpack.c.h.b16 %v625
    %v3084 = vunpack.c.l.b16 %v626
    %v3085 = vunpack.c.h.b16 %v626
    %v3086 = vunpack.c.l.b16 %v627
    %v3087 = vunpack.c.h.b16 %v627
    %v3088 = vunpack.c.l.b16 %v628
    %v3089 = vunpack.c.h.b16 %v628
    %v3090 = vunpack.c.l.b16 %v629
    %v3091 = vunpack.c.h.b16 %v629
    %v3092 = vunpack.c.l.b16 %v630
    %v3093 = vunpack.c.h.b16 %v630
    %v3094 = vunpack.c.l.b16 %v631
    %v3095 = vunpack.c.h.b16 %v631
    %v3096 = vunpack.c.l.b16 %v632
    %v3097 = vunpack.c.h.b16 %v632
    %v3098 = vunpack.c.l.b16 %v633
    %v3099 = vunpack.c.h.b16 %v633
    %v3100 = vunpack.c.l.b16 %v634
    %v3101 = vunpack.c.h.b16 %v634
    %v3102 = vunpack.c.l.b16 %v635
    %v3103 = vunpack.c.h.b16 %v635
    %v3104 = vunpack.c.l.b16 %v636
    %v3105 = vunpack.c.h.b16 %v636
    %v3106 = vunpack.c.l.b16 %v637
    %v3107 = vunpack.c.h.b16 %v637
    %v3108 = vunpack.c.l.b16 %v638
    %v3109 = vunpack.c.h.b16 %v638
    %v3110 = vunpack.c.l.b16 %v639
    %v3111 = vunpack.c.h.b16 %v639
    %v3112 = vunpack.c.l.b16 %v640
    %v3113 = vunpack.c.h.b16 %v640
    %v3114 = vunpack.c.l.b16 %v641
    %v3115 = vunpack.c.h.b16 %v641
    %v3116 = vunpack.c.l.b16 %v642
    %v3117 = vunpack.c.h.b16 %v642
    %v3118 = vunpack.c.l.b16 %v643
    %v3119 = vunpack.c.h.b16 %v643
    %v3120 = vunpack.c.l.b16 %v644
    %v3121 = vunpack.c.h.b16 %v644
    %v3122 = vunpack.c.l.b16 %v645
    %v3123 = vunpack.c.h.b16 %v645
    %v3124 = vunpack.c.l.b16 %v646
    %v3125 = vunpack.c.h.b16 %v646
    %v3126 = vunpack.c.l.b16 %v647
    %v3127 = vunpack.c.h.b16 %v647
    %v3128 = vunpack.c.l.b16 %v648
    %v3129 = vunpack.c.h.b16 %v648
    %v3130 = vunpack.c.l.b16 %v649
    %v3131 = vunpack.c.h.b16 %v649
    %v3132 = vunpack.c.l.b16 %v650
    %v3133 = vunpack.c.h.b16 %v650
    %v3134 = vunpack.c.l.b16 %v651
    %v3135 = vunpack.c.h.b16 %v651
    %v3136 = vunpack.c.l.b16 %v652
    %v3137 = vunpack.c.h.b16 %v652
    %v3138 = vunpack.c.l.b16 %v653
    %v3139 = vunpack.c.h.b16 %v653
    %v3140 = vunpack.c.l.b16 %v654
    %v3141 = vunpack.c.h.b16 %v654
    %v3142 = vunpack.c.l.b16 %v655
    %v3143 = vunpack.c.h.b16 %v655
    %v3144 = vunpack.c.l.b16 %v656
    %v3145 = vunpack.c.h.b16 %v656
    %v3146 = vunpack.c.l.b16 %v657
    %v3147 = vunpack.c.h.b16 %v657
    %v3148 = vunpack.c.l.b16 %v658
    %v3149 = vunpack.c.h.b16 %v658
    %v3150 = vunpack.c.l.b16 %v659
    %v3151 = vunpack.c.h.b16 %v659
    %v3152 = vunpack.c.l.b16 %v660
    %v3153 = vunpack.c.h.b16 %v660
    %v3154 = vunpack.c.l.b16 %v661
    %v3155 = vunpack.c.h.b16 %v661
    %v3156 = vunpack.c.l.b16 %v662
    %v3157 = vunpack.c.h.b16 %v662
    %v3158 = vunpack.c.l.b16 %v663
    %v3159 = vunpack.c.h.b16 %v663
    %v3160 = vunpack.c.l.b16 %v664
    %v3161 = vunpack.c.h.b16 %v664
    %v3162 = vunpack.c.l.b16 %v665
    %v3163 = vunpack.c.h.b16 %v665
    %v3164 = vunpack.c.l.b16 %v666
    %v3165 = vunpack.c.h.b16 %v666
    %v3166 = vunpack.c.l.b16 %v667
    %v3167 = vunpack.c.h.b16 %v667
    %v3168 = vunpack.c.l.b16 %v668
    %v3169 = vunpack.c.h.b16 %v668
    %v3170 = vunpack.c.l.b16 %v669
    %v3171 = vunpack.c.h.b16 %v669
    %v3172 = vunpack.c.l.b16 %v670
    %v3173 = vunpack.c.h.b16 %v670
    %v3174 = vunpack.c.l.b16 %v671
    %v3175 = vunpack.c.h.b16 %v671
    %v3176 = vunpack.c.l.b16 %v672
    %v3177 = vunpack.c.h.b16 %v672
    %v3178 = vunpack.c.l.b16 %v673
    %v3179 = vunpack.c.h.b16 %v673
    %v3180 = vunpack.c.l.b16 %v674
    %v3181 = vunpack.c.h.b16 %v674
    %v3182 = vunpack.c.l.b16 %v675
    %v3183 = vunpack.c.h.b16 %v675
    %v3184 = vunpack.c.l.b16 %v676
    %v3185 = vunpack.c.h.b16 %v676
    %v3186 = vunpack.c.l.b16 %v677
    %v3187 = vunpack.c.h.b16 %v677
    %v3188 = vunpack.c.l.b16 %v678
    %v3189 = vunpack.c.h.b16 %v678
    %v3190 = vunpack.c.l.b16 %v679
    %v3191 = vunpack.c.h.b16 %v679
    %v3192 = vunpack.c.l.b16 %v680
    %v3193 = vunpack.c.h.b16 %v680
    %v3194 = vunpack.c.l.b16 %v681
    %v3195 = vunpack.c.h.b16 %v681
    %v3196 = vunpack.c.l.b16 %v682
    %v3197 = vunpack.c.h.b16 %v682
    %v3198 = vunpack.c.l.b16 %v683
    %v3199 = vunpack.c.h.b16 %v683
    %v3200 = vunpack.c.l.b16 %v684
    %v3201 = vunpack.c.h.b16 %v684
    %v3202 = vunpack.c.l.b16 %v685
    %v3203 = vunpack.c.h.b16 %v685
    %v3204 = vunpack.c.l.b16 %v686
    %v3205 = vunpack.c.h.b16 %v686
    %v3206 = vunpack.c.l.b16 %v687
    %v3207 = vunpack.c.h.b16 %v687
    %v3208 = vunpack.c.l.b16 %v688
    %v3209 = vunpack.c.h.b16 %v688
    %v3210 = vunpack.c.l.b16 %v689
    %v3211 = vunpack.c.h.b16 %v689
    %v3212 = vunpack.c.l.b16 %v690
    %v3213 = vunpack.c.h.b16 %v690
    %v3214 = vunpack.c.l.b16 %v691
    %v3215 = vunpack.c.h.b16 %v691
    %v3216 = vunpack.c.l.b16 %v692
    %v3217 = vunpack.c.h.b16 %v692
    %v3218 = vunpack.c.l.b16 %v693
    %v3219 = vunpack.c.h.b16 %v693
    %v3220 = vunpack.c.l.b16 %v694
    %v3221 = vunpack.c.h.b16 %v694
    %v3222 = vunpack.c.l.b16 %v695
    %v3223 = vunpack.c.h.b16 %v695
    %v3224 = vunpack.c.l.b16 %v696
    %v3225 = vunpack.c.h.b16 %v696
    %v3226 = vunpack.c.l.b16 %v697
    %v3227 = vunpack.c.h.b16 %v697
    %v3228 = vunpack.c.l.b16 %v698
    %v3229 = vunpack.c.h.b16 %v698
    %v3230 = vunpack.c.l.b16 %v699
    %v3231 = vunpack.c.h.b16 %v699
    %v3232 = vunpack.c.l.b16 %v700
    %v3233 = vunpack.c.h.b16 %v700
    %v3234 = vunpack.c.l.b16 %v701
    %v3235 = vunpack.c.h.b16 %v701
    %v3236 = vunpack.c.l.b16 %v702
    %v3237 = vunpack.c.h.b16 %v702
    %v3238 = vunpack.c.l.b16 %v703
    %v3239 = vunpack.c.h.b16 %v703
    %v3240 = vunpack.c.l.b16 %v704
    %v3241 = vunpack.c.h.b16 %v704
    %v3242 = vunpack.c.l.b16 %v705
    %v3243 = vunpack.c.h.b16 %v705
    %v3244 = vunpack.c.l.b16 %v706
    %v3245 = vunpack.c.h.b16 %v706
    %v3246 = vunpack.c.l.b16 %v707
    %v3247 = vunpack.c.h.b16 %v707
    %v3248 = vunpack.c.l.b16 %v708
    %v3249 = vunpack.c.h.b16 %v708
    %v3250 = vunpack.c.l.b16 %v709
    %v3251 = vunpack.c.h.b16 %v709
    %v3252 = vunpack.c.l.b16 %v710
    %v3253 = vunpack.c.h.b16 %v710
    %v3254 = vunpack.c.l.b16 %v711
    %v3255 = vunpack.c.h.b16 %v711
    %v3256 = vunpack.c.l.b16 %v712
    %v3257 = vunpack.c.h.b16 %v712
    %v3258 = vunpack.c.l.b16 %v713
    %v3259 = vunpack.c.h.b16 %v713
    %v3260 = vunpack.c.l.b16 %v714
    %v3261 = vunpack.c.h.b16 %v714
    %v3262 = vunpack.c.l.b16 %v715
    %v3263 = vunpack.c.h.b16 %v715
    %v3264 = vunpack.c.l.b16 %v716
    %v3265 = vunpack.c.h.b16 %v716
    %v3266 = vunpack.c.l.b16 %v717
    %v3267 = vunpack.c.h.b16 %v717
    %v3268 = vunpack.c.l.b16 %v718
    %v3269 = vunpack.c.h.b16 %v718
    %v3270 = vunpack.c.l.b16 %v719
    %v3271 = vunpack.c.h.b16 %v719
    %v3272 = vunpack.c.l.b16 %v720
    %v3273 = vunpack.c.h.b16 %v720
    %v3274 = vunpack.c.l.b16 %v721
    %v3275 = vunpack.c.h.b16 %v721
    %v3276 = vunpack.c.l.b16 %v722
    %v3277 = vunpack.c.h.b16 %v722
    %v3278 = vunpack.c.l.b16 %v723
    %v3279 = vunpack.c.h.b16 %v723
    %v3280 = vunpack.c.l.b16 %v724
    %v3281 = vunpack.c.h.b16 %v724
    %v3282 = vunpack.c.l.b16 %v725
    %v3283 = vunpack.c.h.b16 %v725
    %v3284 = vunpack.c.l.b16 %v726
    %v3285 = vunpack.c.h.b16 %v726
    %v3286 = vunpack.c.l.b16 %v727
    %v3287 = vunpack.c.h.b16 %v727
    %v3288 = vunpack.c.l.b16 %v728
    %v3289 = vunpack.c.h.b16 %v728
    %v3290 = vunpack.c.l.b16 %v729
    %v3291 = vunpack.c.h.b16 %v729
    %v3292 = vunpack.c.l.b16 %v730
    %v3293 = vunpack.c.h.b16 %v730
    %v3294 = vunpack.c.l.b16 %v731
    %v3295 = vunpack.c.h.b16 %v731
    %v3296 = vunpack.c.l.b16 %v732
    %v3297 = vunpack.c.h.b16 %v732
    %v3298 = vunpack.c.l.b16 %v733
    %v3299 = vunpack.c.h.b16 %v733
    %v3300 = vunpack.c.l.b16 %v734
    %v3301 = vunpack.c.h.b16 %v734
    %v3302 = vunpack.c.l.b16 %v735
    %v3303 = vunpack.c.h.b16 %v735
    %v3304 = vunpack.c.l.b16 %v736
    %v3305 = vunpack.c.h.b16 %v736
    %v3306 = vunpack.c.l.b16 %v737
    %v3307 = vunpack.c.h.b16 %v737
    %v3308 = vunpack.c.l.b16 %v738
    %v3309 = vunpack.c.h.b16 %v738
    %v3310 = vunpack.c.l.b16 %v739
    %v3311 = vunpack.c.h.b16 %v739
    %v3312 = vunpack.c.l.b16 %v740
    %v3313 = vunpack.c.h.b16 %v740
    %v3314 = vunpack.c.l.b16 %v741
    %v3315 = vunpack.c.h.b16 %v741
    %v3316 = vunpack.c.l.b16 %v742
    %v3317 = vunpack.c.h.b16 %v742
    %v3318 = vunpack.c.l.b16 %v743
    %v3319 = vunpack.c.h.b16 %v743
    %v3320 = vunpack.c.l.b16 %v744
    %v3321 = vunpack.c.h.b16 %v744
    %v3322 = vunpack.c.l.b16 %v745
    %v3323 = vunpack.c.h.b16 %v745
    %v3324 = vunpack.c.l.b16 %v746
    %v3325 = vunpack.c.h.b16 %v746
    %v3326 = vunpack.c.l.b16 %v747
    %v3327 = vunpack.c.h.b16 %v747
    %v3328 = vunpack.c.l.b16 %v748
    %v3329 = vunpack.c.h.b16 %v748
    %v3330 = vunpack.c.l.b16 %v749
    %v3331 = vunpack.c.h.b16 %v749
    %v3332 = vunpack.c.l.b16 %v750
    %v3333 = vunpack.c.h.b16 %v750
    %v3334 = vunpack.c.l.b16 %v751
    %v3335 = vunpack.c.h.b16 %v751
    %v3336 = vunpack.c.l.b16 %v752
    %v3337 = vunpack.c.h.b16 %v752
    %v3338 = vunpack.c.l.b16 %v753
    %v3339 = vunpack.c.h.b16 %v753
    %v3340 = vunpack.c.l.b16 %v754
    %v3341 = vunpack.c.h.b16 %v754
    %v3342 = vunpack.c.l.b16 %v755
    %v3343 = vunpack.c.h.b16 %v755
    %v3344 = vunpack.c.l.b16 %v756
    %v3345 = vunpack.c.h.b16 %v756
    %v3346 = vunpack.c.l.b16 %v757
    %v3347 = vunpack.c.h.b16 %v757
    %v3348 = vunpack.c.l.b16 %v758
    %v3349 = vunpack.c.h.b16 %v758
    %v3350 = vunpack.c.l.b16 %v759
    %v3351 = vunpack.c.h.b16 %v759
    %v3352 = vunpack.c.l.b16 %v760
    %v3353 = vunpack.c.h.b16 %v760
    %v3354 = vunpack.c.l.b16 %v761
    %v3355 = vunpack.c.h.b16 %v761
    %v3356 = vunpack.c.l.b16 %v762
    %v3357 = vunpack.c.h.b16 %v762
    %v3358 = vunpack.c.l.b16 %v763
    %v3359 = vunpack.c.h.b16 %v763
    %v3360 = vunpack.c.l.b16 %v764
    %v3361 = vunpack.c.h.b16 %v764
    %v3362 = vunpack.c.l.b16 %v765
    %v3363 = vunpack.c.h.b16 %v765
    %v3364 = vunpack.c.l.b16 %v766
    %v3365 = vunpack.c.h.b16 %v766
    %v3366 = vunpack.c.l.b16 %v767
    %v3367 = vunpack.c.h.b16 %v767
    %v3368 = vunpack.c.l.b16 %v768
    %v3369 = vunpack.c.h.b16 %v768
    %v3370 = vunpack.c.l.b16 %v769
    %v3371 = vunpack.c.h.b16 %v769
    %v3372 = vunpack.c.l.b16 %v770
    %v3373 = vunpack.c.h.b16 %v770
    %v3374 = vunpack.c.l.b16 %v771
    %v3375 = vunpack.c.h.b16 %v771
    %v3376 = vunpack.c.l.b16 %v772
    %v3377 = vunpack.c.h.b16 %v772
    %v3378 = vunpack.c.l.b16 %v773
    %v3379 = vunpack.c.h.b16 %v773
    %v3380 = vunpack.c.l.b16 %v774
    %v3381 = vunpack.c.h.b16 %v774
    %v3382 = vunpack.c.l.b16 %v775
    %v3383 = vunpack.c.h.b16 %v775
    %v3384 = vunpack.c.l.b16 %v776
    %v3385 = vunpack.c.h.b16 %v776
    %v3386 = vunpack.c.l.b16 %v777
    %v3387 = vunpack.c.h.b16 %v777
    %v3388 = vunpack.c.l.b16 %v778
    %v3389 = vunpack.c.h.b16 %v778
    %v3390 = vunpack.c.l.b16 %v779
    %v3391 = vunpack.c.h.b16 %v779
    %v3392 = vunpack.c.l.b16 %v780
    %v3393 = vunpack.c.h.b16 %v780
    %v3394 = vunpack.c.l.b16 %v781
    %v3395 = vunpack.c.h.b16 %v781
    %v3396 = vunpack.c.l.b16 %v782
    %v3397 = vunpack.c.h.b16 %v782
    %v3398 = vunpack.c.l.b16 %v783
    %v3399 = vunpack.c.h.b16 %v783
    %v3400 = vunpack.c.l.b16 %v784
    %v3401 = vunpack.c.h.b16 %v784
    %v3402 = vunpack.c.l.b16 %v785
    %v3403 = vunpack.c.h.b16 %v785
    %v3404 = vunpack.c.l.b16 %v786
    %v3405 = vunpack.c.h.b16 %v786
    %v3406 = vunpack.c.l.b16 %v787
    %v3407 = vunpack.c.h.b16 %v787
    %v3408 = vunpack.c.l.b16 %v788
    %v3409 = vunpack.c.h.b16 %v788
    %v3410 = vunpack.c.l.b16 %v789
    %v3411 = vunpack.c.h.b16 %v789
    %v3412 = vunpack.c.l.b16 %v790
    %v3413 = vunpack.c.h.b16 %v790
    %v3414 = vunpack.c.l.b16 %v791
    %v3415 = vunpack.c.h.b16 %v791
    %v3416 = vunpack.c.l.b16 %v792
    %v3417 = vunpack.c.h.b16 %v792
    %v3418 = vunpack.c.l.b16 %v793
    %v3419 = vunpack.c.h.b16 %v793
    %v3420 = vunpack.c.l.b16 %v794
    %v3421 = vunpack.c.h.b16 %v794
    %v3422 = vunpack.c.l.b16 %v795
    %v3423 = vunpack.c.h.b16 %v795
    %v3424 = vunpack.c.l.b16 %v796
    %v3425 = vunpack.c.h.b16 %v796
    %v3426 = vunpack.c.l.b16 %v797
    %v3427 = vunpack.c.h.b16 %v797
    %v3428 = vunpack.c.l.b16 %v798
    %v3429 = vunpack.c.h.b16 %v798
    %v3430 = vunpack.c.l.b16 %v799
    %v3431 = vunpack.c.h.b16 %v799
    %v3432 = vunpack.c.l.b16 %v800
    %v3433 = vunpack.c.h.b16 %v800
    %v3434 = vunpack.c.l.b16 %v801
    %v3435 = vunpack.c.h.b16 %v801
    %v3436 = vunpack.c.l.b16 %v802
    %v3437 = vunpack.c.h.b16 %v802
    %v3438 = vunpack.c.l.b16 %v803
    %v3439 = vunpack.c.h.b16 %v803
    %v3440 = vunpack.c.l.b16 %v804
    %v3441 = vunpack.c.h.b16 %v804
    %v3442 = vunpack.c.l.b16 %v805
    %v3443 = vunpack.c.h.b16 %v805
    %v3444 = vunpack.c.l.b16 %v806
    %v3445 = vunpack.c.h.b16 %v806
    %v3446 = vunpack.c.l.b16 %v807
    %v3447 = vunpack.c.h.b16 %v807
    %v3448 = vunpack.c.l.b16 %v808
    %v3449 = vunpack.c.h.b16 %v808
    %v3450 = vunpack.c.l.b16 %v809
    %v3451 = vunpack.c.h.b16 %v809
    %v3452 = vunpack.c.l.b16 %v810
    %v3453 = vunpack.c.h.b16 %v810
    %v3454 = vunpack.c.l.b16 %v811
    %v3455 = vunpack.c.h.b16 %v811
    %v3456 = vunpack.c.l.b16 %v812
    %v3457 = vunpack.c.h.b16 %v812
    %v3458 = vunpack.c.l.b16 %v813
    %v3459 = vunpack.c.h.b16 %v813
    %v3460 = vunpack.c.l.b16 %v814
    %v3461 = vunpack.c.h.b16 %v814
    %v3462 = vunpack.c.l.b16 %v815
    %v3463 = vunpack.c.h.b16 %v815
    %v3464 = vunpack.c.l.b16 %v816
    %v3465 = vunpack.c.h.b16 %v816
    %v3466 = vunpack.c.l.b16 %v817
    %v3467 = vunpack.c.h.b16 %v817
    %v3468 = vunpack.c.l.b16 %v818
    %v3469 = vunpack.c.h.b16 %v818
    %v3470 = vunpack.c.l.b16 %v819
    %v3471 = vunpack.c.h.b16 %v819
    %v3472 = vunpack.c.l.b16 %v820
    %v3473 = vunpack.c.h.b16 %v820
    %v3474 = vunpack.c.l.b16 %v821
    %v3475 = vunpack.c.h.b16 %v821
    %v3476 = vunpack.c.l.b16 %v822
    %v3477 = vunpack.c.h.b16 %v822
    %v3478 = vunpack.c.l.b16 %v823
    %v3479 = vunpack.c.h.b16 %v823
    %v3480 = vunpack.c.l.b16 %v824
    %v3481 = vunpack.c.h.b16 %v824
    %v3482 = vunpack.c.l.b16 %v825
    %v3483 = vunpack.c.h.b16 %v825
    %v3484 = vunpack.c.l.b16 %v826
    %v3485 = vunpack.c.h.b16 %v826
    %v3486 = vunpack.c.l.b16 %v827
    %v3487 = vunpack.c.h.b16 %v827
    %v3488 = vunpack.c.l.b16 %v828
    %v3489 = vunpack.c.h.b16 %v828
    %v3490 = vunpack.c.l.b16 %v829
    %v3491 = vunpack.c.h.b16 %v829
    %v3492 = vunpack.c.l.b16 %v830
    %v3493 = vunpack.c.h.b16 %v830
    %v3494 = vunpack.c.l.b16 %v831
    %v3495 = vunpack.c.h.b16 %v831
    %v3496 = vpack.c.b16 %v1962, %v1960
    %v3497 = vpack.c.b16 %v1963, %v1961
    %v3498 = vpack.c.b16 %v1966, %v1964
    %v3499 = vpack.c.b16 %v1967, %v1965
    %v3500 = vpack.c.b16 %v1970, %v1968
    %v3501 = vpack.c.b16 %v1971, %v1969
    %v3502 = vpack.c.b16 %v1974, %v1972
    %v3503 = vpack.c.b16 %v1975, %v1973
    %v3504 = vpack.c.b16 %v1978, %v1976
    %v3505 = vpack.c.b16 %v1979, %v1977
    %v3506 = vpack.c.b16 %v1982, %v1980
    %v3507 = vpack.c.b16 %v1983, %v1981
    %v3508 = vpack.c.b16 %v1986, %v1984
    %v3509 = vpack.c.b16 %v1987, %v1985
    %v3510 = vpack.c.b16 %v1990, %v1988
    %v3511 = vpack.c.b16 %v1991, %v1989
    %v3512 = vpack.c.b16 %v1994, %v1992
    %v3513 = vpack.c.b16 %v1995, %v1993
    %v3514 = vpack.c.b16 %v1998, %v1996
    %v3515 = vpack.c.b16 %v1999, %v1997
    %v3516 = vpack.c.b16 %v2002, %v2000
    %v3517 = vpack.c.b16 %v2003, %v2001
    %v3518 = vpack.c.b16 %v2006, %v2004
    %v3519 = vpack.c.b16 %v2007, %v2005
    %v3520 = vpack.c.b16 %v2010, %v2008
    %v3521 = vpack.c.b16 %v2011, %v2009
    %v3522 = vpack.c.b16 %v2014, %v2012
    %v3523 = vpack.c.b16 %v2015, %v2013
    %v3524 = vpack.c.b16 %v2018, %v2016
    %v3525 = vpack.c.b16 %v2019, %v2017
    %v3526 = vpack.c.b16 %v2022, %v2020
    %v3527 = vpack.c.b16 %v2023, %v2021
    %v3528 = vpack.c.b16 %v2026, %v2024
    %v3529 = vpack.c.b16 %v2027, %v2025
    %v3530 = vpack.c.b16 %v2030, %v2028
    %v3531 = vpack.c.b16 %v2031, %v2029
    %v3532 = vpack.c.b16 %v2034, %v2032
    %v3533 = vpack.c.b16 %v2035, %v2033
    %v3534 = vpack.c.b16 %v2038, %v2036
    %v3535 = vpack.c.b16 %v2039, %v2037
    %v3536 = vpack.c.b16 %v2042, %v2040
    %v3537 = vpack.c.b16 %v2043, %v2041
    %v3538 = vpack.c.b16 %v2046, %v2044
    %v3539 = vpack.c.b16 %v2047, %v2045
    %v3540 = vpack.c.b16 %v2050, %v2048
    %v3541 = vpack.c.b16 %v2051, %v2049
    %v3542 = vpack.c.b16 %v2054, %v2052
    %v3543 = vpack.c.b16 %v2055, %v2053
    %v3544 = vpack.c.b16 %v2058, %v2056
    %v3545 = vpack.c.b16 %v2059, %v2057
    %v3546 = vpack.c.b16 %v2062, %v2060
    %v3547 = vpack.c.b16 %v2063, %v2061
    %v3548 = vpack.c.b16 %v2066, %v2064
    %v3549 = vpack.c.b16 %v2067, %v2065
    %v3550 = vpack.c.b16 %v2070, %v2068
    %v3551 = vpack.c.b16 %v2071, %v2069
    %v3552 = vpack.c.b16 %v2074, %v2072
    %v3553 = vpack.c.b16 %v2075, %v2073
    %v3554 = vpack.c.b16 %v2078, %v2076
    %v3555 = vpack.c.b16 %v2079, %v2077
    %v3556 = vpack.c.b16 %v2082, %v2080
    %v3557 = vpack.c.b16 %v2083, %v2081
    %v3558 = vpack.c.b16 %v2086, %v2084
    %v3559 = vpack.c.b16 %v2087, %v2085
    %v3560 = vpack.c.b16 %v2090, %v2088
    %v3561 = vpack.c.b16 %v2091, %v2089
    %v3562 = vpack.c.b16 %v2094, %v2092
    %v3563 = vpack.c.b16 %v2095, %v2093
    %v3564 = vpack.c.b16 %v2098, %v2096
    %v3565 = vpack.c.b16 %v2099, %v2097
    %v3566 = vpack.c.b16 %v2102, %v2100
    %v3567 = vpack.c.b16 %v2103, %v2101
    %v3568 = vpack.c.b16 %v2106, %v2104
    %v3569 = vpack.c.b16 %v2107, %v2105
    %v3570 = vpack.c.b16 %v2110, %v2108
    %v3571 = vpack.c.b16 %v2111, %v2109
    %v3572 = vpack.c.b16 %v2114, %v2112
    %v3573 = vpack.c.b16 %v2115, %v2113
    %v3574 = vpack.c.b16 %v2118, %v2116
    %v3575 = vpack.c.b16 %v2119, %v2117
    %v3576 = vpack.c.b16 %v2122, %v2120
    %v3577 = vpack.c.b16 %v2123, %v2121
    %v3578 = vpack.c.b16 %v2126, %v2124
    %v3579 = vpack.c.b16 %v2127, %v2125
    %v3580 = vpack.c.b16 %v2130, %v2128
    %v3581 = vpack.c.b16 %v2131, %v2129
    %v3582 = vpack.c.b16 %v2134, %v2132
    %v3583 = vpack.c.b16 %v2135, %v2133
    %v3584 = vpack.c.b16 %v2138, %v2136
    %v3585 = vpack.c.b16 %v2139, %v2137
    %v3586 = vpack.c.b16 %v2142, %v2140
    %v3587 = vpack.c.b16 %v2143, %v2141
    %v3588 = vpack.c.b16 %v2146, %v2144
    %v3589 = vpack.c.b16 %v2147, %v2145
    %v3590 = vpack.c.b16 %v2150, %v2148
    %v3591 = vpack.c.b16 %v2151, %v2149
    %v3592 = vpack.c.b16 %v2154, %v2152
    %v3593 = vpack.c.b16 %v2155, %v2153
    %v3594 = vpack.c.b16 %v2158, %v2156
    %v3595 = vpack.c.b16 %v2159, %v2157
    %v3596 = vpack.c.b16 %v2162, %v2160
    %v3597 = vpack.c.b16 %v2163, %v2161
    %v3598 = vpack.c.b16 %v2166, %v2164
    %v3599 = vpack.c.b16 %v2167, %v2165
    %v3600 = vpack.c.b16 %v2170, %v2168
    %v3601 = vpack.c.b16 %v2171, %v2169
    %v3602 = vpack.c.b16 %v2174, %v2172
    %v3603 = vpack.c.b16 %v2175, %v2173
    %v3604 = vpack.c.b16 %v2178, %v2176
    %v3605 = vpack.c.b16 %v2179, %v2177
    %v3606 = vpack.c.b16 %v2182, %v2180
    %v3607 = vpack.c.b16 %v2183, %v2181
    %v3608 = vpack.c.b16 %v2186, %v2184
    %v3609 = vpack.c.b16 %v2187, %v2185
    %v3610 = vpack.c.b16 %v2190, %v2188
    %v3611 = vpack.c.b16 %v2191, %v2189
    %v3612 = vpack.c.b16 %v2194, %v2192
    %v3613 = vpack.c.b16 %v2195, %v2193
    %v3614 = vpack.c.b16 %v2198, %v2196
    %v3615 = vpack.c.b16 %v2199, %v2197
    %v3616 = vpack.c.b16 %v2202, %v2200
    %v3617 = vpack.c.b16 %v2203, %v2201
    %v3618 = vpack.c.b16 %v2206, %v2204
    %v3619 = vpack.c.b16 %v2207, %v2205
    %v3620 = vpack.c.b16 %v2210, %v2208
    %v3621 = vpack.c.b16 %v2211, %v2209
    %v3622 = vpack.c.b16 %v2214, %v2212
    %v3623 = vpack.c.b16 %v2215, %v2213
    %v3624 = vpack.c.b16 %v2218, %v2216
    %v3625 = vpack.c.b16 %v2219, %v2217
    %v3626 = vpack.c.b16 %v2222, %v2220
    %v3627 = vpack.c.b16 %v2223, %v2221
    %v3628 = vpack.c.b16 %v2226, %v2224
    %v3629 = vpack.c.b16 %v2227, %v2225
    %v3630 = vpack.c.b16 %v2230, %v2228
    %v3631 = vpack.c.b16 %v2231, %v2229
    %v3632 = vpack.c.b16 %v2234, %v2232
    %v3633 = vpack.c.b16 %v2235, %v2233
    %v3634 = vpack.c.b16 %v2238, %v2236
    %v3635 = vpack.c.b16 %v2239, %v2237
    %v3636 = vpack.c.b16 %v2242, %v2240
    %v3637 = vpack.c.b16 %v2243, %v2241
    %v3638 = vpack.c.b16 %v2246, %v2244
    %v3639 = vpack.c.b16 %v2247, %v2245
    %v3640 = vpack.c.b16 %v2250, %v2248
    %v3641 = vpack.c.b16 %v2251, %v2249
    %v3642 = vpack.c.b16 %v2254, %v2252
    %v3643 = vpack.c.b16 %v2255, %v2253
    %v3644 = vpack.c.b16 %v2258, %v2256
    %v3645 = vpack.c.b16 %v2259, %v2257
    %v3646 = vpack.c.b16 %v2262, %v2260
    %v3647 = vpack.c.b16 %v2263, %v2261
    %v3648 = vpack.c.b16 %v2266, %v2264
    %v3649 = vpack.c.b16 %v2267, %v2265
    %v3650 = vpack.c.b16 %v2270, %v2268
    %v3651 = vpack.c.b16 %v2271, %v2269
    %v3652 = vpack.c.b16 %v2274, %v2272
    %v3653 = vpack.c.b16 %v2275, %v2273
    %v3654 = vpack.c.b16 %v2278, %v2276
    %v3655 = vpack.c.b16 %v2279, %v2277
    %v3656 = vpack.c.b16 %v2282, %v2280
    %v3657 = vpack.c.b16 %v2283, %v2281
    %v3658 = vpack.c.b16 %v2286, %v2284
    %v3659 = vpack.c.b16 %v2287, %v2285
    %v3660 = vpack.c.b16 %v2290, %v2288
    %v3661 = vpack.c.b16 %v2291, %v2289
    %v3662 = vpack.c.b16 %v2294, %v2292
    %v3663 = vpack.c.b16 %v2295, %v2293
    %v3664 = vpack.c.b16 %v2298, %v2296
    %v3665 = vpack.c.b16 %v2299, %v2297
    %v3666 = vpack.c.b16 %v2302, %v2300
    %v3667 = vpack.c.b16 %v2303, %v2301
    %v3668 = vpack.c.b16 %v2306, %v2304
    %v3669 = vpack.c.b16 %v2307, %v2305
    %v3670 = vpack.c.b16 %v2310, %v2308
    %v3671 = vpack.c.b16 %v2311, %v2309
    %v3672 = vpack.c.b16 %v2314, %v2312
    %v3673 = vpack.c.b16 %v2315, %v2313
    %v3674 = vpack.c.b16 %v2318, %v2316
    %v3675 = vpack.c.b16 %v2319, %v2317
    %v3676 = vpack.c.b16 %v2322, %v2320
    %v3677 = vpack.c.b16 %v2323, %v2321
    %v3678 = vpack.c.b16 %v2326, %v2324
    %v3679 = vpack.c.b16 %v2327, %v2325
    %v3680 = vpack.c.b16 %v2330, %v2328
    %v3681 = vpack.c.b16 %v2331, %v2329
    %v3682 = vpack.c.b16 %v2334, %v2332
    %v3683 = vpack.c.b16 %v2335, %v2333
    %v3684 = vpack.c.b16 %v2338, %v2336
    %v3685 = vpack.c.b16 %v2339, %v2337
    %v3686 = vpack.c.b16 %v2342, %v2340
    %v3687 = vpack.c.b16 %v2343, %v2341
    %v3688 = vpack.c.b16 %v2346, %v2344
    %v3689 = vpack.c.b16 %v2347, %v2345
    %v3690 = vpack.c.b16 %v2350, %v2348
    %v3691 = vpack.c.b16 %v2351, %v2349
    %v3692 = vpack.c.b16 %v2354, %v2352
    %v3693 = vpack.c.b16 %v2355, %v2353
    %v3694 = vpack.c.b16 %v2358, %v2356
    %v3695 = vpack.c.b16 %v2359, %v2357
    %v3696 = vpack.c.b16 %v2362, %v2360
    %v3697 = vpack.c.b16 %v2363, %v2361
    %v3698 = vpack.c.b16 %v2366, %v2364
    %v3699 = vpack.c.b16 %v2367, %v2365
    %v3700 = vpack.c.b16 %v2370, %v2368
    %v3701 = vpack.c.b16 %v2371, %v2369
    %v3702 = vpack.c.b16 %v2374, %v2372
    %v3703 = vpack.c.b16 %v2375, %v2373
    %v3704 = vpack.c.b16 %v2378, %v2376
    %v3705 = vpack.c.b16 %v2379, %v2377
    %v3706 = vpack.c.b16 %v2382, %v2380
    %v3707 = vpack.c.b16 %v2383, %v2381
    %v3708 = vpack.c.b16 %v2386, %v2384
    %v3709 = vpack.c.b16 %v2387, %v2385
    %v3710 = vpack.c.b16 %v2390, %v2388
    %v3711 = vpack.c.b16 %v2391, %v2389
    %v3712 = vpack.c.b16 %v2394, %v2392
    %v3713 = vpack.c.b16 %v2395, %v2393
    %v3714 = vpack.c.b16 %v2398, %v2396
    %v3715 = vpack.c.b16 %v2399, %v2397
    %v3716 = vpack.c.b16 %v2402, %v2400
    %v3717 = vpack.c.b16 %v2403, %v2401
    %v3718 = vpack.c.b16 %v2406, %v2404
    %v3719 = vpack.c.b16 %v2407, %v2405
    %v3720 = vpack.c.b16 %v2410, %v2408
    %v3721 = vpack.c.b16 %v2411, %v2409
    %v3722 = vpack.c.b16 %v2414, %v2412
    %v3723 = vpack.c.b16 %v2415, %v2413
    %v3724 = vpack.c.b16 %v2418, %v2416
    %v3725 = vpack.c.b16 %v2419, %v2417
    %v3726 = vpack.c.b16 %v2422, %v2420
    %v3727 = vpack.c.b16 %v2423, %v2421
    %v3728 = vpack.c.b16 %v2426, %v2424
    %v3729 = vpack.c.b16 %v2427, %v2425
    %v3730 = vpack.c.b16 %v2430, %v2428
    %v3731 = vpack.c.b16 %v2431, %v2429
    %v3732 = vpack.c.b16 %v2434, %v2432
    %v3733 = vpack.c.b16 %v2435, %v2433
    %v3734 = vpack.c.b16 %v2438, %v2436
    %v3735 = vpack.c.b16 %v2439, %v2437
    %v3736 = vpack.c.b16 %v2442, %v2440
    %v3737 = vpack.c.b16 %v2443, %v2441
    %v3738 = vpack.c.b16 %v2446, %v2444
    %v3739 = vpack.c.b16 %v2447, %v2445
    %v3740 = vpack.c.b16 %v2450, %v2448
    %v3741 = vpack.c.b16 %v2451, %v2449
    %v3742 = vpack.c.b16 %v2454, %v2452
    %v3743 = vpack.c.b16 %v2455, %v2453
    %v3744 = vpack.c.b16 %v2458, %v2456
    %v3745 = vpack.c.b16 %v2459, %v2457
    %v3746 = vpack.c.b16 %v2462, %v2460
    %v3747 = vpack.c.b16 %v2463, %v2461
    %v3748 = vpack.c.b16 %v2466, %v2464
    %v3749 = vpack.c.b16 %v2467, %v2465
    %v3750 = vpack.c.b16 %v2470, %v2468
    %v3751 = vpack.c.b16 %v2471, %v2469
    %v3752 = vpack.c.b16 %v2474, %v2472
    %v3753 = vpack.c.b16 %v2475, %v2473
    %v3754 = vpack.c.b16 %v2478, %v2476
    %v3755 = vpack.c.b16 %v2479, %v2477
    %v3756 = vpack.c.b16 %v2482, %v2480
    %v3757 = vpack.c.b16 %v2483, %v2481
    %v3758 = vpack.c.b16 %v2486, %v2484
    %v3759 = vpack.c.b16 %v2487, %v2485
    %v3760 = vpack.c.b16 %v2490, %v2488
    %v3761 = vpack.c.b16 %v2491, %v2489
    %v3762 = vpack.c.b16 %v2494, %v2492
    %v3763 = vpack.c.b16 %v2495, %v2493
    %v3764 = vpack.c.b16 %v2498, %v2496
    %v3765 = vpack.c.b16 %v2499, %v2497
    %v3766 = vpack.c.b16 %v2502, %v2500
    %v3767 = vpack.c.b16 %v2503, %v2501
    %v3768 = vpack.c.b16 %v2506, %v2504
    %v3769 = vpack.c.b16 %v2507, %v2505
    %v3770 = vpack.c.b16 %v2510, %v2508
    %v3771 = vpack.c.b16 %v2511, %v2509
    %v3772 = vpack.c.b16 %v2514, %v2512
    %v3773 = vpack.c.b16 %v2515, %v2513
    %v3774 = vpack.c.b16 %v2518, %v2516
    %v3775 = vpack.c.b16 %v2519, %v2517
    %v3776 = vpack.c.b16 %v2522, %v2520
    %v3777 = vpack.c.b16 %v2523, %v2521
    %v3778 = vpack.c.b16 %v2526, %v2524
    %v3779 = vpack.c.b16 %v2527, %v2525
    %v3780 = vpack.c.b16 %v2530, %v2528
    %v3781 = vpack.c.b16 %v2531, %v2529
    %v3782 = vpack.c.b16 %v2534, %v2532
    %v3783 = vpack.c.b16 %v2535, %v2533
    %v3784 = vpack.c.b16 %v2538, %v2536
    %v3785 = vpack.c.b16 %v2539, %v2537
    %v3786 = vpack.c.b16 %v2542, %v2540
    %v3787 = vpack.c.b16 %v2543, %v2541
    %v3788 = vpack.c.b16 %v2546, %v2544
    %v3789 = vpack.c.b16 %v2547, %v2545
    %v3790 = vpack.c.b16 %v2550, %v2548
    %v3791 = vpack.c.b16 %v2551, %v2549
    %v3792 = vpack.c.b16 %v2554, %v2552
    %v3793 = vpack.c.b16 %v2555, %v2553
    %v3794 = vpack.c.b16 %v2558, %v2556
    %v3795 = vpack.c.b16 %v2559, %v2557
    %v3796 = vpack.c.b16 %v2562, %v2560
    %v3797 = vpack.c.b16 %v2563, %v2561
    %v3798 = vpack.c.b16 %v2566, %v2564
    %v3799 = vpack.c.b16 %v2567, %v2565
    %v3800 = vpack.c.b16 %v2570, %v2568
    %v3801 = vpack.c.b16 %v2571, %v2569
    %v3802 = vpack.c.b16 %v2574, %v2572
    %v3803 = vpack.c.b16 %v2575, %v2573
    %v3804 = vpack.c.b16 %v2578, %v2576
    %v3805 = vpack.c.b16 %v2579, %v2577
    %v3806 = vpack.c.b16 %v2582, %v2580
    %v3807 = vpack.c.b16 %v2583, %v2581
    %v3808 = vpack.c.b16 %v2586, %v2584
    %v3809 = vpack.c.b16 %v2587, %v2585
    %v3810 = vpack.c.b16 %v2590, %v2588
    %v3811 = vpack.c.b16 %v2591, %v2589
    %v3812 = vpack.c.b16 %v2594, %v2592
    %v3813 = vpack.c.b16 %v2595, %v2593
    %v3814 = vpack.c.b16 %v2598, %v2596
    %v3815 = vpack.c.b16 %v2599, %v2597
    %v3816 = vpack.c.b16 %v2602, %v2600
    %v3817 = vpack.c.b16 %v2603, %v2601
    %v3818 = vpack.c.b16 %v2606, %v2604
    %v3819 = vpack.c.b16 %v2607, %v2605
    %v3820 = vpack.c.b16 %v2610, %v2608
    %v3821 = vpack.c.b16 %v2611, %v2609
    %v3822 = vpack.c.b16 %v2614, %v2612
    %v3823 = vpack.c.b16 %v2615, %v2613
    %v3824 = vpack.c.b16 %v2618, %v2616
    %v3825 = vpack.c.b16 %v2619, %v2617
    %v3826 = vpack.c.b16 %v2622, %v2620
    %v3827 = vpack.c.b16 %v2623, %v2621
    %v3828 = vpack.c.b16 %v2626, %v2624
    %v3829 = vpack.c.b16 %v2627, %v2625
    %v3830 = vpack.c.b16 %v2630, %v2628
    %v3831 = vpack.c.b16 %v2631, %v2629
    %v3832 = vpack.c.b16 %v2634, %v2632
    %v3833 = vpack.c.b16 %v2635, %v2633
    %v3834 = vpack.c.b16 %v2638, %v2636
    %v3835 = vpack.c.b16 %v2639, %v2637
    %v3836 = vpack.c.b16 %v2642, %v2640
    %v3837 = vpack.c.b16 %v2643, %v2641
    %v3838 = vpack.c.b16 %v2646, %v2644
    %v3839 = vpack.c.b16 %v2647, %v2645
    %v3840 = vpack.c.b16 %v2650, %v2648
    %v3841 = vpack.c.b16 %v2651, %v2649
    %v3842 = vpack.c.b16 %v2654, %v2652
    %v3843 = vpack.c.b16 %v2655, %v2653
    %v3844 = vpack.c.b16 %v2658, %v2656
    %v3845 = vpack.c.b16 %v2659, %v2657
    %v3846 = vpack.c.b16 %v2662, %v2660
    %v3847 = vpack.c.b16 %v2663, %v2661
    %v3848 = vpack.c.b16 %v2666, %v2664
    %v3849 = vpack.c.b16 %v2667, %v2665
    %v3850 = vpack.c.b16 %v2670, %v2668
    %v3851 = vpack.c.b16 %v2671, %v2669
    %v3852 = vpack.c.b16 %v2674, %v2672
    %v3853 = vpack.c.b16 %v2675, %v2673
    %v3854 = vpack.c.b16 %v2678, %v2676
    %v3855 = vpack.c.b16 %v2679, %v2677
    %v3856 = vpack.c.b16 %v2682, %v2680
    %v3857 = vpack.c.b16 %v2683, %v2681
    %v3858 = vpack.c.b16 %v2686, %v2684
    %v3859 = vpack.c.b16 %v2687, %v2685
    %v3860 = vpack.c.b16 %v2690, %v2688
    %v3861 = vpack.c.b16 %v2691, %v2689
    %v3862 = vpack.c.b16 %v2694, %v2692
    %v3863 = vpack.c.b16 %v2695, %v2693
    %v3864 = vpack.c.b16 %v2698, %v2696
    %v3865 = vpack.c.b16 %v2699, %v2697
    %v3866 = vpack.c.b16 %v2702, %v2700
    %v3867 = vpack.c.b16 %v2703, %v2701
    %v3868 = vpack.c.b16 %v2706, %v2704
    %v3869 = vpack.c.b16 %v2707, %v2705
    %v3870 = vpack.c.b16 %v2710, %v2708
    %v3871 = vpack.c.b16 %v2711, %v2709
    %v3872 = vpack.c.b16 %v2714, %v2712
    %v3873 = vpack.c.b16 %v2715, %v2713
    %v3874 = vpack.c.b16 %v2718, %v2716
    %v3875 = vpack.c.b16 %v2719, %v2717
    %v3876 = vpack.c.b16 %v2722, %v2720
    %v3877 = vpack.c.b16 %v2723, %v2721
    %v3878 = vpack.c.b16 %v2726, %v2724
    %v3879 = vpack.c.b16 %v2727, %v2725
    %v3880 = vpack.c.b16 %v2730, %v2728
    %v3881 = vpack.c.b16 %v2731, %v2729
    %v3882 = vpack.c.b16 %v2734, %v2732
    %v3883 = vpack.c.b16 %v2735, %v2733
    %v3884 = vpack.c.b16 %v2738, %v2736
    %v3885 = vpack.c.b16 %v2739, %v2737
    %v3886 = vpack.c.b16 %v2742, %v2740
    %v3887 = vpack.c.b16 %v2743, %v2741
    %v3888 = vpack.c.b16 %v2746, %v2744
    %v3889 = vpack.c.b16 %v2747, %v2745
    %v3890 = vpack.c.b16 %v2750, %v2748
    %v3891 = vpack.c.b16 %v2751, %v2749
    %v3892 = vpack.c.b16 %v2754, %v2752
    %v3893 = vpack.c.b16 %v2755, %v2753
    %v3894 = vpack.c.b16 %v2758, %v2756
    %v3895 = vpack.c.b16 %v2759, %v2757
    %v3896 = vpack.c.b16 %v2762, %v2760
    %v3897 = vpack.c.b16 %v2763, %v2761
    %v3898 = vpack.c.b16 %v2766, %v2764
    %v3899 = vpack.c.b16 %v2767, %v2765
    %v3900 = vpack.c.b16 %v2770, %v2768
    %v3901 = vpack.c.b16 %v2771, %v2769
    %v3902 = vpack.c.b16 %v2774, %v2772
    %v3903 = vpack.c.b16 %v2775, %v2773
    %v3904 = vpack.c.b16 %v2778, %v2776
    %v3905 = vpack.c.b16 %v2779, %v2777
    %v3906 = vpack.c.b16 %v2782, %v2780
    %v3907 = vpack.c.b16 %v2783, %v2781
    %v3908 = vpack.c.b16 %v2786, %v2784
    %v3909 = vpack.c.b16 %v2787, %v2785
    %v3910 = vpack.c.b16 %v2790, %v2788
    %v3911 = vpack.c.b16 %v2791, %v2789
    %v3912 = vpack.c.b16 %v2794, %v2792
    %v3913 = vpack.c.b16 %v2795, %v2793
    %v3914 = vpack.c.b16 %v2798, %v2796
    %v3915 = vpack.c.b16 %v2799, %v2797
    %v3916 = vpack.c.b16 %v2802, %v2800
    %v3917 = vpack.c.b16 %v2803, %v2801
    %v3918 = vpack.c.b16 %v2806, %v2804
    %v3919 = vpack.c.b16 %v2807, %v2805
    %v3920 = vpack.c.b16 %v2810, %v2808
    %v3921 = vpack.c.b16 %v2811, %v2809
    %v3922 = vpack.c.b16 %v2814, %v2812
    %v3923 = vpack.c.b16 %v2815, %v2813
    %v3924 = vpack.c.b16 %v2818, %v2816
    %v3925 = vpack.c.b16 %v2819, %v2817
    %v3926 = vpack.c.b16 %v2822, %v2820
    %v3927 = vpack.c.b16 %v2823, %v2821
    %v3928 = vpack.c.b16 %v2826, %v2824
    %v3929 = vpack.c.b16 %v2827, %v2825
    %v3930 = vpack.c.b16 %v2830, %v2828
    %v3931 = vpack.c.b16 %v2831, %v2829
    %v3932 = vpack.c.b16 %v2834, %v2832
    %v3933 = vpack.c.b16 %v2835, %v2833
    %v3934 = vpack.c.b16 %v2838, %v2836
    %v3935 = vpack.c.b16 %v2839, %v2837
    %v3936 = vpack.c.b16 %v2842, %v2840
    %v3937 = vpack.c.b16 %v2843, %v2841
    %v3938 = vpack.c.b16 %v2846, %v2844
    %v3939 = vpack.c.b16 %v2847, %v2845
    %v3940 = vpack.c.b16 %v2850, %v2848
    %v3941 = vpack.c.b16 %v2851, %v2849
    %v3942 = vpack.c.b16 %v2854, %v2852
    %v3943 = vpack.c.b16 %v2855, %v2853
    %v3944 = vpack.c.b16 %v2858, %v2856
    %v3945 = vpack.c.b16 %v2859, %v2857
    %v3946 = vpack.c.b16 %v2862, %v2860
    %v3947 = vpack.c.b16 %v2863, %v2861
    %v3948 = vpack.c.b16 %v2866, %v2864
    %v3949 = vpack.c.b16 %v2867, %v2865
    %v3950 = vpack.c.b16 %v2870, %v2868
    %v3951 = vpack.c.b16 %v2871, %v2869
    %v3952 = vpack.c.b16 %v2874, %v2872
    %v3953 = vpack.c.b16 %v2875, %v2873
    %v3954 = vpack.c.b16 %v2878, %v2876
    %v3955 = vpack.c.b16 %v2879, %v2877
    %v3956 = vpack.c.b16 %v2882, %v2880
    %v3957 = vpack.c.b16 %v2883, %v2881
    %v3958 = vpack.c.b16 %v2886, %v2884
    %v3959 = vpack.c.b16 %v2887, %v2885
    %v3960 = vpack.c.b16 %v2890, %v2888
    %v3961 = vpack.c.b16 %v2891, %v2889
    %v3962 = vpack.c.b16 %v2894, %v2892
    %v3963 = vpack.c.b16 %v2895, %v2893
    %v3964 = vpack.c.b16 %v2898, %v2896
    %v3965 = vpack.c.b16 %v2899, %v2897
    %v3966 = vpack.c.b16 %v2902, %v2900
    %v3967 = vpack.c.b16 %v2903, %v2901
    %v3968 = vpack.c.b16 %v2906, %v2904
    %v3969 = vpack.c.b16 %v2907, %v2905
    %v3970 = vpack.c.b16 %v2910, %v2908
    %v3971 = vpack.c.b16 %v2911, %v2909
    %v3972 = vpack.c.b16 %v2914, %v2912
    %v3973 = vpack.c.b16 %v2915, %v2913
    %v3974 = vpack.c.b16 %v2918, %v2916
    %v3975 = vpack.c.b16 %v2919, %v2917
    %v3976 = vpack.c.b16 %v2922, %v2920
    %v3977 = vpack.c.b16 %v2923, %v2921
    %v3978 = vpack.c.b16 %v2926, %v2924
    %v3979 = vpack.c.b16 %v2927, %v2925
    %v3980 = vpack.c.b16 %v2930, %v2928
    %v3981 = vpack.c.b16 %v2931, %v2929
    %v3982 = vpack.c.b16 %v2934, %v2932
    %v3983 = vpack.c.b16 %v2935, %v2933
    %v3984 = vpack.c.b16 %v2938, %v2936
    %v3985 = vpack.c.b16 %v2939, %v2937
    %v3986 = vpack.c.b16 %v2942, %v2940
    %v3987 = vpack.c.b16 %v2943, %v2941
    %v3988 = vpack.c.b16 %v2946, %v2944
    %v3989 = vpack.c.b16 %v2947, %v2945
    %v3990 = vpack.c.b16 %v2950, %v2948
    %v3991 = vpack.c.b16 %v2951, %v2949
    %v3992 = vpack.c.b16 %v2954, %v2952
    %v3993 = vpack.c.b16 %v2955, %v2953
    %v3994 = vpack.c.b16 %v2958, %v2956
    %v3995 = vpack.c.b16 %v2959, %v2957
    %v3996 = vpack.c.b16 %v2962, %v2960
    %v3997 = vpack.c.b16 %v2963, %v2961
    %v3998 = vpack.c.b16 %v2966, %v2964
    %v3999 = vpack.c.b16 %v2967, %v2965
    %v4000 = vpack.c.b16 %v2970, %v2968
    %v4001 = vpack.c.b16 %v2971, %v2969
    %v4002 = vpack.c.b16 %v2974, %v2972
    %v4003 = vpack.c.b16 %v2975, %v2973
    %v4004 = vpack.c.b16 %v2978, %v2976
    %v4005 = vpack.c.b16 %v2979, %v2977
    %v4006 = vpack.c.b16 %v2982, %v2980
    %v4007 = vpack.c.b16 %v2983, %v2981
    %v4008 = vpack.c.b16 %v2986, %v2984
    %v4009 = vpack.c.b16 %v2987, %v2985
    %v4010 = vpack.c.b16 %v2990, %v2988
    %v4011 = vpack.c.b16 %v2991, %v2989
    %v4012 = vpack.c.b16 %v2994, %v2992
    %v4013 = vpack.c.b16 %v2995, %v2993
    %v4014 = vpack.c.b16 %v2998, %v2996
    %v4015 = vpack.c.b16 %v2999, %v2997
    %v4016 = vpack.c.b16 %v3002, %v3000
    %v4017 = vpack.c.b16 %v3003, %v3001
    %v4018 = vpack.c.b16 %v3006, %v3004
    %v4019 = vpack.c.b16 %v3007, %v3005
    %v4020 = vpack.c.b16 %v3010, %v3008
    %v4021 = vpack.c.b16 %v3011, %v3009
    %v4022 = vpack.c.b16 %v3014, %v3012
    %v4023 = vpack.c.b16 %v3015, %v3013
    %v4024 = vpack.c.b16 %v3018, %v3016
    %v4025 = vpack.c.b16 %v3019, %v3017
    %v4026 = vpack.c.b16 %v3022, %v3020
    %v4027 = vpack.c.b16 %v3023, %v3021
    %v4028 = vpack.c.b16 %v3026, %v3024
    %v4029 = vpack.c.b16 %v3027, %v3025
    %v4030 = vpack.c.b16 %v3030, %v3028
    %v4031 = vpack.c.b16 %v3031, %v3029
    %v4032 = vpack.c.b16 %v3034, %v3032
    %v4033 = vpack.c.b16 %v3035, %v3033
    %v4034 = vpack.c.b16 %v3038, %v3036
    %v4035 = vpack.c.b16 %v3039, %v3037
    %v4036 = vpack.c.b16 %v3042, %v3040
    %v4037 = vpack.c.b16 %v3043, %v3041
    %v4038 = vpack.c.b16 %v3046, %v3044
    %v4039 = vpack.c.b16 %v3047, %v3045
    %v4040 = vpack.c.b16 %v3050, %v3048
    %v4041 = vpack.c.b16 %v3051, %v3049
    %v4042 = vpack.c.b16 %v3054, %v3052
    %v4043 = vpack.c.b16 %v3055, %v3053
    %v4044 = vpack.c.b16 %v3058, %v3056
    %v4045 = vpack.c.b16 %v3059, %v3057
    %v4046 = vpack.c.b16 %v3062, %v3060
    %v4047 = vpack.c.b16 %v3063, %v3061
    %v4048 = vpack.c.b16 %v3066, %v3064
    %v4049 = vpack.c.b16 %v3067, %v3065
    %v4050 = vpack.c.b16 %v3070, %v3068
    %v4051 = vpack.c.b16 %v3071, %v3069
    %v4052 = vpack.c.b16 %v3074, %v3072
    %v4053 = vpack.c.b16 %v3075, %v3073
    %v4054 = vpack.c.b16 %v3078, %v3076
    %v4055 = vpack.c.b16 %v3079, %v3077
    %v4056 = vpack.c.b16 %v3082, %v3080
    %v4057 = vpack.c.b16 %v3083, %v3081
    %v4058 = vpack.c.b16 %v3086, %v3084
    %v4059 = vpack.c.b16 %v3087, %v3085
    %v4060 = vpack.c.b16 %v3090, %v3088
    %v4061 = vpack.c.b16 %v3091, %v3089
    %v4062 = vpack.c.b16 %v3094, %v3092
    %v4063 = vpack.c.b16 %v3095, %v3093
    %v4064 = vpack.c.b16 %v3098, %v3096
    %v4065 = vpack.c.b16 %v3099, %v3097
    %v4066 = vpack.c.b16 %v3102, %v3100
    %v4067 = vpack.c.b16 %v3103, %v3101
    %v4068 = vpack.c.b16 %v3106, %v3104
    %v4069 = vpack.c.b16 %v3107, %v3105
    %v4070 = vpack.c.b16 %v3110, %v3108
    %v4071 = vpack.c.b16 %v3111, %v3109
    %v4072 = vpack.c.b16 %v3114, %v3112
    %v4073 = vpack.c.b16 %v3115, %v3113
    %v4074 = vpack.c.b16 %v3118, %v3116
    %v4075 = vpack.c.b16 %v3119, %v3117
    %v4076 = vpack.c.b16 %v3122, %v3120
    %v4077 = vpack.c.b16 %v3123, %v3121
    %v4078 = vpack.c.b16 %v3126, %v3124
    %v4079 = vpack.c.b16 %v3127, %v3125
    %v4080 = vpack.c.b16 %v3130, %v3128
    %v4081 = vpack.c.b16 %v3131, %v3129
    %v4082 = vpack.c.b16 %v3134, %v3132
    %v4083 = vpack.c.b16 %v3135, %v3133
    %v4084 = vpack.c.b16 %v3138, %v3136
    %v4085 = vpack.c.b16 %v3139, %v3137
    %v4086 = vpack.c.b16 %v3142, %v3140
    %v4087 = vpack.c.b16 %v3143, %v3141
    %v4088 = vpack.c.b16 %v3146, %v3144
    %v4089 = vpack.c.b16 %v3147, %v3145
    %v4090 = vpack.c.b16 %v3150, %v3148
    %v4091 = vpack.c.b16 %v3151, %v3149
    %v4092 = vpack.c.b16 %v3154, %v3152
    %v4093 = vpack.c.b16 %v3155, %v3153
    %v4094 = vpack.c.b16 %v3158, %v3156
    %v4095 = vpack.c.b16 %v3159, %v3157
    %v4096 = vpack.c.b16 %v3162, %v3160
    %v4097 = vpack.c.b16 %v3163, %v3161
    %v4098 = vpack.c.b16 %v3166, %v3164
    %v4099 = vpack.c.b16 %v3167, %v3165
    %v4100 = vpack.c.b16 %v3170, %v3168
    %v4101 = vpack.c.b16 %v3171, %v3169
    %v4102 = vpack.c.b16 %v3174, %v3172
    %v4103 = vpack.c.b16 %v3175, %v3173
    %v4104 = vpack.c.b16 %v3178, %v3176
    %v4105 = vpack.c.b16 %v3179, %v3177
    %v4106 = vpack.c.b16 %v3182, %v3180
    %v4107 = vpack.c.b16 %v3183, %v3181
    %v4108 = vpack.c.b16 %v3186, %v3184
    %v4109 = vpack.c.b16 %v3187, %v3185
    %v4110 = vpack.c.b16 %v3190, %v3188
    %v4111 = vpack.c.b16 %v3191, %v3189
    %v4112 = vpack.c.b16 %v3194, %v3192
    %v4113 = vpack.c.b16 %v3195, %v3193
    %v4114 = vpack.c.b16 %v3198, %v3196
    %v4115 = vpack.c.b16 %v3199, %v3197
    %v4116 = vpack.c.b16 %v3202, %v3200
    %v4117 = vpack.c.b16 %v3203, %v3201
    %v4118 = vpack.c.b16 %v3206, %v3204
    %v4119 = vpack.c.b16 %v3207, %v3205
    %v4120 = vpack.c.b16 %v3210, %v3208
    %v4121 = vpack.c.b16 %v3211, %v3209
    %v4122 = vpack.c.b16 %v3214, %v3212
    %v4123 = vpack.c.b16 %v3215, %v3213
    %v4124 = vpack.c.b16 %v3218, %v3216
    %v4125 = vpack.c.b16 %v3219, %v3217
    %v4126 = vpack.c.b16 %v3222, %v3220
    %v4127 = vpack.c.b16 %v3223, %v3221
    %v4128 = vpack.c.b16 %v3226, %v3224
    %v4129 = vpack.c.b16 %v3227, %v3225
    %v4130 = vpack.c.b16 %v3230, %v3228
    %v4131 = vpack.c.b16 %v3231, %v3229
    %v4132 = vpack.c.b16 %v3234, %v3232
    %v4133 = vpack.c.b16 %v3235, %v3233
    %v4134 = vpack.c.b16 %v3238, %v3236
    %v4135 = vpack.c.b16 %v3239, %v3237
    %v4136 = vpack.c.b16 %v3242, %v3240
    %v4137 = vpack.c.b16 %v3243, %v3241
    %v4138 = vpack.c.b16 %v3246, %v3244
    %v4139 = vpack.c.b16 %v3247, %v3245
    %v4140 = vpack.c.b16 %v3250, %v3248
    %v4141 = vpack.c.b16 %v3251, %v3249
    %v4142 = vpack.c.b16 %v3254, %v3252
    %v4143 = vpack.c.b16 %v3255, %v3253
    %v4144 = vpack.c.b16 %v3258, %v3256
    %v4145 = vpack.c.b16 %v3259, %v3257
    %v4146 = vpack.c.b16 %v3262, %v3260
    %v4147 = vpack.c.b16 %v3263, %v3261
    %v4148 = vpack.c.b16 %v3266, %v3264
    %v4149 = vpack.c.b16 %v3267, %v3265
    %v4150 = vpack.c.b16 %v3270, %v3268
    %v4151 = vpack.c.b16 %v3271, %v3269
    %v4152 = vpack.c.b16 %v3274, %v3272
    %v4153 = vpack.c.b16 %v3275, %v3273
    %v4154 = vpack.c.b16 %v3278, %v3276
    %v4155 = vpack.c.b16 %v3279, %v3277
    %v4156 = vpack.c.b16 %v3282, %v3280
    %v4157 = vpack.c.b16 %v3283, %v3281
    %v4158 = vpack.c.b16 %v3286, %v3284
    %v4159 = vpack.c.b16 %v3287, %v3285
    %v4160 = vpack.c.b16 %v3290, %v3288
    %v4161 = vpack.c.b16 %v3291, %v3289
    %v4162 = vpack.c.b16 %v3294, %v3292
    %v4163 = vpack.c.b16 %v3295, %v3293
    %v4164 = vpack.c.b16 %v3298, %v3296
    %v4165 = vpack.c.b16 %v3299, %v3297
    %v4166 = vpack.c.b16 %v3302, %v3300
    %v4167 = vpack.c.b16 %v3303, %v3301
    %v4168 = vpack.c.b16 %v3306, %v3304
    %v4169 = vpack.c.b16 %v3307, %v3305
    %v4170 = vpack.c.b16 %v3310, %v3308
    %v4171 = vpack.c.b16 %v3311, %v3309
    %v4172 = vpack.c.b16 %v3314, %v3312
    %v4173 = vpack.c.b16 %v3315, %v3313
    %v4174 = vpack.c.b16 %v3318, %v3316
    %v4175 = vpack.c.b16 %v3319, %v3317
    %v4176 = vpack.c.b16 %v3322, %v3320
    %v4177 = vpack.c.b16 %v3323, %v3321
    %v4178 = vpack.c.b16 %v3326, %v3324
    %v4179 = vpack.c.b16 %v3327, %v3325
    %v4180 = vpack.c.b16 %v3330, %v3328
    %v4181 = vpack.c.b16 %v3331, %v3329
    %v4182 = vpack.c.b16 %v3334, %v3332
    %v4183 = vpack.c.b16 %v3335, %v3333
    %v4184 = vpack.c.b16 %v3338, %v3336
    %v4185 = vpack.c.b16 %v3339, %v3337
    %v4186 = vpack.c.b16 %v3342, %v3340
    %v4187 = vpack.c.b16 %v3343, %v3341
    %v4188 = vpack.c.b16 %v3346, %v3344
    %v4189 = vpack.c.b16 %v3347, %v3345
    %v4190 = vpack.c.b16 %v3350, %v3348
    %v4191 = vpack.c.b16 %v3351, %v3349
    %v4192 = vpack.c.b16 %v3354, %v3352
    %v4193 = vpack.c.b16 %v3355, %v3353
    %v4194 = vpack.c.b16 %v3358, %v3356
    %v4195 = vpack.c.b16 %v3359, %v3357
    %v4196 = vpack.c.b16 %v3362, %v3360
    %v4197 = vpack.c.b16 %v3363, %v3361
    %v4198 = vpack.c.b16 %v3366, %v3364
    %v4199 = vpack.c.b16 %v3367, %v3365
    %v4200 = vpack.c.b16 %v3370, %v3368
    %v4201 = vpack.c.b16 %v3371, %v3369
    %v4202 = vpack.c.b16 %v3374, %v3372
    %v4203 = vpack.c.b16 %v3375, %v3373
    %v4204 = vpack.c.b16 %v3378, %v3376
    %v4205 = vpack.c.b16 %v3379, %v3377
    %v4206 = vpack.c.b16 %v3382, %v3380
    %v4207 = vpack.c.b16 %v3383, %v3381
    %v4208 = vpack.c.b16 %v3386, %v3384
    %v4209 = vpack.c.b16 %v3387, %v3385
    %v4210 = vpack.c.b16 %v3390, %v3388
    %v4211 = vpack.c.b16 %v3391, %v3389
    %v4212 = vpack.c.b16 %v3394, %v3392
    %v4213 = vpack.c.b16 %v3395, %v3393
    %v4214 = vpack.c.b16 %v3398, %v3396
    %v4215 = vpack.c.b16 %v3399, %v3397
    %v4216 = vpack.c.b16 %v3402, %v3400
    %v4217 = vpack.c.b16 %v3403, %v3401
    %v4218 = vpack.c.b16 %v3406, %v3404
    %v4219 = vpack.c.b16 %v3407, %v3405
    %v4220 = vpack.c.b16 %v3410, %v3408
    %v4221 = vpack.c.b16 %v3411, %v3409
    %v4222 = vpack.c.b16 %v3414, %v3412
    %v4223 = vpack.c.b16 %v3415, %v3413
    %v4224 = vpack.c.b16 %v3418, %v3416
    %v4225 = vpack.c.b16 %v3419, %v3417
    %v4226 = vpack.c.b16 %v3422, %v3420
    %v4227 = vpack.c.b16 %v3423, %v3421
    %v4228 = vpack.c.b16 %v3426, %v3424
    %v4229 = vpack.c.b16 %v3427, %v3425
    %v4230 = vpack.c.b16 %v3430, %v3428
    %v4231 = vpack.c.b16 %v3431, %v3429
    %v4232 = vpack.c.b16 %v3434, %v3432
    %v4233 = vpack.c.b16 %v3435, %v3433
    %v4234 = vpack.c.b16 %v3438, %v3436
    %v4235 = vpack.c.b16 %v3439, %v3437
    %v4236 = vpack.c.b16 %v3442, %v3440
    %v4237 = vpack.c.b16 %v3443, %v3441
    %v4238 = vpack.c.b16 %v3446, %v3444
    %v4239 = vpack.c.b16 %v3447, %v3445
    %v4240 = vpack.c.b16 %v3450, %v3448
    %v4241 = vpack.c.b16 %v3451, %v3449
    %v4242 = vpack.c.b16 %v3454, %v3452
    %v4243 = vpack.c.b16 %v3455, %v3453
    %v4244 = vpack.c.b16 %v3458, %v3456
    %v4245 = vpack.c.b16 %v3459, %v3457
    %v4246 = vpack.c.b16 %v3462, %v3460
    %v4247 = vpack.c.b16 %v3463, %v3461
    %v4248 = vpack.c.b16 %v3466, %v3464
    %v4249 = vpack.c.b16 %v3467, %v3465
    %v4250 = vpack.c.b16 %v3470, %v3468
    %v4251 = vpack.c.b16 %v3471, %v3469
    %v4252 = vpack.c.b16 %v3474, %v3472
    %v4253 = vpack.c.b16 %v3475, %v3473
    %v4254 = vpack.c.b16 %v3478, %v3476
    %v4255 = vpack.c.b16 %v3479, %v3477
    %v4256 = vpack.c.b16 %v3482, %v3480
    %v4257 = vpack.c.b16 %v3483, %v3481
    %v4258 = vpack.c.b16 %v3486, %v3484
    %v4259 = vpack.c.b16 %v3487, %v3485
    %v4260 = vpack.c.b16 %v3490, %v3488
    %v4261 = vpack.c.b16 %v3491, %v3489
    %v4262 = vpack.c.b16 %v3494, %v3492
    %v4263 = vpack.c.b16 %v3495, %v3493
    %5032 = vmatprep.subr.bf16.mxu0 %v3497
    %5033 = vmatpush1.bf16.msra.mxu0 %v3496
    %5034 = vmatprep.subr.bf16.mxu0 %v3499
    %5035 = vmatpush1.bf16.msra.mxu0 %v3498
    %5036 = vmatprep.subr.bf16.mxu0 %v3501
    %5037 = vmatpush1.bf16.msra.mxu0 %v3500
    %5038 = vmatprep.subr.bf16.mxu0 %v3503
    %5039 = vmatpush1.bf16.msra.mxu0 %v3502
    %5040 = vmatprep.subr.bf16.mxu0 %v3505
    %5041 = vmatpush1.bf16.msra.mxu0 %v3504
    %5042 = vmatprep.subr.bf16.mxu0 %v3507
    %5043 = vmatpush1.bf16.msra.mxu0 %v3506
    %5044 = vmatprep.subr.bf16.mxu0 %v3509
    %5045 = vmatpush1.bf16.msra.mxu0 %v3508
    %5046 = vmatprep.subr.bf16.mxu0 %v3511
    %5047 = vmatpush1.bf16.msra.mxu0 %v3510
    %5048 = vmatprep.subr.bf16.mxu0 %v3513
    %5049 = vmatpush1.bf16.msra.mxu0 %v3512
    %5050 = vmatprep.subr.bf16.mxu0 %v3515
    %5051 = vmatpush1.bf16.msra.mxu0 %v3514
    %5052 = vmatprep.subr.bf16.mxu0 %v3517
    %5053 = vmatpush1.bf16.msra.mxu0 %v3516
    %5054 = vmatprep.subr.bf16.mxu0 %v3519
    %5055 = vmatpush1.bf16.msra.mxu0 %v3518
    %5056 = vmatprep.subr.bf16.mxu0 %v3521
    %5057 = vmatpush1.bf16.msra.mxu0 %v3520
    %5058 = vmatprep.subr.bf16.mxu0 %v3523
    %5059 = vmatpush1.bf16.msra.mxu0 %v3522
    %5060 = vmatprep.subr.bf16.mxu0 %v3525
    %5061 = vmatpush1.bf16.msra.mxu0 %v3524
    %5062 = vmatprep.subr.bf16.mxu0 %v3527
    %5063 = vmatpush1.bf16.msra.mxu0 %v3526
    %5064 = vmatprep.mubr.bf16.mxu0 %v887
    %5065 = vmatmul.mubr.bf16.gmra.mrb[0].mxu0 %v873
    %v5066 = vpop.f32.mrb[0].mxu0
    %v5067 = vadd.f32 %v837, %v5066
    %v5068 = vpop.f32.mrb[0].mxu0
    %v5069 = vadd.f32 %v841, %v5068
    %v5070 = vpop.f32.mrb[0].mxu0
    %v5071 = vpop.f32.mrb[0].mxu0
    %5072 = vdwg.mxu0
    %5073 = vmatprep.subr.bf16.mxu0 %v3529
    %5074 = vmatpush1.bf16.msra.mxu0 %v3528
    %5075 = vmatprep.subr.bf16.mxu0 %v3531
    %5076 = vmatpush1.bf16.msra.mxu0 %v3530
    %5077 = vmatprep.subr.bf16.mxu0 %v3533
    %5078 = vmatpush1.bf16.msra.mxu0 %v3532
    %5079 = vmatprep.subr.bf16.mxu0 %v3535
    %5080 = vmatpush1.bf16.msra.mxu0 %v3534
    %5081 = vmatprep.subr.bf16.mxu0 %v3537
    %5082 = vmatpush1.bf16.msra.mxu0 %v3536
    %5083 = vmatprep.subr.bf16.mxu0 %v3539
    %5084 = vmatpush1.bf16.msra.mxu0 %v3538
    %5085 = vmatprep.subr.bf16.mxu0 %v3541
    %5086 = vmatpush1.bf16.msra.mxu0 %v3540
    %5087 = vmatprep.subr.bf16.mxu0 %v3543
    %5088 = vmatpush1.bf16.msra.mxu0 %v3542
    %5089 = vmatprep.subr.bf16.mxu0 %v3545
    %5090 = vmatpush1.bf16.msra.mxu0 %v3544
    %5091 = vmatprep.subr.bf16.mxu0 %v3547
    %5092 = vmatpush1.bf16.msra.mxu0 %v3546
    %5093 = vmatprep.subr.bf16.mxu0 %v3549
    %5094 = vmatpush1.bf16.msra.mxu0 %v3548
    %5095 = vmatprep.subr.bf16.mxu0 %v3551
    %5096 = vmatpush1.bf16.msra.mxu0 %v3550
    %5097 = vmatprep.subr.bf16.mxu0 %v3553
    %5098 = vmatpush1.bf16.msra.mxu0 %v3552
    %5099 = vmatprep.subr.bf16.mxu0 %v3555
    %5100 = vmatpush1.bf16.msra.mxu0 %v3554
    %5101 = vmatprep.subr.bf16.mxu0 %v3557
    %5102 = vmatpush1.bf16.msra.mxu0 %v3556
    %5103 = vmatprep.subr.bf16.mxu0 %v3559
    %5104 = vmatpush1.bf16.msra.mxu0 %v3558
    %5105 = vmatprep.mubr.bf16.mxu0 %v897
    %5106 = vmatmul.mubr.bf16.gmra.mrb[0].mxu0 %v895
    %v5107 = vpop.f32.mrb[0].mxu0
    %v5108 = vadd.f32 %v5067, %v5107
    %v5109 = vpop.f32.mrb[0].mxu0
    %v5110 = vadd.f32 %v5069, %v5109
    %v5111 = vpop.f32.mrb[0].mxu0
    %v5112 = vpop.f32.mrb[0].mxu0
    %5113 = vdwg.mxu0
    %5114 = vmatprep.subr.bf16.mxu0 %v3561
    %5115 = vmatpush1.bf16.msra.mxu0 %v3560
    %5116 = vmatprep.subr.bf16.mxu0 %v3563
    %5117 = vmatpush1.bf16.msra.mxu0 %v3562
    %5118 = vmatprep.subr.bf16.mxu0 %v3565
    %5119 = vmatpush1.bf16.msra.mxu0 %v3564
    %5120 = vmatprep.subr.bf16.mxu0 %v3567
    %5121 = vmatpush1.bf16.msra.mxu0 %v3566
    %5122 = vmatprep.subr.bf16.mxu0 %v3569
    %5123 = vmatpush1.bf16.msra.mxu0 %v3568
    %5124 = vmatprep.subr.bf16.mxu0 %v3571
    %5125 = vmatpush1.bf16.msra.mxu0 %v3570
    %5126 = vmatprep.subr.bf16.mxu0 %v3573
    %5127 = vmatpush1.bf16.msra.mxu0 %v3572
    %5128 = vmatprep.subr.bf16.mxu0 %v3575
    %5129 = vmatpush1.bf16.msra.mxu0 %v3574
    %5130 = vmatprep.subr.bf16.mxu0 %v3577
    %5131 = vmatpush1.bf16.msra.mxu0 %v3576
    %5132 = vmatprep.subr.bf16.mxu0 %v3579
    %5133 = vmatpush1.bf16.msra.mxu0 %v3578
    %5134 = vmatprep.subr.bf16.mxu0 %v3581
    %5135 = vmatpush1.bf16.msra.mxu0 %v3580
    %5136 = vmatprep.subr.bf16.mxu0 %v3583
    %5137 = vmatpush1.bf16.msra.mxu0 %v3582
    %5138 = vmatprep.subr.bf16.mxu0 %v3585
    %5139 = vmatpush1.bf16.msra.mxu0 %v3584
    %5140 = vmatprep.subr.bf16.mxu0 %v3587
    %5141 = vmatpush1.bf16.msra.mxu0 %v3586
    %5142 = vmatprep.subr.bf16.mxu0 %v3589
    %5143 = vmatpush1.bf16.msra.mxu0 %v3588
    %5144 = vmatprep.subr.bf16.mxu0 %v3591
    %5145 = vmatpush1.bf16.msra.mxu0 %v3590
    %5146 = vmatprep.mubr.bf16.mxu0 %v894
    %5147 = vmatmul.mubr.bf16.gmra.mrb[0].mxu0 %v880
    %v5148 = vpop.f32.mrb[0].mxu0
    %v5149 = vadd.f32 %v5108, %v5148
    %v5150 = vpop.f32.mrb[0].mxu0
    %v5151 = vadd.f32 %v5110, %v5150
    %v5152 = vpop.f32.mrb[0].mxu0
    %v5153 = vpop.f32.mrb[0].mxu0
    %5154 = vdwg.mxu0
    %5155 = vmatprep.subr.bf16.mxu0 %v3593
    %5156 = vmatpush1.bf16.msra.mxu0 %v3592
    %5157 = vmatprep.subr.bf16.mxu0 %v3595
    %5158 = vmatpush1.bf16.msra.mxu0 %v3594
    %5159 = vmatprep.subr.bf16.mxu0 %v3597
    %5160 = vmatpush1.bf16.msra.mxu0 %v3596
    %5161 = vmatprep.subr.bf16.mxu0 %v3599
    %5162 = vmatpush1.bf16.msra.mxu0 %v3598
    %5163 = vmatprep.subr.bf16.mxu0 %v3601
    %5164 = vmatpush1.bf16.msra.mxu0 %v3600
    %5165 = vmatprep.subr.bf16.mxu0 %v3603
    %5166 = vmatpush1.bf16.msra.mxu0 %v3602
    %5167 = vmatprep.subr.bf16.mxu0 %v3605
    %5168 = vmatpush1.bf16.msra.mxu0 %v3604
    %5169 = vmatprep.subr.bf16.mxu0 %v3607
    %5170 = vmatpush1.bf16.msra.mxu0 %v3606
    %5171 = vmatprep.subr.bf16.mxu0 %v3609
    %5172 = vmatpush1.bf16.msra.mxu0 %v3608
    %5173 = vmatprep.subr.bf16.mxu0 %v3611
    %5174 = vmatpush1.bf16.msra.mxu0 %v3610
    %5175 = vmatprep.subr.bf16.mxu0 %v3613
    %5176 = vmatpush1.bf16.msra.mxu0 %v3612
    %5177 = vmatprep.subr.bf16.mxu0 %v3615
    %5178 = vmatpush1.bf16.msra.mxu0 %v3614
    %5179 = vmatprep.subr.bf16.mxu0 %v3617
    %5180 = vmatpush1.bf16.msra.mxu0 %v3616
    %5181 = vmatprep.subr.bf16.mxu0 %v3619
    %5182 = vmatpush1.bf16.msra.mxu0 %v3618
    %5183 = vmatprep.subr.bf16.mxu0 %v3621
    %5184 = vmatpush1.bf16.msra.mxu0 %v3620
    %5185 = vmatprep.subr.bf16.mxu0 %v3623
    %5186 = vmatpush1.bf16.msra.mxu0 %v3622
    %5187 = vmatprep.mubr.bf16.mxu0 %v898
    %5188 = vmatmul.mubr.bf16.gmra.mrb[0].mxu0 %v896
    %v5189 = vpop.f32.mrb[0].mxu0
    %v5190 = vadd.f32 %v5149, %v5189
    %v5191 = vpop.f32.mrb[0].mxu0
    %v5192 = vadd.f32 %v5151, %v5191
    %v5193 = vpop.f32.mrb[0].mxu0
    %v5194 = vpop.f32.mrb[0].mxu0
    %5195 = vdwg.mxu0
    %5196 = vmatprep.subr.bf16.mxu0 %v3625
    %5197 = vmatpush1.bf16.msra.mxu0 %v3624
    %5198 = vmatprep.subr.bf16.mxu0 %v3627
    %5199 = vmatpush1.bf16.msra.mxu0 %v3626
    %5200 = vmatprep.subr.bf16.mxu0 %v3629
    %5201 = vmatpush1.bf16.msra.mxu0 %v3628
    %5202 = vmatprep.subr.bf16.mxu0 %v3631
    %5203 = vmatpush1.bf16.msra.mxu0 %v3630
    %5204 = vmatprep.subr.bf16.mxu0 %v3633
    %5205 = vmatpush1.bf16.msra.mxu0 %v3632
    %5206 = vmatprep.subr.bf16.mxu0 %v3635
    %5207 = vmatpush1.bf16.msra.mxu0 %v3634
    %5208 = vmatprep.subr.bf16.mxu0 %v3637
    %5209 = vmatpush1.bf16.msra.mxu0 %v3636
    %5210 = vmatprep.subr.bf16.mxu0 %v3639
    %5211 = vmatpush1.bf16.msra.mxu0 %v3638
    %5212 = vmatprep.subr.bf16.mxu0 %v3641
    %5213 = vmatpush1.bf16.msra.mxu0 %v3640
    %5214 = vmatprep.subr.bf16.mxu0 %v3643
    %5215 = vmatpush1.bf16.msra.mxu0 %v3642
    %5216 = vmatprep.subr.bf16.mxu0 %v3645
    %5217 = vmatpush1.bf16.msra.mxu0 %v3644
    %5218 = vmatprep.subr.bf16.mxu0 %v3647
    %5219 = vmatpush1.bf16.msra.mxu0 %v3646
    %5220 = vmatprep.subr.bf16.mxu0 %v3649
    %5221 = vmatpush1.bf16.msra.mxu0 %v3648
    %5222 = vmatprep.subr.bf16.mxu0 %v3651
    %5223 = vmatpush1.bf16.msra.mxu0 %v3650
    %5224 = vmatprep.subr.bf16.mxu0 %v3653
    %5225 = vmatpush1.bf16.msra.mxu0 %v3652
    %5226 = vmatprep.subr.bf16.mxu0 %v3655
    %5227 = vmatpush1.bf16.msra.mxu0 %v3654
    %5228 = vmatprep.mubr.bf16.mxu0 %v936
    %5229 = vmatmul.mubr.bf16.gmra.mrb[0].mxu0 %v922
    %v5230 = vpop.f32.mrb[0].mxu0
    %v5231 = vadd.f32 %v5190, %v5230
    %v5232 = vpop.f32.mrb[0].mxu0
    %v5233 = vadd.f32 %v5192, %v5232
    %v5234 = vpop.f32.mrb[0].mxu0
    %v5235 = vpop.f32.mrb[0].mxu0
    %5236 = vdwg.mxu0
    %5237 = vmatprep.subr.bf16.mxu0 %v3657
    %5238 = vmatpush1.bf16.msra.mxu0 %v3656
    %5239 = vmatprep.subr.bf16.mxu0 %v3659
    %5240 = vmatpush1.bf16.msra.mxu0 %v3658
    %5241 = vmatprep.subr.bf16.mxu0 %v3661
    %5242 = vmatpush1.bf16.msra.mxu0 %v3660
    %5243 = vmatprep.subr.bf16.mxu0 %v3663
    %5244 = vmatpush1.bf16.msra.mxu0 %v3662
    %5245 = vmatprep.subr.bf16.mxu0 %v3665
    %5246 = vmatpush1.bf16.msra.mxu0 %v3664
    %5247 = vmatprep.subr.bf16.mxu0 %v3667
    %5248 = vmatpush1.bf16.msra.mxu0 %v3666
    %5249 = vmatprep.subr.bf16.mxu0 %v3669
    %5250 = vmatpush1.bf16.msra.mxu0 %v3668
    %5251 = vmatprep.subr.bf16.mxu0 %v3671
    %5252 = vmatpush1.bf16.msra.mxu0 %v3670
    %5253 = vmatprep.subr.bf16.mxu0 %v3673
    %5254 = vmatpush1.bf16.msra.mxu0 %v3672
    %5255 = vmatprep.subr.bf16.mxu0 %v3675
    %5256 = vmatpush1.bf16.msra.mxu0 %v3674
    %5257 = vmatprep.subr.bf16.mxu0 %v3677
    %5258 = vmatpush1.bf16.msra.mxu0 %v3676
    %5259 = vmatprep.subr.bf16.mxu0 %v3679
    %5260 = vmatpush1.bf16.msra.mxu0 %v3678
    %5261 = vmatprep.subr.bf16.mxu0 %v3681
    %5262 = vmatpush1.bf16.msra.mxu0 %v3680
    %5263 = vmatprep.subr.bf16.mxu0 %v3683
    %5264 = vmatpush1.bf16.msra.mxu0 %v3682
    %5265 = vmatprep.subr.bf16.mxu0 %v3685
    %5266 = vmatpush1.bf16.msra.mxu0 %v3684
    %5267 = vmatprep.subr.bf16.mxu0 %v3687
    %5268 = vmatpush1.bf16.msra.mxu0 %v3686
    %5269 = vmatprep.mubr.bf16.mxu0 %v946
    %5270 = vmatmul.mubr.bf16.gmra.mrb[0].mxu0 %v944
    %v5271 = vpop.f32.mrb[0].mxu0
    %v5272 = vadd.f32 %v5231, %v5271
    %v5273 = vpop.f32.mrb[0].mxu0
    %v5274 = vadd.f32 %v5233, %v5273
    %v5275 = vpop.f32.mrb[0].mxu0
    %v5276 = vpop.f32.mrb[0].mxu0
    %5277 = vdwg.mxu0
    %5278 = vmatprep.subr.bf16.mxu0 %v3689
    %5279 = vmatpush1.bf16.msra.mxu0 %v3688
    %5280 = vmatprep.subr.bf16.mxu0 %v3691
    %5281 = vmatpush1.bf16.msra.mxu0 %v3690
    %5282 = vmatprep.subr.bf16.mxu0 %v3693
    %5283 = vmatpush1.bf16.msra.mxu0 %v3692
    %5284 = vmatprep.subr.bf16.mxu0 %v3695
    %5285 = vmatpush1.bf16.msra.mxu0 %v3694
    %5286 = vmatprep.subr.bf16.mxu0 %v3697
    %5287 = vmatpush1.bf16.msra.mxu0 %v3696
    %5288 = vmatprep.subr.bf16.mxu0 %v3699
    %5289 = vmatpush1.bf16.msra.mxu0 %v3698
    %5290 = vmatprep.subr.bf16.mxu0 %v3701
    %5291 = vmatpush1.bf16.msra.mxu0 %v3700
    %5292 = vmatprep.subr.bf16.mxu0 %v3703
    %5293 = vmatpush1.bf16.msra.mxu0 %v3702
    %5294 = vmatprep.subr.bf16.mxu0 %v3705
    %5295 = vmatpush1.bf16.msra.mxu0 %v3704
    %5296 = vmatprep.subr.bf16.mxu0 %v3707
    %5297 = vmatpush1.bf16.msra.mxu0 %v3706
    %5298 = vmatprep.subr.bf16.mxu0 %v3709
    %5299 = vmatpush1.bf16.msra.mxu0 %v3708
    %5300 = vmatprep.subr.bf16.mxu0 %v3711
    %5301 = vmatpush1.bf16.msra.mxu0 %v3710
    %5302 = vmatprep.subr.bf16.mxu0 %v3713
    %5303 = vmatpush1.bf16.msra.mxu0 %v3712
    %5304 = vmatprep.subr.bf16.mxu0 %v3715
    %5305 = vmatpush1.bf16.msra.mxu0 %v3714
    %5306 = vmatprep.subr.bf16.mxu0 %v3717
    %5307 = vmatpush1.bf16.msra.mxu0 %v3716
    %5308 = vmatprep.subr.bf16.mxu0 %v3719
    %5309 = vmatpush1.bf16.msra.mxu0 %v3718
    %5310 = vmatprep.mubr.bf16.mxu0 %v943
    %5311 = vmatmul.mubr.bf16.gmra.mrb[0].mxu0 %v929
    %v5312 = vpop.f32.mrb[0].mxu0
    %v5313 = vadd.f32 %v5272, %v5312
    %v5314 = vpop.f32.mrb[0].mxu0
    %v5315 = vadd.f32 %v5274, %v5314
    %v5316 = vpop.f32.mrb[0].mxu0
    %v5317 = vpop.f32.mrb[0].mxu0
    %5318 = vdwg.mxu0
    %5319 = vmatprep.subr.bf16.mxu0 %v3721
    %5320 = vmatpush1.bf16.msra.mxu0 %v3720
    %5321 = vmatprep.subr.bf16.mxu0 %v3723
    %5322 = vmatpush1.bf16.msra.mxu0 %v3722
    %5323 = vmatprep.subr.bf16.mxu0 %v3725
    %5324 = vmatpush1.bf16.msra.mxu0 %v3724
    %5325 = vmatprep.subr.bf16.mxu0 %v3727
    %5326 = vmatpush1.bf16.msra.mxu0 %v3726
    %5327 = vmatprep.subr.bf16.mxu0 %v3729
    %5328 = vmatpush1.bf16.msra.mxu0 %v3728
    %5329 = vmatprep.subr.bf16.mxu0 %v3731
    %5330 = vmatpush1.bf16.msra.mxu0 %v3730
    %5331 = vmatprep.subr.bf16.mxu0 %v3733
    %5332 = vmatpush1.bf16.msra.mxu0 %v3732
    %5333 = vmatprep.subr.bf16.mxu0 %v3735
    %5334 = vmatpush1.bf16.msra.mxu0 %v3734
    %5335 = vmatprep.subr.bf16.mxu0 %v3737
    %5336 = vmatpush1.bf16.msra.mxu0 %v3736
    %5337 = vmatprep.subr.bf16.mxu0 %v3739
    %5338 = vmatpush1.bf16.msra.mxu0 %v3738
    %5339 = vmatprep.subr.bf16.mxu0 %v3741
    %5340 = vmatpush1.bf16.msra.mxu0 %v3740
    %5341 = vmatprep.subr.bf16.mxu0 %v3743
    %5342 = vmatpush1.bf16.msra.mxu0 %v3742
    %5343 = vmatprep.subr.bf16.mxu0 %v3745
    %5344 = vmatpush1.bf16.msra.mxu0 %v3744
    %5345 = vmatprep.subr.bf16.mxu0 %v3747
    %5346 = vmatpush1.bf16.msra.mxu0 %v3746
    %5347 = vmatprep.subr.bf16.mxu0 %v3749
    %5348 = vmatpush1.bf16.msra.mxu0 %v3748
    %5349 = vmatprep.subr.bf16.mxu0 %v3751
    %5350 = vmatpush1.bf16.msra.mxu0 %v3750
    %5351 = vmatprep.mubr.bf16.mxu0 %v947
    %5352 = vmatmul.mubr.bf16.gmra.mrb[0].mxu0 %v945
    %v5353 = vpop.f32.mrb[0].mxu0
    %v5354 = vadd.f32 %v5313, %v5353
    %v5355 = vpop.f32.mrb[0].mxu0
    %v5356 = vadd.f32 %v5315, %v5355
    %v5357 = vpop.f32.mrb[0].mxu0
    %v5358 = vpop.f32.mrb[0].mxu0
    %5359 = vdwg.mxu0
    %5360 = vmatprep.subr.bf16.mxu0 %v3753
    %5361 = vmatpush1.bf16.msra.mxu0 %v3752
    %5362 = vmatprep.subr.bf16.mxu0 %v3755
    %5363 = vmatpush1.bf16.msra.mxu0 %v3754
    %5364 = vmatprep.subr.bf16.mxu0 %v3757
    %5365 = vmatpush1.bf16.msra.mxu0 %v3756
    %5366 = vmatprep.subr.bf16.mxu0 %v3759
    %5367 = vmatpush1.bf16.msra.mxu0 %v3758
    %5368 = vmatprep.subr.bf16.mxu0 %v3761
    %5369 = vmatpush1.bf16.msra.mxu0 %v3760
    %5370 = vmatprep.subr.bf16.mxu0 %v3763
    %5371 = vmatpush1.bf16.msra.mxu0 %v3762
    %5372 = vmatprep.subr.bf16.mxu0 %v3765
    %5373 = vmatpush1.bf16.msra.mxu0 %v3764
    %5374 = vmatprep.subr.bf16.mxu0 %v3767
    %5375 = vmatpush1.bf16.msra.mxu0 %v3766
    %5376 = vmatprep.subr.bf16.mxu0 %v3769
    %5377 = vmatpush1.bf16.msra.mxu0 %v3768
    %5378 = vmatprep.subr.bf16.mxu0 %v3771
    %5379 = vmatpush1.bf16.msra.mxu0 %v3770
    %5380 = vmatprep.subr.bf16.mxu0 %v3773
    %5381 = vmatpush1.bf16.msra.mxu0 %v3772
    %5382 = vmatprep.subr.bf16.mxu0 %v3775
    %5383 = vmatpush1.bf16.msra.mxu0 %v3774
    %5384 = vmatprep.subr.bf16.mxu0 %v3777
    %5385 = vmatpush1.bf16.msra.mxu0 %v3776
    %5386 = vmatprep.subr.bf16.mxu0 %v3779
    %5387 = vmatpush1.bf16.msra.mxu0 %v3778
    %5388 = vmatprep.subr.bf16.mxu0 %v3781
    %5389 = vmatpush1.bf16.msra.mxu0 %v3780
    %5390 = vmatprep.subr.bf16.mxu0 %v3783
    %5391 = vmatpush1.bf16.msra.mxu0 %v3782
    %5392 = vmatprep.mubr.bf16.mxu0 %v985
    %5393 = vmatmul.mubr.bf16.gmra.mrb[0].mxu0 %v971
    %v5394 = vpop.f32.mrb[0].mxu0
    %v5395 = vadd.f32 %v5354, %v5394
    %v5396 = vpop.f32.mrb[0].mxu0
    %v5397 = vadd.f32 %v5356, %v5396
    %v5398 = vpop.f32.mrb[0].mxu0
    %v5399 = vpop.f32.mrb[0].mxu0
    %5400 = vdwg.mxu0
    %5401 = vmatprep.subr.bf16.mxu0 %v3785
    %5402 = vmatpush1.bf16.msra.mxu0 %v3784
    %5403 = vmatprep.subr.bf16.mxu0 %v3787
    %5404 = vmatpush1.bf16.msra.mxu0 %v3786
    %5405 = vmatprep.subr.bf16.mxu0 %v3789
    %5406 = vmatpush1.bf16.msra.mxu0 %v3788
    %5407 = vmatprep.subr.bf16.mxu0 %v3791
    %5408 = vmatpush1.bf16.msra.mxu0 %v3790
    %5409 = vmatprep.subr.bf16.mxu0 %v3793
    %5410 = vmatpush1.bf16.msra.mxu0 %v3792
    %5411 = vmatprep.subr.bf16.mxu0 %v3795
    %5412 = vmatpush1.bf16.msra.mxu0 %v3794
    %5413 = vmatprep.subr.bf16.mxu0 %v3797
    %5414 = vmatpush1.bf16.msra.mxu0 %v3796
    %5415 = vmatprep.subr.bf16.mxu0 %v3799
    %5416 = vmatpush1.bf16.msra.mxu0 %v3798
    %5417 = vmatprep.subr.bf16.mxu0 %v3801
    %5418 = vmatpush1.bf16.msra.mxu0 %v3800
    %5419 = vmatprep.subr.bf16.mxu0 %v3803
    %5420 = vmatpush1.bf16.msra.mxu0 %v3802
    %5421 = vmatprep.subr.bf16.mxu0 %v3805
    %5422 = vmatpush1.bf16.msra.mxu0 %v3804
    %5423 = vmatprep.subr.bf16.mxu0 %v3807
    %5424 = vmatpush1.bf16.msra.mxu0 %v3806
    %5425 = vmatprep.subr.bf16.mxu0 %v3809
    %5426 = vmatpush1.bf16.msra.mxu0 %v3808
    %5427 = vmatprep.subr.bf16.mxu0 %v3811
    %5428 = vmatpush1.bf16.msra.mxu0 %v3810
    %5429 = vmatprep.subr.bf16.mxu0 %v3813
    %5430 = vmatpush1.bf16.msra.mxu0 %v3812
    %5431 = vmatprep.subr.bf16.mxu0 %v3815
    %5432 = vmatpush1.bf16.msra.mxu0 %v3814
    %5433 = vmatprep.mubr.bf16.mxu0 %v995
    %5434 = vmatmul.mubr.bf16.gmra.mrb[0].mxu0 %v993
    %v5435 = vpop.f32.mrb[0].mxu0
    %v5436 = vadd.f32 %v5395, %v5435
    %v5437 = vpop.f32.mrb[0].mxu0
    %v5438 = vadd.f32 %v5397, %v5437
    %v5439 = vpop.f32.mrb[0].mxu0
    %v5440 = vpop.f32.mrb[0].mxu0
    %5441 = vdwg.mxu0
    %5442 = vmatprep.subr.bf16.mxu0 %v3817
    %5443 = vmatpush1.bf16.msra.mxu0 %v3816
    %5444 = vmatprep.subr.bf16.mxu0 %v3819
    %5445 = vmatpush1.bf16.msra.mxu0 %v3818
    %5446 = vmatprep.subr.bf16.mxu0 %v3821
    %5447 = vmatpush1.bf16.msra.mxu0 %v3820
    %5448 = vmatprep.subr.bf16.mxu0 %v3823
    %5449 = vmatpush1.bf16.msra.mxu0 %v3822
    %5450 = vmatprep.subr.bf16.mxu0 %v3825
    %5451 = vmatpush1.bf16.msra.mxu0 %v3824
    %5452 = vmatprep.subr.bf16.mxu0 %v3827
    %5453 = vmatpush1.bf16.msra.mxu0 %v3826
    %5454 = vmatprep.subr.bf16.mxu0 %v3829
    %5455 = vmatpush1.bf16.msra.mxu0 %v3828
    %5456 = vmatprep.subr.bf16.mxu0 %v3831
    %5457 = vmatpush1.bf16.msra.mxu0 %v3830
    %5458 = vmatprep.subr.bf16.mxu0 %v3833
    %5459 = vmatpush1.bf16.msra.mxu0 %v3832
    %5460 = vmatprep.subr.bf16.mxu0 %v3835
    %5461 = vmatpush1.bf16.msra.mxu0 %v3834
    %5462 = vmatprep.subr.bf16.mxu0 %v3837
    %5463 = vmatpush1.bf16.msra.mxu0 %v3836
    %5464 = vmatprep.subr.bf16.mxu0 %v3839
    %5465 = vmatpush1.bf16.msra.mxu0 %v3838
    %5466 = vmatprep.subr.bf16.mxu0 %v3841
    %5467 = vmatpush1.bf16.msra.mxu0 %v3840
    %5468 = vmatprep.subr.bf16.mxu0 %v3843
    %5469 = vmatpush1.bf16.msra.mxu0 %v3842
    %5470 = vmatprep.subr.bf16.mxu0 %v3845
    %5471 = vmatpush1.bf16.msra.mxu0 %v3844
    %5472 = vmatprep.subr.bf16.mxu0 %v3847
    %5473 = vmatpush1.bf16.msra.mxu0 %v3846
    %5474 = vmatprep.mubr.bf16.mxu0 %v992
    %5475 = vmatmul.mubr.bf16.gmra.mrb[0].mxu0 %v978
    %v5476 = vpop.f32.mrb[0].mxu0
    %v5477 = vadd.f32 %v5436, %v5476
    %v5478 = vpop.f32.mrb[0].mxu0
    %v5479 = vadd.f32 %v5438, %v5478
    %v5480 = vpop.f32.mrb[0].mxu0
    %v5481 = vpop.f32.mrb[0].mxu0
    %5482 = vdwg.mxu0
    %5483 = vmatprep.subr.bf16.mxu0 %v3849
    %5484 = vmatpush1.bf16.msra.mxu0 %v3848
    %5485 = vmatprep.subr.bf16.mxu0 %v3851
    %5486 = vmatpush1.bf16.msra.mxu0 %v3850
    %5487 = vmatprep.subr.bf16.mxu0 %v3853
    %5488 = vmatpush1.bf16.msra.mxu0 %v3852
    %5489 = vmatprep.subr.bf16.mxu0 %v3855
    %5490 = vmatpush1.bf16.msra.mxu0 %v3854
    %5491 = vmatprep.subr.bf16.mxu0 %v3857
    %5492 = vmatpush1.bf16.msra.mxu0 %v3856
    %5493 = vmatprep.subr.bf16.mxu0 %v3859
    %5494 = vmatpush1.bf16.msra.mxu0 %v3858
    %5495 = vmatprep.subr.bf16.mxu0 %v3861
    %5496 = vmatpush1.bf16.msra.mxu0 %v3860
    %5497 = vmatprep.subr.bf16.mxu0 %v3863
    %5498 = vmatpush1.bf16.msra.mxu0 %v3862
    %5499 = vmatprep.subr.bf16.mxu0 %v3865
    %5500 = vmatpush1.bf16.msra.mxu0 %v3864
    %5501 = vmatprep.subr.bf16.mxu0 %v3867
    %5502 = vmatpush1.bf16.msra.mxu0 %v3866
    %5503 = vmatprep.subr.bf16.mxu0 %v3869
    %5504 = vmatpush1.bf16.msra.mxu0 %v3868
    %5505 = vmatprep.subr.bf16.mxu0 %v3871
    %5506 = vmatpush1.bf16.msra.mxu0 %v3870
    %5507 = vmatprep.subr.bf16.mxu0 %v3873
    %5508 = vmatpush1.bf16.msra.mxu0 %v3872
    %5509 = vmatprep.subr.bf16.mxu0 %v3875
    %5510 = vmatpush1.bf16.msra.mxu0 %v3874
    %5511 = vmatprep.subr.bf16.mxu0 %v3877
    %5512 = vmatpush1.bf16.msra.mxu0 %v3876
    %5513 = vmatprep.subr.bf16.mxu0 %v3879
    %5514 = vmatpush1.bf16.msra.mxu0 %v3878
    %5515 = vmatprep.mubr.bf16.mxu0 %v996
    %5516 = vmatmul.mubr.bf16.gmra.mrb[0].mxu0 %v994
    %v5517 = vpop.f32.mrb[0].mxu0
    %v5518 = vadd.f32 %v5477, %v5517
    %v5519 = vpop.f32.mrb[0].mxu0
    %v5520 = vadd.f32 %v5479, %v5519
    %v5521 = vpop.f32.mrb[0].mxu0
    %v5522 = vpop.f32.mrb[0].mxu0
    %5523 = vdwg.mxu0
    %5524 = vmatprep.subr.bf16.mxu0 %v3881
    %5525 = vmatpush1.bf16.msra.mxu0 %v3880
    %5526 = vmatprep.subr.bf16.mxu0 %v3883
    %5527 = vmatpush1.bf16.msra.mxu0 %v3882
    %5528 = vmatprep.subr.bf16.mxu0 %v3885
    %5529 = vmatpush1.bf16.msra.mxu0 %v3884
    %5530 = vmatprep.subr.bf16.mxu0 %v3887
    %5531 = vmatpush1.bf16.msra.mxu0 %v3886
    %5532 = vmatprep.subr.bf16.mxu0 %v3889
    %5533 = vmatpush1.bf16.msra.mxu0 %v3888
    %5534 = vmatprep.subr.bf16.mxu0 %v3891
    %5535 = vmatpush1.bf16.msra.mxu0 %v3890
    %5536 = vmatprep.subr.bf16.mxu0 %v3893
    %5537 = vmatpush1.bf16.msra.mxu0 %v3892
    %5538 = vmatprep.subr.bf16.mxu0 %v3895
    %5539 = vmatpush1.bf16.msra.mxu0 %v3894
    %5540 = vmatprep.subr.bf16.mxu0 %v3897
    %5541 = vmatpush1.bf16.msra.mxu0 %v3896
    %5542 = vmatprep.subr.bf16.mxu0 %v3899
    %5543 = vmatpush1.bf16.msra.mxu0 %v3898
    %5544 = vmatprep.subr.bf16.mxu0 %v3901
    %5545 = vmatpush1.bf16.msra.mxu0 %v3900
    %5546 = vmatprep.subr.bf16.mxu0 %v3903
    %5547 = vmatpush1.bf16.msra.mxu0 %v3902
    %5548 = vmatprep.subr.bf16.mxu0 %v3905
    %5549 = vmatpush1.bf16.msra.mxu0 %v3904
    %5550 = vmatprep.subr.bf16.mxu0 %v3907
    %5551 = vmatpush1.bf16.msra.mxu0 %v3906
    %5552 = vmatprep.subr.bf16.mxu0 %v3909
    %5553 = vmatpush1.bf16.msra.mxu0 %v3908
    %5554 = vmatprep.subr.bf16.mxu0 %v3911
    %5555 = vmatpush1.bf16.msra.mxu0 %v3910
    %5556 = vmatprep.mubr.bf16.mxu0 %v1034
    %5557 = vmatmul.mubr.bf16.gmra.mrb[0].mxu0 %v1020
    %v5558 = vpop.f32.mrb[0].mxu0
    %v5559 = vadd.f32 %v5518, %v5558
    %v5560 = vpop.f32.mrb[0].mxu0
    %v5561 = vadd.f32 %v5520, %v5560
    %v5562 = vpop.f32.mrb[0].mxu0
    %v5563 = vpop.f32.mrb[0].mxu0
    %5564 = vdwg.mxu0
    %5565 = vmatprep.subr.bf16.mxu0 %v3913
    %5566 = vmatpush1.bf16.msra.mxu0 %v3912
    %5567 = vmatprep.subr.bf16.mxu0 %v3915
    %5568 = vmatpush1.bf16.msra.mxu0 %v3914
    %5569 = vmatprep.subr.bf16.mxu0 %v3917
    %5570 = vmatpush1.bf16.msra.mxu0 %v3916
    %5571 = vmatprep.subr.bf16.mxu0 %v3919
    %5572 = vmatpush1.bf16.msra.mxu0 %v3918
    %5573 = vmatprep.subr.bf16.mxu0 %v3921
    %5574 = vmatpush1.bf16.msra.mxu0 %v3920
    %5575 = vmatprep.subr.bf16.mxu0 %v3923
    %5576 = vmatpush1.bf16.msra.mxu0 %v3922
    %5577 = vmatprep.subr.bf16.mxu0 %v3925
    %5578 = vmatpush1.bf16.msra.mxu0 %v3924
    %5579 = vmatprep.subr.bf16.mxu0 %v3927
    %5580 = vmatpush1.bf16.msra.mxu0 %v3926
    %5581 = vmatprep.subr.bf16.mxu0 %v3929
    %5582 = vmatpush1.bf16.msra.mxu0 %v3928
    %5583 = vmatprep.subr.bf16.mxu0 %v3931
    %5584 = vmatpush1.bf16.msra.mxu0 %v3930
    %5585 = vmatprep.subr.bf16.mxu0 %v3933
    %5586 = vmatpush1.bf16.msra.mxu0 %v3932
    %5587 = vmatprep.subr.bf16.mxu0 %v3935
    %5588 = vmatpush1.bf16.msra.mxu0 %v3934
    %5589 = vmatprep.subr.bf16.mxu0 %v3937
    %5590 = vmatpush1.bf16.msra.mxu0 %v3936
    %5591 = vmatprep.subr.bf16.mxu0 %v3939
    %5592 = vmatpush1.bf16.msra.mxu0 %v3938
    %5593 = vmatprep.subr.bf16.mxu0 %v3941
    %5594 = vmatpush1.bf16.msra.mxu0 %v3940
    %5595 = vmatprep.subr.bf16.mxu0 %v3943
    %5596 = vmatpush1.bf16.msra.mxu0 %v3942
    %5597 = vmatprep.mubr.bf16.mxu0 %v1044
    %5598 = vmatmul.mubr.bf16.gmra.mrb[0].mxu0 %v1042
    %v5599 = vpop.f32.mrb[0].mxu0
    %v5600 = vadd.f32 %v5559, %v5599
    %v5601 = vpop.f32.mrb[0].mxu0
    %v5602 = vadd.f32 %v5561, %v5601
    %v5603 = vpop.f32.mrb[0].mxu0
    %v5604 = vpop.f32.mrb[0].mxu0
    %5605 = vdwg.mxu0
    %5606 = vmatprep.subr.bf16.mxu0 %v3945
    %5607 = vmatpush1.bf16.msra.mxu0 %v3944
    %5608 = vmatprep.subr.bf16.mxu0 %v3947
    %5609 = vmatpush1.bf16.msra.mxu0 %v3946
    %5610 = vmatprep.subr.bf16.mxu0 %v3949
    %5611 = vmatpush1.bf16.msra.mxu0 %v3948
    %5612 = vmatprep.subr.bf16.mxu0 %v3951
    %5613 = vmatpush1.bf16.msra.mxu0 %v3950
    %5614 = vmatprep.subr.bf16.mxu0 %v3953
    %5615 = vmatpush1.bf16.msra.mxu0 %v3952
    %5616 = vmatprep.subr.bf16.mxu0 %v3955
    %5617 = vmatpush1.bf16.msra.mxu0 %v3954
    %5618 = vmatprep.subr.bf16.mxu0 %v3957
    %5619 = vmatpush1.bf16.msra.mxu0 %v3956
    %5620 = vmatprep.subr.bf16.mxu0 %v3959
    %5621 = vmatpush1.bf16.msra.mxu0 %v3958
    %5622 = vmatprep.subr.bf16.mxu0 %v3961
    %5623 = vmatpush1.bf16.msra.mxu0 %v3960
    %5624 = vmatprep.subr.bf16.mxu0 %v3963
    %5625 = vmatpush1.bf16.msra.mxu0 %v3962
    %5626 = vmatprep.subr.bf16.mxu0 %v3965
    %5627 = vmatpush1.bf16.msra.mxu0 %v3964
    %5628 = vmatprep.subr.bf16.mxu0 %v3967
    %5629 = vmatpush1.bf16.msra.mxu0 %v3966
    %5630 = vmatprep.subr.bf16.mxu0 %v3969
    %5631 = vmatpush1.bf16.msra.mxu0 %v3968
    %5632 = vmatprep.subr.bf16.mxu0 %v3971
    %5633 = vmatpush1.bf16.msra.mxu0 %v3970
    %5634 = vmatprep.subr.bf16.mxu0 %v3973
    %5635 = vmatpush1.bf16.msra.mxu0 %v3972
    %5636 = vmatprep.subr.bf16.mxu0 %v3975
    %5637 = vmatpush1.bf16.msra.mxu0 %v3974
    %5638 = vmatprep.mubr.bf16.mxu0 %v1041
    %5639 = vmatmul.mubr.bf16.gmra.mrb[0].mxu0 %v1027
    %v5640 = vpop.f32.mrb[0].mxu0
    %v5641 = vadd.f32 %v5600, %v5640
    %v5642 = vpop.f32.mrb[0].mxu0
    %v5643 = vadd.f32 %v5602, %v5642
    %v5644 = vpop.f32.mrb[0].mxu0
    %v5645 = vpop.f32.mrb[0].mxu0
    %5646 = vdwg.mxu0
    %5647 = vmatprep.subr.bf16.mxu0 %v3977
    %5648 = vmatpush1.bf16.msra.mxu0 %v3976
    %5649 = vmatprep.subr.bf16.mxu0 %v3979
    %5650 = vmatpush1.bf16.msra.mxu0 %v3978
    %5651 = vmatprep.subr.bf16.mxu0 %v3981
    %5652 = vmatpush1.bf16.msra.mxu0 %v3980
    %5653 = vmatprep.subr.bf16.mxu0 %v3983
    %5654 = vmatpush1.bf16.msra.mxu0 %v3982
    %5655 = vmatprep.subr.bf16.mxu0 %v3985
    %5656 = vmatpush1.bf16.msra.mxu0 %v3984
    %5657 = vmatprep.subr.bf16.mxu0 %v3987
    %5658 = vmatpush1.bf16.msra.mxu0 %v3986
    %5659 = vmatprep.subr.bf16.mxu0 %v3989
    %5660 = vmatpush1.bf16.msra.mxu0 %v3988
    %5661 = vmatprep.subr.bf16.mxu0 %v3991
    %5662 = vmatpush1.bf16.msra.mxu0 %v3990
    %5663 = vmatprep.subr.bf16.mxu0 %v3993
    %5664 = vmatpush1.bf16.msra.mxu0 %v3992
    %5665 = vmatprep.subr.bf16.mxu0 %v3995
    %5666 = vmatpush1.bf16.msra.mxu0 %v3994
    %5667 = vmatprep.subr.bf16.mxu0 %v3997
    %5668 = vmatpush1.bf16.msra.mxu0 %v3996
    %5669 = vmatprep.subr.bf16.mxu0 %v3999
    %5670 = vmatpush1.bf16.msra.mxu0 %v3998
    %5671 = vmatprep.subr.bf16.mxu0 %v4001
    %5672 = vmatpush1.bf16.msra.mxu0 %v4000
    %5673 = vmatprep.subr.bf16.mxu0 %v4003
    %5674 = vmatpush1.bf16.msra.mxu0 %v4002
    %5675 = vmatprep.subr.bf16.mxu0 %v4005
    %5676 = vmatpush1.bf16.msra.mxu0 %v4004
    %5677 = vmatprep.subr.bf16.mxu0 %v4007
    %5678 = vmatpush1.bf16.msra.mxu0 %v4006
    %5679 = vmatprep.mubr.bf16.mxu0 %v1045
    %5680 = vmatmul.mubr.bf16.gmra.mrb[0].mxu0 %v1043
    %v5681 = vpop.f32.mrb[0].mxu0
    %v5682 = vadd.f32 %v5641, %v5681
    %v5683 = vpop.f32.mrb[0].mxu0
    %v5684 = vadd.f32 %v5643, %v5683
    %v5685 = vpop.f32.mrb[0].mxu0
    %v5686 = vpop.f32.mrb[0].mxu0
    %5687 = vdwg.mxu0
    %5688 = vmatprep.subr.bf16.mxu0 %v4009
    %5689 = vmatpush1.bf16.msra.mxu0 %v4008
    %5690 = vmatprep.subr.bf16.mxu0 %v4011
    %5691 = vmatpush1.bf16.msra.mxu0 %v4010
    %5692 = vmatprep.subr.bf16.mxu0 %v4013
    %5693 = vmatpush1.bf16.msra.mxu0 %v4012
    %5694 = vmatprep.subr.bf16.mxu0 %v4015
    %5695 = vmatpush1.bf16.msra.mxu0 %v4014
    %5696 = vmatprep.subr.bf16.mxu0 %v4017
    %5697 = vmatpush1.bf16.msra.mxu0 %v4016
    %5698 = vmatprep.subr.bf16.mxu0 %v4019
    %5699 = vmatpush1.bf16.msra.mxu0 %v4018
    %5700 = vmatprep.subr.bf16.mxu0 %v4021
    %5701 = vmatpush1.bf16.msra.mxu0 %v4020
    %5702 = vmatprep.subr.bf16.mxu0 %v4023
    %5703 = vmatpush1.bf16.msra.mxu0 %v4022
    %5704 = vmatprep.subr.bf16.mxu0 %v4025
    %5705 = vmatpush1.bf16.msra.mxu0 %v4024
    %5706 = vmatprep.subr.bf16.mxu0 %v4027
    %5707 = vmatpush1.bf16.msra.mxu0 %v4026
    %5708 = vmatprep.subr.bf16.mxu0 %v4029
    %5709 = vmatpush1.bf16.msra.mxu0 %v4028
    %5710 = vmatprep.subr.bf16.mxu0 %v4031
    %5711 = vmatpush1.bf16.msra.mxu0 %v4030
    %5712 = vmatprep.subr.bf16.mxu0 %v4033
    %5713 = vmatpush1.bf16.msra.mxu0 %v4032
    %5714 = vmatprep.subr.bf16.mxu0 %v4035
    %5715 = vmatpush1.bf16.msra.mxu0 %v4034
    %5716 = vmatprep.subr.bf16.mxu0 %v4037
    %5717 = vmatpush1.bf16.msra.mxu0 %v4036
    %5718 = vmatprep.subr.bf16.mxu0 %v4039
    %5719 = vmatpush1.bf16.msra.mxu0 %v4038
    %5720 = vmatprep.mubr.bf16.mxu0 %v1083
    %5721 = vmatmul.mubr.bf16.gmra.mrb[0].mxu0 %v1069
    %v5722 = vpop.f32.mrb[0].mxu0
    %v5723 = vadd.f32 %v5682, %v5722
    %v5724 = vpop.f32.mrb[0].mxu0
    %v5725 = vadd.f32 %v5684, %v5724
    %v5726 = vpop.f32.mrb[0].mxu0
    %v5727 = vpop.f32.mrb[0].mxu0
    %5728 = vdwg.mxu0
    %5729 = vmatprep.subr.bf16.mxu0 %v4041
    %5730 = vmatpush1.bf16.msra.mxu0 %v4040
    %5731 = vmatprep.subr.bf16.mxu0 %v4043
    %5732 = vmatpush1.bf16.msra.mxu0 %v4042
    %5733 = vmatprep.subr.bf16.mxu0 %v4045
    %5734 = vmatpush1.bf16.msra.mxu0 %v4044
    %5735 = vmatprep.subr.bf16.mxu0 %v4047
    %5736 = vmatpush1.bf16.msra.mxu0 %v4046
    %5737 = vmatprep.subr.bf16.mxu0 %v4049
    %5738 = vmatpush1.bf16.msra.mxu0 %v4048
    %5739 = vmatprep.subr.bf16.mxu0 %v4051
    %5740 = vmatpush1.bf16.msra.mxu0 %v4050
    %5741 = vmatprep.subr.bf16.mxu0 %v4053
    %5742 = vmatpush1.bf16.msra.mxu0 %v4052
    %5743 = vmatprep.subr.bf16.mxu0 %v4055
    %5744 = vmatpush1.bf16.msra.mxu0 %v4054
    %5745 = vmatprep.subr.bf16.mxu0 %v4057
    %5746 = vmatpush1.bf16.msra.mxu0 %v4056
    %5747 = vmatprep.subr.bf16.mxu0 %v4059
    %5748 = vmatpush1.bf16.msra.mxu0 %v4058
    %5749 = vmatprep.subr.bf16.mxu0 %v4061
    %5750 = vmatpush1.bf16.msra.mxu0 %v4060
    %5751 = vmatprep.subr.bf16.mxu0 %v4063
    %5752 = vmatpush1.bf16.msra.mxu0 %v4062
    %5753 = vmatprep.subr.bf16.mxu0 %v4065
    %5754 = vmatpush1.bf16.msra.mxu0 %v4064
    %5755 = vmatprep.subr.bf16.mxu0 %v4067
    %5756 = vmatpush1.bf16.msra.mxu0 %v4066
    %5757 = vmatprep.subr.bf16.mxu0 %v4069
    %5758 = vmatpush1.bf16.msra.mxu0 %v4068
    %5759 = vmatprep.subr.bf16.mxu0 %v4071
    %5760 = vmatpush1.bf16.msra.mxu0 %v4070
    %5761 = vmatprep.mubr.bf16.mxu0 %v1093
    %5762 = vmatmul.mubr.bf16.gmra.mrb[0].mxu0 %v1091
    %v5763 = vpop.f32.mrb[0].mxu0
    %v5764 = vadd.f32 %v5723, %v5763
    %v5765 = vpop.f32.mrb[0].mxu0
    %v5766 = vadd.f32 %v5725, %v5765
    %v5767 = vpop.f32.mrb[0].mxu0
    %v5768 = vpop.f32.mrb[0].mxu0
    %5769 = vdwg.mxu0
    %5770 = vmatprep.subr.bf16.mxu0 %v4073
    %5771 = vmatpush1.bf16.msra.mxu0 %v4072
    %5772 = vmatprep.subr.bf16.mxu0 %v4075
    %5773 = vmatpush1.bf16.msra.mxu0 %v4074
    %5774 = vmatprep.subr.bf16.mxu0 %v4077
    %5775 = vmatpush1.bf16.msra.mxu0 %v4076
    %5776 = vmatprep.subr.bf16.mxu0 %v4079
    %5777 = vmatpush1.bf16.msra.mxu0 %v4078
    %5778 = vmatprep.subr.bf16.mxu0 %v4081
    %5779 = vmatpush1.bf16.msra.mxu0 %v4080
    %5780 = vmatprep.subr.bf16.mxu0 %v4083
    %5781 = vmatpush1.bf16.msra.mxu0 %v4082
    %5782 = vmatprep.subr.bf16.mxu0 %v4085
    %5783 = vmatpush1.bf16.msra.mxu0 %v4084
    %5784 = vmatprep.subr.bf16.mxu0 %v4087
    %5785 = vmatpush1.bf16.msra.mxu0 %v4086
    %5786 = vmatprep.subr.bf16.mxu0 %v4089
    %5787 = vmatpush1.bf16.msra.mxu0 %v4088
    %5788 = vmatprep.subr.bf16.mxu0 %v4091
    %5789 = vmatpush1.bf16.msra.mxu0 %v4090
    %5790 = vmatprep.subr.bf16.mxu0 %v4093
    %5791 = vmatpush1.bf16.msra.mxu0 %v4092
    %5792 = vmatprep.subr.bf16.mxu0 %v4095
    %5793 = vmatpush1.bf16.msra.mxu0 %v4094
    %5794 = vmatprep.subr.bf16.mxu0 %v4097
    %5795 = vmatpush1.bf16.msra.mxu0 %v4096
    %5796 = vmatprep.subr.bf16.mxu0 %v4099
    %5797 = vmatpush1.bf16.msra.mxu0 %v4098
    %5798 = vmatprep.subr.bf16.mxu0 %v4101
    %5799 = vmatpush1.bf16.msra.mxu0 %v4100
    %5800 = vmatprep.subr.bf16.mxu0 %v4103
    %5801 = vmatpush1.bf16.msra.mxu0 %v4102
    %5802 = vmatprep.mubr.bf16.mxu0 %v1090
    %5803 = vmatmul.mubr.bf16.gmra.mrb[0].mxu0 %v1076
    %v5804 = vpop.f32.mrb[0].mxu0
    %v5805 = vadd.f32 %v5764, %v5804
    %v5806 = vpop.f32.mrb[0].mxu0
    %v5807 = vadd.f32 %v5766, %v5806
    %v5808 = vpop.f32.mrb[0].mxu0
    %v5809 = vpop.f32.mrb[0].mxu0
    %5810 = vdwg.mxu0
    %5811 = vmatprep.subr.bf16.mxu0 %v4105
    %5812 = vmatpush1.bf16.msra.mxu0 %v4104
    %5813 = vmatprep.subr.bf16.mxu0 %v4107
    %5814 = vmatpush1.bf16.msra.mxu0 %v4106
    %5815 = vmatprep.subr.bf16.mxu0 %v4109
    %5816 = vmatpush1.bf16.msra.mxu0 %v4108
    %5817 = vmatprep.subr.bf16.mxu0 %v4111
    %5818 = vmatpush1.bf16.msra.mxu0 %v4110
    %5819 = vmatprep.subr.bf16.mxu0 %v4113
    %5820 = vmatpush1.bf16.msra.mxu0 %v4112
    %5821 = vmatprep.subr.bf16.mxu0 %v4115
    %5822 = vmatpush1.bf16.msra.mxu0 %v4114
    %5823 = vmatprep.subr.bf16.mxu0 %v4117
    %5824 = vmatpush1.bf16.msra.mxu0 %v4116
    %5825 = vmatprep.subr.bf16.mxu0 %v4119
    %5826 = vmatpush1.bf16.msra.mxu0 %v4118
    %5827 = vmatprep.subr.bf16.mxu0 %v4121
    %5828 = vmatpush1.bf16.msra.mxu0 %v4120
    %5829 = vmatprep.subr.bf16.mxu0 %v4123
    %5830 = vmatpush1.bf16.msra.mxu0 %v4122
    %5831 = vmatprep.subr.bf16.mxu0 %v4125
    %5832 = vmatpush1.bf16.msra.mxu0 %v4124
    %5833 = vmatprep.subr.bf16.mxu0 %v4127
    %5834 = vmatpush1.bf16.msra.mxu0 %v4126
    %5835 = vmatprep.subr.bf16.mxu0 %v4129
    %5836 = vmatpush1.bf16.msra.mxu0 %v4128
    %5837 = vmatprep.subr.bf16.mxu0 %v4131
    %5838 = vmatpush1.bf16.msra.mxu0 %v4130
    %5839 = vmatprep.subr.bf16.mxu0 %v4133
    %5840 = vmatpush1.bf16.msra.mxu0 %v4132
    %5841 = vmatprep.subr.bf16.mxu0 %v4135
    %5842 = vmatpush1.bf16.msra.mxu0 %v4134
    %5843 = vmatprep.mubr.bf16.mxu0 %v1094
    %5844 = vmatmul.mubr.bf16.gmra.mrb[0].mxu0 %v1092
    %v5845 = vpop.f32.mrb[0].mxu0
    %v5846 = vadd.f32 %v5805, %v5845
    %v5847 = vpop.f32.mrb[0].mxu0
    %v5848 = vadd.f32 %v5807, %v5847
    %v5849 = vpop.f32.mrb[0].mxu0
    %v5850 = vpop.f32.mrb[0].mxu0
    %5851 = vdwg.mxu0
    %5852 = vmatprep.subr.bf16.mxu0 %v4137
    %5853 = vmatpush1.bf16.msra.mxu0 %v4136
    %5854 = vmatprep.subr.bf16.mxu0 %v4139
    %5855 = vmatpush1.bf16.msra.mxu0 %v4138
    %5856 = vmatprep.subr.bf16.mxu0 %v4141
    %5857 = vmatpush1.bf16.msra.mxu0 %v4140
    %5858 = vmatprep.subr.bf16.mxu0 %v4143
    %5859 = vmatpush1.bf16.msra.mxu0 %v4142
    %5860 = vmatprep.subr.bf16.mxu0 %v4145
    %5861 = vmatpush1.bf16.msra.mxu0 %v4144
    %5862 = vmatprep.subr.bf16.mxu0 %v4147
    %5863 = vmatpush1.bf16.msra.mxu0 %v4146
    %5864 = vmatprep.subr.bf16.mxu0 %v4149
    %5865 = vmatpush1.bf16.msra.mxu0 %v4148
    %5866 = vmatprep.subr.bf16.mxu0 %v4151
    %5867 = vmatpush1.bf16.msra.mxu0 %v4150
    %5868 = vmatprep.subr.bf16.mxu0 %v4153
    %5869 = vmatpush1.bf16.msra.mxu0 %v4152
    %5870 = vmatprep.subr.bf16.mxu0 %v4155
    %5871 = vmatpush1.bf16.msra.mxu0 %v4154
    %5872 = vmatprep.subr.bf16.mxu0 %v4157
    %5873 = vmatpush1.bf16.msra.mxu0 %v4156
    %5874 = vmatprep.subr.bf16.mxu0 %v4159
    %5875 = vmatpush1.bf16.msra.mxu0 %v4158
    %5876 = vmatprep.subr.bf16.mxu0 %v4161
    %5877 = vmatpush1.bf16.msra.mxu0 %v4160
    %5878 = vmatprep.subr.bf16.mxu0 %v4163
    %5879 = vmatpush1.bf16.msra.mxu0 %v4162
    %5880 = vmatprep.subr.bf16.mxu0 %v4165
    %5881 = vmatpush1.bf16.msra.mxu0 %v4164
    %5882 = vmatprep.subr.bf16.mxu0 %v4167
    %5883 = vmatpush1.bf16.msra.mxu0 %v4166
    %5884 = vmatprep.mubr.bf16.mxu0 %v1132
    %5885 = vmatmul.mubr.bf16.gmra.mrb[0].mxu0 %v1118
    %v5886 = vpop.f32.mrb[0].mxu0
    %v5887 = vadd.f32 %v5846, %v5886
    %v5888 = vpop.f32.mrb[0].mxu0
    %v5889 = vadd.f32 %v5848, %v5888
    %v5890 = vpop.f32.mrb[0].mxu0
    %v5891 = vpop.f32.mrb[0].mxu0
    %5892 = vdwg.mxu0
    %5893 = vmatprep.subr.bf16.mxu0 %v4169
    %5894 = vmatpush1.bf16.msra.mxu0 %v4168
    %5895 = vmatprep.subr.bf16.mxu0 %v4171
    %5896 = vmatpush1.bf16.msra.mxu0 %v4170
    %5897 = vmatprep.subr.bf16.mxu0 %v4173
    %5898 = vmatpush1.bf16.msra.mxu0 %v4172
    %5899 = vmatprep.subr.bf16.mxu0 %v4175
    %5900 = vmatpush1.bf16.msra.mxu0 %v4174
    %5901 = vmatprep.subr.bf16.mxu0 %v4177
    %5902 = vmatpush1.bf16.msra.mxu0 %v4176
    %5903 = vmatprep.subr.bf16.mxu0 %v4179
    %5904 = vmatpush1.bf16.msra.mxu0 %v4178
    %5905 = vmatprep.subr.bf16.mxu0 %v4181
    %5906 = vmatpush1.bf16.msra.mxu0 %v4180
    %5907 = vmatprep.subr.bf16.mxu0 %v4183
    %5908 = vmatpush1.bf16.msra.mxu0 %v4182
    %5909 = vmatprep.subr.bf16.mxu0 %v4185
    %5910 = vmatpush1.bf16.msra.mxu0 %v4184
    %5911 = vmatprep.subr.bf16.mxu0 %v4187
    %5912 = vmatpush1.bf16.msra.mxu0 %v4186
    %5913 = vmatprep.subr.bf16.mxu0 %v4189
    %5914 = vmatpush1.bf16.msra.mxu0 %v4188
    %5915 = vmatprep.subr.bf16.mxu0 %v4191
    %5916 = vmatpush1.bf16.msra.mxu0 %v4190
    %5917 = vmatprep.subr.bf16.mxu0 %v4193
    %5918 = vmatpush1.bf16.msra.mxu0 %v4192
    %5919 = vmatprep.subr.bf16.mxu0 %v4195
    %5920 = vmatpush1.bf16.msra.mxu0 %v4194
    %5921 = vmatprep.subr.bf16.mxu0 %v4197
    %5922 = vmatpush1.bf16.msra.mxu0 %v4196
    %5923 = vmatprep.subr.bf16.mxu0 %v4199
    %5924 = vmatpush1.bf16.msra.mxu0 %v4198
    %5925 = vmatprep.mubr.bf16.mxu0 %v1142
    %5926 = vmatmul.mubr.bf16.gmra.mrb[0].mxu0 %v1140
    %v5927 = vpop.f32.mrb[0].mxu0
    %v5928 = vadd.f32 %v5887, %v5927
    %v5929 = vpop.f32.mrb[0].mxu0
    %v5930 = vadd.f32 %v5889, %v5929
    %v5931 = vpop.f32.mrb[0].mxu0
    %v5932 = vpop.f32.mrb[0].mxu0
    %5933 = vdwg.mxu0
    %5934 = vmatprep.subr.bf16.mxu0 %v4201
    %5935 = vmatpush1.bf16.msra.mxu0 %v4200
    %5936 = vmatprep.subr.bf16.mxu0 %v4203
    %5937 = vmatpush1.bf16.msra.mxu0 %v4202
    %5938 = vmatprep.subr.bf16.mxu0 %v4205
    %5939 = vmatpush1.bf16.msra.mxu0 %v4204
    %5940 = vmatprep.subr.bf16.mxu0 %v4207
    %5941 = vmatpush1.bf16.msra.mxu0 %v4206
    %5942 = vmatprep.subr.bf16.mxu0 %v4209
    %5943 = vmatpush1.bf16.msra.mxu0 %v4208
    %5944 = vmatprep.subr.bf16.mxu0 %v4211
    %5945 = vmatpush1.bf16.msra.mxu0 %v4210
    %5946 = vmatprep.subr.bf16.mxu0 %v4213
    %5947 = vmatpush1.bf16.msra.mxu0 %v4212
    %5948 = vmatprep.subr.bf16.mxu0 %v4215
    %5949 = vmatpush1.bf16.msra.mxu0 %v4214
    %5950 = vmatprep.subr.bf16.mxu0 %v4217
    %5951 = vmatpush1.bf16.msra.mxu0 %v4216
    %5952 = vmatprep.subr.bf16.mxu0 %v4219
    %5953 = vmatpush1.bf16.msra.mxu0 %v4218
    %5954 = vmatprep.subr.bf16.mxu0 %v4221
    %5955 = vmatpush1.bf16.msra.mxu0 %v4220
    %5956 = vmatprep.subr.bf16.mxu0 %v4223
    %5957 = vmatpush1.bf16.msra.mxu0 %v4222
    %5958 = vmatprep.subr.bf16.mxu0 %v4225
    %5959 = vmatpush1.bf16.msra.mxu0 %v4224
    %5960 = vmatprep.subr.bf16.mxu0 %v4227
    %5961 = vmatpush1.bf16.msra.mxu0 %v4226
    %5962 = vmatprep.subr.bf16.mxu0 %v4229
    %5963 = vmatpush1.bf16.msra.mxu0 %v4228
    %5964 = vmatprep.subr.bf16.mxu0 %v4231
    %5965 = vmatpush1.bf16.msra.mxu0 %v4230
    %5966 = vmatprep.mubr.bf16.mxu0 %v1139
    %5967 = vmatmul.mubr.bf16.gmra.mrb[0].mxu0 %v1125
    %v5968 = vpop.f32.mrb[0].mxu0
    %v5969 = vadd.f32 %v5928, %v5968
    %v5970 = vpop.f32.mrb[0].mxu0
    %v5971 = vadd.f32 %v5930, %v5970
    %v5972 = vpop.f32.mrb[0].mxu0
    %v5973 = vpop.f32.mrb[0].mxu0
    %5974 = vdwg.mxu0
    %5975 = vmatprep.subr.bf16.mxu0 %v4233
    %5976 = vmatpush1.bf16.msra.mxu0 %v4232
    %5977 = vmatprep.subr.bf16.mxu0 %v4235
    %5978 = vmatpush1.bf16.msra.mxu0 %v4234
    %5979 = vmatprep.subr.bf16.mxu0 %v4237
    %5980 = vmatpush1.bf16.msra.mxu0 %v4236
    %5981 = vmatprep.subr.bf16.mxu0 %v4239
    %5982 = vmatpush1.bf16.msra.mxu0 %v4238
    %5983 = vmatprep.subr.bf16.mxu0 %v4241
    %5984 = vmatpush1.bf16.msra.mxu0 %v4240
    %5985 = vmatprep.subr.bf16.mxu0 %v4243
    %5986 = vmatpush1.bf16.msra.mxu0 %v4242
    %5987 = vmatprep.subr.bf16.mxu0 %v4245
    %5988 = vmatpush1.bf16.msra.mxu0 %v4244
    %5989 = vmatprep.subr.bf16.mxu0 %v4247
    %5990 = vmatpush1.bf16.msra.mxu0 %v4246
    %5991 = vmatprep.subr.bf16.mxu0 %v4249
    %5992 = vmatpush1.bf16.msra.mxu0 %v4248
    %5993 = vmatprep.subr.bf16.mxu0 %v4251
    %5994 = vmatpush1.bf16.msra.mxu0 %v4250
    %5995 = vmatprep.subr.bf16.mxu0 %v4253
    %5996 = vmatpush1.bf16.msra.mxu0 %v4252
    %5997 = vmatprep.subr.bf16.mxu0 %v4255
    %5998 = vmatpush1.bf16.msra.mxu0 %v4254
    %5999 = vmatprep.subr.bf16.mxu0 %v4257
    %6000 = vmatpush1.bf16.msra.mxu0 %v4256
    %6001 = vmatprep.subr.bf16.mxu0 %v4259
    %6002 = vmatpush1.bf16.msra.mxu0 %v4258
    %6003 = vmatprep.subr.bf16.mxu0 %v4261
    %6004 = vmatpush1.bf16.msra.mxu0 %v4260
    %6005 = vmatprep.subr.bf16.mxu0 %v4263
    %6006 = vmatpush1.bf16.msra.mxu0 %v4262
    %6007 = vmatprep.mubr.bf16.mxu0 %v1143
    %6008 = vmatmul.mubr.bf16.gmra.mrb[0].mxu0 %v1141
    %v6009 = vpop.f32.mrb[0].mxu0
    %v6010 = vadd.f32 %v5969, %v6009
    %v6011 = vpop.f32.mrb[0].mxu0
    %v6012 = vadd.f32 %v5971, %v6011
    %v6013 = vpop.f32.mrb[0].mxu0
    %v6014 = vpop.f32.mrb[0].mxu0
    %6015 = vdwg.mxu0
    %v6016 = vmax.f32 %v6010, 0.0
    %v6017 = vmax.f32 %v6012, 0.0
    %v6018 = vld [vmem:[%s3] sm:$0xff]
    %v6019 = vld [vmem:[%s3 + $0x8] sm:$0xff]
    %v6020 = vld [vmem:[%s3 + $0x10] sm:$0xff]
    %v6021 = vld [vmem:[%s3 + $0x18] sm:$0xff]
    %v6022 = vld [vmem:[%s3 + $0x20] sm:$0xff]
    %v6023 = vld [vmem:[%s3 + $0x28] sm:$0xff]
    %v6024 = vld [vmem:[%s3 + $0x30] sm:$0xff]
    %v6025 = vld [vmem:[%s3 + $0x38] sm:$0xff]
    %v6026 = vld [vmem:[%s3 + $0x40] sm:$0xff]
    %v6027 = vld [vmem:[%s3 + $0x48] sm:$0xff]
    %v6028 = vld [vmem:[%s3 + $0x50] sm:$0xff]
    %v6029 = vld [vmem:[%s3 + $0x58] sm:$0xff]
    %v6030 = vld [vmem:[%s3 + $0x60] sm:$0xff]
    %v6031 = vld [vmem:[%s3 + $0x68] sm:$0xff]
    %v6032 = vld [vmem:[%s3 + $0x70] sm:$0xff]
    %v6033 = vld [vmem:[%s3 + $0x78] sm:$0xff]
    %v6034 = vld [vmem:[%s3 + $0x80] sm:$0xff]
    %v6035 = vld [vmem:[%s3 + $0x88] sm:$0xff]
    %v6036 = vld [vmem:[%s3 + $0x90] sm:$0xff]
    %v6037 = vld [vmem:[%s3 + $0x98] sm:$0xff]
    %v6038 = vld [vmem:[%s3 + $0xa0] sm:$0xff]
    %v6039 = vld [vmem:[%s3 + $0xa8] sm:$0xff]
    %v6040 = vld [vmem:[%s3 + $0xb0] sm:$0xff]
    %v6041 = vld [vmem:[%s3 + $0xb8] sm:$0xff]
    %v6042 = vld [vmem:[%s3 + $0xc0] sm:$0xff]
    %v6043 = vld [vmem:[%s3 + $0xc8] sm:$0xff]
    %v6044 = vld [vmem:[%s3 + $0xd0] sm:$0xff]
    %v6045 = vld [vmem:[%s3 + $0xd8] sm:$0xff]
    %v6046 = vld [vmem:[%s3 + $0xe0] sm:$0xff]
    %v6047 = vld [vmem:[%s3 + $0xe8] sm:$0xff]
    %v6048 = vld [vmem:[%s3 + $0xf0] sm:$0xff]
    %v6049 = vld [vmem:[%s3 + $0xf8] sm:$0xff]
    %v6050 = vld [vmem:[#allocation7] sm:$0x1]
    %v6052 = vlaneseq
    %v6053 = vshrl.u32 %v6052, 7
    %v6054 = vsub.s32 0, %v6053
    %v6055 = vrot.slane %v6050, %v6054
    %6057 = vmatprep.subr.mxu0 0.0
    %6058 = vmatpush1.msra.mxu0 %v6018
    %6059 = vmatprep.subr.mxu0 0.0
    %6060 = vmatpush1.msra.mxu0 %v6019
    %6061 = vmatprep.subr.mxu0 0.0
    %6062 = vmatpush1.msra.mxu0 %v6020
    %6063 = vmatprep.subr.mxu0 0.0
    %6064 = vmatpush1.msra.mxu0 %v6021
    %6065 = vmatprep.subr.mxu0 0.0
    %6066 = vmatpush1.msra.mxu0 %v6022
    %6067 = vmatprep.subr.mxu0 0.0
    %6068 = vmatpush1.msra.mxu0 %v6023
    %6069 = vmatprep.subr.mxu0 0.0
    %6070 = vmatpush1.msra.mxu0 %v6024
    %6071 = vmatprep.subr.mxu0 0.0
    %6072 = vmatpush1.msra.mxu0 %v6025
    %6073 = vmatprep.subr.mxu0 0.0
    %6074 = vmatpush1.msra.mxu0 %v6026
    %6075 = vmatprep.subr.mxu0 0.0
    %6076 = vmatpush1.msra.mxu0 %v6027
    %6077 = vmatprep.subr.mxu0 0.0
    %6078 = vmatpush1.msra.mxu0 %v6028
    %6079 = vmatprep.subr.mxu0 0.0
    %6080 = vmatpush1.msra.mxu0 %v6029
    %6081 = vmatprep.subr.mxu0 0.0
    %6082 = vmatpush1.msra.mxu0 %v6030
    %6083 = vmatprep.subr.mxu0 0.0
    %6084 = vmatpush1.msra.mxu0 %v6031
    %6085 = vmatprep.subr.mxu0 0.0
    %6086 = vmatpush1.msra.mxu0 %v6032
    %6087 = vmatprep.subr.mxu0 0.0
    %6088 = vmatpush1.msra.mxu0 %v6033
    %6089 = vmatprep.subr.mxu0 0.0
    %6090 = vmatpush1.msra.mxu0 %v6034
    %6091 = vmatprep.subr.mxu0 0.0
    %6092 = vmatpush1.msra.mxu0 %v6035
    %6093 = vmatprep.subr.mxu0 0.0
    %6094 = vmatpush1.msra.mxu0 %v6036
    %6095 = vmatprep.subr.mxu0 0.0
    %6096 = vmatpush1.msra.mxu0 %v6037
    %6097 = vmatprep.subr.mxu0 0.0
    %6098 = vmatpush1.msra.mxu0 %v6038
    %6099 = vmatprep.subr.mxu0 0.0
    %6100 = vmatpush1.msra.mxu0 %v6039
    %6101 = vmatprep.subr.mxu0 0.0
    %6102 = vmatpush1.msra.mxu0 %v6040
    %6103 = vmatprep.subr.mxu0 0.0
    %6104 = vmatpush1.msra.mxu0 %v6041
    %6105 = vmatprep.subr.mxu0 0.0
    %6106 = vmatpush1.msra.mxu0 %v6042
    %6107 = vmatprep.subr.mxu0 0.0
    %6108 = vmatpush1.msra.mxu0 %v6043
    %6109 = vmatprep.subr.mxu0 0.0
    %6110 = vmatpush1.msra.mxu0 %v6044
    %6111 = vmatprep.subr.mxu0 0.0
    %6112 = vmatpush1.msra.mxu0 %v6045
    %6113 = vmatprep.subr.mxu0 0.0
    %6114 = vmatpush1.msra.mxu0 %v6046
    %6115 = vmatprep.subr.mxu0 0.0
    %6116 = vmatpush1.msra.mxu0 %v6047
    %6117 = vmatprep.subr.mxu0 0.0
    %6118 = vmatpush1.msra.mxu0 %v6048
    %6119 = vmatprep.subr.mxu0 0.0
    %6120 = vmatpush1.msra.mxu0 %v6049
    %6121 = vmatprep.mubr.f32.mxu0 %v6017
    %6122 = vmatmul.mubr.f32.gmra.mrb[0].mxu0 %v6016
    %v6123 = vpop.f32.mrb[0].mxu0
    %v6124 = vadd.f32 %v6055, %v6123
    %v6125 = vpop.f32.mrb[0].mxu0
    %6126 = vdwg.mxu0
    %vm6127 = vcmask 25600
    %v6128 = vsel %vm6127, %v6124, 0.0
    %6129 = vadd.xlane.f32.xlu0 %v6128
    %v6130 = vpop.xlane.xlu0 %6129
    %v6131 = vrcp.pop 4.0
    %v6132 = vmul.f32 %v6130, %v6131
    %v6133 = vsub.f32 %v6124, %v6132
    %6135 = vset.pattern.permute.xlu0 4
    %6136 = vperm.xlu0 %6135, %v6124
    %v6137 = vpop.permute.xlu0 %6136
    %v6139 = vadd.f32 %v6137, %v6133
    %6140 = vst.msk [vmem:[#allocation8] sm:$0x3] %vm6127, %v6139
    // Predicated region
    $region34: #{forward.3} parent=1 // pred_check
      _
    $region35: #{forward.3} parent=1 // pred_check_branch
      %6142 = sbr.rel (0) target = $region37
    $region36: #{forward.3} parent=1 // pred_region
      %s6144 = ssub.s32 32, 32
      %6145 = vsyncadd [#allocation4], %s6144
      %s6147 = sshll.u32 [#allocation8], 4
      %s6148 = int_to_ptr.vmem [resolvable:$true] %s6147
      %6150 = dma.vmem_to_hbm [thread:$0]  %s6148, 32, %s5, [#allocation4]
    $region37: #{forward.3} parent=1 // pred_fallthru
      _
    // Predicated region
    $region38: #{forward.3} parent=1 // pred_check
      _
    $region39: #{forward.3} parent=1 // pred_check_branch
      %6152 = sbr.rel (0) target = $region41
    $region40: #{forward.3} parent=1 // pred_region
      %6153 = dma.done [#allocation4], 32
    $region41: #{forward.3} parent=1 // pred_fallthru
      _
    %6154 = vsyncpa [#allocation3], 1
    %6155 = vsyncpa [#allocation6], 1
    %6156 = vsyncpa [#allocation4], 1

</llo_original>
